<compile_context>
chip_gen: v7x
topology: tpu7x:2x2x1
jax: 0.10.0
libtpu: 0.0.40
codegen_flags: <defaults>
</compile_context>

<pallas_src>
import math

import jax
import jax.numpy as jnp
from jax import lax
from jax.experimental import pallas as pl
from jax.experimental.pallas import tpu as pltpu

# ----------------------------- configuration --------------------------------
B = 2                 # batch
N_CHANS = 4           # EEG channels
SFREQ = 32.0          # small sfreq so kernel sizes stay small
N_TIMES = 128         # 4 s window at 32 Hz
N_CONV_CHS = 8
N_OUTPUTS = 5

TIME_CONV_SIZE = math.ceil(0.5 * SFREQ)    # 16
MAX_POOL = math.ceil(0.125 * SFREQ)        # 4
PAD = math.ceil(0.25 * SFREQ)              # 8

T1 = N_TIMES + 2 * PAD - (TIME_CONV_SIZE - 1)    # 129 true conv1 output length
T2 = T1 // MAX_POOL                              # 32  pool1 output length
T3 = T2 + 2 * PAD - (TIME_CONV_SIZE - 1)         # 33  true conv2 output length
T4 = T3 // MAX_POOL                              # 8   pool2 output length
R = B * N_CHANS                                  # 8   fused (batch, eeg_chan) rows
LEN_LAST = N_CONV_CHS * N_CHANS * T4             # 256 flattened feature size

# ---------------- flat-layout geometry used inside the kernel ----------------
T1E = T2 * MAX_POOL                    # 128: conv1 samples actually consumed by pool1
SEG1 = N_TIMES + 2 * PAD               # 144: per-row segment of the padded conv1 input
M1 = R * SEG1                          # 1152: conv1 output width (flat)
PW1 = M1 + TIME_CONV_SIZE              # 1168: padded conv1-input buffer width
WP1 = M1 - (MAX_POOL - 1)              # 1149: pool1 (full-rate window max) width

SEG2 = T2 + 2 * PAD                    # 48:  per-row padded conv2 input (down-sampled units)
SEG2F = MAX_POOL * SEG2                # 192: per-row segment in the full-rate conv2 layout
M2 = R * SEG2F                         # 1536: conv2 output width (flat, full-rate)
PW2 = 1664                             # conv2 input buffer width (>= M2 + 4*(K-1) = 1596)
WM2 = M2 - MAX_POOL * (MAX_POOL - 1)   # 1524: pool2 (full-rate window max) width
PER_B = N_CHANS * SEG2F                # 768: lanes per batch element in the flat layout
POOL2_STRIDE = MAX_POOL * MAX_POOL     # 16: full-rate stride between consecutive pool2 samples
WFIN = (N_CHANS - 1) * SEG2F + T4 * POOL2_STRIDE   # 704: final-layer reduction width


# ------------------------------ Pallas kernel --------------------------------
def fused_forward_kernel(x_ref, ws_ref, bs_ref, w1_ref, b1_ref, w2_ref, b2_ref,
                         wmap_ref, bfc_ref, out_ref, pad1, pp, x2s):
    """Fused forward pass, all compute in f32.

    x_ref   : (B, N_CHANS, N_TIMES)
    ws_ref  : (N_CHANS, N_CHANS)       spatial conv weight [out, in]
    bs_ref  : (N_CHANS, 1)
    w1_ref  : (C, K)                   temporal conv1 weight
    b1_ref  : (C, 1)
    w2_ref  : (C, C*K)                 conv2 weight remapped to [oc, k*C + ic]
    b2_ref  : (C, 1)
    wmap_ref: (N_OUTPUTS, C, WFIN)     final-layer weight remapped onto the flat layout
    bfc_ref : (1, N_OUTPUTS)
    out_ref : (B, N_OUTPUTS)
    pad1    : VMEM (8, PW1)   zero-padded spatial-conv output, replicated over sublanes
    pp      : VMEM (8, PW2)   zero-padded full-rate pool1 output, sublane = conv channel
    x2s     : VMEM (C*K, M2)  conv2 im2col staging buffer
    """
    f32 = jnp.float32
    hi = lax.Precision.HIGHEST   # tiny matmuls, MXU is idle -> keep f32-exact for free

    # ---- stage 0: spatial conv (channel mixing), scattered into the flat padded layout ----
    # (full-buffer zero init is only ~10 vector stores here; the interior is overwritten)
    pad1[...] = jnp.zeros_like(pad1)
    ws = ws_ref[...]
    bs = bs_ref[...]
    for b in range(B):
        yb = jnp.dot(ws, x_ref[b], preferred_element_type=f32, precision=hi) + bs  # (4, 128)
        for j in range(N_CHANS):
            off = (b * N_CHANS + j) * SEG1 + PAD
            # replicate the row over all 8 sublanes so every conv1 tap is a full-vreg FMA
            pad1[:, off:off + N_TIMES] = jnp.broadcast_to(yb[j:j + 1, :],
                                                          (N_CONV_CHS, N_TIMES))

    # ---- stage 1: temporal conv1 (16 taps on the VPU) + bias + ReLU ------------------------
    xp = pad1[...]                                           # (8, PW1), identical sublanes
    w1 = w1_ref[...]                                         # (8, 16)
    acc = w1[:, 0:1] * xp[:, 0:M1]
    for k in range(1, TIME_CONV_SIZE):
        acc = acc + w1[:, k:k + 1] * xp[:, k:k + M1]         # sublane c += w1[c,k]*signal[m+k]
    acc = jnp.maximum(acc + b1_ref[...], 0.0)                # (8, 1152)

    # ---- pool1: full-rate running window max (down-sample folded into conv2 dilation) ------
    p1 = acc[:, 0:WP1]
    for j in range(1, MAX_POOL):
        p1 = jnp.maximum(p1, acc[:, j:j + WP1])              # (8, 1149)

    # ---- repack rows into the zero-padded full-rate conv2 input layout ---------------------
    pp[...] = jnp.zeros_like(pp)
    for r in range(R):
        src = r * SEG1
        dst = r * SEG2F + MAX_POOL * PAD
        pp[:, dst:dst + T1E] = p1[:, src:src + T1E]

    # ---- stage 2: conv2 as ONE MXU matmul over a 16-tap dilated im2col ---------------------
    ppv = pp[...]                                            # (8, PW2)
    for k in range(TIME_CONV_SIZE):
        x2s[N_CONV_CHS * k:N_CONV_CHS * (k + 1), :] = ppv[:, MAX_POOL * k:MAX_POOL * k + M2]
    c2 = jnp.dot(w2_ref[...], x2s[...],
                 preferred_element_type=f32, precision=hi)   # (8, 128) @ (128, 1536)
    c2 = jnp.maximum(c2 + b2_ref[...], 0.0)                  # (8, 1536)

    # ---- pool2: full-rate window max with dilation MAX_POOL --------------------------------
    m2 = c2[:, 0:WM2]
    for j in range(1, MAX_POOL):
        m2 = jnp.maximum(m2, c2[:, MAX_POOL * j:MAX_POOL * j + WM2])   # (8, 1524)

    # ---- final linear: masked f32 reduction against host-remapped weights ------------------
    # TODO(synk): Dropout(p=0.25) before the dense layer is identity at inference.
    wmap = wmap_ref[...]                                     # (5, 8, WFIN)
    bfc = bfc_ref[...]                                       # (1, 5)
    for b in range(B):
        pb = m2[:, b * PER_B:b * PER_B + WFIN]               # (8, WFIN)
        s = jnp.sum(pb[None, :, :] * wmap, axis=2)           # (5, 8)
        s = jnp.sum(s, axis=1, keepdims=True)                # (5, 1)
        out_ref[b:b + 1, :] = s.T + bfc


# ------------------------------ wrapper (glue) --------------------------------
@jax.jit
def sleep_stager_forward(x, params):
    ws, bs, w1, b1, w2, b2, wfc, bfc = params

    # conv2 weight remapped to the im2col row order [oc, k*C + ic]
    w2km = jnp.transpose(w2, (0, 2, 1)).reshape(N_CONV_CHS, N_CONV_CHS * TIME_CONV_SIZE)

    # final-layer weight remapped onto the kernel's full-rate flat feature layout:
    # pooled feature (oc, h, p) lives at lane  h*SEG2F + p*POOL2_STRIDE  of batch segment b.
    wfc_r = wfc.reshape(N_OUTPUTS, N_CONV_CHS, N_CHANS, T4)
    lane_idx = (jnp.arange(N_CHANS)[:, None] * SEG2F
                + jnp.arange(T4)[None, :] * POOL2_STRIDE)            # (4, 8)
    wmap = jnp.zeros((N_OUTPUTS, N_CONV_CHS, WFIN), jnp.float32)
    wmap = wmap.at[:, :, lane_idx].set(wfc_r)

    vmem = pltpu.MemorySpace.VMEM
    out = pl.pallas_call(
        fused_forward_kernel,
        out_shape=jax.ShapeDtypeStruct((B, N_OUTPUTS), jnp.float32),
        in_specs=[pl.BlockSpec(memory_space=vmem) for _ in range(9)],
        out_specs=pl.BlockSpec(memory_space=vmem),
        scratch_shapes=[
            pltpu.VMEM((N_CONV_CHS, PW1), jnp.float32),
            pltpu.VMEM((N_CONV_CHS, PW2), jnp.float32),
            pltpu.VMEM((N_CONV_CHS * TIME_CONV_SIZE, M2), jnp.float32),
        ],
    )(x.astype(jnp.float32), ws, bs.reshape(N_CHANS, 1),
      w1, b1.reshape(N_CONV_CHS, 1), w2km, b2.reshape(N_CONV_CHS, 1),
      wmap, bfc.reshape(1, N_OUTPUTS))
    return out


# ---------------------------- pure-JAX reference ------------------------------
def reference_forward(x, params):
    ws, bs, w1, b1, w2, b2, wfc, bfc = params
    hp = lax.Precision.HIGHEST
    y = jnp.einsum('oc,bct->bot', ws, x, precision=hp) + bs[None, :, None]   # spatial conv
    z = y[:, None, :, :]                                                     # (B,1,nch,T)
    z = lax.conv_general_dilated(z, w1[:, None, None, :], (1, 1),
                                 ((0, 0), (PAD, PAD)),
                                 dimension_numbers=('NCHW', 'OIHW', 'NCHW'),
                                 precision=hp) + b1[None, :, None, None]
    z = jnp.maximum(z, 0.0)
    z = z[..., :T2 * MAX_POOL].reshape(B, N_CONV_CHS, N_CHANS, T2, MAX_POOL).max(-1)
    z = lax.conv_general_dilated(z, w2[:, :, None, :], (1, 1),
                                 ((0, 0), (PAD, PAD)),
                                 dimension_numbers=('NCHW', 'OIHW', 'NCHW'),
                                 precision=hp) + b2[None, :, None, None]
    z = jnp.maximum(z, 0.0)
    z = z[..., :T4 * MAX_POOL].reshape(B, N_CONV_CHS, N_CHANS, T4, MAX_POOL).max(-1)
    feats = z.reshape(B, LEN_LAST)
    return jnp.dot(feats, wfc.T, precision=hp) + bfc[None, :]


# ----------------------------------- main -------------------------------------
if __name__ == "__main__":
    key = jax.random.PRNGKey(0)
    keys = jax.random.split(key, 9)

    x = jax.random.normal(keys[0], (B, N_CHANS, N_TIMES), jnp.float32)
    ws = 0.1 * jax.random.normal(keys[1], (N_CHANS, N_CHANS), jnp.float32)
    bs = 0.1 * jax.random.normal(keys[2], (N_CHANS,), jnp.float32)
    w1 = 0.1 * jax.random.normal(keys[3], (N_CONV_CHS, TIME_CONV_SIZE), jnp.float32)
    b1 = 0.1 * jax.random.normal(keys[4], (N_CONV_CHS,), jnp.float32)
    w2 = 0.1 * jax.random.normal(keys[5], (N_CONV_CHS, N_CONV_CHS, TIME_CONV_SIZE), jnp.float32)
    b2 = 0.1 * jax.random.normal(keys[6], (N_CONV_CHS,), jnp.float32)
    wfc = 0.1 * jax.random.normal(keys[7], (N_OUTPUTS, LEN_LAST), jnp.float32)
    bfc = 0.1 * jax.random.normal(keys[8], (N_OUTPUTS,), jnp.float32)
    params = (ws, bs, w1, b1, w2, b2, wfc, bfc)

    out = sleep_stager_forward(x, params)
    out = jax.block_until_ready(out)
    assert out.shape == (B, N_OUTPUTS), out.shape

    ref = jax.block_until_ready(reference_forward(x, params))
    max_err = float(jnp.max(jnp.abs(out - ref)))
    assert max_err < 1e-3, f"mismatch vs reference: {max_err}"

    print("KERNEL_OK")
</pallas_src>

<mosaic_0001>
module attributes {stable_mosaic.version = 11 : i64} {
  func.func @fused_forward_kernel(%arg0: memref<2x4x128xf32, #tpu.memory_space<vmem>>, %arg1: memref<4x4xf32, #tpu.memory_space<vmem>>, %arg2: memref<4x1xf32, #tpu.memory_space<vmem>>, %arg3: memref<8x16xf32, #tpu.memory_space<vmem>>, %arg4: memref<8x1xf32, #tpu.memory_space<vmem>>, %arg5: memref<8x128xf32, #tpu.memory_space<vmem>>, %arg6: memref<8x1xf32, #tpu.memory_space<vmem>>, %arg7: memref<5x8x704xf32, #tpu.memory_space<vmem>>, %arg8: memref<1x5xf32, #tpu.memory_space<vmem>>, %arg9: memref<2x5xf32, #tpu.memory_space<vmem>>, %arg10: memref<8x1168xf32, #tpu.memory_space<vmem>>, %arg11: memref<8x1664xf32, #tpu.memory_space<vmem>>, %arg12: memref<128x1536xf32, #tpu.memory_space<vmem>>) attributes {dimension_semantics = [], scalar_prefetch = 0 : i64, scratch_operands = 3 : i64, tpu.core_type = #tpu.core_type<tc>} {
    %cst = arith.constant 0.000000e+00 : f32
    %0 = vector.broadcast %cst : f32 to vector<8x1168xf32>
    %c0 = arith.constant 0 : index
    %c0_0 = arith.constant 0 : index
    %1 = vector.load %arg10[%c0, %c0_0] : memref<8x1168xf32, #tpu.memory_space<vmem>>, vector<8x1168xf32>
    tpu.vector_store %arg10[%c0, %c0_0], %0 {strides = array<i32>} : memref<8x1168xf32, #tpu.memory_space<vmem>>, vector<8x1168xf32>,
    %c0_1 = arith.constant 0 : index
    %c0_2 = arith.constant 0 : index
    %2 = vector.load %arg1[%c0_1, %c0_2] : memref<4x4xf32, #tpu.memory_space<vmem>>, vector<4x4xf32>
    %c0_3 = arith.constant 0 : index
    %c0_4 = arith.constant 0 : index
    %3 = vector.load %arg2[%c0_3, %c0_4] : memref<4x1xf32, #tpu.memory_space<vmem>>, vector<4x1xf32>
    %c0_5 = arith.constant 0 : index
    %c0_6 = arith.constant 0 : index
    %c0_7 = arith.constant 0 : index
    %4 = vector.load %arg0[%c0_5, %c0_6, %c0_7] : memref<2x4x128xf32, #tpu.memory_space<vmem>>, vector<1x4x128xf32>
    %5 = vector.shape_cast %4 : vector<1x4x128xf32> to vector<4x128xf32>
    %cst_8 = arith.constant dense<0.000000e+00> : vector<4x128xf32>
    %6 = tpu.matmul %2, %5, %cst_8 {dimension_numbers = #tpu.dot_dimension_numbers<[1], [0], [0], [1], [0, 0, 1, 1], [], []>, precision = #tpu.contract_precision<fp32>} : vector<4x4xf32>, vector<4x128xf32>, vector<4x128xf32> -> vector<4x128xf32>
    %7 = vector.broadcast %3 : vector<4x1xf32> to vector<4x128xf32>
    %8 = arith.addf %6, %7 : vector<4x128xf32>
    %9 = vector.extract_strided_slice %8 {offsets = [0, 0], sizes = [1, 128], strides = [1, 1]} : vector<4x128xf32> to vector<1x128xf32>
    %10 = vector.shape_cast %9 : vector<1x128xf32> to vector<1x128xf32>
    %11 = vector.broadcast %10 : vector<1x128xf32> to vector<8x128xf32>
    %c0_9 = arith.constant 0 : index
    %c8 = arith.constant 8 : index
    %12 = vector.load %arg10[%c0_9, %c8] : memref<8x1168xf32, #tpu.memory_space<vmem>>, vector<8x128xf32>
    tpu.vector_store %arg10[%c0_9, %c8], %11 {strides = array<i32>} : memref<8x1168xf32, #tpu.memory_space<vmem>>, vector<8x128xf32>,
    %13 = vector.extract_strided_slice %8 {offsets = [1, 0], sizes = [1, 128], strides = [1, 1]} : vector<4x128xf32> to vector<1x128xf32>
    %14 = vector.shape_cast %13 : vector<1x128xf32> to vector<1x128xf32>
    %15 = vector.broadcast %14 : vector<1x128xf32> to vector<8x128xf32>
    %c0_10 = arith.constant 0 : index
    %c152 = arith.constant 152 : index
    %16 = vector.load %arg10[%c0_10, %c152] : memref<8x1168xf32, #tpu.memory_space<vmem>>, vector<8x128xf32>
    tpu.vector_store %arg10[%c0_10, %c152], %15 {strides = array<i32>} : memref<8x1168xf32, #tpu.memory_space<vmem>>, vector<8x128xf32>,
    %17 = vector.extract_strided_slice %8 {offsets = [2, 0], sizes = [1, 128], strides = [1, 1]} : vector<4x128xf32> to vector<1x128xf32>
    %18 = vector.shape_cast %17 : vector<1x128xf32> to vector<1x128xf32>
    %19 = vector.broadcast %18 : vector<1x128xf32> to vector<8x128xf32>
    %c0_11 = arith.constant 0 : index
    %c296 = arith.constant 296 : index
    %20 = vector.load %arg10[%c0_11, %c296] : memref<8x1168xf32, #tpu.memory_space<vmem>>, vector<8x128xf32>
    tpu.vector_store %arg10[%c0_11, %c296], %19 {strides = array<i32>} : memref<8x1168xf32, #tpu.memory_space<vmem>>, vector<8x128xf32>,
    %21 = vector.extract_strided_slice %8 {offsets = [3, 0], sizes = [1, 128], strides = [1, 1]} : vector<4x128xf32> to vector<1x128xf32>
    %22 = vector.shape_cast %21 : vector<1x128xf32> to vector<1x128xf32>
    %23 = vector.broadcast %22 : vector<1x128xf32> to vector<8x128xf32>
    %c0_12 = arith.constant 0 : index
    %c440 = arith.constant 440 : index
    %24 = vector.load %arg10[%c0_12, %c440] : memref<8x1168xf32, #tpu.memory_space<vmem>>, vector<8x128xf32>
    tpu.vector_store %arg10[%c0_12, %c440], %23 {strides = array<i32>} : memref<8x1168xf32, #tpu.memory_space<vmem>>, vector<8x128xf32>,
    %c1 = arith.constant 1 : index
    %c0_13 = arith.constant 0 : index
    %c0_14 = arith.constant 0 : index
    %25 = vector.load %arg0[%c1, %c0_13, %c0_14] : memref<2x4x128xf32, #tpu.memory_space<vmem>>, vector<1x4x128xf32>
    %26 = vector.shape_cast %25 : vector<1x4x128xf32> to vector<4x128xf32>
    %cst_15 = arith.constant dense<0.000000e+00> : vector<4x128xf32>
    %27 = tpu.matmul %2, %26, %cst_15 {dimension_numbers = #tpu.dot_dimension_numbers<[1], [0], [0], [1], [0, 0, 1, 1], [], []>, precision = #tpu.contract_precision<fp32>} : vector<4x4xf32>, vector<4x128xf32>, vector<4x128xf32> -> vector<4x128xf32>
    %28 = vector.broadcast %3 : vector<4x1xf32> to vector<4x128xf32>
    %29 = arith.addf %27, %28 : vector<4x128xf32>
    %30 = vector.extract_strided_slice %29 {offsets = [0, 0], sizes = [1, 128], strides = [1, 1]} : vector<4x128xf32> to vector<1x128xf32>
    %31 = vector.shape_cast %30 : vector<1x128xf32> to vector<1x128xf32>
    %32 = vector.broadcast %31 : vector<1x128xf32> to vector<8x128xf32>
    %c0_16 = arith.constant 0 : index
    %c584 = arith.constant 584 : index
    %33 = vector.load %arg10[%c0_16, %c584] : memref<8x1168xf32, #tpu.memory_space<vmem>>, vector<8x128xf32>
    tpu.vector_store %arg10[%c0_16, %c584], %32 {strides = array<i32>} : memref<8x1168xf32, #tpu.memory_space<vmem>>, vector<8x128xf32>,
    %34 = vector.extract_strided_slice %29 {offsets = [1, 0], sizes = [1, 128], strides = [1, 1]} : vector<4x128xf32> to vector<1x128xf32>
    %35 = vector.shape_cast %34 : vector<1x128xf32> to vector<1x128xf32>
    %36 = vector.broadcast %35 : vector<1x128xf32> to vector<8x128xf32>
    %c0_17 = arith.constant 0 : index
    %c728 = arith.constant 728 : index
    %37 = vector.load %arg10[%c0_17, %c728] : memref<8x1168xf32, #tpu.memory_space<vmem>>, vector<8x128xf32>
    tpu.vector_store %arg10[%c0_17, %c728], %36 {strides = array<i32>} : memref<8x1168xf32, #tpu.memory_space<vmem>>, vector<8x128xf32>,
    %38 = vector.extract_strided_slice %29 {offsets = [2, 0], sizes = [1, 128], strides = [1, 1]} : vector<4x128xf32> to vector<1x128xf32>
    %39 = vector.shape_cast %38 : vector<1x128xf32> to vector<1x128xf32>
    %40 = vector.broadcast %39 : vector<1x128xf32> to vector<8x128xf32>
    %c0_18 = arith.constant 0 : index
    %c872 = arith.constant 872 : index
    %41 = vector.load %arg10[%c0_18, %c872] : memref<8x1168xf32, #tpu.memory_space<vmem>>, vector<8x128xf32>
    tpu.vector_store %arg10[%c0_18, %c872], %40 {strides = array<i32>} : memref<8x1168xf32, #tpu.memory_space<vmem>>, vector<8x128xf32>,
    %42 = vector.extract_strided_slice %29 {offsets = [3, 0], sizes = [1, 128], strides = [1, 1]} : vector<4x128xf32> to vector<1x128xf32>
    %43 = vector.shape_cast %42 : vector<1x128xf32> to vector<1x128xf32>
    %44 = vector.broadcast %43 : vector<1x128xf32> to vector<8x128xf32>
    %c0_19 = arith.constant 0 : index
    %c1016 = arith.constant 1016 : index
    %45 = vector.load %arg10[%c0_19, %c1016] : memref<8x1168xf32, #tpu.memory_space<vmem>>, vector<8x128xf32>
    tpu.vector_store %arg10[%c0_19, %c1016], %44 {strides = array<i32>} : memref<8x1168xf32, #tpu.memory_space<vmem>>, vector<8x128xf32>,
    %c0_20 = arith.constant 0 : index
    %c0_21 = arith.constant 0 : index
    %46 = vector.load %arg10[%c0_20, %c0_21] : memref<8x1168xf32, #tpu.memory_space<vmem>>, vector<8x1168xf32>
    %c0_22 = arith.constant 0 : index
    %c0_23 = arith.constant 0 : index
    %47 = vector.load %arg3[%c0_22, %c0_23] : memref<8x16xf32, #tpu.memory_space<vmem>>, vector<8x16xf32>
    %48 = vector.extract_strided_slice %47 {offsets = [0, 0], sizes = [8, 1], strides = [1, 1]} : vector<8x16xf32> to vector<8x1xf32>
    %49 = vector.extract_strided_slice %46 {offsets = [0, 0], sizes = [8, 1152], strides = [1, 1]} : vector<8x1168xf32> to vector<8x1152xf32>
    %50 = vector.broadcast %48 : vector<8x1xf32> to vector<8x1152xf32>
    %51 = arith.mulf %50, %49 : vector<8x1152xf32>
    %52 = vector.extract_strided_slice %47 {offsets = [0, 1], sizes = [8, 1], strides = [1, 1]} : vector<8x16xf32> to vector<8x1xf32>
    %53 = vector.extract_strided_slice %46 {offsets = [0, 1], sizes = [8, 1152], strides = [1, 1]} : vector<8x1168xf32> to vector<8x1152xf32>
    %54 = vector.broadcast %52 : vector<8x1xf32> to vector<8x1152xf32>
    %55 = arith.mulf %54, %53 : vector<8x1152xf32>
    %56 = arith.addf %51, %55 : vector<8x1152xf32>
    %57 = vector.extract_strided_slice %47 {offsets = [0, 2], sizes = [8, 1], strides = [1, 1]} : vector<8x16xf32> to vector<8x1xf32>
    %58 = vector.extract_strided_slice %46 {offsets = [0, 2], sizes = [8, 1152], strides = [1, 1]} : vector<8x1168xf32> to vector<8x1152xf32>
    %59 = vector.broadcast %57 : vector<8x1xf32> to vector<8x1152xf32>
    %60 = arith.mulf %59, %58 : vector<8x1152xf32>
    %61 = arith.addf %56, %60 : vector<8x1152xf32>
    %62 = vector.extract_strided_slice %47 {offsets = [0, 3], sizes = [8, 1], strides = [1, 1]} : vector<8x16xf32> to vector<8x1xf32>
    %63 = vector.extract_strided_slice %46 {offsets = [0, 3], sizes = [8, 1152], strides = [1, 1]} : vector<8x1168xf32> to vector<8x1152xf32>
    %64 = vector.broadcast %62 : vector<8x1xf32> to vector<8x1152xf32>
    %65 = arith.mulf %64, %63 : vector<8x1152xf32>
    %66 = arith.addf %61, %65 : vector<8x1152xf32>
    %67 = vector.extract_strided_slice %47 {offsets = [0, 4], sizes = [8, 1], strides = [1, 1]} : vector<8x16xf32> to vector<8x1xf32>
    %68 = vector.extract_strided_slice %46 {offsets = [0, 4], sizes = [8, 1152], strides = [1, 1]} : vector<8x1168xf32> to vector<8x1152xf32>
    %69 = vector.broadcast %67 : vector<8x1xf32> to vector<8x1152xf32>
    %70 = arith.mulf %69, %68 : vector<8x1152xf32>
    %71 = arith.addf %66, %70 : vector<8x1152xf32>
    %72 = vector.extract_strided_slice %47 {offsets = [0, 5], sizes = [8, 1], strides = [1, 1]} : vector<8x16xf32> to vector<8x1xf32>
    %73 = vector.extract_strided_slice %46 {offsets = [0, 5], sizes = [8, 1152], strides = [1, 1]} : vector<8x1168xf32> to vector<8x1152xf32>
    %74 = vector.broadcast %72 : vector<8x1xf32> to vector<8x1152xf32>
    %75 = arith.mulf %74, %73 : vector<8x1152xf32>
    %76 = arith.addf %71, %75 : vector<8x1152xf32>
    %77 = vector.extract_strided_slice %47 {offsets = [0, 6], sizes = [8, 1], strides = [1, 1]} : vector<8x16xf32> to vector<8x1xf32>
    %78 = vector.extract_strided_slice %46 {offsets = [0, 6], sizes = [8, 1152], strides = [1, 1]} : vector<8x1168xf32> to vector<8x1152xf32>
    %79 = vector.broadcast %77 : vector<8x1xf32> to vector<8x1152xf32>
    %80 = arith.mulf %79, %78 : vector<8x1152xf32>
    %81 = arith.addf %76, %80 : vector<8x1152xf32>
    %82 = vector.extract_strided_slice %47 {offsets = [0, 7], sizes = [8, 1], strides = [1, 1]} : vector<8x16xf32> to vector<8x1xf32>
    %83 = vector.extract_strided_slice %46 {offsets = [0, 7], sizes = [8, 1152], strides = [1, 1]} : vector<8x1168xf32> to vector<8x1152xf32>
    %84 = vector.broadcast %82 : vector<8x1xf32> to vector<8x1152xf32>
    %85 = arith.mulf %84, %83 : vector<8x1152xf32>
    %86 = arith.addf %81, %85 : vector<8x1152xf32>
    %87 = vector.extract_strided_slice %47 {offsets = [0, 8], sizes = [8, 1], strides = [1, 1]} : vector<8x16xf32> to vector<8x1xf32>
    %88 = vector.extract_strided_slice %46 {offsets = [0, 8], sizes = [8, 1152], strides = [1, 1]} : vector<8x1168xf32> to vector<8x1152xf32>
    %89 = vector.broadcast %87 : vector<8x1xf32> to vector<8x1152xf32>
    %90 = arith.mulf %89, %88 : vector<8x1152xf32>
    %91 = arith.addf %86, %90 : vector<8x1152xf32>
    %92 = vector.extract_strided_slice %47 {offsets = [0, 9], sizes = [8, 1], strides = [1, 1]} : vector<8x16xf32> to vector<8x1xf32>
    %93 = vector.extract_strided_slice %46 {offsets = [0, 9], sizes = [8, 1152], strides = [1, 1]} : vector<8x1168xf32> to vector<8x1152xf32>
    %94 = vector.broadcast %92 : vector<8x1xf32> to vector<8x1152xf32>
    %95 = arith.mulf %94, %93 : vector<8x1152xf32>
    %96 = arith.addf %91, %95 : vector<8x1152xf32>
    %97 = vector.extract_strided_slice %47 {offsets = [0, 10], sizes = [8, 1], strides = [1, 1]} : vector<8x16xf32> to vector<8x1xf32>
    %98 = vector.extract_strided_slice %46 {offsets = [0, 10], sizes = [8, 1152], strides = [1, 1]} : vector<8x1168xf32> to vector<8x1152xf32>
    %99 = vector.broadcast %97 : vector<8x1xf32> to vector<8x1152xf32>
    %100 = arith.mulf %99, %98 : vector<8x1152xf32>
    %101 = arith.addf %96, %100 : vector<8x1152xf32>
    %102 = vector.extract_strided_slice %47 {offsets = [0, 11], sizes = [8, 1], strides = [1, 1]} : vector<8x16xf32> to vector<8x1xf32>
    %103 = vector.extract_strided_slice %46 {offsets = [0, 11], sizes = [8, 1152], strides = [1, 1]} : vector<8x1168xf32> to vector<8x1152xf32>
    %104 = vector.broadcast %102 : vector<8x1xf32> to vector<8x1152xf32>
    %105 = arith.mulf %104, %103 : vector<8x1152xf32>
    %106 = arith.addf %101, %105 : vector<8x1152xf32>
    %107 = vector.extract_strided_slice %47 {offsets = [0, 12], sizes = [8, 1], strides = [1, 1]} : vector<8x16xf32> to vector<8x1xf32>
    %108 = vector.extract_strided_slice %46 {offsets = [0, 12], sizes = [8, 1152], strides = [1, 1]} : vector<8x1168xf32> to vector<8x1152xf32>
    %109 = vector.broadcast %107 : vector<8x1xf32> to vector<8x1152xf32>
    %110 = arith.mulf %109, %108 : vector<8x1152xf32>
    %111 = arith.addf %106, %110 : vector<8x1152xf32>
    %112 = vector.extract_strided_slice %47 {offsets = [0, 13], sizes = [8, 1], strides = [1, 1]} : vector<8x16xf32> to vector<8x1xf32>
    %113 = vector.extract_strided_slice %46 {offsets = [0, 13], sizes = [8, 1152], strides = [1, 1]} : vector<8x1168xf32> to vector<8x1152xf32>
    %114 = vector.broadcast %112 : vector<8x1xf32> to vector<8x1152xf32>
    %115 = arith.mulf %114, %113 : vector<8x1152xf32>
    %116 = arith.addf %111, %115 : vector<8x1152xf32>
    %117 = vector.extract_strided_slice %47 {offsets = [0, 14], sizes = [8, 1], strides = [1, 1]} : vector<8x16xf32> to vector<8x1xf32>
    %118 = vector.extract_strided_slice %46 {offsets = [0, 14], sizes = [8, 1152], strides = [1, 1]} : vector<8x1168xf32> to vector<8x1152xf32>
    %119 = vector.broadcast %117 : vector<8x1xf32> to vector<8x1152xf32>
    %120 = arith.mulf %119, %118 : vector<8x1152xf32>
    %121 = arith.addf %116, %120 : vector<8x1152xf32>
    %122 = vector.extract_strided_slice %47 {offsets = [0, 15], sizes = [8, 1], strides = [1, 1]} : vector<8x16xf32> to vector<8x1xf32>
    %123 = vector.extract_strided_slice %46 {offsets = [0, 15], sizes = [8, 1152], strides = [1, 1]} : vector<8x1168xf32> to vector<8x1152xf32>
    %124 = vector.broadcast %122 : vector<8x1xf32> to vector<8x1152xf32>
    %125 = arith.mulf %124, %123 : vector<8x1152xf32>
    %126 = arith.addf %121, %125 : vector<8x1152xf32>
    %c0_24 = arith.constant 0 : index
    %c0_25 = arith.constant 0 : index
    %127 = vector.load %arg4[%c0_24, %c0_25] : memref<8x1xf32, #tpu.memory_space<vmem>>, vector<8x1xf32>
    %128 = vector.broadcast %127 : vector<8x1xf32> to vector<8x1152xf32>
    %129 = arith.addf %126, %128 : vector<8x1152xf32>
    %cst_26 = arith.constant 0.000000e+00 : f32
    %130 = vector.broadcast %cst_26 : f32 to vector<8x1152xf32>
    %131 = arith.maximumf %129, %130 : vector<8x1152xf32>
    %132 = vector.extract_strided_slice %131 {offsets = [0, 0], sizes = [8, 1149], strides = [1, 1]} : vector<8x1152xf32> to vector<8x1149xf32>
    %133 = vector.extract_strided_slice %131 {offsets = [0, 1], sizes = [8, 1149], strides = [1, 1]} : vector<8x1152xf32> to vector<8x1149xf32>
    %134 = arith.maximumf %132, %133 : vector<8x1149xf32>
    %135 = vector.extract_strided_slice %131 {offsets = [0, 2], sizes = [8, 1149], strides = [1, 1]} : vector<8x1152xf32> to vector<8x1149xf32>
    %136 = arith.maximumf %134, %135 : vector<8x1149xf32>
    %137 = vector.extract_strided_slice %131 {offsets = [0, 3], sizes = [8, 1149], strides = [1, 1]} : vector<8x1152xf32> to vector<8x1149xf32>
    %138 = arith.maximumf %136, %137 : vector<8x1149xf32>
    %cst_27 = arith.constant 0.000000e+00 : f32
    %139 = vector.broadcast %cst_27 : f32 to vector<8x1664xf32>
    %c0_28 = arith.constant 0 : index
    %c0_29 = arith.constant 0 : index
    %140 = vector.load %arg11[%c0_28, %c0_29] : memref<8x1664xf32, #tpu.memory_space<vmem>>, vector<8x1664xf32>
    tpu.vector_store %arg11[%c0_28, %c0_29], %139 {strides = array<i32>} : memref<8x1664xf32, #tpu.memory_space<vmem>>, vector<8x1664xf32>,
    %141 = vector.extract_strided_slice %138 {offsets = [0, 0], sizes = [8, 128], strides = [1, 1]} : vector<8x1149xf32> to vector<8x128xf32>
    %c0_30 = arith.constant 0 : index
    %c32 = arith.constant 32 : index
    %142 = vector.load %arg11[%c0_30, %c32] : memref<8x1664xf32, #tpu.memory_space<vmem>>, vector<8x128xf32>
    tpu.vector_store %arg11[%c0_30, %c32], %141 {strides = array<i32>} : memref<8x1664xf32, #tpu.memory_space<vmem>>, vector<8x128xf32>,
    %143 = vector.extract_strided_slice %138 {offsets = [0, 144], sizes = [8, 128], strides = [1, 1]} : vector<8x1149xf32> to vector<8x128xf32>
    %c0_31 = arith.constant 0 : index
    %c224 = arith.constant 224 : index
    %144 = vector.load %arg11[%c0_31, %c224] : memref<8x1664xf32, #tpu.memory_space<vmem>>, vector<8x128xf32>
    tpu.vector_store %arg11[%c0_31, %c224], %143 {strides = array<i32>} : memref<8x1664xf32, #tpu.memory_space<vmem>>, vector<8x128xf32>,
    %145 = vector.extract_strided_slice %138 {offsets = [0, 288], sizes = [8, 128], strides = [1, 1]} : vector<8x1149xf32> to vector<8x128xf32>
    %c0_32 = arith.constant 0 : index
    %c416 = arith.constant 416 : index
    %146 = vector.load %arg11[%c0_32, %c416] : memref<8x1664xf32, #tpu.memory_space<vmem>>, vector<8x128xf32>
    tpu.vector_store %arg11[%c0_32, %c416], %145 {strides = array<i32>} : memref<8x1664xf32, #tpu.memory_space<vmem>>, vector<8x128xf32>,
    %147 = vector.extract_strided_slice %138 {offsets = [0, 432], sizes = [8, 128], strides = [1, 1]} : vector<8x1149xf32> to vector<8x128xf32>
    %c0_33 = arith.constant 0 : index
    %c608 = arith.constant 608 : index
    %148 = vector.load %arg11[%c0_33, %c608] : memref<8x1664xf32, #tpu.memory_space<vmem>>, vector<8x128xf32>
    tpu.vector_store %arg11[%c0_33, %c608], %147 {strides = array<i32>} : memref<8x1664xf32, #tpu.memory_space<vmem>>, vector<8x128xf32>,
    %149 = vector.extract_strided_slice %138 {offsets = [0, 576], sizes = [8, 128], strides = [1, 1]} : vector<8x1149xf32> to vector<8x128xf32>
    %c0_34 = arith.constant 0 : index
    %c800 = arith.constant 800 : index
    %150 = vector.load %arg11[%c0_34, %c800] : memref<8x1664xf32, #tpu.memory_space<vmem>>, vector<8x128xf32>
    tpu.vector_store %arg11[%c0_34, %c800], %149 {strides = array<i32>} : memref<8x1664xf32, #tpu.memory_space<vmem>>, vector<8x128xf32>,
    %151 = vector.extract_strided_slice %138 {offsets = [0, 720], sizes = [8, 128], strides = [1, 1]} : vector<8x1149xf32> to vector<8x128xf32>
    %c0_35 = arith.constant 0 : index
    %c992 = arith.constant 992 : index
    %152 = vector.load %arg11[%c0_35, %c992] : memref<8x1664xf32, #tpu.memory_space<vmem>>, vector<8x128xf32>
    tpu.vector_store %arg11[%c0_35, %c992], %151 {strides = array<i32>} : memref<8x1664xf32, #tpu.memory_space<vmem>>, vector<8x128xf32>,
    %153 = vector.extract_strided_slice %138 {offsets = [0, 864], sizes = [8, 128], strides = [1, 1]} : vector<8x1149xf32> to vector<8x128xf32>
    %c0_36 = arith.constant 0 : index
    %c1184 = arith.constant 1184 : index
    %154 = vector.load %arg11[%c0_36, %c1184] : memref<8x1664xf32, #tpu.memory_space<vmem>>, vector<8x128xf32>
    tpu.vector_store %arg11[%c0_36, %c1184], %153 {strides = array<i32>} : memref<8x1664xf32, #tpu.memory_space<vmem>>, vector<8x128xf32>,
    %155 = vector.extract_strided_slice %138 {offsets = [0, 1008], sizes = [8, 128], strides = [1, 1]} : vector<8x1149xf32> to vector<8x128xf32>
    %c0_37 = arith.constant 0 : index
    %c1376 = arith.constant 1376 : index
    %156 = vector.load %arg11[%c0_37, %c1376] : memref<8x1664xf32, #tpu.memory_space<vmem>>, vector<8x128xf32>
    tpu.vector_store %arg11[%c0_37, %c1376], %155 {strides = array<i32>} : memref<8x1664xf32, #tpu.memory_space<vmem>>, vector<8x128xf32>,
    %c0_38 = arith.constant 0 : index
    %c0_39 = arith.constant 0 : index
    %157 = vector.load %arg11[%c0_38, %c0_39] : memref<8x1664xf32, #tpu.memory_space<vmem>>, vector<8x1664xf32>
    %158 = vector.extract_strided_slice %157 {offsets = [0, 0], sizes = [8, 1536], strides = [1, 1]} : vector<8x1664xf32> to vector<8x1536xf32>
    %c0_40 = arith.constant 0 : index
    %c0_41 = arith.constant 0 : index
    %159 = vector.load %arg12[%c0_40, %c0_41] : memref<128x1536xf32, #tpu.memory_space<vmem>>, vector<8x1536xf32>
    tpu.vector_store %arg12[%c0_40, %c0_41], %158 {strides = array<i32>} : memref<128x1536xf32, #tpu.memory_space<vmem>>, vector<8x1536xf32>,
    %160 = vector.extract_strided_slice %157 {offsets = [0, 4], sizes = [8, 1536], strides = [1, 1]} : vector<8x1664xf32> to vector<8x1536xf32>
    %c8_42 = arith.constant 8 : index
    %c0_43 = arith.constant 0 : index
    %161 = vector.load %arg12[%c8_42, %c0_43] : memref<128x1536xf32, #tpu.memory_space<vmem>>, vector<8x1536xf32>
    tpu.vector_store %arg12[%c8_42, %c0_43], %160 {strides = array<i32>} : memref<128x1536xf32, #tpu.memory_space<vmem>>, vector<8x1536xf32>,
    %162 = vector.extract_strided_slice %157 {offsets = [0, 8], sizes = [8, 1536], strides = [1, 1]} : vector<8x1664xf32> to vector<8x1536xf32>
    %c16 = arith.constant 16 : index
    %c0_44 = arith.constant 0 : index
    %163 = vector.load %arg12[%c16, %c0_44] : memref<128x1536xf32, #tpu.memory_space<vmem>>, vector<8x1536xf32>
    tpu.vector_store %arg12[%c16, %c0_44], %162 {strides = array<i32>} : memref<128x1536xf32, #tpu.memory_space<vmem>>, vector<8x1536xf32>,
    %164 = vector.extract_strided_slice %157 {offsets = [0, 12], sizes = [8, 1536], strides = [1, 1]} : vector<8x1664xf32> to vector<8x1536xf32>
    %c24 = arith.constant 24 : index
    %c0_45 = arith.constant 0 : index
    %165 = vector.load %arg12[%c24, %c0_45] : memref<128x1536xf32, #tpu.memory_space<vmem>>, vector<8x1536xf32>
    tpu.vector_store %arg12[%c24, %c0_45], %164 {strides = array<i32>} : memref<128x1536xf32, #tpu.memory_space<vmem>>, vector<8x1536xf32>,
    %166 = vector.extract_strided_slice %157 {offsets = [0, 16], sizes = [8, 1536], strides = [1, 1]} : vector<8x1664xf32> to vector<8x1536xf32>
    %c32_46 = arith.constant 32 : index
    %c0_47 = arith.constant 0 : index
    %167 = vector.load %arg12[%c32_46, %c0_47] : memref<128x1536xf32, #tpu.memory_space<vmem>>, vector<8x1536xf32>
    tpu.vector_store %arg12[%c32_46, %c0_47], %166 {strides = array<i32>} : memref<128x1536xf32, #tpu.memory_space<vmem>>, vector<8x1536xf32>,
    %168 = vector.extract_strided_slice %157 {offsets = [0, 20], sizes = [8, 1536], strides = [1, 1]} : vector<8x1664xf32> to vector<8x1536xf32>
    %c40 = arith.constant 40 : index
    %c0_48 = arith.constant 0 : index
    %169 = vector.load %arg12[%c40, %c0_48] : memref<128x1536xf32, #tpu.memory_space<vmem>>, vector<8x1536xf32>
    tpu.vector_store %arg12[%c40, %c0_48], %168 {strides = array<i32>} : memref<128x1536xf32, #tpu.memory_space<vmem>>, vector<8x1536xf32>,
    %170 = vector.extract_strided_slice %157 {offsets = [0, 24], sizes = [8, 1536], strides = [1, 1]} : vector<8x1664xf32> to vector<8x1536xf32>
    %c48 = arith.constant 48 : index
    %c0_49 = arith.constant 0 : index
    %171 = vector.load %arg12[%c48, %c0_49] : memref<128x1536xf32, #tpu.memory_space<vmem>>, vector<8x1536xf32>
    tpu.vector_store %arg12[%c48, %c0_49], %170 {strides = array<i32>} : memref<128x1536xf32, #tpu.memory_space<vmem>>, vector<8x1536xf32>,
    %172 = vector.extract_strided_slice %157 {offsets = [0, 28], sizes = [8, 1536], strides = [1, 1]} : vector<8x1664xf32> to vector<8x1536xf32>
    %c56 = arith.constant 56 : index
    %c0_50 = arith.constant 0 : index
    %173 = vector.load %arg12[%c56, %c0_50] : memref<128x1536xf32, #tpu.memory_space<vmem>>, vector<8x1536xf32>
    tpu.vector_store %arg12[%c56, %c0_50], %172 {strides = array<i32>} : memref<128x1536xf32, #tpu.memory_space<vmem>>, vector<8x1536xf32>,
    %174 = vector.extract_strided_slice %157 {offsets = [0, 32], sizes = [8, 1536], strides = [1, 1]} : vector<8x1664xf32> to vector<8x1536xf32>
    %c64 = arith.constant 64 : index
    %c0_51 = arith.constant 0 : index
    %175 = vector.load %arg12[%c64, %c0_51] : memref<128x1536xf32, #tpu.memory_space<vmem>>, vector<8x1536xf32>
    tpu.vector_store %arg12[%c64, %c0_51], %174 {strides = array<i32>} : memref<128x1536xf32, #tpu.memory_space<vmem>>, vector<8x1536xf32>,
    %176 = vector.extract_strided_slice %157 {offsets = [0, 36], sizes = [8, 1536], strides = [1, 1]} : vector<8x1664xf32> to vector<8x1536xf32>
    %c72 = arith.constant 72 : index
    %c0_52 = arith.constant 0 : index
    %177 = vector.load %arg12[%c72, %c0_52] : memref<128x1536xf32, #tpu.memory_space<vmem>>, vector<8x1536xf32>
    tpu.vector_store %arg12[%c72, %c0_52], %176 {strides = array<i32>} : memref<128x1536xf32, #tpu.memory_space<vmem>>, vector<8x1536xf32>,
    %178 = vector.extract_strided_slice %157 {offsets = [0, 40], sizes = [8, 1536], strides = [1, 1]} : vector<8x1664xf32> to vector<8x1536xf32>
    %c80 = arith.constant 80 : index
    %c0_53 = arith.constant 0 : index
    %179 = vector.load %arg12[%c80, %c0_53] : memref<128x1536xf32, #tpu.memory_space<vmem>>, vector<8x1536xf32>
    tpu.vector_store %arg12[%c80, %c0_53], %178 {strides = array<i32>} : memref<128x1536xf32, #tpu.memory_space<vmem>>, vector<8x1536xf32>,
    %180 = vector.extract_strided_slice %157 {offsets = [0, 44], sizes = [8, 1536], strides = [1, 1]} : vector<8x1664xf32> to vector<8x1536xf32>
    %c88 = arith.constant 88 : index
    %c0_54 = arith.constant 0 : index
    %181 = vector.load %arg12[%c88, %c0_54] : memref<128x1536xf32, #tpu.memory_space<vmem>>, vector<8x1536xf32>
    tpu.vector_store %arg12[%c88, %c0_54], %180 {strides = array<i32>} : memref<128x1536xf32, #tpu.memory_space<vmem>>, vector<8x1536xf32>,
    %182 = vector.extract_strided_slice %157 {offsets = [0, 48], sizes = [8, 1536], strides = [1, 1]} : vector<8x1664xf32> to vector<8x1536xf32>
    %c96 = arith.constant 96 : index
    %c0_55 = arith.constant 0 : index
    %183 = vector.load %arg12[%c96, %c0_55] : memref<128x1536xf32, #tpu.memory_space<vmem>>, vector<8x1536xf32>
    tpu.vector_store %arg12[%c96, %c0_55], %182 {strides = array<i32>} : memref<128x1536xf32, #tpu.memory_space<vmem>>, vector<8x1536xf32>,
    %184 = vector.extract_strided_slice %157 {offsets = [0, 52], sizes = [8, 1536], strides = [1, 1]} : vector<8x1664xf32> to vector<8x1536xf32>
    %c104 = arith.constant 104 : index
    %c0_56 = arith.constant 0 : index
    %185 = vector.load %arg12[%c104, %c0_56] : memref<128x1536xf32, #tpu.memory_space<vmem>>, vector<8x1536xf32>
    tpu.vector_store %arg12[%c104, %c0_56], %184 {strides = array<i32>} : memref<128x1536xf32, #tpu.memory_space<vmem>>, vector<8x1536xf32>,
    %186 = vector.extract_strided_slice %157 {offsets = [0, 56], sizes = [8, 1536], strides = [1, 1]} : vector<8x1664xf32> to vector<8x1536xf32>
    %c112 = arith.constant 112 : index
    %c0_57 = arith.constant 0 : index
    %187 = vector.load %arg12[%c112, %c0_57] : memref<128x1536xf32, #tpu.memory_space<vmem>>, vector<8x1536xf32>
    tpu.vector_store %arg12[%c112, %c0_57], %186 {strides = array<i32>} : memref<128x1536xf32, #tpu.memory_space<vmem>>, vector<8x1536xf32>,
    %188 = vector.extract_strided_slice %157 {offsets = [0, 60], sizes = [8, 1536], strides = [1, 1]} : vector<8x1664xf32> to vector<8x1536xf32>
    %c120 = arith.constant 120 : index
    %c0_58 = arith.constant 0 : index
    %189 = vector.load %arg12[%c120, %c0_58] : memref<128x1536xf32, #tpu.memory_space<vmem>>, vector<8x1536xf32>
    tpu.vector_store %arg12[%c120, %c0_58], %188 {strides = array<i32>} : memref<128x1536xf32, #tpu.memory_space<vmem>>, vector<8x1536xf32>,
    %c0_59 = arith.constant 0 : index
    %c0_60 = arith.constant 0 : index
    %190 = vector.load %arg5[%c0_59, %c0_60] : memref<8x128xf32, #tpu.memory_space<vmem>>, vector<8x128xf32>
    %c0_61 = arith.constant 0 : index
    %c0_62 = arith.constant 0 : index
    %191 = vector.load %arg12[%c0_61, %c0_62] : memref<128x1536xf32, #tpu.memory_space<vmem>>, vector<128x1536xf32>
    %cst_63 = arith.constant dense<0.000000e+00> : vector<8x1536xf32>
    %192 = tpu.matmul %190, %191, %cst_63 {dimension_numbers = #tpu.dot_dimension_numbers<[1], [0], [0], [1], [0, 0, 1, 1], [], []>, precision = #tpu.contract_precision<fp32>} : vector<8x128xf32>, vector<128x1536xf32>, vector<8x1536xf32> -> vector<8x1536xf32>
    %c0_64 = arith.constant 0 : index
    %c0_65 = arith.constant 0 : index
    %193 = vector.load %arg6[%c0_64, %c0_65] : memref<8x1xf32, #tpu.memory_space<vmem>>, vector<8x1xf32>
    %194 = vector.broadcast %193 : vector<8x1xf32> to vector<8x1536xf32>
    %195 = arith.addf %192, %194 : vector<8x1536xf32>
    %cst_66 = arith.constant 0.000000e+00 : f32
    %196 = vector.broadcast %cst_66 : f32 to vector<8x1536xf32>
    %197 = arith.maximumf %195, %196 : vector<8x1536xf32>
    %198 = vector.extract_strided_slice %197 {offsets = [0, 0], sizes = [8, 1524], strides = [1, 1]} : vector<8x1536xf32> to vector<8x1524xf32>
    %199 = vector.extract_strided_slice %197 {offsets = [0, 4], sizes = [8, 1524], strides = [1, 1]} : vector<8x1536xf32> to vector<8x1524xf32>
    %200 = arith.maximumf %198, %199 : vector<8x1524xf32>
    %201 = vector.extract_strided_slice %197 {offsets = [0, 8], sizes = [8, 1524], strides = [1, 1]} : vector<8x1536xf32> to vector<8x1524xf32>
    %202 = arith.maximumf %200, %201 : vector<8x1524xf32>
    %203 = vector.extract_strided_slice %197 {offsets = [0, 12], sizes = [8, 1524], strides = [1, 1]} : vector<8x1536xf32> to vector<8x1524xf32>
    %204 = arith.maximumf %202, %203 : vector<8x1524xf32>
    %c0_67 = arith.constant 0 : index
    %c0_68 = arith.constant 0 : index
    %c0_69 = arith.constant 0 : index
    %205 = vector.load %arg7[%c0_67, %c0_68, %c0_69] : memref<5x8x704xf32, #tpu.memory_space<vmem>>, vector<5x8x704xf32>
    %c0_70 = arith.constant 0 : index
    %c0_71 = arith.constant 0 : index
    %206 = vector.load %arg8[%c0_70, %c0_71] : memref<1x5xf32, #tpu.memory_space<vmem>>, vector<1x5xf32>
    %207 = vector.extract_strided_slice %204 {offsets = [0, 0], sizes = [8, 704], strides = [1, 1]} : vector<8x1524xf32> to vector<8x704xf32>
    %208 = vector.shape_cast %207 : vector<8x704xf32> to vector<1x8x704xf32>
    %209 = vector.broadcast %208 : vector<1x8x704xf32> to vector<5x8x704xf32>
    %210 = arith.mulf %209, %205 : vector<5x8x704xf32>
    %cst_72 = arith.constant dense<0.000000e+00> : vector<5x8xf32>
    %211 = vector.multi_reduction <add>, %210, %cst_72 [2] : vector<5x8x704xf32> to vector<5x8xf32>
    %cst_73 = arith.constant dense<0.000000e+00> : vector<5xf32>
    %212 = vector.multi_reduction <add>, %211, %cst_73 [1] : vector<5x8xf32> to vector<5xf32>
    %213 = vector.shape_cast %212 : vector<5xf32> to vector<5x1xf32>
    %214 = tpu.transpose %213, [1, 0] : vector<5x1xf32> -> vector<1x5xf32>
    %215 = arith.addf %214, %206 : vector<1x5xf32>
    %c0_74 = arith.constant 0 : index
    %c0_75 = arith.constant 0 : index
    %216 = vector.load %arg9[%c0_74, %c0_75] : memref<2x5xf32, #tpu.memory_space<vmem>>, vector<1x5xf32>
    tpu.vector_store %arg9[%c0_74, %c0_75], %215 {strides = array<i32>} : memref<2x5xf32, #tpu.memory_space<vmem>>, vector<1x5xf32>,
    %217 = vector.extract_strided_slice %204 {offsets = [0, 768], sizes = [8, 704], strides = [1, 1]} : vector<8x1524xf32> to vector<8x704xf32>
    %218 = vector.shape_cast %217 : vector<8x704xf32> to vector<1x8x704xf32>
    %219 = vector.broadcast %218 : vector<1x8x704xf32> to vector<5x8x704xf32>
    %220 = arith.mulf %219, %205 : vector<5x8x704xf32>
    %cst_76 = arith.constant dense<0.000000e+00> : vector<5x8xf32>
    %221 = vector.multi_reduction <add>, %220, %cst_76 [2] : vector<5x8x704xf32> to vector<5x8xf32>
    %cst_77 = arith.constant dense<0.000000e+00> : vector<5xf32>
    %222 = vector.multi_reduction <add>, %221, %cst_77 [1] : vector<5x8xf32> to vector<5xf32>
    %223 = vector.shape_cast %222 : vector<5xf32> to vector<5x1xf32>
    %224 = tpu.transpose %223, [1, 0] : vector<5x1xf32> -> vector<1x5xf32>
    %225 = arith.addf %224, %206 : vector<1x5xf32>
    %c1_78 = arith.constant 1 : index
    %c0_79 = arith.constant 0 : index
    %226 = vector.load %arg9[%c1_78, %c0_79] : memref<2x5xf32, #tpu.memory_space<vmem>>, vector<1x5xf32>
    tpu.vector_store %arg9[%c1_78, %c0_79], %225 {strides = array<i32>} : memref<2x5xf32, #tpu.memory_space<vmem>>, vector<1x5xf32>,
    return
  }
}

</mosaic_0001>

<llo_original>
// kernel: sleep_stager_forward.1
$region0: #{sleep_stager_forward.1}
  #allocation0 [shape = 'u32[]', space=smem, size = 0x4, offset = 0x4, fixed_abs, tag = 'smem constant byte address 0x4 - core index']
  #allocation1 [shape = 'u32[144,128]{1,0:T(1,128)}', space=vmem, size = 0x12000, scoped, tag = 'internal scratch']
  #allocation2 [shape = 'f32[8,1168]{1,0:T(8,128)}', space=vmem, size = 0xa000, scoped, tag = 'scratch operand']
  #allocation3 [shape = 'f32[8,1664]{1,0:T(8,128)}', space=vmem, size = 0xd000, scoped, tag = 'scratch operand']
  #allocation4 [shape = 'f32[128,1536]{1,0:T(8,128)}', space=vmem, size = 0xc0000, scoped, tag = 'scratch operand']
  %s0 = inlined_call_operand.vmem [shape: f32[2,4,128], index: 0, kind: input, shape index: {}]
  %s1 = inlined_call_operand.vmem [shape: f32[4,4], index: 1, kind: input, shape index: {}]
  %s2 = inlined_call_operand.vmem [shape: f32[4,1], index: 2, kind: input, shape index: {}]
  %s3 = inlined_call_operand.vmem [shape: f32[8,16], index: 3, kind: input, shape index: {}]
  %s4 = inlined_call_operand.vmem [shape: f32[8,1], index: 4, kind: input, shape index: {}]
  %s5 = inlined_call_operand.vmem [shape: f32[8,128], index: 5, kind: input, shape index: {}]
  %s6 = inlined_call_operand.vmem [shape: f32[8,1], index: 6, kind: input, shape index: {}]
  %s7 = inlined_call_operand.vmem [shape: f32[5,8,704], index: 7, kind: input, shape index: {}]
  %s8 = inlined_call_operand.vmem [shape: f32[1,5], index: 8, kind: input, shape index: {}]
  %s9 = inlined_call_operand.hbm [shape: f32[2,5], index: 9, kind: output, shape index: {}]
  %s10 = sld [smem:[#allocation0]]
  $region46: #{sleep_stager_forward.1} parent=0
    _
  %s12 = ssub.s32 1, %s10
  %s13 = scalar_select 0, %s12, %s10
  $region1: #{sleep_stager_forward.1} parent=0
    #allocation5 [shape = 'u8[1024]{0}', space=vmem, size = 0x400, scoped, tag = 'output window, operand 0, single buffered']
    #allocation6 [shape = 's32[1]{0}', space=sflag, size = 0x4, scoped, tag = 'scoped memory for sleep_stager_forward.1']
    %14 = vsyncpa [#allocation6], 0
    // Predicated region
    $region2: #{sleep_stager_forward.1} parent=1 // pred_check
      _
    $region3: #{sleep_stager_forward.1} parent=1 // pred_check_branch
      %16 = sbr.rel (0) target = $region5
    $region4: #{sleep_stager_forward.1} parent=1 // pred_region
      _
    $region5: #{sleep_stager_forward.1} parent=1 // pred_fallthru
      _
    // Predicated region
    $region6: #{sleep_stager_forward.1} parent=1 // pred_check
      _
    $region7: #{sleep_stager_forward.1} parent=1 // pred_check_branch
      %18 = sbr.rel (0) target = $region9
    $region8: #{sleep_stager_forward.1} parent=1 // pred_region
      _
    $region9: #{sleep_stager_forward.1} parent=1 // pred_fallthru
      _
    // Predicated region
    $region10: #{sleep_stager_forward.1} parent=1 // pred_check
      _
    $region11: #{sleep_stager_forward.1} parent=1 // pred_check_branch
      %20 = sbr.rel (0) target = $region13
    $region12: #{sleep_stager_forward.1} parent=1 // pred_region
      _
    $region13: #{sleep_stager_forward.1} parent=1 // pred_fallthru
      _
    // Predicated region
    $region14: #{sleep_stager_forward.1} parent=1 // pred_check
      _
    $region15: #{sleep_stager_forward.1} parent=1 // pred_check_branch
      %22 = sbr.rel (0) target = $region17
    $region16: #{sleep_stager_forward.1} parent=1 // pred_region
      _
    $region17: #{sleep_stager_forward.1} parent=1 // pred_fallthru
      _
    // Predicated region
    $region18: #{sleep_stager_forward.1} parent=1 // pred_check
      _
    $region19: #{sleep_stager_forward.1} parent=1 // pred_check_branch
      %24 = sbr.rel (0) target = $region21
    $region20: #{sleep_stager_forward.1} parent=1 // pred_region
      _
    $region21: #{sleep_stager_forward.1} parent=1 // pred_fallthru
      _
    // Predicated region
    $region22: #{sleep_stager_forward.1} parent=1 // pred_check
      _
    $region23: #{sleep_stager_forward.1} parent=1 // pred_check_branch
      %26 = sbr.rel (0) target = $region25
    $region24: #{sleep_stager_forward.1} parent=1 // pred_region
      _
    $region25: #{sleep_stager_forward.1} parent=1 // pred_fallthru
      _
    // Predicated region
    $region26: #{sleep_stager_forward.1} parent=1 // pred_check
      _
    $region27: #{sleep_stager_forward.1} parent=1 // pred_check_branch
      %28 = sbr.rel (0) target = $region29
    $region28: #{sleep_stager_forward.1} parent=1 // pred_region
      _
    $region29: #{sleep_stager_forward.1} parent=1 // pred_fallthru
      _
    // Predicated region
    $region30: #{sleep_stager_forward.1} parent=1 // pred_check
      _
    $region31: #{sleep_stager_forward.1} parent=1 // pred_check_branch
      %30 = sbr.rel (0) target = $region33
    $region32: #{sleep_stager_forward.1} parent=1 // pred_region
      _
    $region33: #{sleep_stager_forward.1} parent=1 // pred_fallthru
      _
    // Predicated region
    $region34: #{sleep_stager_forward.1} parent=1 // pred_check
      _
    $region35: #{sleep_stager_forward.1} parent=1 // pred_check_branch
      %32 = sbr.rel (0) target = $region37
    $region36: #{sleep_stager_forward.1} parent=1 // pred_region
      _
    $region37: #{sleep_stager_forward.1} parent=1 // pred_fallthru
      _
    %33 = vst [vmem:[#allocation2] sm:$0xff] 0.0
    %34 = vst [vmem:[#allocation2 + $0x8] sm:$0xff] 0.0
    %35 = vst [vmem:[#allocation2 + $0x10] sm:$0xff] 0.0
    %36 = vst [vmem:[#allocation2 + $0x18] sm:$0xff] 0.0
    %37 = vst [vmem:[#allocation2 + $0x20] sm:$0xff] 0.0
    %38 = vst [vmem:[#allocation2 + $0x28] sm:$0xff] 0.0
    %39 = vst [vmem:[#allocation2 + $0x30] sm:$0xff] 0.0
    %40 = vst [vmem:[#allocation2 + $0x38] sm:$0xff] 0.0
    %41 = vst [vmem:[#allocation2 + $0x40] sm:$0xff] 0.0
    %vm42 = vcmask 130048
    %43 = vst.msk [vmem:[#allocation2 + $0x48] sm:$0xff] %vm42, 0.0
    %v44 = vld [vmem:[%s1] sm:$0xf]
    %v45 = vld [vmem:[%s2] sm:$0xf]
    %v46 = vld [vmem:[%s0] sm:$0xf]
    %48 = vset.pattern.permute.xlu0 0
    %49 = vperm.xlu0 %48, %v45
    %v50 = vpop.permute.xlu0 %49
    %vm52 = vcmask 31744
    %v54 = vsel %vm52, %v44, 0
    %vm56 = vcmask 1043456
    %v58 = vsel %vm56, %v46, 0
    %60 = vmatprep.subr.mxu0 0.0
    %v61 = vand.u32 %v58, 4294901760
    %62 = vmatpush1.msra.mxu0 %v61
    %63 = vmatprep.subr.mxu0 0.0
    %64 = vmatpush1.msra.mxu0 0.0
    %65 = vmatprep.subr.mxu0 0.0
    %66 = vmatpush1.msra.mxu0 0.0
    %67 = vmatprep.subr.mxu0 0.0
    %68 = vmatpush1.msra.mxu0 0.0
    %69 = vmatprep.subr.mxu0 0.0
    %70 = vmatpush1.msra.mxu0 0.0
    %71 = vmatprep.subr.mxu0 0.0
    %72 = vmatpush1.msra.mxu0 0.0
    %73 = vmatprep.subr.mxu0 0.0
    %74 = vmatpush1.msra.mxu0 0.0
    %75 = vmatprep.subr.mxu0 0.0
    %76 = vmatpush1.msra.mxu0 0.0
    %77 = vmatprep.subr.mxu0 0.0
    %78 = vmatpush1.msra.mxu0 0.0
    %79 = vmatprep.subr.mxu0 0.0
    %80 = vmatpush1.msra.mxu0 0.0
    %81 = vmatprep.subr.mxu0 0.0
    %82 = vmatpush1.msra.mxu0 0.0
    %83 = vmatprep.subr.mxu0 0.0
    %84 = vmatpush1.msra.mxu0 0.0
    %85 = vmatprep.subr.mxu0 0.0
    %86 = vmatpush1.msra.mxu0 0.0
    %87 = vmatprep.subr.mxu0 0.0
    %88 = vmatpush1.msra.mxu0 0.0
    %89 = vmatprep.subr.mxu0 0.0
    %90 = vmatpush1.msra.mxu0 0.0
    %91 = vmatprep.subr.mxu0 0.0
    %92 = vmatpush1.msra.mxu0 0.0
    %93 = vmatprep.subr.mxu0 0.0
    %94 = vmatpush1.msra.mxu0 0.0
    %95 = vmatprep.subr.mxu0 0.0
    %96 = vmatpush1.msra.mxu0 0.0
    %97 = vmatprep.subr.mxu0 0.0
    %98 = vmatpush1.msra.mxu0 0.0
    %99 = vmatprep.subr.mxu0 0.0
    %100 = vmatpush1.msra.mxu0 0.0
    %101 = vmatprep.subr.mxu0 0.0
    %102 = vmatpush1.msra.mxu0 0.0
    %103 = vmatprep.subr.mxu0 0.0
    %104 = vmatpush1.msra.mxu0 0.0
    %105 = vmatprep.subr.mxu0 0.0
    %106 = vmatpush1.msra.mxu0 0.0
    %107 = vmatprep.subr.mxu0 0.0
    %108 = vmatpush1.msra.mxu0 0.0
    %109 = vmatprep.subr.mxu0 0.0
    %110 = vmatpush1.msra.mxu0 0.0
    %111 = vmatprep.subr.mxu0 0.0
    %112 = vmatpush1.msra.mxu0 0.0
    %113 = vmatprep.subr.mxu0 0.0
    %114 = vmatpush1.msra.mxu0 0.0
    %115 = vmatprep.subr.mxu0 0.0
    %116 = vmatpush1.msra.mxu0 0.0
    %117 = vmatprep.subr.mxu0 0.0
    %118 = vmatpush1.msra.mxu0 0.0
    %119 = vmatprep.subr.mxu0 0.0
    %120 = vmatpush1.msra.mxu0 0.0
    %121 = vmatprep.subr.mxu0 0.0
    %122 = vmatpush1.msra.mxu0 0.0
    %123 = vmatprep.subr.mxu0 0.0
    %124 = vmatpush1.msra.mxu0 0.0
    %125 = vmatprep.mubr.f32.mxu0 0.0
    %v126 = vand.u32 %v54, 4294901760
    %v127 = vsub.f32 %v54, %v126
    %v128 = vand.u32 %v127, 4294901760
    %v129 = vsub.f32 %v127, %v128
    %v130 = vand.u32 %v129, 4294901760
    %131 = vmatmul.mubr.f32.gmra.mrb[0].mxu0 %v130
    %v132 = vpop.f32.mrb[0].mxu0
    %v133 = vadd.f32 %v50, %v132
    %v134 = vpop.f32.mrb[0].mxu0
    %135 = vdwg.mxu0
    %136 = vmatprep.subr.mxu0 0.0
    %v137 = vand.u32 %v58, 4294901760
    %v138 = vsub.f32 %v58, %v137
    %v139 = vand.u32 %v138, 4294901760
    %v140 = vsub.f32 %v138, %v139
    %v141 = vand.u32 %v140, 4294901760
    %142 = vmatpush1.msra.mxu0 %v141
    %143 = vmatprep.subr.mxu0 0.0
    %144 = vmatpush1.msra.mxu0 0.0
    %145 = vmatprep.subr.mxu0 0.0
    %146 = vmatpush1.msra.mxu0 0.0
    %147 = vmatprep.subr.mxu0 0.0
    %148 = vmatpush1.msra.mxu0 0.0
    %149 = vmatprep.subr.mxu0 0.0
    %150 = vmatpush1.msra.mxu0 0.0
    %151 = vmatprep.subr.mxu0 0.0
    %152 = vmatpush1.msra.mxu0 0.0
    %153 = vmatprep.subr.mxu0 0.0
    %154 = vmatpush1.msra.mxu0 0.0
    %155 = vmatprep.subr.mxu0 0.0
    %156 = vmatpush1.msra.mxu0 0.0
    %157 = vmatprep.subr.mxu0 0.0
    %158 = vmatpush1.msra.mxu0 0.0
    %159 = vmatprep.subr.mxu0 0.0
    %160 = vmatpush1.msra.mxu0 0.0
    %161 = vmatprep.subr.mxu0 0.0
    %162 = vmatpush1.msra.mxu0 0.0
    %163 = vmatprep.subr.mxu0 0.0
    %164 = vmatpush1.msra.mxu0 0.0
    %165 = vmatprep.subr.mxu0 0.0
    %166 = vmatpush1.msra.mxu0 0.0
    %167 = vmatprep.subr.mxu0 0.0
    %168 = vmatpush1.msra.mxu0 0.0
    %169 = vmatprep.subr.mxu0 0.0
    %170 = vmatpush1.msra.mxu0 0.0
    %171 = vmatprep.subr.mxu0 0.0
    %172 = vmatpush1.msra.mxu0 0.0
    %173 = vmatprep.subr.mxu0 0.0
    %174 = vmatpush1.msra.mxu0 0.0
    %175 = vmatprep.subr.mxu0 0.0
    %176 = vmatpush1.msra.mxu0 0.0
    %177 = vmatprep.subr.mxu0 0.0
    %178 = vmatpush1.msra.mxu0 0.0
    %179 = vmatprep.subr.mxu0 0.0
    %180 = vmatpush1.msra.mxu0 0.0
    %181 = vmatprep.subr.mxu0 0.0
    %182 = vmatpush1.msra.mxu0 0.0
    %183 = vmatprep.subr.mxu0 0.0
    %184 = vmatpush1.msra.mxu0 0.0
    %185 = vmatprep.subr.mxu0 0.0
    %186 = vmatpush1.msra.mxu0 0.0
    %187 = vmatprep.subr.mxu0 0.0
    %188 = vmatpush1.msra.mxu0 0.0
    %189 = vmatprep.subr.mxu0 0.0
    %190 = vmatpush1.msra.mxu0 0.0
    %191 = vmatprep.subr.mxu0 0.0
    %192 = vmatpush1.msra.mxu0 0.0
    %193 = vmatprep.subr.mxu0 0.0
    %194 = vmatpush1.msra.mxu0 0.0
    %195 = vmatprep.subr.mxu0 0.0
    %196 = vmatpush1.msra.mxu0 0.0
    %197 = vmatprep.subr.mxu0 0.0
    %198 = vmatpush1.msra.mxu0 0.0
    %199 = vmatprep.subr.mxu0 0.0
    %200 = vmatpush1.msra.mxu0 0.0
    %201 = vmatprep.subr.mxu0 0.0
    %202 = vmatpush1.msra.mxu0 0.0
    %203 = vmatprep.subr.mxu0 0.0
    %204 = vmatpush1.msra.mxu0 0.0
    %205 = vmatprep.mubr.f32.mxu0 0.0
    %v206 = vand.u32 %v54, 4294901760
    %207 = vmatmul.mubr.f32.gmra.mrb[0].mxu0 %v206
    %v208 = vpop.f32.mrb[0].mxu0
    %v209 = vadd.f32 %v133, %v208
    %v210 = vpop.f32.mrb[0].mxu0
    %211 = vdwg.mxu0
    %212 = vmatprep.subr.mxu0 0.0
    %v213 = vand.u32 %v58, 4294901760
    %v214 = vsub.f32 %v58, %v213
    %215 = vmatpush1.msra.mxu0 %v214
    %216 = vmatprep.subr.mxu0 0.0
    %217 = vmatpush1.msra.mxu0 0.0
    %218 = vmatprep.subr.mxu0 0.0
    %219 = vmatpush1.msra.mxu0 0.0
    %220 = vmatprep.subr.mxu0 0.0
    %221 = vmatpush1.msra.mxu0 0.0
    %222 = vmatprep.subr.mxu0 0.0
    %223 = vmatpush1.msra.mxu0 0.0
    %224 = vmatprep.subr.mxu0 0.0
    %225 = vmatpush1.msra.mxu0 0.0
    %226 = vmatprep.subr.mxu0 0.0
    %227 = vmatpush1.msra.mxu0 0.0
    %228 = vmatprep.subr.mxu0 0.0
    %229 = vmatpush1.msra.mxu0 0.0
    %230 = vmatprep.subr.mxu0 0.0
    %231 = vmatpush1.msra.mxu0 0.0
    %232 = vmatprep.subr.mxu0 0.0
    %233 = vmatpush1.msra.mxu0 0.0
    %234 = vmatprep.subr.mxu0 0.0
    %235 = vmatpush1.msra.mxu0 0.0
    %236 = vmatprep.subr.mxu0 0.0
    %237 = vmatpush1.msra.mxu0 0.0
    %238 = vmatprep.subr.mxu0 0.0
    %239 = vmatpush1.msra.mxu0 0.0
    %240 = vmatprep.subr.mxu0 0.0
    %241 = vmatpush1.msra.mxu0 0.0
    %242 = vmatprep.subr.mxu0 0.0
    %243 = vmatpush1.msra.mxu0 0.0
    %244 = vmatprep.subr.mxu0 0.0
    %245 = vmatpush1.msra.mxu0 0.0
    %246 = vmatprep.subr.mxu0 0.0
    %247 = vmatpush1.msra.mxu0 0.0
    %248 = vmatprep.subr.mxu0 0.0
    %249 = vmatpush1.msra.mxu0 0.0
    %250 = vmatprep.subr.mxu0 0.0
    %251 = vmatpush1.msra.mxu0 0.0
    %252 = vmatprep.subr.mxu0 0.0
    %253 = vmatpush1.msra.mxu0 0.0
    %254 = vmatprep.subr.mxu0 0.0
    %255 = vmatpush1.msra.mxu0 0.0
    %256 = vmatprep.subr.mxu0 0.0
    %257 = vmatpush1.msra.mxu0 0.0
    %258 = vmatprep.subr.mxu0 0.0
    %259 = vmatpush1.msra.mxu0 0.0
    %260 = vmatprep.subr.mxu0 0.0
    %261 = vmatpush1.msra.mxu0 0.0
    %262 = vmatprep.subr.mxu0 0.0
    %263 = vmatpush1.msra.mxu0 0.0
    %264 = vmatprep.subr.mxu0 0.0
    %265 = vmatpush1.msra.mxu0 0.0
    %266 = vmatprep.subr.mxu0 0.0
    %267 = vmatpush1.msra.mxu0 0.0
    %268 = vmatprep.subr.mxu0 0.0
    %269 = vmatpush1.msra.mxu0 0.0
    %270 = vmatprep.subr.mxu0 0.0
    %271 = vmatpush1.msra.mxu0 0.0
    %272 = vmatprep.subr.mxu0 0.0
    %273 = vmatpush1.msra.mxu0 0.0
    %274 = vmatprep.subr.mxu0 0.0
    %275 = vmatpush1.msra.mxu0 0.0
    %276 = vmatprep.subr.mxu0 0.0
    %277 = vmatpush1.msra.mxu0 0.0
    %278 = vmatprep.mubr.f32.mxu0 0.0
    %v279 = vand.u32 %v54, 4294901760
    %v280 = vsub.f32 %v54, %v279
    %281 = vmatmul.mubr.f32.gmra.mrb[0].mxu0 %v280
    %v282 = vpop.f32.mrb[0].mxu0
    %v283 = vadd.f32 %v209, %v282
    %v284 = vpop.f32.mrb[0].mxu0
    %285 = vdwg.mxu0
    %286 = vmatprep.subr.mxu0 0.0
    %v287 = vand.u32 %v58, 4294901760
    %288 = vmatpush1.msra.mxu0 %v287
    %289 = vmatprep.subr.mxu0 0.0
    %290 = vmatpush1.msra.mxu0 0.0
    %291 = vmatprep.subr.mxu0 0.0
    %292 = vmatpush1.msra.mxu0 0.0
    %293 = vmatprep.subr.mxu0 0.0
    %294 = vmatpush1.msra.mxu0 0.0
    %295 = vmatprep.subr.mxu0 0.0
    %296 = vmatpush1.msra.mxu0 0.0
    %297 = vmatprep.subr.mxu0 0.0
    %298 = vmatpush1.msra.mxu0 0.0
    %299 = vmatprep.subr.mxu0 0.0
    %300 = vmatpush1.msra.mxu0 0.0
    %301 = vmatprep.subr.mxu0 0.0
    %302 = vmatpush1.msra.mxu0 0.0
    %303 = vmatprep.subr.mxu0 0.0
    %304 = vmatpush1.msra.mxu0 0.0
    %305 = vmatprep.subr.mxu0 0.0
    %306 = vmatpush1.msra.mxu0 0.0
    %307 = vmatprep.subr.mxu0 0.0
    %308 = vmatpush1.msra.mxu0 0.0
    %309 = vmatprep.subr.mxu0 0.0
    %310 = vmatpush1.msra.mxu0 0.0
    %311 = vmatprep.subr.mxu0 0.0
    %312 = vmatpush1.msra.mxu0 0.0
    %313 = vmatprep.subr.mxu0 0.0
    %314 = vmatpush1.msra.mxu0 0.0
    %315 = vmatprep.subr.mxu0 0.0
    %316 = vmatpush1.msra.mxu0 0.0
    %317 = vmatprep.subr.mxu0 0.0
    %318 = vmatpush1.msra.mxu0 0.0
    %319 = vmatprep.subr.mxu0 0.0
    %320 = vmatpush1.msra.mxu0 0.0
    %321 = vmatprep.subr.mxu0 0.0
    %322 = vmatpush1.msra.mxu0 0.0
    %323 = vmatprep.subr.mxu0 0.0
    %324 = vmatpush1.msra.mxu0 0.0
    %325 = vmatprep.subr.mxu0 0.0
    %326 = vmatpush1.msra.mxu0 0.0
    %327 = vmatprep.subr.mxu0 0.0
    %328 = vmatpush1.msra.mxu0 0.0
    %329 = vmatprep.subr.mxu0 0.0
    %330 = vmatpush1.msra.mxu0 0.0
    %331 = vmatprep.subr.mxu0 0.0
    %332 = vmatpush1.msra.mxu0 0.0
    %333 = vmatprep.subr.mxu0 0.0
    %334 = vmatpush1.msra.mxu0 0.0
    %335 = vmatprep.subr.mxu0 0.0
    %336 = vmatpush1.msra.mxu0 0.0
    %337 = vmatprep.subr.mxu0 0.0
    %338 = vmatpush1.msra.mxu0 0.0
    %339 = vmatprep.subr.mxu0 0.0
    %340 = vmatpush1.msra.mxu0 0.0
    %341 = vmatprep.subr.mxu0 0.0
    %342 = vmatpush1.msra.mxu0 0.0
    %343 = vmatprep.subr.mxu0 0.0
    %344 = vmatpush1.msra.mxu0 0.0
    %345 = vmatprep.subr.mxu0 0.0
    %346 = vmatpush1.msra.mxu0 0.0
    %347 = vmatprep.subr.mxu0 0.0
    %348 = vmatpush1.msra.mxu0 0.0
    %349 = vmatprep.subr.mxu0 0.0
    %350 = vmatpush1.msra.mxu0 0.0
    %351 = vmatprep.mubr.f32.mxu0 0.0
    %v352 = vand.u32 %v54, 4294901760
    %v353 = vsub.f32 %v54, %v352
    %v354 = vand.u32 %v353, 4294901760
    %355 = vmatmul.mubr.f32.gmra.mrb[0].mxu0 %v354
    %v356 = vpop.f32.mrb[0].mxu0
    %v357 = vadd.f32 %v283, %v356
    %v358 = vpop.f32.mrb[0].mxu0
    %359 = vdwg.mxu0
    %360 = vmatprep.subr.mxu0 0.0
    %v361 = vand.u32 %v58, 4294901760
    %v362 = vsub.f32 %v58, %v361
    %v363 = vand.u32 %v362, 4294901760
    %364 = vmatpush1.msra.mxu0 %v363
    %365 = vmatprep.subr.mxu0 0.0
    %366 = vmatpush1.msra.mxu0 0.0
    %367 = vmatprep.subr.mxu0 0.0
    %368 = vmatpush1.msra.mxu0 0.0
    %369 = vmatprep.subr.mxu0 0.0
    %370 = vmatpush1.msra.mxu0 0.0
    %371 = vmatprep.subr.mxu0 0.0
    %372 = vmatpush1.msra.mxu0 0.0
    %373 = vmatprep.subr.mxu0 0.0
    %374 = vmatpush1.msra.mxu0 0.0
    %375 = vmatprep.subr.mxu0 0.0
    %376 = vmatpush1.msra.mxu0 0.0
    %377 = vmatprep.subr.mxu0 0.0
    %378 = vmatpush1.msra.mxu0 0.0
    %379 = vmatprep.subr.mxu0 0.0
    %380 = vmatpush1.msra.mxu0 0.0
    %381 = vmatprep.subr.mxu0 0.0
    %382 = vmatpush1.msra.mxu0 0.0
    %383 = vmatprep.subr.mxu0 0.0
    %384 = vmatpush1.msra.mxu0 0.0
    %385 = vmatprep.subr.mxu0 0.0
    %386 = vmatpush1.msra.mxu0 0.0
    %387 = vmatprep.subr.mxu0 0.0
    %388 = vmatpush1.msra.mxu0 0.0
    %389 = vmatprep.subr.mxu0 0.0
    %390 = vmatpush1.msra.mxu0 0.0
    %391 = vmatprep.subr.mxu0 0.0
    %392 = vmatpush1.msra.mxu0 0.0
    %393 = vmatprep.subr.mxu0 0.0
    %394 = vmatpush1.msra.mxu0 0.0
    %395 = vmatprep.subr.mxu0 0.0
    %396 = vmatpush1.msra.mxu0 0.0
    %397 = vmatprep.subr.mxu0 0.0
    %398 = vmatpush1.msra.mxu0 0.0
    %399 = vmatprep.subr.mxu0 0.0
    %400 = vmatpush1.msra.mxu0 0.0
    %401 = vmatprep.subr.mxu0 0.0
    %402 = vmatpush1.msra.mxu0 0.0
    %403 = vmatprep.subr.mxu0 0.0
    %404 = vmatpush1.msra.mxu0 0.0
    %405 = vmatprep.subr.mxu0 0.0
    %406 = vmatpush1.msra.mxu0 0.0
    %407 = vmatprep.subr.mxu0 0.0
    %408 = vmatpush1.msra.mxu0 0.0
    %409 = vmatprep.subr.mxu0 0.0
    %410 = vmatpush1.msra.mxu0 0.0
    %411 = vmatprep.subr.mxu0 0.0
    %412 = vmatpush1.msra.mxu0 0.0
    %413 = vmatprep.subr.mxu0 0.0
    %414 = vmatpush1.msra.mxu0 0.0
    %415 = vmatprep.subr.mxu0 0.0
    %416 = vmatpush1.msra.mxu0 0.0
    %417 = vmatprep.subr.mxu0 0.0
    %418 = vmatpush1.msra.mxu0 0.0
    %419 = vmatprep.subr.mxu0 0.0
    %420 = vmatpush1.msra.mxu0 0.0
    %421 = vmatprep.subr.mxu0 0.0
    %422 = vmatpush1.msra.mxu0 0.0
    %423 = vmatprep.subr.mxu0 0.0
    %424 = vmatpush1.msra.mxu0 0.0
    %425 = vmatprep.subr.mxu0 0.0
    %426 = vmatpush1.msra.mxu0 0.0
    %427 = vmatprep.mubr.f32.mxu0 0.0
    %v428 = vand.u32 %v54, 4294901760
    %429 = vmatmul.mubr.f32.gmra.mrb[0].mxu0 %v428
    %v430 = vpop.f32.mrb[0].mxu0
    %v431 = vadd.f32 %v357, %v430
    %v432 = vpop.f32.mrb[0].mxu0
    %433 = vdwg.mxu0
    %434 = vmatprep.subr.mxu0 0.0
    %v435 = vand.u32 %v58, 4294901760
    %436 = vmatpush1.msra.mxu0 %v435
    %437 = vmatprep.subr.mxu0 0.0
    %438 = vmatpush1.msra.mxu0 0.0
    %439 = vmatprep.subr.mxu0 0.0
    %440 = vmatpush1.msra.mxu0 0.0
    %441 = vmatprep.subr.mxu0 0.0
    %442 = vmatpush1.msra.mxu0 0.0
    %443 = vmatprep.subr.mxu0 0.0
    %444 = vmatpush1.msra.mxu0 0.0
    %445 = vmatprep.subr.mxu0 0.0
    %446 = vmatpush1.msra.mxu0 0.0
    %447 = vmatprep.subr.mxu0 0.0
    %448 = vmatpush1.msra.mxu0 0.0
    %449 = vmatprep.subr.mxu0 0.0
    %450 = vmatpush1.msra.mxu0 0.0
    %451 = vmatprep.subr.mxu0 0.0
    %452 = vmatpush1.msra.mxu0 0.0
    %453 = vmatprep.subr.mxu0 0.0
    %454 = vmatpush1.msra.mxu0 0.0
    %455 = vmatprep.subr.mxu0 0.0
    %456 = vmatpush1.msra.mxu0 0.0
    %457 = vmatprep.subr.mxu0 0.0
    %458 = vmatpush1.msra.mxu0 0.0
    %459 = vmatprep.subr.mxu0 0.0
    %460 = vmatpush1.msra.mxu0 0.0
    %461 = vmatprep.subr.mxu0 0.0
    %462 = vmatpush1.msra.mxu0 0.0
    %463 = vmatprep.subr.mxu0 0.0
    %464 = vmatpush1.msra.mxu0 0.0
    %465 = vmatprep.subr.mxu0 0.0
    %466 = vmatpush1.msra.mxu0 0.0
    %467 = vmatprep.subr.mxu0 0.0
    %468 = vmatpush1.msra.mxu0 0.0
    %469 = vmatprep.subr.mxu0 0.0
    %470 = vmatpush1.msra.mxu0 0.0
    %471 = vmatprep.subr.mxu0 0.0
    %472 = vmatpush1.msra.mxu0 0.0
    %473 = vmatprep.subr.mxu0 0.0
    %474 = vmatpush1.msra.mxu0 0.0
    %475 = vmatprep.subr.mxu0 0.0
    %476 = vmatpush1.msra.mxu0 0.0
    %477 = vmatprep.subr.mxu0 0.0
    %478 = vmatpush1.msra.mxu0 0.0
    %479 = vmatprep.subr.mxu0 0.0
    %480 = vmatpush1.msra.mxu0 0.0
    %481 = vmatprep.subr.mxu0 0.0
    %482 = vmatpush1.msra.mxu0 0.0
    %483 = vmatprep.subr.mxu0 0.0
    %484 = vmatpush1.msra.mxu0 0.0
    %485 = vmatprep.subr.mxu0 0.0
    %486 = vmatpush1.msra.mxu0 0.0
    %487 = vmatprep.subr.mxu0 0.0
    %488 = vmatpush1.msra.mxu0 0.0
    %489 = vmatprep.subr.mxu0 0.0
    %490 = vmatpush1.msra.mxu0 0.0
    %491 = vmatprep.subr.mxu0 0.0
    %492 = vmatpush1.msra.mxu0 0.0
    %493 = vmatprep.subr.mxu0 0.0
    %494 = vmatpush1.msra.mxu0 0.0
    %495 = vmatprep.subr.mxu0 0.0
    %496 = vmatpush1.msra.mxu0 0.0
    %497 = vmatprep.subr.mxu0 0.0
    %498 = vmatpush1.msra.mxu0 0.0
    %499 = vmatprep.mubr.f32.mxu0 0.0
    %v500 = vand.u32 %v54, 4294901760
    %501 = vmatmul.mubr.f32.gmra.mrb[0].mxu0 %v500
    %v502 = vpop.f32.mrb[0].mxu0
    %v503 = vadd.f32 %v431, %v502
    %v504 = vpop.f32.mrb[0].mxu0
    %505 = vdwg.mxu0
    %v506 = vlaneseq
    %v507 = vshrl.u32 %v506, 7
    %v508 = vsub.s32 0, %v507
    %v509 = vrot.slane %v503, %v508
    %511 = vrot.lane.b32.xlu0 %v509, 8
    %v512 = vpop.permute.xlu0 %511
    %vm514 = vcmask 1047616
    %515 = vst.msk [vmem:[#allocation2] sm:$0xff] %vm514, %v512
    %vm516 = vcmask 64512
    %517 = vst.msk [vmem:[#allocation2 + $0x8] sm:$0xff] %vm516, %v512
    %v518 = vlaneseq
    %v519 = vshrl.u32 %v518, 7
    %v520 = vsub.s32 1, %v519
    %v521 = vrot.slane %v503, %v520
    %523 = vrot.lane.b32.xlu0 %v521, 24
    %v524 = vpop.permute.xlu0 %523
    %vm526 = vcmask 1047744
    %527 = vst.msk [vmem:[#allocation2 + $0x8] sm:$0xff] %vm526, %v524
    %vm528 = vcmask 195584
    %529 = vst.msk [vmem:[#allocation2 + $0x10] sm:$0xff] %vm528, %v524
    %v530 = vlaneseq
    %v531 = vshrl.u32 %v530, 7
    %v532 = vsub.s32 2, %v531
    %v533 = vrot.slane %v503, %v532
    %535 = vrot.lane.b32.xlu0 %v533, 40
    %v536 = vpop.permute.xlu0 %535
    %vm538 = vcmask 1047872
    %539 = vst.msk [vmem:[#allocation2 + $0x10] sm:$0xff] %vm538, %v536
    %vm540 = vcmask 326656
    %541 = vst.msk [vmem:[#allocation2 + $0x18] sm:$0xff] %vm540, %v536
    %v542 = vlaneseq
    %v543 = vshrl.u32 %v542, 7
    %v544 = vsub.s32 3, %v543
    %v545 = vrot.slane %v503, %v544
    %547 = vrot.lane.b32.xlu0 %v545, 56
    %v548 = vpop.permute.xlu0 %547
    %vm550 = vcmask 1048000
    %551 = vst.msk [vmem:[#allocation2 + $0x18] sm:$0xff] %vm550, %v548
    %vm552 = vcmask 457728
    %553 = vst.msk [vmem:[#allocation2 + $0x20] sm:$0xff] %vm552, %v548
    %s554 = scalar_lea.vmem %s0, 4
    %v555 = vld [vmem:[%s554] sm:$0xf]
    %v557 = vsel %vm56, %v555, 0
    %559 = vmatprep.subr.mxu0 0.0
    %v560 = vand.u32 %v557, 4294901760
    %561 = vmatpush1.msra.mxu0 %v560
    %562 = vmatprep.subr.mxu0 0.0
    %563 = vmatpush1.msra.mxu0 0.0
    %564 = vmatprep.subr.mxu0 0.0
    %565 = vmatpush1.msra.mxu0 0.0
    %566 = vmatprep.subr.mxu0 0.0
    %567 = vmatpush1.msra.mxu0 0.0
    %568 = vmatprep.subr.mxu0 0.0
    %569 = vmatpush1.msra.mxu0 0.0
    %570 = vmatprep.subr.mxu0 0.0
    %571 = vmatpush1.msra.mxu0 0.0
    %572 = vmatprep.subr.mxu0 0.0
    %573 = vmatpush1.msra.mxu0 0.0
    %574 = vmatprep.subr.mxu0 0.0
    %575 = vmatpush1.msra.mxu0 0.0
    %576 = vmatprep.subr.mxu0 0.0
    %577 = vmatpush1.msra.mxu0 0.0
    %578 = vmatprep.subr.mxu0 0.0
    %579 = vmatpush1.msra.mxu0 0.0
    %580 = vmatprep.subr.mxu0 0.0
    %581 = vmatpush1.msra.mxu0 0.0
    %582 = vmatprep.subr.mxu0 0.0
    %583 = vmatpush1.msra.mxu0 0.0
    %584 = vmatprep.subr.mxu0 0.0
    %585 = vmatpush1.msra.mxu0 0.0
    %586 = vmatprep.subr.mxu0 0.0
    %587 = vmatpush1.msra.mxu0 0.0
    %588 = vmatprep.subr.mxu0 0.0
    %589 = vmatpush1.msra.mxu0 0.0
    %590 = vmatprep.subr.mxu0 0.0
    %591 = vmatpush1.msra.mxu0 0.0
    %592 = vmatprep.subr.mxu0 0.0
    %593 = vmatpush1.msra.mxu0 0.0
    %594 = vmatprep.subr.mxu0 0.0
    %595 = vmatpush1.msra.mxu0 0.0
    %596 = vmatprep.subr.mxu0 0.0
    %597 = vmatpush1.msra.mxu0 0.0
    %598 = vmatprep.subr.mxu0 0.0
    %599 = vmatpush1.msra.mxu0 0.0
    %600 = vmatprep.subr.mxu0 0.0
    %601 = vmatpush1.msra.mxu0 0.0
    %602 = vmatprep.subr.mxu0 0.0
    %603 = vmatpush1.msra.mxu0 0.0
    %604 = vmatprep.subr.mxu0 0.0
    %605 = vmatpush1.msra.mxu0 0.0
    %606 = vmatprep.subr.mxu0 0.0
    %607 = vmatpush1.msra.mxu0 0.0
    %608 = vmatprep.subr.mxu0 0.0
    %609 = vmatpush1.msra.mxu0 0.0
    %610 = vmatprep.subr.mxu0 0.0
    %611 = vmatpush1.msra.mxu0 0.0
    %612 = vmatprep.subr.mxu0 0.0
    %613 = vmatpush1.msra.mxu0 0.0
    %614 = vmatprep.subr.mxu0 0.0
    %615 = vmatpush1.msra.mxu0 0.0
    %616 = vmatprep.subr.mxu0 0.0
    %617 = vmatpush1.msra.mxu0 0.0
    %618 = vmatprep.subr.mxu0 0.0
    %619 = vmatpush1.msra.mxu0 0.0
    %620 = vmatprep.subr.mxu0 0.0
    %621 = vmatpush1.msra.mxu0 0.0
    %622 = vmatprep.subr.mxu0 0.0
    %623 = vmatpush1.msra.mxu0 0.0
    %624 = vmatprep.mubr.f32.mxu0 0.0
    %v625 = vand.u32 %v54, 4294901760
    %v626 = vsub.f32 %v54, %v625
    %v627 = vand.u32 %v626, 4294901760
    %v628 = vsub.f32 %v626, %v627
    %v629 = vand.u32 %v628, 4294901760
    %630 = vmatmul.mubr.f32.gmra.mrb[0].mxu0 %v629
    %v631 = vpop.f32.mrb[0].mxu0
    %v632 = vadd.f32 %v50, %v631
    %v633 = vpop.f32.mrb[0].mxu0
    %634 = vdwg.mxu0
    %635 = vmatprep.subr.mxu0 0.0
    %v636 = vand.u32 %v557, 4294901760
    %v637 = vsub.f32 %v557, %v636
    %v638 = vand.u32 %v637, 4294901760
    %v639 = vsub.f32 %v637, %v638
    %v640 = vand.u32 %v639, 4294901760
    %641 = vmatpush1.msra.mxu0 %v640
    %642 = vmatprep.subr.mxu0 0.0
    %643 = vmatpush1.msra.mxu0 0.0
    %644 = vmatprep.subr.mxu0 0.0
    %645 = vmatpush1.msra.mxu0 0.0
    %646 = vmatprep.subr.mxu0 0.0
    %647 = vmatpush1.msra.mxu0 0.0
    %648 = vmatprep.subr.mxu0 0.0
    %649 = vmatpush1.msra.mxu0 0.0
    %650 = vmatprep.subr.mxu0 0.0
    %651 = vmatpush1.msra.mxu0 0.0
    %652 = vmatprep.subr.mxu0 0.0
    %653 = vmatpush1.msra.mxu0 0.0
    %654 = vmatprep.subr.mxu0 0.0
    %655 = vmatpush1.msra.mxu0 0.0
    %656 = vmatprep.subr.mxu0 0.0
    %657 = vmatpush1.msra.mxu0 0.0
    %658 = vmatprep.subr.mxu0 0.0
    %659 = vmatpush1.msra.mxu0 0.0
    %660 = vmatprep.subr.mxu0 0.0
    %661 = vmatpush1.msra.mxu0 0.0
    %662 = vmatprep.subr.mxu0 0.0
    %663 = vmatpush1.msra.mxu0 0.0
    %664 = vmatprep.subr.mxu0 0.0
    %665 = vmatpush1.msra.mxu0 0.0
    %666 = vmatprep.subr.mxu0 0.0
    %667 = vmatpush1.msra.mxu0 0.0
    %668 = vmatprep.subr.mxu0 0.0
    %669 = vmatpush1.msra.mxu0 0.0
    %670 = vmatprep.subr.mxu0 0.0
    %671 = vmatpush1.msra.mxu0 0.0
    %672 = vmatprep.subr.mxu0 0.0
    %673 = vmatpush1.msra.mxu0 0.0
    %674 = vmatprep.subr.mxu0 0.0
    %675 = vmatpush1.msra.mxu0 0.0
    %676 = vmatprep.subr.mxu0 0.0
    %677 = vmatpush1.msra.mxu0 0.0
    %678 = vmatprep.subr.mxu0 0.0
    %679 = vmatpush1.msra.mxu0 0.0
    %680 = vmatprep.subr.mxu0 0.0
    %681 = vmatpush1.msra.mxu0 0.0
    %682 = vmatprep.subr.mxu0 0.0
    %683 = vmatpush1.msra.mxu0 0.0
    %684 = vmatprep.subr.mxu0 0.0
    %685 = vmatpush1.msra.mxu0 0.0
    %686 = vmatprep.subr.mxu0 0.0
    %687 = vmatpush1.msra.mxu0 0.0
    %688 = vmatprep.subr.mxu0 0.0
    %689 = vmatpush1.msra.mxu0 0.0
    %690 = vmatprep.subr.mxu0 0.0
    %691 = vmatpush1.msra.mxu0 0.0
    %692 = vmatprep.subr.mxu0 0.0
    %693 = vmatpush1.msra.mxu0 0.0
    %694 = vmatprep.subr.mxu0 0.0
    %695 = vmatpush1.msra.mxu0 0.0
    %696 = vmatprep.subr.mxu0 0.0
    %697 = vmatpush1.msra.mxu0 0.0
    %698 = vmatprep.subr.mxu0 0.0
    %699 = vmatpush1.msra.mxu0 0.0
    %700 = vmatprep.subr.mxu0 0.0
    %701 = vmatpush1.msra.mxu0 0.0
    %702 = vmatprep.subr.mxu0 0.0
    %703 = vmatpush1.msra.mxu0 0.0
    %704 = vmatprep.mubr.f32.mxu0 0.0
    %v705 = vand.u32 %v54, 4294901760
    %706 = vmatmul.mubr.f32.gmra.mrb[0].mxu0 %v705
    %v707 = vpop.f32.mrb[0].mxu0
    %v708 = vadd.f32 %v632, %v707
    %v709 = vpop.f32.mrb[0].mxu0
    %710 = vdwg.mxu0
    %711 = vmatprep.subr.mxu0 0.0
    %v712 = vand.u32 %v557, 4294901760
    %v713 = vsub.f32 %v557, %v712
    %714 = vmatpush1.msra.mxu0 %v713
    %715 = vmatprep.subr.mxu0 0.0
    %716 = vmatpush1.msra.mxu0 0.0
    %717 = vmatprep.subr.mxu0 0.0
    %718 = vmatpush1.msra.mxu0 0.0
    %719 = vmatprep.subr.mxu0 0.0
    %720 = vmatpush1.msra.mxu0 0.0
    %721 = vmatprep.subr.mxu0 0.0
    %722 = vmatpush1.msra.mxu0 0.0
    %723 = vmatprep.subr.mxu0 0.0
    %724 = vmatpush1.msra.mxu0 0.0
    %725 = vmatprep.subr.mxu0 0.0
    %726 = vmatpush1.msra.mxu0 0.0
    %727 = vmatprep.subr.mxu0 0.0
    %728 = vmatpush1.msra.mxu0 0.0
    %729 = vmatprep.subr.mxu0 0.0
    %730 = vmatpush1.msra.mxu0 0.0
    %731 = vmatprep.subr.mxu0 0.0
    %732 = vmatpush1.msra.mxu0 0.0
    %733 = vmatprep.subr.mxu0 0.0
    %734 = vmatpush1.msra.mxu0 0.0
    %735 = vmatprep.subr.mxu0 0.0
    %736 = vmatpush1.msra.mxu0 0.0
    %737 = vmatprep.subr.mxu0 0.0
    %738 = vmatpush1.msra.mxu0 0.0
    %739 = vmatprep.subr.mxu0 0.0
    %740 = vmatpush1.msra.mxu0 0.0
    %741 = vmatprep.subr.mxu0 0.0
    %742 = vmatpush1.msra.mxu0 0.0
    %743 = vmatprep.subr.mxu0 0.0
    %744 = vmatpush1.msra.mxu0 0.0
    %745 = vmatprep.subr.mxu0 0.0
    %746 = vmatpush1.msra.mxu0 0.0
    %747 = vmatprep.subr.mxu0 0.0
    %748 = vmatpush1.msra.mxu0 0.0
    %749 = vmatprep.subr.mxu0 0.0
    %750 = vmatpush1.msra.mxu0 0.0
    %751 = vmatprep.subr.mxu0 0.0
    %752 = vmatpush1.msra.mxu0 0.0
    %753 = vmatprep.subr.mxu0 0.0
    %754 = vmatpush1.msra.mxu0 0.0
    %755 = vmatprep.subr.mxu0 0.0
    %756 = vmatpush1.msra.mxu0 0.0
    %757 = vmatprep.subr.mxu0 0.0
    %758 = vmatpush1.msra.mxu0 0.0
    %759 = vmatprep.subr.mxu0 0.0
    %760 = vmatpush1.msra.mxu0 0.0
    %761 = vmatprep.subr.mxu0 0.0
    %762 = vmatpush1.msra.mxu0 0.0
    %763 = vmatprep.subr.mxu0 0.0
    %764 = vmatpush1.msra.mxu0 0.0
    %765 = vmatprep.subr.mxu0 0.0
    %766 = vmatpush1.msra.mxu0 0.0
    %767 = vmatprep.subr.mxu0 0.0
    %768 = vmatpush1.msra.mxu0 0.0
    %769 = vmatprep.subr.mxu0 0.0
    %770 = vmatpush1.msra.mxu0 0.0
    %771 = vmatprep.subr.mxu0 0.0
    %772 = vmatpush1.msra.mxu0 0.0
    %773 = vmatprep.subr.mxu0 0.0
    %774 = vmatpush1.msra.mxu0 0.0
    %775 = vmatprep.subr.mxu0 0.0
    %776 = vmatpush1.msra.mxu0 0.0
    %777 = vmatprep.mubr.f32.mxu0 0.0
    %v778 = vand.u32 %v54, 4294901760
    %v779 = vsub.f32 %v54, %v778
    %780 = vmatmul.mubr.f32.gmra.mrb[0].mxu0 %v779
    %v781 = vpop.f32.mrb[0].mxu0
    %v782 = vadd.f32 %v708, %v781
    %v783 = vpop.f32.mrb[0].mxu0
    %784 = vdwg.mxu0
    %785 = vmatprep.subr.mxu0 0.0
    %v786 = vand.u32 %v557, 4294901760
    %787 = vmatpush1.msra.mxu0 %v786
    %788 = vmatprep.subr.mxu0 0.0
    %789 = vmatpush1.msra.mxu0 0.0
    %790 = vmatprep.subr.mxu0 0.0
    %791 = vmatpush1.msra.mxu0 0.0
    %792 = vmatprep.subr.mxu0 0.0
    %793 = vmatpush1.msra.mxu0 0.0
    %794 = vmatprep.subr.mxu0 0.0
    %795 = vmatpush1.msra.mxu0 0.0
    %796 = vmatprep.subr.mxu0 0.0
    %797 = vmatpush1.msra.mxu0 0.0
    %798 = vmatprep.subr.mxu0 0.0
    %799 = vmatpush1.msra.mxu0 0.0
    %800 = vmatprep.subr.mxu0 0.0
    %801 = vmatpush1.msra.mxu0 0.0
    %802 = vmatprep.subr.mxu0 0.0
    %803 = vmatpush1.msra.mxu0 0.0
    %804 = vmatprep.subr.mxu0 0.0
    %805 = vmatpush1.msra.mxu0 0.0
    %806 = vmatprep.subr.mxu0 0.0
    %807 = vmatpush1.msra.mxu0 0.0
    %808 = vmatprep.subr.mxu0 0.0
    %809 = vmatpush1.msra.mxu0 0.0
    %810 = vmatprep.subr.mxu0 0.0
    %811 = vmatpush1.msra.mxu0 0.0
    %812 = vmatprep.subr.mxu0 0.0
    %813 = vmatpush1.msra.mxu0 0.0
    %814 = vmatprep.subr.mxu0 0.0
    %815 = vmatpush1.msra.mxu0 0.0
    %816 = vmatprep.subr.mxu0 0.0
    %817 = vmatpush1.msra.mxu0 0.0
    %818 = vmatprep.subr.mxu0 0.0
    %819 = vmatpush1.msra.mxu0 0.0
    %820 = vmatprep.subr.mxu0 0.0
    %821 = vmatpush1.msra.mxu0 0.0
    %822 = vmatprep.subr.mxu0 0.0
    %823 = vmatpush1.msra.mxu0 0.0
    %824 = vmatprep.subr.mxu0 0.0
    %825 = vmatpush1.msra.mxu0 0.0
    %826 = vmatprep.subr.mxu0 0.0
    %827 = vmatpush1.msra.mxu0 0.0
    %828 = vmatprep.subr.mxu0 0.0
    %829 = vmatpush1.msra.mxu0 0.0
    %830 = vmatprep.subr.mxu0 0.0
    %831 = vmatpush1.msra.mxu0 0.0
    %832 = vmatprep.subr.mxu0 0.0
    %833 = vmatpush1.msra.mxu0 0.0
    %834 = vmatprep.subr.mxu0 0.0
    %835 = vmatpush1.msra.mxu0 0.0
    %836 = vmatprep.subr.mxu0 0.0
    %837 = vmatpush1.msra.mxu0 0.0
    %838 = vmatprep.subr.mxu0 0.0
    %839 = vmatpush1.msra.mxu0 0.0
    %840 = vmatprep.subr.mxu0 0.0
    %841 = vmatpush1.msra.mxu0 0.0
    %842 = vmatprep.subr.mxu0 0.0
    %843 = vmatpush1.msra.mxu0 0.0
    %844 = vmatprep.subr.mxu0 0.0
    %845 = vmatpush1.msra.mxu0 0.0
    %846 = vmatprep.subr.mxu0 0.0
    %847 = vmatpush1.msra.mxu0 0.0
    %848 = vmatprep.subr.mxu0 0.0
    %849 = vmatpush1.msra.mxu0 0.0
    %850 = vmatprep.mubr.f32.mxu0 0.0
    %v851 = vand.u32 %v54, 4294901760
    %v852 = vsub.f32 %v54, %v851
    %v853 = vand.u32 %v852, 4294901760
    %854 = vmatmul.mubr.f32.gmra.mrb[0].mxu0 %v853
    %v855 = vpop.f32.mrb[0].mxu0
    %v856 = vadd.f32 %v782, %v855
    %v857 = vpop.f32.mrb[0].mxu0
    %858 = vdwg.mxu0
    %859 = vmatprep.subr.mxu0 0.0
    %v860 = vand.u32 %v557, 4294901760
    %v861 = vsub.f32 %v557, %v860
    %v862 = vand.u32 %v861, 4294901760
    %863 = vmatpush1.msra.mxu0 %v862
    %864 = vmatprep.subr.mxu0 0.0
    %865 = vmatpush1.msra.mxu0 0.0
    %866 = vmatprep.subr.mxu0 0.0
    %867 = vmatpush1.msra.mxu0 0.0
    %868 = vmatprep.subr.mxu0 0.0
    %869 = vmatpush1.msra.mxu0 0.0
    %870 = vmatprep.subr.mxu0 0.0
    %871 = vmatpush1.msra.mxu0 0.0
    %872 = vmatprep.subr.mxu0 0.0
    %873 = vmatpush1.msra.mxu0 0.0
    %874 = vmatprep.subr.mxu0 0.0
    %875 = vmatpush1.msra.mxu0 0.0
    %876 = vmatprep.subr.mxu0 0.0
    %877 = vmatpush1.msra.mxu0 0.0
    %878 = vmatprep.subr.mxu0 0.0
    %879 = vmatpush1.msra.mxu0 0.0
    %880 = vmatprep.subr.mxu0 0.0
    %881 = vmatpush1.msra.mxu0 0.0
    %882 = vmatprep.subr.mxu0 0.0
    %883 = vmatpush1.msra.mxu0 0.0
    %884 = vmatprep.subr.mxu0 0.0
    %885 = vmatpush1.msra.mxu0 0.0
    %886 = vmatprep.subr.mxu0 0.0
    %887 = vmatpush1.msra.mxu0 0.0
    %888 = vmatprep.subr.mxu0 0.0
    %889 = vmatpush1.msra.mxu0 0.0
    %890 = vmatprep.subr.mxu0 0.0
    %891 = vmatpush1.msra.mxu0 0.0
    %892 = vmatprep.subr.mxu0 0.0
    %893 = vmatpush1.msra.mxu0 0.0
    %894 = vmatprep.subr.mxu0 0.0
    %895 = vmatpush1.msra.mxu0 0.0
    %896 = vmatprep.subr.mxu0 0.0
    %897 = vmatpush1.msra.mxu0 0.0
    %898 = vmatprep.subr.mxu0 0.0
    %899 = vmatpush1.msra.mxu0 0.0
    %900 = vmatprep.subr.mxu0 0.0
    %901 = vmatpush1.msra.mxu0 0.0
    %902 = vmatprep.subr.mxu0 0.0
    %903 = vmatpush1.msra.mxu0 0.0
    %904 = vmatprep.subr.mxu0 0.0
    %905 = vmatpush1.msra.mxu0 0.0
    %906 = vmatprep.subr.mxu0 0.0
    %907 = vmatpush1.msra.mxu0 0.0
    %908 = vmatprep.subr.mxu0 0.0
    %909 = vmatpush1.msra.mxu0 0.0
    %910 = vmatprep.subr.mxu0 0.0
    %911 = vmatpush1.msra.mxu0 0.0
    %912 = vmatprep.subr.mxu0 0.0
    %913 = vmatpush1.msra.mxu0 0.0
    %914 = vmatprep.subr.mxu0 0.0
    %915 = vmatpush1.msra.mxu0 0.0
    %916 = vmatprep.subr.mxu0 0.0
    %917 = vmatpush1.msra.mxu0 0.0
    %918 = vmatprep.subr.mxu0 0.0
    %919 = vmatpush1.msra.mxu0 0.0
    %920 = vmatprep.subr.mxu0 0.0
    %921 = vmatpush1.msra.mxu0 0.0
    %922 = vmatprep.subr.mxu0 0.0
    %923 = vmatpush1.msra.mxu0 0.0
    %924 = vmatprep.subr.mxu0 0.0
    %925 = vmatpush1.msra.mxu0 0.0
    %926 = vmatprep.mubr.f32.mxu0 0.0
    %v927 = vand.u32 %v54, 4294901760
    %928 = vmatmul.mubr.f32.gmra.mrb[0].mxu0 %v927
    %v929 = vpop.f32.mrb[0].mxu0
    %v930 = vadd.f32 %v856, %v929
    %v931 = vpop.f32.mrb[0].mxu0
    %932 = vdwg.mxu0
    %933 = vmatprep.subr.mxu0 0.0
    %v934 = vand.u32 %v557, 4294901760
    %935 = vmatpush1.msra.mxu0 %v934
    %936 = vmatprep.subr.mxu0 0.0
    %937 = vmatpush1.msra.mxu0 0.0
    %938 = vmatprep.subr.mxu0 0.0
    %939 = vmatpush1.msra.mxu0 0.0
    %940 = vmatprep.subr.mxu0 0.0
    %941 = vmatpush1.msra.mxu0 0.0
    %942 = vmatprep.subr.mxu0 0.0
    %943 = vmatpush1.msra.mxu0 0.0
    %944 = vmatprep.subr.mxu0 0.0
    %945 = vmatpush1.msra.mxu0 0.0
    %946 = vmatprep.subr.mxu0 0.0
    %947 = vmatpush1.msra.mxu0 0.0
    %948 = vmatprep.subr.mxu0 0.0
    %949 = vmatpush1.msra.mxu0 0.0
    %950 = vmatprep.subr.mxu0 0.0
    %951 = vmatpush1.msra.mxu0 0.0
    %952 = vmatprep.subr.mxu0 0.0
    %953 = vmatpush1.msra.mxu0 0.0
    %954 = vmatprep.subr.mxu0 0.0
    %955 = vmatpush1.msra.mxu0 0.0
    %956 = vmatprep.subr.mxu0 0.0
    %957 = vmatpush1.msra.mxu0 0.0
    %958 = vmatprep.subr.mxu0 0.0
    %959 = vmatpush1.msra.mxu0 0.0
    %960 = vmatprep.subr.mxu0 0.0
    %961 = vmatpush1.msra.mxu0 0.0
    %962 = vmatprep.subr.mxu0 0.0
    %963 = vmatpush1.msra.mxu0 0.0
    %964 = vmatprep.subr.mxu0 0.0
    %965 = vmatpush1.msra.mxu0 0.0
    %966 = vmatprep.subr.mxu0 0.0
    %967 = vmatpush1.msra.mxu0 0.0
    %968 = vmatprep.subr.mxu0 0.0
    %969 = vmatpush1.msra.mxu0 0.0
    %970 = vmatprep.subr.mxu0 0.0
    %971 = vmatpush1.msra.mxu0 0.0
    %972 = vmatprep.subr.mxu0 0.0
    %973 = vmatpush1.msra.mxu0 0.0
    %974 = vmatprep.subr.mxu0 0.0
    %975 = vmatpush1.msra.mxu0 0.0
    %976 = vmatprep.subr.mxu0 0.0
    %977 = vmatpush1.msra.mxu0 0.0
    %978 = vmatprep.subr.mxu0 0.0
    %979 = vmatpush1.msra.mxu0 0.0
    %980 = vmatprep.subr.mxu0 0.0
    %981 = vmatpush1.msra.mxu0 0.0
    %982 = vmatprep.subr.mxu0 0.0
    %983 = vmatpush1.msra.mxu0 0.0
    %984 = vmatprep.subr.mxu0 0.0
    %985 = vmatpush1.msra.mxu0 0.0
    %986 = vmatprep.subr.mxu0 0.0
    %987 = vmatpush1.msra.mxu0 0.0
    %988 = vmatprep.subr.mxu0 0.0
    %989 = vmatpush1.msra.mxu0 0.0
    %990 = vmatprep.subr.mxu0 0.0
    %991 = vmatpush1.msra.mxu0 0.0
    %992 = vmatprep.subr.mxu0 0.0
    %993 = vmatpush1.msra.mxu0 0.0
    %994 = vmatprep.subr.mxu0 0.0
    %995 = vmatpush1.msra.mxu0 0.0
    %996 = vmatprep.subr.mxu0 0.0
    %997 = vmatpush1.msra.mxu0 0.0
    %998 = vmatprep.mubr.f32.mxu0 0.0
    %v999 = vand.u32 %v54, 4294901760
    %1000 = vmatmul.mubr.f32.gmra.mrb[0].mxu0 %v999
    %v1001 = vpop.f32.mrb[0].mxu0
    %v1002 = vadd.f32 %v930, %v1001
    %v1003 = vpop.f32.mrb[0].mxu0
    %1004 = vdwg.mxu0
    %v1005 = vlaneseq
    %v1006 = vshrl.u32 %v1005, 7
    %v1007 = vsub.s32 0, %v1006
    %v1008 = vrot.slane %v1002, %v1007
    %1010 = vrot.lane.b32.xlu0 %v1008, 72
    %v1011 = vpop.permute.xlu0 %1010
    %vm1013 = vcmask 1048128
    %1014 = vst.msk [vmem:[#allocation2 + $0x20] sm:$0xff] %vm1013, %v1011
    %vm1015 = vcmask 588800
    %1016 = vst.msk [vmem:[#allocation2 + $0x28] sm:$0xff] %vm1015, %v1011
    %v1017 = vlaneseq
    %v1018 = vshrl.u32 %v1017, 7
    %v1019 = vsub.s32 1, %v1018
    %v1020 = vrot.slane %v1002, %v1019
    %1022 = vrot.lane.b32.xlu0 %v1020, 88
    %v1023 = vpop.permute.xlu0 %1022
    %vm1025 = vcmask 1048256
    %1026 = vst.msk [vmem:[#allocation2 + $0x28] sm:$0xff] %vm1025, %v1023
    %vm1027 = vcmask 719872
    %1028 = vst.msk [vmem:[#allocation2 + $0x30] sm:$0xff] %vm1027, %v1023
    %v1029 = vlaneseq
    %v1030 = vshrl.u32 %v1029, 7
    %v1031 = vsub.s32 2, %v1030
    %v1032 = vrot.slane %v1002, %v1031
    %1034 = vrot.lane.b32.xlu0 %v1032, 104
    %v1035 = vpop.permute.xlu0 %1034
    %vm1037 = vcmask 1048384
    %1038 = vst.msk [vmem:[#allocation2 + $0x30] sm:$0xff] %vm1037, %v1035
    %vm1039 = vcmask 850944
    %1040 = vst.msk [vmem:[#allocation2 + $0x38] sm:$0xff] %vm1039, %v1035
    %v1041 = vlaneseq
    %v1042 = vshrl.u32 %v1041, 7
    %v1043 = vsub.s32 3, %v1042
    %v1044 = vrot.slane %v1002, %v1043
    %1046 = vrot.lane.b32.xlu0 %v1044, 120
    %v1047 = vpop.permute.xlu0 %1046
    %vm1049 = vcmask 1048512
    %1050 = vst.msk [vmem:[#allocation2 + $0x38] sm:$0xff] %vm1049, %v1047
    %vm1051 = vcmask 982016
    %1052 = vst.msk [vmem:[#allocation2 + $0x40] sm:$0xff] %vm1051, %v1047
    %v1053 = vld [vmem:[#allocation2] sm:$0xff]
    %v1054 = vld [vmem:[#allocation2 + $0x8] sm:$0xff]
    %v1055 = vld [vmem:[#allocation2 + $0x10] sm:$0xff]
    %v1056 = vld [vmem:[#allocation2 + $0x18] sm:$0xff]
    %v1057 = vld [vmem:[#allocation2 + $0x20] sm:$0xff]
    %v1058 = vld [vmem:[#allocation2 + $0x28] sm:$0xff]
    %v1059 = vld [vmem:[#allocation2 + $0x30] sm:$0xff]
    %v1060 = vld [vmem:[#allocation2 + $0x38] sm:$0xff]
    %v1061 = vld [vmem:[#allocation2 + $0x40] sm:$0xff]
    %v1062 = vld [vmem:[#allocation2 + $0x48] sm:$0xff]
    %v1063 = vld [vmem:[%s3] sm:$0xff]
    %1065 = vset.pattern.permute.xlu0 0
    %1066 = vperm.xlu0 %1065, %v1063
    %v1067 = vpop.permute.xlu0 %1066
    %v1069 = vmul.f32 %v1067, %v1053
    %v1070 = vmul.f32 %v1067, %v1054
    %v1071 = vmul.f32 %v1067, %v1055
    %v1072 = vmul.f32 %v1067, %v1056
    %v1073 = vmul.f32 %v1067, %v1057
    %v1074 = vmul.f32 %v1067, %v1058
    %v1075 = vmul.f32 %v1067, %v1059
    %v1076 = vmul.f32 %v1067, %v1060
    %v1077 = vmul.f32 %v1067, %v1061
    %1078 = vset.pattern.permute.xlu0 1
    %1079 = vperm.xlu0 %1078, %v1063
    %v1080 = vpop.permute.xlu0 %1079
    %v1082 = vmul.f32 %v1080, %v1053
    %v1083 = vmul.f32 %v1080, %v1054
    %v1084 = vmul.f32 %v1080, %v1055
    %v1085 = vmul.f32 %v1080, %v1056
    %v1086 = vmul.f32 %v1080, %v1057
    %v1087 = vmul.f32 %v1080, %v1058
    %v1088 = vmul.f32 %v1080, %v1059
    %v1089 = vmul.f32 %v1080, %v1060
    %v1090 = vmul.f32 %v1080, %v1061
    %v1091 = vmul.f32 %v1080, %v1062
    %1102 = vrot.lane.b32.xlu0 %v1082, 127
    %v1103 = vpop.permute.xlu0 %1102
    %1104 = vrot.lane.b32.xlu0 %v1083, 127
    %v1105 = vpop.permute.xlu0 %1104
    %1106 = vrot.lane.b32.xlu0 %v1084, 127
    %v1107 = vpop.permute.xlu0 %1106
    %1108 = vrot.lane.b32.xlu0 %v1085, 127
    %v1109 = vpop.permute.xlu0 %1108
    %1110 = vrot.lane.b32.xlu0 %v1086, 127
    %v1111 = vpop.permute.xlu0 %1110
    %1112 = vrot.lane.b32.xlu0 %v1087, 127
    %v1113 = vpop.permute.xlu0 %1112
    %1114 = vrot.lane.b32.xlu0 %v1088, 127
    %v1115 = vpop.permute.xlu0 %1114
    %1116 = vrot.lane.b32.xlu0 %v1089, 127
    %v1117 = vpop.permute.xlu0 %1116
    %1118 = vrot.lane.b32.xlu0 %v1090, 127
    %v1119 = vpop.permute.xlu0 %1118
    %1120 = vrot.lane.b32.xlu0 %v1091, 127
    %v1121 = vpop.permute.xlu0 %1120
    %vm1122 = vcmask 1039360
    %v1123 = vsel %vm1122, %v1103, %v1105
    %v1124 = vsel %vm1122, %v1105, %v1107
    %v1125 = vsel %vm1122, %v1107, %v1109
    %v1126 = vsel %vm1122, %v1109, %v1111
    %v1127 = vsel %vm1122, %v1111, %v1113
    %v1128 = vsel %vm1122, %v1113, %v1115
    %v1129 = vsel %vm1122, %v1115, %v1117
    %v1130 = vsel %vm1122, %v1117, %v1119
    %v1131 = vsel %vm1122, %v1119, %v1121
    %v1141 = vadd.f32 %v1069, %v1123
    %v1142 = vadd.f32 %v1070, %v1124
    %v1143 = vadd.f32 %v1071, %v1125
    %v1144 = vadd.f32 %v1072, %v1126
    %v1145 = vadd.f32 %v1073, %v1127
    %v1146 = vadd.f32 %v1074, %v1128
    %v1147 = vadd.f32 %v1075, %v1129
    %v1148 = vadd.f32 %v1076, %v1130
    %v1149 = vadd.f32 %v1077, %v1131
    %1150 = vset.pattern.permute.xlu0 2
    %1151 = vperm.xlu0 %1150, %v1063
    %v1152 = vpop.permute.xlu0 %1151
    %v1154 = vmul.f32 %v1152, %v1053
    %v1155 = vmul.f32 %v1152, %v1054
    %v1156 = vmul.f32 %v1152, %v1055
    %v1157 = vmul.f32 %v1152, %v1056
    %v1158 = vmul.f32 %v1152, %v1057
    %v1159 = vmul.f32 %v1152, %v1058
    %v1160 = vmul.f32 %v1152, %v1059
    %v1161 = vmul.f32 %v1152, %v1060
    %v1162 = vmul.f32 %v1152, %v1061
    %v1163 = vmul.f32 %v1152, %v1062
    %1174 = vrot.lane.b32.xlu0 %v1154, 126
    %v1175 = vpop.permute.xlu0 %1174
    %1176 = vrot.lane.b32.xlu0 %v1155, 126
    %v1177 = vpop.permute.xlu0 %1176
    %1178 = vrot.lane.b32.xlu0 %v1156, 126
    %v1179 = vpop.permute.xlu0 %1178
    %1180 = vrot.lane.b32.xlu0 %v1157, 126
    %v1181 = vpop.permute.xlu0 %1180
    %1182 = vrot.lane.b32.xlu0 %v1158, 126
    %v1183 = vpop.permute.xlu0 %1182
    %1184 = vrot.lane.b32.xlu0 %v1159, 126
    %v1185 = vpop.permute.xlu0 %1184
    %1186 = vrot.lane.b32.xlu0 %v1160, 126
    %v1187 = vpop.permute.xlu0 %1186
    %1188 = vrot.lane.b32.xlu0 %v1161, 126
    %v1189 = vpop.permute.xlu0 %1188
    %1190 = vrot.lane.b32.xlu0 %v1162, 126
    %v1191 = vpop.permute.xlu0 %1190
    %1192 = vrot.lane.b32.xlu0 %v1163, 126
    %v1193 = vpop.permute.xlu0 %1192
    %vm1194 = vcmask 1031168
    %v1195 = vsel %vm1194, %v1175, %v1177
    %v1196 = vsel %vm1194, %v1177, %v1179
    %v1197 = vsel %vm1194, %v1179, %v1181
    %v1198 = vsel %vm1194, %v1181, %v1183
    %v1199 = vsel %vm1194, %v1183, %v1185
    %v1200 = vsel %vm1194, %v1185, %v1187
    %v1201 = vsel %vm1194, %v1187, %v1189
    %v1202 = vsel %vm1194, %v1189, %v1191
    %v1203 = vsel %vm1194, %v1191, %v1193
    %v1213 = vadd.f32 %v1141, %v1195
    %v1214 = vadd.f32 %v1142, %v1196
    %v1215 = vadd.f32 %v1143, %v1197
    %v1216 = vadd.f32 %v1144, %v1198
    %v1217 = vadd.f32 %v1145, %v1199
    %v1218 = vadd.f32 %v1146, %v1200
    %v1219 = vadd.f32 %v1147, %v1201
    %v1220 = vadd.f32 %v1148, %v1202
    %v1221 = vadd.f32 %v1149, %v1203
    %1222 = vset.pattern.permute.xlu0 3
    %1223 = vperm.xlu0 %1222, %v1063
    %v1224 = vpop.permute.xlu0 %1223
    %v1226 = vmul.f32 %v1224, %v1053
    %v1227 = vmul.f32 %v1224, %v1054
    %v1228 = vmul.f32 %v1224, %v1055
    %v1229 = vmul.f32 %v1224, %v1056
    %v1230 = vmul.f32 %v1224, %v1057
    %v1231 = vmul.f32 %v1224, %v1058
    %v1232 = vmul.f32 %v1224, %v1059
    %v1233 = vmul.f32 %v1224, %v1060
    %v1234 = vmul.f32 %v1224, %v1061
    %v1235 = vmul.f32 %v1224, %v1062
    %1246 = vrot.lane.b32.xlu0 %v1226, 125
    %v1247 = vpop.permute.xlu0 %1246
    %1248 = vrot.lane.b32.xlu0 %v1227, 125
    %v1249 = vpop.permute.xlu0 %1248
    %1250 = vrot.lane.b32.xlu0 %v1228, 125
    %v1251 = vpop.permute.xlu0 %1250
    %1252 = vrot.lane.b32.xlu0 %v1229, 125
    %v1253 = vpop.permute.xlu0 %1252
    %1254 = vrot.lane.b32.xlu0 %v1230, 125
    %v1255 = vpop.permute.xlu0 %1254
    %1256 = vrot.lane.b32.xlu0 %v1231, 125
    %v1257 = vpop.permute.xlu0 %1256
    %1258 = vrot.lane.b32.xlu0 %v1232, 125
    %v1259 = vpop.permute.xlu0 %1258
    %1260 = vrot.lane.b32.xlu0 %v1233, 125
    %v1261 = vpop.permute.xlu0 %1260
    %1262 = vrot.lane.b32.xlu0 %v1234, 125
    %v1263 = vpop.permute.xlu0 %1262
    %1264 = vrot.lane.b32.xlu0 %v1235, 125
    %v1265 = vpop.permute.xlu0 %1264
    %vm1266 = vcmask 1022976
    %v1267 = vsel %vm1266, %v1247, %v1249
    %v1268 = vsel %vm1266, %v1249, %v1251
    %v1269 = vsel %vm1266, %v1251, %v1253
    %v1270 = vsel %vm1266, %v1253, %v1255
    %v1271 = vsel %vm1266, %v1255, %v1257
    %v1272 = vsel %vm1266, %v1257, %v1259
    %v1273 = vsel %vm1266, %v1259, %v1261
    %v1274 = vsel %vm1266, %v1261, %v1263
    %v1275 = vsel %vm1266, %v1263, %v1265
    %v1285 = vadd.f32 %v1213, %v1267
    %v1286 = vadd.f32 %v1214, %v1268
    %v1287 = vadd.f32 %v1215, %v1269
    %v1288 = vadd.f32 %v1216, %v1270
    %v1289 = vadd.f32 %v1217, %v1271
    %v1290 = vadd.f32 %v1218, %v1272
    %v1291 = vadd.f32 %v1219, %v1273
    %v1292 = vadd.f32 %v1220, %v1274
    %v1293 = vadd.f32 %v1221, %v1275
    %1294 = vset.pattern.permute.xlu0 4
    %1295 = vperm.xlu0 %1294, %v1063
    %v1296 = vpop.permute.xlu0 %1295
    %v1298 = vmul.f32 %v1296, %v1053
    %v1299 = vmul.f32 %v1296, %v1054
    %v1300 = vmul.f32 %v1296, %v1055
    %v1301 = vmul.f32 %v1296, %v1056
    %v1302 = vmul.f32 %v1296, %v1057
    %v1303 = vmul.f32 %v1296, %v1058
    %v1304 = vmul.f32 %v1296, %v1059
    %v1305 = vmul.f32 %v1296, %v1060
    %v1306 = vmul.f32 %v1296, %v1061
    %v1307 = vmul.f32 %v1296, %v1062
    %1318 = vrot.lane.b32.xlu0 %v1298, 124
    %v1319 = vpop.permute.xlu0 %1318
    %1320 = vrot.lane.b32.xlu0 %v1299, 124
    %v1321 = vpop.permute.xlu0 %1320
    %1322 = vrot.lane.b32.xlu0 %v1300, 124
    %v1323 = vpop.permute.xlu0 %1322
    %1324 = vrot.lane.b32.xlu0 %v1301, 124
    %v1325 = vpop.permute.xlu0 %1324
    %1326 = vrot.lane.b32.xlu0 %v1302, 124
    %v1327 = vpop.permute.xlu0 %1326
    %1328 = vrot.lane.b32.xlu0 %v1303, 124
    %v1329 = vpop.permute.xlu0 %1328
    %1330 = vrot.lane.b32.xlu0 %v1304, 124
    %v1331 = vpop.permute.xlu0 %1330
    %1332 = vrot.lane.b32.xlu0 %v1305, 124
    %v1333 = vpop.permute.xlu0 %1332
    %1334 = vrot.lane.b32.xlu0 %v1306, 124
    %v1335 = vpop.permute.xlu0 %1334
    %1336 = vrot.lane.b32.xlu0 %v1307, 124
    %v1337 = vpop.permute.xlu0 %1336
    %vm1338 = vcmask 1014784
    %v1339 = vsel %vm1338, %v1319, %v1321
    %v1340 = vsel %vm1338, %v1321, %v1323
    %v1341 = vsel %vm1338, %v1323, %v1325
    %v1342 = vsel %vm1338, %v1325, %v1327
    %v1343 = vsel %vm1338, %v1327, %v1329
    %v1344 = vsel %vm1338, %v1329, %v1331
    %v1345 = vsel %vm1338, %v1331, %v1333
    %v1346 = vsel %vm1338, %v1333, %v1335
    %v1347 = vsel %vm1338, %v1335, %v1337
    %v1357 = vadd.f32 %v1285, %v1339
    %v1358 = vadd.f32 %v1286, %v1340
    %v1359 = vadd.f32 %v1287, %v1341
    %v1360 = vadd.f32 %v1288, %v1342
    %v1361 = vadd.f32 %v1289, %v1343
    %v1362 = vadd.f32 %v1290, %v1344
    %v1363 = vadd.f32 %v1291, %v1345
    %v1364 = vadd.f32 %v1292, %v1346
    %v1365 = vadd.f32 %v1293, %v1347
    %1366 = vset.pattern.permute.xlu0 5
    %1367 = vperm.xlu0 %1366, %v1063
    %v1368 = vpop.permute.xlu0 %1367
    %v1370 = vmul.f32 %v1368, %v1053
    %v1371 = vmul.f32 %v1368, %v1054
    %v1372 = vmul.f32 %v1368, %v1055
    %v1373 = vmul.f32 %v1368, %v1056
    %v1374 = vmul.f32 %v1368, %v1057
    %v1375 = vmul.f32 %v1368, %v1058
    %v1376 = vmul.f32 %v1368, %v1059
    %v1377 = vmul.f32 %v1368, %v1060
    %v1378 = vmul.f32 %v1368, %v1061
    %v1379 = vmul.f32 %v1368, %v1062
    %1390 = vrot.lane.b32.xlu0 %v1370, 123
    %v1391 = vpop.permute.xlu0 %1390
    %1392 = vrot.lane.b32.xlu0 %v1371, 123
    %v1393 = vpop.permute.xlu0 %1392
    %1394 = vrot.lane.b32.xlu0 %v1372, 123
    %v1395 = vpop.permute.xlu0 %1394
    %1396 = vrot.lane.b32.xlu0 %v1373, 123
    %v1397 = vpop.permute.xlu0 %1396
    %1398 = vrot.lane.b32.xlu0 %v1374, 123
    %v1399 = vpop.permute.xlu0 %1398
    %1400 = vrot.lane.b32.xlu0 %v1375, 123
    %v1401 = vpop.permute.xlu0 %1400
    %1402 = vrot.lane.b32.xlu0 %v1376, 123
    %v1403 = vpop.permute.xlu0 %1402
    %1404 = vrot.lane.b32.xlu0 %v1377, 123
    %v1405 = vpop.permute.xlu0 %1404
    %1406 = vrot.lane.b32.xlu0 %v1378, 123
    %v1407 = vpop.permute.xlu0 %1406
    %1408 = vrot.lane.b32.xlu0 %v1379, 123
    %v1409 = vpop.permute.xlu0 %1408
    %vm1410 = vcmask 1006592
    %v1411 = vsel %vm1410, %v1391, %v1393
    %v1412 = vsel %vm1410, %v1393, %v1395
    %v1413 = vsel %vm1410, %v1395, %v1397
    %v1414 = vsel %vm1410, %v1397, %v1399
    %v1415 = vsel %vm1410, %v1399, %v1401
    %v1416 = vsel %vm1410, %v1401, %v1403
    %v1417 = vsel %vm1410, %v1403, %v1405
    %v1418 = vsel %vm1410, %v1405, %v1407
    %v1419 = vsel %vm1410, %v1407, %v1409
    %v1429 = vadd.f32 %v1357, %v1411
    %v1430 = vadd.f32 %v1358, %v1412
    %v1431 = vadd.f32 %v1359, %v1413
    %v1432 = vadd.f32 %v1360, %v1414
    %v1433 = vadd.f32 %v1361, %v1415
    %v1434 = vadd.f32 %v1362, %v1416
    %v1435 = vadd.f32 %v1363, %v1417
    %v1436 = vadd.f32 %v1364, %v1418
    %v1437 = vadd.f32 %v1365, %v1419
    %1438 = vset.pattern.permute.xlu0 6
    %1439 = vperm.xlu0 %1438, %v1063
    %v1440 = vpop.permute.xlu0 %1439
    %v1442 = vmul.f32 %v1440, %v1053
    %v1443 = vmul.f32 %v1440, %v1054
    %v1444 = vmul.f32 %v1440, %v1055
    %v1445 = vmul.f32 %v1440, %v1056
    %v1446 = vmul.f32 %v1440, %v1057
    %v1447 = vmul.f32 %v1440, %v1058
    %v1448 = vmul.f32 %v1440, %v1059
    %v1449 = vmul.f32 %v1440, %v1060
    %v1450 = vmul.f32 %v1440, %v1061
    %v1451 = vmul.f32 %v1440, %v1062
    %1462 = vrot.lane.b32.xlu0 %v1442, 122
    %v1463 = vpop.permute.xlu0 %1462
    %1464 = vrot.lane.b32.xlu0 %v1443, 122
    %v1465 = vpop.permute.xlu0 %1464
    %1466 = vrot.lane.b32.xlu0 %v1444, 122
    %v1467 = vpop.permute.xlu0 %1466
    %1468 = vrot.lane.b32.xlu0 %v1445, 122
    %v1469 = vpop.permute.xlu0 %1468
    %1470 = vrot.lane.b32.xlu0 %v1446, 122
    %v1471 = vpop.permute.xlu0 %1470
    %1472 = vrot.lane.b32.xlu0 %v1447, 122
    %v1473 = vpop.permute.xlu0 %1472
    %1474 = vrot.lane.b32.xlu0 %v1448, 122
    %v1475 = vpop.permute.xlu0 %1474
    %1476 = vrot.lane.b32.xlu0 %v1449, 122
    %v1477 = vpop.permute.xlu0 %1476
    %1478 = vrot.lane.b32.xlu0 %v1450, 122
    %v1479 = vpop.permute.xlu0 %1478
    %1480 = vrot.lane.b32.xlu0 %v1451, 122
    %v1481 = vpop.permute.xlu0 %1480
    %vm1482 = vcmask 998400
    %v1483 = vsel %vm1482, %v1463, %v1465
    %v1484 = vsel %vm1482, %v1465, %v1467
    %v1485 = vsel %vm1482, %v1467, %v1469
    %v1486 = vsel %vm1482, %v1469, %v1471
    %v1487 = vsel %vm1482, %v1471, %v1473
    %v1488 = vsel %vm1482, %v1473, %v1475
    %v1489 = vsel %vm1482, %v1475, %v1477
    %v1490 = vsel %vm1482, %v1477, %v1479
    %v1491 = vsel %vm1482, %v1479, %v1481
    %v1501 = vadd.f32 %v1429, %v1483
    %v1502 = vadd.f32 %v1430, %v1484
    %v1503 = vadd.f32 %v1431, %v1485
    %v1504 = vadd.f32 %v1432, %v1486
    %v1505 = vadd.f32 %v1433, %v1487
    %v1506 = vadd.f32 %v1434, %v1488
    %v1507 = vadd.f32 %v1435, %v1489
    %v1508 = vadd.f32 %v1436, %v1490
    %v1509 = vadd.f32 %v1437, %v1491
    %1510 = vset.pattern.permute.xlu0 7
    %1511 = vperm.xlu0 %1510, %v1063
    %v1512 = vpop.permute.xlu0 %1511
    %v1514 = vmul.f32 %v1512, %v1053
    %v1515 = vmul.f32 %v1512, %v1054
    %v1516 = vmul.f32 %v1512, %v1055
    %v1517 = vmul.f32 %v1512, %v1056
    %v1518 = vmul.f32 %v1512, %v1057
    %v1519 = vmul.f32 %v1512, %v1058
    %v1520 = vmul.f32 %v1512, %v1059
    %v1521 = vmul.f32 %v1512, %v1060
    %v1522 = vmul.f32 %v1512, %v1061
    %v1523 = vmul.f32 %v1512, %v1062
    %1534 = vrot.lane.b32.xlu0 %v1514, 121
    %v1535 = vpop.permute.xlu0 %1534
    %1536 = vrot.lane.b32.xlu0 %v1515, 121
    %v1537 = vpop.permute.xlu0 %1536
    %1538 = vrot.lane.b32.xlu0 %v1516, 121
    %v1539 = vpop.permute.xlu0 %1538
    %1540 = vrot.lane.b32.xlu0 %v1517, 121
    %v1541 = vpop.permute.xlu0 %1540
    %1542 = vrot.lane.b32.xlu0 %v1518, 121
    %v1543 = vpop.permute.xlu0 %1542
    %1544 = vrot.lane.b32.xlu0 %v1519, 121
    %v1545 = vpop.permute.xlu0 %1544
    %1546 = vrot.lane.b32.xlu0 %v1520, 121
    %v1547 = vpop.permute.xlu0 %1546
    %1548 = vrot.lane.b32.xlu0 %v1521, 121
    %v1549 = vpop.permute.xlu0 %1548
    %1550 = vrot.lane.b32.xlu0 %v1522, 121
    %v1551 = vpop.permute.xlu0 %1550
    %1552 = vrot.lane.b32.xlu0 %v1523, 121
    %v1553 = vpop.permute.xlu0 %1552
    %vm1554 = vcmask 990208
    %v1555 = vsel %vm1554, %v1535, %v1537
    %v1556 = vsel %vm1554, %v1537, %v1539
    %v1557 = vsel %vm1554, %v1539, %v1541
    %v1558 = vsel %vm1554, %v1541, %v1543
    %v1559 = vsel %vm1554, %v1543, %v1545
    %v1560 = vsel %vm1554, %v1545, %v1547
    %v1561 = vsel %vm1554, %v1547, %v1549
    %v1562 = vsel %vm1554, %v1549, %v1551
    %v1563 = vsel %vm1554, %v1551, %v1553
    %v1573 = vadd.f32 %v1501, %v1555
    %v1574 = vadd.f32 %v1502, %v1556
    %v1575 = vadd.f32 %v1503, %v1557
    %v1576 = vadd.f32 %v1504, %v1558
    %v1577 = vadd.f32 %v1505, %v1559
    %v1578 = vadd.f32 %v1506, %v1560
    %v1579 = vadd.f32 %v1507, %v1561
    %v1580 = vadd.f32 %v1508, %v1562
    %v1581 = vadd.f32 %v1509, %v1563
    %1582 = vset.pattern.permute.xlu0 8
    %1583 = vperm.xlu0 %1582, %v1063
    %v1584 = vpop.permute.xlu0 %1583
    %v1586 = vmul.f32 %v1584, %v1053
    %v1587 = vmul.f32 %v1584, %v1054
    %v1588 = vmul.f32 %v1584, %v1055
    %v1589 = vmul.f32 %v1584, %v1056
    %v1590 = vmul.f32 %v1584, %v1057
    %v1591 = vmul.f32 %v1584, %v1058
    %v1592 = vmul.f32 %v1584, %v1059
    %v1593 = vmul.f32 %v1584, %v1060
    %v1594 = vmul.f32 %v1584, %v1061
    %v1595 = vmul.f32 %v1584, %v1062
    %1606 = vrot.lane.b32.xlu0 %v1586, 120
    %v1607 = vpop.permute.xlu0 %1606
    %1608 = vrot.lane.b32.xlu0 %v1587, 120
    %v1609 = vpop.permute.xlu0 %1608
    %1610 = vrot.lane.b32.xlu0 %v1588, 120
    %v1611 = vpop.permute.xlu0 %1610
    %1612 = vrot.lane.b32.xlu0 %v1589, 120
    %v1613 = vpop.permute.xlu0 %1612
    %1614 = vrot.lane.b32.xlu0 %v1590, 120
    %v1615 = vpop.permute.xlu0 %1614
    %1616 = vrot.lane.b32.xlu0 %v1591, 120
    %v1617 = vpop.permute.xlu0 %1616
    %1618 = vrot.lane.b32.xlu0 %v1592, 120
    %v1619 = vpop.permute.xlu0 %1618
    %1620 = vrot.lane.b32.xlu0 %v1593, 120
    %v1621 = vpop.permute.xlu0 %1620
    %1622 = vrot.lane.b32.xlu0 %v1594, 120
    %v1623 = vpop.permute.xlu0 %1622
    %1624 = vrot.lane.b32.xlu0 %v1595, 120
    %v1625 = vpop.permute.xlu0 %1624
    %v1626 = vsel %vm1051, %v1607, %v1609
    %v1627 = vsel %vm1051, %v1609, %v1611
    %v1628 = vsel %vm1051, %v1611, %v1613
    %v1629 = vsel %vm1051, %v1613, %v1615
    %v1630 = vsel %vm1051, %v1615, %v1617
    %v1631 = vsel %vm1051, %v1617, %v1619
    %v1632 = vsel %vm1051, %v1619, %v1621
    %v1633 = vsel %vm1051, %v1621, %v1623
    %v1634 = vsel %vm1051, %v1623, %v1625
    %v1644 = vadd.f32 %v1573, %v1626
    %v1645 = vadd.f32 %v1574, %v1627
    %v1646 = vadd.f32 %v1575, %v1628
    %v1647 = vadd.f32 %v1576, %v1629
    %v1648 = vadd.f32 %v1577, %v1630
    %v1649 = vadd.f32 %v1578, %v1631
    %v1650 = vadd.f32 %v1579, %v1632
    %v1651 = vadd.f32 %v1580, %v1633
    %v1652 = vadd.f32 %v1581, %v1634
    %1653 = vset.pattern.permute.xlu0 9
    %1654 = vperm.xlu0 %1653, %v1063
    %v1655 = vpop.permute.xlu0 %1654
    %v1657 = vmul.f32 %v1655, %v1053
    %v1658 = vmul.f32 %v1655, %v1054
    %v1659 = vmul.f32 %v1655, %v1055
    %v1660 = vmul.f32 %v1655, %v1056
    %v1661 = vmul.f32 %v1655, %v1057
    %v1662 = vmul.f32 %v1655, %v1058
    %v1663 = vmul.f32 %v1655, %v1059
    %v1664 = vmul.f32 %v1655, %v1060
    %v1665 = vmul.f32 %v1655, %v1061
    %v1666 = vmul.f32 %v1655, %v1062
    %1677 = vrot.lane.b32.xlu0 %v1657, 119
    %v1678 = vpop.permute.xlu0 %1677
    %1679 = vrot.lane.b32.xlu0 %v1658, 119
    %v1680 = vpop.permute.xlu0 %1679
    %1681 = vrot.lane.b32.xlu0 %v1659, 119
    %v1682 = vpop.permute.xlu0 %1681
    %1683 = vrot.lane.b32.xlu0 %v1660, 119
    %v1684 = vpop.permute.xlu0 %1683
    %1685 = vrot.lane.b32.xlu0 %v1661, 119
    %v1686 = vpop.permute.xlu0 %1685
    %1687 = vrot.lane.b32.xlu0 %v1662, 119
    %v1688 = vpop.permute.xlu0 %1687
    %1689 = vrot.lane.b32.xlu0 %v1663, 119
    %v1690 = vpop.permute.xlu0 %1689
    %1691 = vrot.lane.b32.xlu0 %v1664, 119
    %v1692 = vpop.permute.xlu0 %1691
    %1693 = vrot.lane.b32.xlu0 %v1665, 119
    %v1694 = vpop.permute.xlu0 %1693
    %1695 = vrot.lane.b32.xlu0 %v1666, 119
    %v1696 = vpop.permute.xlu0 %1695
    %vm1697 = vcmask 973824
    %v1698 = vsel %vm1697, %v1678, %v1680
    %v1699 = vsel %vm1697, %v1680, %v1682
    %v1700 = vsel %vm1697, %v1682, %v1684
    %v1701 = vsel %vm1697, %v1684, %v1686
    %v1702 = vsel %vm1697, %v1686, %v1688
    %v1703 = vsel %vm1697, %v1688, %v1690
    %v1704 = vsel %vm1697, %v1690, %v1692
    %v1705 = vsel %vm1697, %v1692, %v1694
    %v1706 = vsel %vm1697, %v1694, %v1696
    %v1716 = vadd.f32 %v1644, %v1698
    %v1717 = vadd.f32 %v1645, %v1699
    %v1718 = vadd.f32 %v1646, %v1700
    %v1719 = vadd.f32 %v1647, %v1701
    %v1720 = vadd.f32 %v1648, %v1702
    %v1721 = vadd.f32 %v1649, %v1703
    %v1722 = vadd.f32 %v1650, %v1704
    %v1723 = vadd.f32 %v1651, %v1705
    %v1724 = vadd.f32 %v1652, %v1706
    %1725 = vset.pattern.permute.xlu0 10
    %1726 = vperm.xlu0 %1725, %v1063
    %v1727 = vpop.permute.xlu0 %1726
    %v1729 = vmul.f32 %v1727, %v1053
    %v1730 = vmul.f32 %v1727, %v1054
    %v1731 = vmul.f32 %v1727, %v1055
    %v1732 = vmul.f32 %v1727, %v1056
    %v1733 = vmul.f32 %v1727, %v1057
    %v1734 = vmul.f32 %v1727, %v1058
    %v1735 = vmul.f32 %v1727, %v1059
    %v1736 = vmul.f32 %v1727, %v1060
    %v1737 = vmul.f32 %v1727, %v1061
    %v1738 = vmul.f32 %v1727, %v1062
    %1749 = vrot.lane.b32.xlu0 %v1729, 118
    %v1750 = vpop.permute.xlu0 %1749
    %1751 = vrot.lane.b32.xlu0 %v1730, 118
    %v1752 = vpop.permute.xlu0 %1751
    %1753 = vrot.lane.b32.xlu0 %v1731, 118
    %v1754 = vpop.permute.xlu0 %1753
    %1755 = vrot.lane.b32.xlu0 %v1732, 118
    %v1756 = vpop.permute.xlu0 %1755
    %1757 = vrot.lane.b32.xlu0 %v1733, 118
    %v1758 = vpop.permute.xlu0 %1757
    %1759 = vrot.lane.b32.xlu0 %v1734, 118
    %v1760 = vpop.permute.xlu0 %1759
    %1761 = vrot.lane.b32.xlu0 %v1735, 118
    %v1762 = vpop.permute.xlu0 %1761
    %1763 = vrot.lane.b32.xlu0 %v1736, 118
    %v1764 = vpop.permute.xlu0 %1763
    %1765 = vrot.lane.b32.xlu0 %v1737, 118
    %v1766 = vpop.permute.xlu0 %1765
    %1767 = vrot.lane.b32.xlu0 %v1738, 118
    %v1768 = vpop.permute.xlu0 %1767
    %vm1769 = vcmask 965632
    %v1770 = vsel %vm1769, %v1750, %v1752
    %v1771 = vsel %vm1769, %v1752, %v1754
    %v1772 = vsel %vm1769, %v1754, %v1756
    %v1773 = vsel %vm1769, %v1756, %v1758
    %v1774 = vsel %vm1769, %v1758, %v1760
    %v1775 = vsel %vm1769, %v1760, %v1762
    %v1776 = vsel %vm1769, %v1762, %v1764
    %v1777 = vsel %vm1769, %v1764, %v1766
    %v1778 = vsel %vm1769, %v1766, %v1768
    %v1788 = vadd.f32 %v1716, %v1770
    %v1789 = vadd.f32 %v1717, %v1771
    %v1790 = vadd.f32 %v1718, %v1772
    %v1791 = vadd.f32 %v1719, %v1773
    %v1792 = vadd.f32 %v1720, %v1774
    %v1793 = vadd.f32 %v1721, %v1775
    %v1794 = vadd.f32 %v1722, %v1776
    %v1795 = vadd.f32 %v1723, %v1777
    %v1796 = vadd.f32 %v1724, %v1778
    %1797 = vset.pattern.permute.xlu0 11
    %1798 = vperm.xlu0 %1797, %v1063
    %v1799 = vpop.permute.xlu0 %1798
    %v1801 = vmul.f32 %v1799, %v1053
    %v1802 = vmul.f32 %v1799, %v1054
    %v1803 = vmul.f32 %v1799, %v1055
    %v1804 = vmul.f32 %v1799, %v1056
    %v1805 = vmul.f32 %v1799, %v1057
    %v1806 = vmul.f32 %v1799, %v1058
    %v1807 = vmul.f32 %v1799, %v1059
    %v1808 = vmul.f32 %v1799, %v1060
    %v1809 = vmul.f32 %v1799, %v1061
    %v1810 = vmul.f32 %v1799, %v1062
    %1821 = vrot.lane.b32.xlu0 %v1801, 117
    %v1822 = vpop.permute.xlu0 %1821
    %1823 = vrot.lane.b32.xlu0 %v1802, 117
    %v1824 = vpop.permute.xlu0 %1823
    %1825 = vrot.lane.b32.xlu0 %v1803, 117
    %v1826 = vpop.permute.xlu0 %1825
    %1827 = vrot.lane.b32.xlu0 %v1804, 117
    %v1828 = vpop.permute.xlu0 %1827
    %1829 = vrot.lane.b32.xlu0 %v1805, 117
    %v1830 = vpop.permute.xlu0 %1829
    %1831 = vrot.lane.b32.xlu0 %v1806, 117
    %v1832 = vpop.permute.xlu0 %1831
    %1833 = vrot.lane.b32.xlu0 %v1807, 117
    %v1834 = vpop.permute.xlu0 %1833
    %1835 = vrot.lane.b32.xlu0 %v1808, 117
    %v1836 = vpop.permute.xlu0 %1835
    %1837 = vrot.lane.b32.xlu0 %v1809, 117
    %v1838 = vpop.permute.xlu0 %1837
    %1839 = vrot.lane.b32.xlu0 %v1810, 117
    %v1840 = vpop.permute.xlu0 %1839
    %vm1841 = vcmask 957440
    %v1842 = vsel %vm1841, %v1822, %v1824
    %v1843 = vsel %vm1841, %v1824, %v1826
    %v1844 = vsel %vm1841, %v1826, %v1828
    %v1845 = vsel %vm1841, %v1828, %v1830
    %v1846 = vsel %vm1841, %v1830, %v1832
    %v1847 = vsel %vm1841, %v1832, %v1834
    %v1848 = vsel %vm1841, %v1834, %v1836
    %v1849 = vsel %vm1841, %v1836, %v1838
    %v1850 = vsel %vm1841, %v1838, %v1840
    %v1860 = vadd.f32 %v1788, %v1842
    %v1861 = vadd.f32 %v1789, %v1843
    %v1862 = vadd.f32 %v1790, %v1844
    %v1863 = vadd.f32 %v1791, %v1845
    %v1864 = vadd.f32 %v1792, %v1846
    %v1865 = vadd.f32 %v1793, %v1847
    %v1866 = vadd.f32 %v1794, %v1848
    %v1867 = vadd.f32 %v1795, %v1849
    %v1868 = vadd.f32 %v1796, %v1850
    %1869 = vset.pattern.permute.xlu0 12
    %1870 = vperm.xlu0 %1869, %v1063
    %v1871 = vpop.permute.xlu0 %1870
    %v1873 = vmul.f32 %v1871, %v1053
    %v1874 = vmul.f32 %v1871, %v1054
    %v1875 = vmul.f32 %v1871, %v1055
    %v1876 = vmul.f32 %v1871, %v1056
    %v1877 = vmul.f32 %v1871, %v1057
    %v1878 = vmul.f32 %v1871, %v1058
    %v1879 = vmul.f32 %v1871, %v1059
    %v1880 = vmul.f32 %v1871, %v1060
    %v1881 = vmul.f32 %v1871, %v1061
    %v1882 = vmul.f32 %v1871, %v1062
    %1893 = vrot.lane.b32.xlu0 %v1873, 116
    %v1894 = vpop.permute.xlu0 %1893
    %1895 = vrot.lane.b32.xlu0 %v1874, 116
    %v1896 = vpop.permute.xlu0 %1895
    %1897 = vrot.lane.b32.xlu0 %v1875, 116
    %v1898 = vpop.permute.xlu0 %1897
    %1899 = vrot.lane.b32.xlu0 %v1876, 116
    %v1900 = vpop.permute.xlu0 %1899
    %1901 = vrot.lane.b32.xlu0 %v1877, 116
    %v1902 = vpop.permute.xlu0 %1901
    %1903 = vrot.lane.b32.xlu0 %v1878, 116
    %v1904 = vpop.permute.xlu0 %1903
    %1905 = vrot.lane.b32.xlu0 %v1879, 116
    %v1906 = vpop.permute.xlu0 %1905
    %1907 = vrot.lane.b32.xlu0 %v1880, 116
    %v1908 = vpop.permute.xlu0 %1907
    %1909 = vrot.lane.b32.xlu0 %v1881, 116
    %v1910 = vpop.permute.xlu0 %1909
    %1911 = vrot.lane.b32.xlu0 %v1882, 116
    %v1912 = vpop.permute.xlu0 %1911
    %vm1913 = vcmask 949248
    %v1914 = vsel %vm1913, %v1894, %v1896
    %v1915 = vsel %vm1913, %v1896, %v1898
    %v1916 = vsel %vm1913, %v1898, %v1900
    %v1917 = vsel %vm1913, %v1900, %v1902
    %v1918 = vsel %vm1913, %v1902, %v1904
    %v1919 = vsel %vm1913, %v1904, %v1906
    %v1920 = vsel %vm1913, %v1906, %v1908
    %v1921 = vsel %vm1913, %v1908, %v1910
    %v1922 = vsel %vm1913, %v1910, %v1912
    %v1932 = vadd.f32 %v1860, %v1914
    %v1933 = vadd.f32 %v1861, %v1915
    %v1934 = vadd.f32 %v1862, %v1916
    %v1935 = vadd.f32 %v1863, %v1917
    %v1936 = vadd.f32 %v1864, %v1918
    %v1937 = vadd.f32 %v1865, %v1919
    %v1938 = vadd.f32 %v1866, %v1920
    %v1939 = vadd.f32 %v1867, %v1921
    %v1940 = vadd.f32 %v1868, %v1922
    %1941 = vset.pattern.permute.xlu0 13
    %1942 = vperm.xlu0 %1941, %v1063
    %v1943 = vpop.permute.xlu0 %1942
    %v1945 = vmul.f32 %v1943, %v1053
    %v1946 = vmul.f32 %v1943, %v1054
    %v1947 = vmul.f32 %v1943, %v1055
    %v1948 = vmul.f32 %v1943, %v1056
    %v1949 = vmul.f32 %v1943, %v1057
    %v1950 = vmul.f32 %v1943, %v1058
    %v1951 = vmul.f32 %v1943, %v1059
    %v1952 = vmul.f32 %v1943, %v1060
    %v1953 = vmul.f32 %v1943, %v1061
    %v1954 = vmul.f32 %v1943, %v1062
    %1965 = vrot.lane.b32.xlu0 %v1945, 115
    %v1966 = vpop.permute.xlu0 %1965
    %1967 = vrot.lane.b32.xlu0 %v1946, 115
    %v1968 = vpop.permute.xlu0 %1967
    %1969 = vrot.lane.b32.xlu0 %v1947, 115
    %v1970 = vpop.permute.xlu0 %1969
    %1971 = vrot.lane.b32.xlu0 %v1948, 115
    %v1972 = vpop.permute.xlu0 %1971
    %1973 = vrot.lane.b32.xlu0 %v1949, 115
    %v1974 = vpop.permute.xlu0 %1973
    %1975 = vrot.lane.b32.xlu0 %v1950, 115
    %v1976 = vpop.permute.xlu0 %1975
    %1977 = vrot.lane.b32.xlu0 %v1951, 115
    %v1978 = vpop.permute.xlu0 %1977
    %1979 = vrot.lane.b32.xlu0 %v1952, 115
    %v1980 = vpop.permute.xlu0 %1979
    %1981 = vrot.lane.b32.xlu0 %v1953, 115
    %v1982 = vpop.permute.xlu0 %1981
    %1983 = vrot.lane.b32.xlu0 %v1954, 115
    %v1984 = vpop.permute.xlu0 %1983
    %vm1985 = vcmask 941056
    %v1986 = vsel %vm1985, %v1966, %v1968
    %v1987 = vsel %vm1985, %v1968, %v1970
    %v1988 = vsel %vm1985, %v1970, %v1972
    %v1989 = vsel %vm1985, %v1972, %v1974
    %v1990 = vsel %vm1985, %v1974, %v1976
    %v1991 = vsel %vm1985, %v1976, %v1978
    %v1992 = vsel %vm1985, %v1978, %v1980
    %v1993 = vsel %vm1985, %v1980, %v1982
    %v1994 = vsel %vm1985, %v1982, %v1984
    %v2004 = vadd.f32 %v1932, %v1986
    %v2005 = vadd.f32 %v1933, %v1987
    %v2006 = vadd.f32 %v1934, %v1988
    %v2007 = vadd.f32 %v1935, %v1989
    %v2008 = vadd.f32 %v1936, %v1990
    %v2009 = vadd.f32 %v1937, %v1991
    %v2010 = vadd.f32 %v1938, %v1992
    %v2011 = vadd.f32 %v1939, %v1993
    %v2012 = vadd.f32 %v1940, %v1994
    %2013 = vset.pattern.permute.xlu0 14
    %2014 = vperm.xlu0 %2013, %v1063
    %v2015 = vpop.permute.xlu0 %2014
    %v2017 = vmul.f32 %v2015, %v1053
    %v2018 = vmul.f32 %v2015, %v1054
    %v2019 = vmul.f32 %v2015, %v1055
    %v2020 = vmul.f32 %v2015, %v1056
    %v2021 = vmul.f32 %v2015, %v1057
    %v2022 = vmul.f32 %v2015, %v1058
    %v2023 = vmul.f32 %v2015, %v1059
    %v2024 = vmul.f32 %v2015, %v1060
    %v2025 = vmul.f32 %v2015, %v1061
    %v2026 = vmul.f32 %v2015, %v1062
    %2037 = vrot.lane.b32.xlu0 %v2017, 114
    %v2038 = vpop.permute.xlu0 %2037
    %2039 = vrot.lane.b32.xlu0 %v2018, 114
    %v2040 = vpop.permute.xlu0 %2039
    %2041 = vrot.lane.b32.xlu0 %v2019, 114
    %v2042 = vpop.permute.xlu0 %2041
    %2043 = vrot.lane.b32.xlu0 %v2020, 114
    %v2044 = vpop.permute.xlu0 %2043
    %2045 = vrot.lane.b32.xlu0 %v2021, 114
    %v2046 = vpop.permute.xlu0 %2045
    %2047 = vrot.lane.b32.xlu0 %v2022, 114
    %v2048 = vpop.permute.xlu0 %2047
    %2049 = vrot.lane.b32.xlu0 %v2023, 114
    %v2050 = vpop.permute.xlu0 %2049
    %2051 = vrot.lane.b32.xlu0 %v2024, 114
    %v2052 = vpop.permute.xlu0 %2051
    %2053 = vrot.lane.b32.xlu0 %v2025, 114
    %v2054 = vpop.permute.xlu0 %2053
    %2055 = vrot.lane.b32.xlu0 %v2026, 114
    %v2056 = vpop.permute.xlu0 %2055
    %vm2057 = vcmask 932864
    %v2058 = vsel %vm2057, %v2038, %v2040
    %v2059 = vsel %vm2057, %v2040, %v2042
    %v2060 = vsel %vm2057, %v2042, %v2044
    %v2061 = vsel %vm2057, %v2044, %v2046
    %v2062 = vsel %vm2057, %v2046, %v2048
    %v2063 = vsel %vm2057, %v2048, %v2050
    %v2064 = vsel %vm2057, %v2050, %v2052
    %v2065 = vsel %vm2057, %v2052, %v2054
    %v2066 = vsel %vm2057, %v2054, %v2056
    %v2076 = vadd.f32 %v2004, %v2058
    %v2077 = vadd.f32 %v2005, %v2059
    %v2078 = vadd.f32 %v2006, %v2060
    %v2079 = vadd.f32 %v2007, %v2061
    %v2080 = vadd.f32 %v2008, %v2062
    %v2081 = vadd.f32 %v2009, %v2063
    %v2082 = vadd.f32 %v2010, %v2064
    %v2083 = vadd.f32 %v2011, %v2065
    %v2084 = vadd.f32 %v2012, %v2066
    %2085 = vset.pattern.permute.xlu0 15
    %2086 = vperm.xlu0 %2085, %v1063
    %v2087 = vpop.permute.xlu0 %2086
    %v2089 = vmul.f32 %v2087, %v1053
    %v2090 = vmul.f32 %v2087, %v1054
    %v2091 = vmul.f32 %v2087, %v1055
    %v2092 = vmul.f32 %v2087, %v1056
    %v2093 = vmul.f32 %v2087, %v1057
    %v2094 = vmul.f32 %v2087, %v1058
    %v2095 = vmul.f32 %v2087, %v1059
    %v2096 = vmul.f32 %v2087, %v1060
    %v2097 = vmul.f32 %v2087, %v1061
    %v2098 = vmul.f32 %v2087, %v1062
    %2109 = vrot.lane.b32.xlu0 %v2089, 113
    %v2110 = vpop.permute.xlu0 %2109
    %2111 = vrot.lane.b32.xlu0 %v2090, 113
    %v2112 = vpop.permute.xlu0 %2111
    %2113 = vrot.lane.b32.xlu0 %v2091, 113
    %v2114 = vpop.permute.xlu0 %2113
    %2115 = vrot.lane.b32.xlu0 %v2092, 113
    %v2116 = vpop.permute.xlu0 %2115
    %2117 = vrot.lane.b32.xlu0 %v2093, 113
    %v2118 = vpop.permute.xlu0 %2117
    %2119 = vrot.lane.b32.xlu0 %v2094, 113
    %v2120 = vpop.permute.xlu0 %2119
    %2121 = vrot.lane.b32.xlu0 %v2095, 113
    %v2122 = vpop.permute.xlu0 %2121
    %2123 = vrot.lane.b32.xlu0 %v2096, 113
    %v2124 = vpop.permute.xlu0 %2123
    %2125 = vrot.lane.b32.xlu0 %v2097, 113
    %v2126 = vpop.permute.xlu0 %2125
    %2127 = vrot.lane.b32.xlu0 %v2098, 113
    %v2128 = vpop.permute.xlu0 %2127
    %vm2129 = vcmask 924672
    %v2130 = vsel %vm2129, %v2110, %v2112
    %v2131 = vsel %vm2129, %v2112, %v2114
    %v2132 = vsel %vm2129, %v2114, %v2116
    %v2133 = vsel %vm2129, %v2116, %v2118
    %v2134 = vsel %vm2129, %v2118, %v2120
    %v2135 = vsel %vm2129, %v2120, %v2122
    %v2136 = vsel %vm2129, %v2122, %v2124
    %v2137 = vsel %vm2129, %v2124, %v2126
    %v2138 = vsel %vm2129, %v2126, %v2128
    %v2148 = vadd.f32 %v2076, %v2130
    %v2149 = vadd.f32 %v2077, %v2131
    %v2150 = vadd.f32 %v2078, %v2132
    %v2151 = vadd.f32 %v2079, %v2133
    %v2152 = vadd.f32 %v2080, %v2134
    %v2153 = vadd.f32 %v2081, %v2135
    %v2154 = vadd.f32 %v2082, %v2136
    %v2155 = vadd.f32 %v2083, %v2137
    %v2156 = vadd.f32 %v2084, %v2138
    %v2157 = vld [vmem:[%s4] sm:$0xff]
    %2159 = vset.pattern.permute.xlu0 0
    %2160 = vperm.xlu0 %2159, %v2157
    %v2161 = vpop.permute.xlu0 %2160
    %v2163 = vadd.f32 %v2148, %v2161
    %v2164 = vadd.f32 %v2149, %v2161
    %v2165 = vadd.f32 %v2150, %v2161
    %v2166 = vadd.f32 %v2151, %v2161
    %v2167 = vadd.f32 %v2152, %v2161
    %v2168 = vadd.f32 %v2153, %v2161
    %v2169 = vadd.f32 %v2154, %v2161
    %v2170 = vadd.f32 %v2155, %v2161
    %v2171 = vadd.f32 %v2156, %v2161
    %v2172 = vmax.f32 %v2163, 0.0
    %v2173 = vmax.f32 %v2164, 0.0
    %v2174 = vmax.f32 %v2165, 0.0
    %v2175 = vmax.f32 %v2166, 0.0
    %v2176 = vmax.f32 %v2167, 0.0
    %v2177 = vmax.f32 %v2168, 0.0
    %v2178 = vmax.f32 %v2169, 0.0
    %v2179 = vmax.f32 %v2170, 0.0
    %v2180 = vmax.f32 %v2171, 0.0
    %2190 = vrot.lane.b32.xlu0 %v2172, 127
    %v2191 = vpop.permute.xlu0 %2190
    %2192 = vrot.lane.b32.xlu0 %v2173, 127
    %v2193 = vpop.permute.xlu0 %2192
    %2194 = vrot.lane.b32.xlu0 %v2174, 127
    %v2195 = vpop.permute.xlu0 %2194
    %2196 = vrot.lane.b32.xlu0 %v2175, 127
    %v2197 = vpop.permute.xlu0 %2196
    %2198 = vrot.lane.b32.xlu0 %v2176, 127
    %v2199 = vpop.permute.xlu0 %2198
    %2200 = vrot.lane.b32.xlu0 %v2177, 127
    %v2201 = vpop.permute.xlu0 %2200
    %2202 = vrot.lane.b32.xlu0 %v2178, 127
    %v2203 = vpop.permute.xlu0 %2202
    %2204 = vrot.lane.b32.xlu0 %v2179, 127
    %v2205 = vpop.permute.xlu0 %2204
    %2206 = vrot.lane.b32.xlu0 %v2180, 127
    %v2207 = vpop.permute.xlu0 %2206
    %v2208 = vsel %vm1122, %v2191, %v2193
    %v2209 = vsel %vm1122, %v2193, %v2195
    %v2210 = vsel %vm1122, %v2195, %v2197
    %v2211 = vsel %vm1122, %v2197, %v2199
    %v2212 = vsel %vm1122, %v2199, %v2201
    %v2213 = vsel %vm1122, %v2201, %v2203
    %v2214 = vsel %vm1122, %v2203, %v2205
    %v2215 = vsel %vm1122, %v2205, %v2207
    %v2225 = vmax.f32 %v2172, %v2208
    %v2226 = vmax.f32 %v2173, %v2209
    %v2227 = vmax.f32 %v2174, %v2210
    %v2228 = vmax.f32 %v2175, %v2211
    %v2229 = vmax.f32 %v2176, %v2212
    %v2230 = vmax.f32 %v2177, %v2213
    %v2231 = vmax.f32 %v2178, %v2214
    %v2232 = vmax.f32 %v2179, %v2215
    %v2233 = vmax.f32 %v2180, %v2207
    %2234 = vrot.lane.b32.xlu0 %v2172, 126
    %v2235 = vpop.permute.xlu0 %2234
    %2236 = vrot.lane.b32.xlu0 %v2173, 126
    %v2237 = vpop.permute.xlu0 %2236
    %2238 = vrot.lane.b32.xlu0 %v2174, 126
    %v2239 = vpop.permute.xlu0 %2238
    %2240 = vrot.lane.b32.xlu0 %v2175, 126
    %v2241 = vpop.permute.xlu0 %2240
    %2242 = vrot.lane.b32.xlu0 %v2176, 126
    %v2243 = vpop.permute.xlu0 %2242
    %2244 = vrot.lane.b32.xlu0 %v2177, 126
    %v2245 = vpop.permute.xlu0 %2244
    %2246 = vrot.lane.b32.xlu0 %v2178, 126
    %v2247 = vpop.permute.xlu0 %2246
    %2248 = vrot.lane.b32.xlu0 %v2179, 126
    %v2249 = vpop.permute.xlu0 %2248
    %2250 = vrot.lane.b32.xlu0 %v2180, 126
    %v2251 = vpop.permute.xlu0 %2250
    %v2252 = vsel %vm1194, %v2235, %v2237
    %v2253 = vsel %vm1194, %v2237, %v2239
    %v2254 = vsel %vm1194, %v2239, %v2241
    %v2255 = vsel %vm1194, %v2241, %v2243
    %v2256 = vsel %vm1194, %v2243, %v2245
    %v2257 = vsel %vm1194, %v2245, %v2247
    %v2258 = vsel %vm1194, %v2247, %v2249
    %v2259 = vsel %vm1194, %v2249, %v2251
    %v2269 = vmax.f32 %v2225, %v2252
    %v2270 = vmax.f32 %v2226, %v2253
    %v2271 = vmax.f32 %v2227, %v2254
    %v2272 = vmax.f32 %v2228, %v2255
    %v2273 = vmax.f32 %v2229, %v2256
    %v2274 = vmax.f32 %v2230, %v2257
    %v2275 = vmax.f32 %v2231, %v2258
    %v2276 = vmax.f32 %v2232, %v2259
    %v2277 = vmax.f32 %v2233, %v2251
    %2278 = vrot.lane.b32.xlu0 %v2172, 125
    %v2279 = vpop.permute.xlu0 %2278
    %2280 = vrot.lane.b32.xlu0 %v2173, 125
    %v2281 = vpop.permute.xlu0 %2280
    %2282 = vrot.lane.b32.xlu0 %v2174, 125
    %v2283 = vpop.permute.xlu0 %2282
    %2284 = vrot.lane.b32.xlu0 %v2175, 125
    %v2285 = vpop.permute.xlu0 %2284
    %2286 = vrot.lane.b32.xlu0 %v2176, 125
    %v2287 = vpop.permute.xlu0 %2286
    %2288 = vrot.lane.b32.xlu0 %v2177, 125
    %v2289 = vpop.permute.xlu0 %2288
    %2290 = vrot.lane.b32.xlu0 %v2178, 125
    %v2291 = vpop.permute.xlu0 %2290
    %2292 = vrot.lane.b32.xlu0 %v2179, 125
    %v2293 = vpop.permute.xlu0 %2292
    %2294 = vrot.lane.b32.xlu0 %v2180, 125
    %v2295 = vpop.permute.xlu0 %2294
    %v2296 = vsel %vm1266, %v2279, %v2281
    %v2297 = vsel %vm1266, %v2281, %v2283
    %v2298 = vsel %vm1266, %v2283, %v2285
    %v2299 = vsel %vm1266, %v2285, %v2287
    %v2300 = vsel %vm1266, %v2287, %v2289
    %v2301 = vsel %vm1266, %v2289, %v2291
    %v2302 = vsel %vm1266, %v2291, %v2293
    %v2303 = vsel %vm1266, %v2293, %v2295
    %v2313 = vmax.f32 %v2269, %v2296
    %v2314 = vmax.f32 %v2270, %v2297
    %v2315 = vmax.f32 %v2271, %v2298
    %v2316 = vmax.f32 %v2272, %v2299
    %v2317 = vmax.f32 %v2273, %v2300
    %v2318 = vmax.f32 %v2274, %v2301
    %v2319 = vmax.f32 %v2275, %v2302
    %v2320 = vmax.f32 %v2276, %v2303
    %v2321 = vmax.f32 %v2277, %v2295
    %2322 = vst [vmem:[#allocation3] sm:$0xff] 0.0
    %2323 = vst [vmem:[#allocation3 + $0x8] sm:$0xff] 0.0
    %2324 = vst [vmem:[#allocation3 + $0x10] sm:$0xff] 0.0
    %2325 = vst [vmem:[#allocation3 + $0x18] sm:$0xff] 0.0
    %2326 = vst [vmem:[#allocation3 + $0x20] sm:$0xff] 0.0
    %2327 = vst [vmem:[#allocation3 + $0x28] sm:$0xff] 0.0
    %2328 = vst [vmem:[#allocation3 + $0x30] sm:$0xff] 0.0
    %2329 = vst [vmem:[#allocation3 + $0x38] sm:$0xff] 0.0
    %2330 = vst [vmem:[#allocation3 + $0x40] sm:$0xff] 0.0
    %2331 = vst [vmem:[#allocation3 + $0x48] sm:$0xff] 0.0
    %2332 = vst [vmem:[#allocation3 + $0x50] sm:$0xff] 0.0
    %2333 = vst [vmem:[#allocation3 + $0x58] sm:$0xff] 0.0
    %2334 = vst [vmem:[#allocation3 + $0x60] sm:$0xff] 0.0
    %2336 = vrot.lane.b32.xlu0 %v2313, 32
    %v2337 = vpop.permute.xlu0 %2336
    %vm2339 = vcmask 1047808
    %2340 = vst.msk [vmem:[#allocation3] sm:$0xff] %vm2339, %v2337
    %vm2341 = vcmask 261120
    %2342 = vst.msk [vmem:[#allocation3 + $0x8] sm:$0xff] %vm2341, %v2337
    %2345 = vrot.lane.b32.xlu0 %v2314, 80
    %v2346 = vpop.permute.xlu0 %2345
    %2347 = vrot.lane.b32.xlu0 %v2315, 80
    %v2348 = vpop.permute.xlu0 %2347
    %vm2349 = vcmask 654336
    %v2350 = vsel %vm2349, %v2346, %v2348
    %vm2353 = vcmask 1048320
    %2354 = vst.msk [vmem:[#allocation3 + $0x8] sm:$0xff] %vm2353, %v2346
    %vm2355 = vcmask 785408
    %2356 = vst.msk [vmem:[#allocation3 + $0x10] sm:$0xff] %vm2355, %v2350
    %2357 = vst.msk [vmem:[#allocation3 + $0x18] sm:$0xff] %vm2339, %v2315
    %2358 = vst.msk [vmem:[#allocation3 + $0x20] sm:$0xff] %vm2341, %v2316
    %2361 = vrot.lane.b32.xlu0 %v2316, 48
    %v2362 = vpop.permute.xlu0 %2361
    %2363 = vrot.lane.b32.xlu0 %v2317, 48
    %v2364 = vpop.permute.xlu0 %2363
    %vm2365 = vcmask 392192
    %v2366 = vsel %vm2365, %v2362, %v2364
    %2369 = vst.msk [vmem:[#allocation3 + $0x20] sm:$0xff] %vm2353, %v2362
    %2370 = vst.msk [vmem:[#allocation3 + $0x28] sm:$0xff] %vm2355, %v2366
    %2372 = vrot.lane.b32.xlu0 %v2317, 96
    %v2373 = vpop.permute.xlu0 %2372
    %2374 = vrot.lane.b32.xlu0 %v2318, 96
    %v2375 = vpop.permute.xlu0 %2374
    %v2376 = vsel %vm2355, %v2373, %v2375
    %2379 = vst.msk [vmem:[#allocation3 + $0x30] sm:$0xff] %vm2339, %v2376
    %2380 = vst.msk [vmem:[#allocation3 + $0x38] sm:$0xff] %vm2341, %v2375
    %2382 = vrot.lane.b32.xlu0 %v2318, 16
    %v2383 = vpop.permute.xlu0 %2382
    %2384 = vrot.lane.b32.xlu0 %v2319, 16
    %v2385 = vpop.permute.xlu0 %2384
    %v2386 = vsel %vm42, %v2383, %v2385
    %2389 = vst.msk [vmem:[#allocation3 + $0x38] sm:$0xff] %vm2353, %v2383
    %2390 = vst.msk [vmem:[#allocation3 + $0x40] sm:$0xff] %vm2355, %v2386
    %2392 = vrot.lane.b32.xlu0 %v2319, 64
    %v2393 = vpop.permute.xlu0 %2392
    %2394 = vrot.lane.b32.xlu0 %v2320, 64
    %v2395 = vpop.permute.xlu0 %2394
    %vm2396 = vcmask 523264
    %v2397 = vsel %vm2396, %v2393, %v2395
    %2400 = vst.msk [vmem:[#allocation3 + $0x48] sm:$0xff] %vm2339, %v2397
    %2401 = vst.msk [vmem:[#allocation3 + $0x50] sm:$0xff] %vm2341, %v2395
    %2403 = vrot.lane.b32.xlu0 %v2320, 112
    %v2404 = vpop.permute.xlu0 %2403
    %2405 = vrot.lane.b32.xlu0 %v2321, 112
    %v2406 = vpop.permute.xlu0 %2405
    %vm2407 = vcmask 916480
    %v2408 = vsel %vm2407, %v2404, %v2406
    %2411 = vst.msk [vmem:[#allocation3 + $0x50] sm:$0xff] %vm2353, %v2408
    %2412 = vst.msk [vmem:[#allocation3 + $0x58] sm:$0xff] %vm2355, %v2406
    %v2413 = vld [vmem:[#allocation3] sm:$0xff]
    %v2414 = vld [vmem:[#allocation3 + $0x8] sm:$0xff]
    %v2415 = vld [vmem:[#allocation3 + $0x10] sm:$0xff]
    %v2416 = vld [vmem:[#allocation3 + $0x18] sm:$0xff]
    %v2417 = vld [vmem:[#allocation3 + $0x20] sm:$0xff]
    %v2418 = vld [vmem:[#allocation3 + $0x28] sm:$0xff]
    %v2419 = vld [vmem:[#allocation3 + $0x30] sm:$0xff]
    %v2420 = vld [vmem:[#allocation3 + $0x38] sm:$0xff]
    %v2421 = vld [vmem:[#allocation3 + $0x40] sm:$0xff]
    %v2422 = vld [vmem:[#allocation3 + $0x48] sm:$0xff]
    %v2423 = vld [vmem:[#allocation3 + $0x50] sm:$0xff]
    %v2424 = vld [vmem:[#allocation3 + $0x58] sm:$0xff]
    %v2425 = vld [vmem:[#allocation3 + $0x60] sm:$0xff]
    %2426 = vst [vmem:[#allocation4] sm:$0xff] %v2413
    %2427 = vst [vmem:[#allocation4 + $0x8] sm:$0xff] %v2414
    %2428 = vst [vmem:[#allocation4 + $0x10] sm:$0xff] %v2415
    %2429 = vst [vmem:[#allocation4 + $0x18] sm:$0xff] %v2416
    %2430 = vst [vmem:[#allocation4 + $0x20] sm:$0xff] %v2417
    %2431 = vst [vmem:[#allocation4 + $0x28] sm:$0xff] %v2418
    %2432 = vst [vmem:[#allocation4 + $0x30] sm:$0xff] %v2419
    %2433 = vst [vmem:[#allocation4 + $0x38] sm:$0xff] %v2420
    %2434 = vst [vmem:[#allocation4 + $0x40] sm:$0xff] %v2421
    %2435 = vst [vmem:[#allocation4 + $0x48] sm:$0xff] %v2422
    %2436 = vst [vmem:[#allocation4 + $0x50] sm:$0xff] %v2423
    %2437 = vst [vmem:[#allocation4 + $0x58] sm:$0xff] %v2424
    %2451 = vrot.lane.b32.xlu0 %v2413, 124
    %v2452 = vpop.permute.xlu0 %2451
    %2453 = vrot.lane.b32.xlu0 %v2414, 124
    %v2454 = vpop.permute.xlu0 %2453
    %2455 = vrot.lane.b32.xlu0 %v2415, 124
    %v2456 = vpop.permute.xlu0 %2455
    %2457 = vrot.lane.b32.xlu0 %v2416, 124
    %v2458 = vpop.permute.xlu0 %2457
    %2459 = vrot.lane.b32.xlu0 %v2417, 124
    %v2460 = vpop.permute.xlu0 %2459
    %2461 = vrot.lane.b32.xlu0 %v2418, 124
    %v2462 = vpop.permute.xlu0 %2461
    %2463 = vrot.lane.b32.xlu0 %v2419, 124
    %v2464 = vpop.permute.xlu0 %2463
    %2465 = vrot.lane.b32.xlu0 %v2420, 124
    %v2466 = vpop.permute.xlu0 %2465
    %2467 = vrot.lane.b32.xlu0 %v2421, 124
    %v2468 = vpop.permute.xlu0 %2467
    %2469 = vrot.lane.b32.xlu0 %v2422, 124
    %v2470 = vpop.permute.xlu0 %2469
    %2471 = vrot.lane.b32.xlu0 %v2423, 124
    %v2472 = vpop.permute.xlu0 %2471
    %2473 = vrot.lane.b32.xlu0 %v2424, 124
    %v2474 = vpop.permute.xlu0 %2473
    %2475 = vrot.lane.b32.xlu0 %v2425, 124
    %v2476 = vpop.permute.xlu0 %2475
    %v2477 = vsel %vm1338, %v2452, %v2454
    %v2478 = vsel %vm1338, %v2454, %v2456
    %v2479 = vsel %vm1338, %v2456, %v2458
    %v2480 = vsel %vm1338, %v2458, %v2460
    %v2481 = vsel %vm1338, %v2460, %v2462
    %v2482 = vsel %vm1338, %v2462, %v2464
    %v2483 = vsel %vm1338, %v2464, %v2466
    %v2484 = vsel %vm1338, %v2466, %v2468
    %v2485 = vsel %vm1338, %v2468, %v2470
    %v2486 = vsel %vm1338, %v2470, %v2472
    %v2487 = vsel %vm1338, %v2472, %v2474
    %v2488 = vsel %vm1338, %v2474, %v2476
    %2501 = vst [vmem:[#allocation4 + $0x60] sm:$0xff] %v2477
    %2502 = vst [vmem:[#allocation4 + $0x68] sm:$0xff] %v2478
    %2503 = vst [vmem:[#allocation4 + $0x70] sm:$0xff] %v2479
    %2504 = vst [vmem:[#allocation4 + $0x78] sm:$0xff] %v2480
    %2505 = vst [vmem:[#allocation4 + $0x80] sm:$0xff] %v2481
    %2506 = vst [vmem:[#allocation4 + $0x88] sm:$0xff] %v2482
    %2507 = vst [vmem:[#allocation4 + $0x90] sm:$0xff] %v2483
    %2508 = vst [vmem:[#allocation4 + $0x98] sm:$0xff] %v2484
    %2509 = vst [vmem:[#allocation4 + $0xa0] sm:$0xff] %v2485
    %2510 = vst [vmem:[#allocation4 + $0xa8] sm:$0xff] %v2486
    %2511 = vst [vmem:[#allocation4 + $0xb0] sm:$0xff] %v2487
    %2512 = vst [vmem:[#allocation4 + $0xb8] sm:$0xff] %v2488
    %2513 = vrot.lane.b32.xlu0 %v2413, 120
    %v2514 = vpop.permute.xlu0 %2513
    %2515 = vrot.lane.b32.xlu0 %v2414, 120
    %v2516 = vpop.permute.xlu0 %2515
    %2517 = vrot.lane.b32.xlu0 %v2415, 120
    %v2518 = vpop.permute.xlu0 %2517
    %2519 = vrot.lane.b32.xlu0 %v2416, 120
    %v2520 = vpop.permute.xlu0 %2519
    %2521 = vrot.lane.b32.xlu0 %v2417, 120
    %v2522 = vpop.permute.xlu0 %2521
    %2523 = vrot.lane.b32.xlu0 %v2418, 120
    %v2524 = vpop.permute.xlu0 %2523
    %2525 = vrot.lane.b32.xlu0 %v2419, 120
    %v2526 = vpop.permute.xlu0 %2525
    %2527 = vrot.lane.b32.xlu0 %v2420, 120
    %v2528 = vpop.permute.xlu0 %2527
    %2529 = vrot.lane.b32.xlu0 %v2421, 120
    %v2530 = vpop.permute.xlu0 %2529
    %2531 = vrot.lane.b32.xlu0 %v2422, 120
    %v2532 = vpop.permute.xlu0 %2531
    %2533 = vrot.lane.b32.xlu0 %v2423, 120
    %v2534 = vpop.permute.xlu0 %2533
    %2535 = vrot.lane.b32.xlu0 %v2424, 120
    %v2536 = vpop.permute.xlu0 %2535
    %2537 = vrot.lane.b32.xlu0 %v2425, 120
    %v2538 = vpop.permute.xlu0 %2537
    %v2539 = vsel %vm1051, %v2514, %v2516
    %v2540 = vsel %vm1051, %v2516, %v2518
    %v2541 = vsel %vm1051, %v2518, %v2520
    %v2542 = vsel %vm1051, %v2520, %v2522
    %v2543 = vsel %vm1051, %v2522, %v2524
    %v2544 = vsel %vm1051, %v2524, %v2526
    %v2545 = vsel %vm1051, %v2526, %v2528
    %v2546 = vsel %vm1051, %v2528, %v2530
    %v2547 = vsel %vm1051, %v2530, %v2532
    %v2548 = vsel %vm1051, %v2532, %v2534
    %v2549 = vsel %vm1051, %v2534, %v2536
    %v2550 = vsel %vm1051, %v2536, %v2538
    %2563 = vst [vmem:[#allocation4 + $0xc0] sm:$0xff] %v2539
    %2564 = vst [vmem:[#allocation4 + $0xc8] sm:$0xff] %v2540
    %2565 = vst [vmem:[#allocation4 + $0xd0] sm:$0xff] %v2541
    %2566 = vst [vmem:[#allocation4 + $0xd8] sm:$0xff] %v2542
    %2567 = vst [vmem:[#allocation4 + $0xe0] sm:$0xff] %v2543
    %2568 = vst [vmem:[#allocation4 + $0xe8] sm:$0xff] %v2544
    %2569 = vst [vmem:[#allocation4 + $0xf0] sm:$0xff] %v2545
    %2570 = vst [vmem:[#allocation4 + $0xf8] sm:$0xff] %v2546
    %2571 = vst [vmem:[#allocation4 + $0x100] sm:$0xff] %v2547
    %2572 = vst [vmem:[#allocation4 + $0x108] sm:$0xff] %v2548
    %2573 = vst [vmem:[#allocation4 + $0x110] sm:$0xff] %v2549
    %2574 = vst [vmem:[#allocation4 + $0x118] sm:$0xff] %v2550
    %2575 = vrot.lane.b32.xlu0 %v2413, 116
    %v2576 = vpop.permute.xlu0 %2575
    %2577 = vrot.lane.b32.xlu0 %v2414, 116
    %v2578 = vpop.permute.xlu0 %2577
    %2579 = vrot.lane.b32.xlu0 %v2415, 116
    %v2580 = vpop.permute.xlu0 %2579
    %2581 = vrot.lane.b32.xlu0 %v2416, 116
    %v2582 = vpop.permute.xlu0 %2581
    %2583 = vrot.lane.b32.xlu0 %v2417, 116
    %v2584 = vpop.permute.xlu0 %2583
    %2585 = vrot.lane.b32.xlu0 %v2418, 116
    %v2586 = vpop.permute.xlu0 %2585
    %2587 = vrot.lane.b32.xlu0 %v2419, 116
    %v2588 = vpop.permute.xlu0 %2587
    %2589 = vrot.lane.b32.xlu0 %v2420, 116
    %v2590 = vpop.permute.xlu0 %2589
    %2591 = vrot.lane.b32.xlu0 %v2421, 116
    %v2592 = vpop.permute.xlu0 %2591
    %2593 = vrot.lane.b32.xlu0 %v2422, 116
    %v2594 = vpop.permute.xlu0 %2593
    %2595 = vrot.lane.b32.xlu0 %v2423, 116
    %v2596 = vpop.permute.xlu0 %2595
    %2597 = vrot.lane.b32.xlu0 %v2424, 116
    %v2598 = vpop.permute.xlu0 %2597
    %2599 = vrot.lane.b32.xlu0 %v2425, 116
    %v2600 = vpop.permute.xlu0 %2599
    %v2601 = vsel %vm1913, %v2576, %v2578
    %v2602 = vsel %vm1913, %v2578, %v2580
    %v2603 = vsel %vm1913, %v2580, %v2582
    %v2604 = vsel %vm1913, %v2582, %v2584
    %v2605 = vsel %vm1913, %v2584, %v2586
    %v2606 = vsel %vm1913, %v2586, %v2588
    %v2607 = vsel %vm1913, %v2588, %v2590
    %v2608 = vsel %vm1913, %v2590, %v2592
    %v2609 = vsel %vm1913, %v2592, %v2594
    %v2610 = vsel %vm1913, %v2594, %v2596
    %v2611 = vsel %vm1913, %v2596, %v2598
    %v2612 = vsel %vm1913, %v2598, %v2600
    %2625 = vst [vmem:[#allocation4 + $0x120] sm:$0xff] %v2601
    %2626 = vst [vmem:[#allocation4 + $0x128] sm:$0xff] %v2602
    %2627 = vst [vmem:[#allocation4 + $0x130] sm:$0xff] %v2603
    %2628 = vst [vmem:[#allocation4 + $0x138] sm:$0xff] %v2604
    %2629 = vst [vmem:[#allocation4 + $0x140] sm:$0xff] %v2605
    %2630 = vst [vmem:[#allocation4 + $0x148] sm:$0xff] %v2606
    %2631 = vst [vmem:[#allocation4 + $0x150] sm:$0xff] %v2607
    %2632 = vst [vmem:[#allocation4 + $0x158] sm:$0xff] %v2608
    %2633 = vst [vmem:[#allocation4 + $0x160] sm:$0xff] %v2609
    %2634 = vst [vmem:[#allocation4 + $0x168] sm:$0xff] %v2610
    %2635 = vst [vmem:[#allocation4 + $0x170] sm:$0xff] %v2611
    %2636 = vst [vmem:[#allocation4 + $0x178] sm:$0xff] %v2612
    %2637 = vrot.lane.b32.xlu0 %v2413, 112
    %v2638 = vpop.permute.xlu0 %2637
    %2639 = vrot.lane.b32.xlu0 %v2414, 112
    %v2640 = vpop.permute.xlu0 %2639
    %2641 = vrot.lane.b32.xlu0 %v2415, 112
    %v2642 = vpop.permute.xlu0 %2641
    %2643 = vrot.lane.b32.xlu0 %v2416, 112
    %v2644 = vpop.permute.xlu0 %2643
    %2645 = vrot.lane.b32.xlu0 %v2417, 112
    %v2646 = vpop.permute.xlu0 %2645
    %2647 = vrot.lane.b32.xlu0 %v2418, 112
    %v2648 = vpop.permute.xlu0 %2647
    %2649 = vrot.lane.b32.xlu0 %v2419, 112
    %v2650 = vpop.permute.xlu0 %2649
    %2651 = vrot.lane.b32.xlu0 %v2420, 112
    %v2652 = vpop.permute.xlu0 %2651
    %2653 = vrot.lane.b32.xlu0 %v2421, 112
    %v2654 = vpop.permute.xlu0 %2653
    %2655 = vrot.lane.b32.xlu0 %v2422, 112
    %v2656 = vpop.permute.xlu0 %2655
    %2657 = vrot.lane.b32.xlu0 %v2423, 112
    %v2658 = vpop.permute.xlu0 %2657
    %2659 = vrot.lane.b32.xlu0 %v2424, 112
    %v2660 = vpop.permute.xlu0 %2659
    %2661 = vrot.lane.b32.xlu0 %v2425, 112
    %v2662 = vpop.permute.xlu0 %2661
    %v2663 = vsel %vm2407, %v2638, %v2640
    %v2664 = vsel %vm2407, %v2640, %v2642
    %v2665 = vsel %vm2407, %v2642, %v2644
    %v2666 = vsel %vm2407, %v2644, %v2646
    %v2667 = vsel %vm2407, %v2646, %v2648
    %v2668 = vsel %vm2407, %v2648, %v2650
    %v2669 = vsel %vm2407, %v2650, %v2652
    %v2670 = vsel %vm2407, %v2652, %v2654
    %v2671 = vsel %vm2407, %v2654, %v2656
    %v2672 = vsel %vm2407, %v2656, %v2658
    %v2673 = vsel %vm2407, %v2658, %v2660
    %v2674 = vsel %vm2407, %v2660, %v2662
    %2687 = vst [vmem:[#allocation4 + $0x180] sm:$0xff] %v2663
    %2688 = vst [vmem:[#allocation4 + $0x188] sm:$0xff] %v2664
    %2689 = vst [vmem:[#allocation4 + $0x190] sm:$0xff] %v2665
    %2690 = vst [vmem:[#allocation4 + $0x198] sm:$0xff] %v2666
    %2691 = vst [vmem:[#allocation4 + $0x1a0] sm:$0xff] %v2667
    %2692 = vst [vmem:[#allocation4 + $0x1a8] sm:$0xff] %v2668
    %2693 = vst [vmem:[#allocation4 + $0x1b0] sm:$0xff] %v2669
    %2694 = vst [vmem:[#allocation4 + $0x1b8] sm:$0xff] %v2670
    %2695 = vst [vmem:[#allocation4 + $0x1c0] sm:$0xff] %v2671
    %2696 = vst [vmem:[#allocation4 + $0x1c8] sm:$0xff] %v2672
    %2697 = vst [vmem:[#allocation4 + $0x1d0] sm:$0xff] %v2673
    %2698 = vst [vmem:[#allocation4 + $0x1d8] sm:$0xff] %v2674
    %2699 = vrot.lane.b32.xlu0 %v2413, 108
    %v2700 = vpop.permute.xlu0 %2699
    %2701 = vrot.lane.b32.xlu0 %v2414, 108
    %v2702 = vpop.permute.xlu0 %2701
    %2703 = vrot.lane.b32.xlu0 %v2415, 108
    %v2704 = vpop.permute.xlu0 %2703
    %2705 = vrot.lane.b32.xlu0 %v2416, 108
    %v2706 = vpop.permute.xlu0 %2705
    %2707 = vrot.lane.b32.xlu0 %v2417, 108
    %v2708 = vpop.permute.xlu0 %2707
    %2709 = vrot.lane.b32.xlu0 %v2418, 108
    %v2710 = vpop.permute.xlu0 %2709
    %2711 = vrot.lane.b32.xlu0 %v2419, 108
    %v2712 = vpop.permute.xlu0 %2711
    %2713 = vrot.lane.b32.xlu0 %v2420, 108
    %v2714 = vpop.permute.xlu0 %2713
    %2715 = vrot.lane.b32.xlu0 %v2421, 108
    %v2716 = vpop.permute.xlu0 %2715
    %2717 = vrot.lane.b32.xlu0 %v2422, 108
    %v2718 = vpop.permute.xlu0 %2717
    %2719 = vrot.lane.b32.xlu0 %v2423, 108
    %v2720 = vpop.permute.xlu0 %2719
    %2721 = vrot.lane.b32.xlu0 %v2424, 108
    %v2722 = vpop.permute.xlu0 %2721
    %2723 = vrot.lane.b32.xlu0 %v2425, 108
    %v2724 = vpop.permute.xlu0 %2723
    %vm2725 = vcmask 883712
    %v2726 = vsel %vm2725, %v2700, %v2702
    %v2727 = vsel %vm2725, %v2702, %v2704
    %v2728 = vsel %vm2725, %v2704, %v2706
    %v2729 = vsel %vm2725, %v2706, %v2708
    %v2730 = vsel %vm2725, %v2708, %v2710
    %v2731 = vsel %vm2725, %v2710, %v2712
    %v2732 = vsel %vm2725, %v2712, %v2714
    %v2733 = vsel %vm2725, %v2714, %v2716
    %v2734 = vsel %vm2725, %v2716, %v2718
    %v2735 = vsel %vm2725, %v2718, %v2720
    %v2736 = vsel %vm2725, %v2720, %v2722
    %v2737 = vsel %vm2725, %v2722, %v2724
    %2750 = vst [vmem:[#allocation4 + $0x1e0] sm:$0xff] %v2726
    %2751 = vst [vmem:[#allocation4 + $0x1e8] sm:$0xff] %v2727
    %2752 = vst [vmem:[#allocation4 + $0x1f0] sm:$0xff] %v2728
    %2753 = vst [vmem:[#allocation4 + $0x1f8] sm:$0xff] %v2729
    %2754 = vst [vmem:[#allocation4 + $0x200] sm:$0xff] %v2730
    %2755 = vst [vmem:[#allocation4 + $0x208] sm:$0xff] %v2731
    %2756 = vst [vmem:[#allocation4 + $0x210] sm:$0xff] %v2732
    %2757 = vst [vmem:[#allocation4 + $0x218] sm:$0xff] %v2733
    %2758 = vst [vmem:[#allocation4 + $0x220] sm:$0xff] %v2734
    %2759 = vst [vmem:[#allocation4 + $0x228] sm:$0xff] %v2735
    %2760 = vst [vmem:[#allocation4 + $0x230] sm:$0xff] %v2736
    %2761 = vst [vmem:[#allocation4 + $0x238] sm:$0xff] %v2737
    %2762 = vrot.lane.b32.xlu0 %v2413, 104
    %v2763 = vpop.permute.xlu0 %2762
    %2764 = vrot.lane.b32.xlu0 %v2414, 104
    %v2765 = vpop.permute.xlu0 %2764
    %2766 = vrot.lane.b32.xlu0 %v2415, 104
    %v2767 = vpop.permute.xlu0 %2766
    %2768 = vrot.lane.b32.xlu0 %v2416, 104
    %v2769 = vpop.permute.xlu0 %2768
    %2770 = vrot.lane.b32.xlu0 %v2417, 104
    %v2771 = vpop.permute.xlu0 %2770
    %2772 = vrot.lane.b32.xlu0 %v2418, 104
    %v2773 = vpop.permute.xlu0 %2772
    %2774 = vrot.lane.b32.xlu0 %v2419, 104
    %v2775 = vpop.permute.xlu0 %2774
    %2776 = vrot.lane.b32.xlu0 %v2420, 104
    %v2777 = vpop.permute.xlu0 %2776
    %2778 = vrot.lane.b32.xlu0 %v2421, 104
    %v2779 = vpop.permute.xlu0 %2778
    %2780 = vrot.lane.b32.xlu0 %v2422, 104
    %v2781 = vpop.permute.xlu0 %2780
    %2782 = vrot.lane.b32.xlu0 %v2423, 104
    %v2783 = vpop.permute.xlu0 %2782
    %2784 = vrot.lane.b32.xlu0 %v2424, 104
    %v2785 = vpop.permute.xlu0 %2784
    %2786 = vrot.lane.b32.xlu0 %v2425, 104
    %v2787 = vpop.permute.xlu0 %2786
    %v2788 = vsel %vm1039, %v2763, %v2765
    %v2789 = vsel %vm1039, %v2765, %v2767
    %v2790 = vsel %vm1039, %v2767, %v2769
    %v2791 = vsel %vm1039, %v2769, %v2771
    %v2792 = vsel %vm1039, %v2771, %v2773
    %v2793 = vsel %vm1039, %v2773, %v2775
    %v2794 = vsel %vm1039, %v2775, %v2777
    %v2795 = vsel %vm1039, %v2777, %v2779
    %v2796 = vsel %vm1039, %v2779, %v2781
    %v2797 = vsel %vm1039, %v2781, %v2783
    %v2798 = vsel %vm1039, %v2783, %v2785
    %v2799 = vsel %vm1039, %v2785, %v2787
    %2812 = vst [vmem:[#allocation4 + $0x240] sm:$0xff] %v2788
    %2813 = vst [vmem:[#allocation4 + $0x248] sm:$0xff] %v2789
    %2814 = vst [vmem:[#allocation4 + $0x250] sm:$0xff] %v2790
    %2815 = vst [vmem:[#allocation4 + $0x258] sm:$0xff] %v2791
    %2816 = vst [vmem:[#allocation4 + $0x260] sm:$0xff] %v2792
    %2817 = vst [vmem:[#allocation4 + $0x268] sm:$0xff] %v2793
    %2818 = vst [vmem:[#allocation4 + $0x270] sm:$0xff] %v2794
    %2819 = vst [vmem:[#allocation4 + $0x278] sm:$0xff] %v2795
    %2820 = vst [vmem:[#allocation4 + $0x280] sm:$0xff] %v2796
    %2821 = vst [vmem:[#allocation4 + $0x288] sm:$0xff] %v2797
    %2822 = vst [vmem:[#allocation4 + $0x290] sm:$0xff] %v2798
    %2823 = vst [vmem:[#allocation4 + $0x298] sm:$0xff] %v2799
    %2824 = vrot.lane.b32.xlu0 %v2413, 100
    %v2825 = vpop.permute.xlu0 %2824
    %2826 = vrot.lane.b32.xlu0 %v2414, 100
    %v2827 = vpop.permute.xlu0 %2826
    %2828 = vrot.lane.b32.xlu0 %v2415, 100
    %v2829 = vpop.permute.xlu0 %2828
    %2830 = vrot.lane.b32.xlu0 %v2416, 100
    %v2831 = vpop.permute.xlu0 %2830
    %2832 = vrot.lane.b32.xlu0 %v2417, 100
    %v2833 = vpop.permute.xlu0 %2832
    %2834 = vrot.lane.b32.xlu0 %v2418, 100
    %v2835 = vpop.permute.xlu0 %2834
    %2836 = vrot.lane.b32.xlu0 %v2419, 100
    %v2837 = vpop.permute.xlu0 %2836
    %2838 = vrot.lane.b32.xlu0 %v2420, 100
    %v2839 = vpop.permute.xlu0 %2838
    %2840 = vrot.lane.b32.xlu0 %v2421, 100
    %v2841 = vpop.permute.xlu0 %2840
    %2842 = vrot.lane.b32.xlu0 %v2422, 100
    %v2843 = vpop.permute.xlu0 %2842
    %2844 = vrot.lane.b32.xlu0 %v2423, 100
    %v2845 = vpop.permute.xlu0 %2844
    %2846 = vrot.lane.b32.xlu0 %v2424, 100
    %v2847 = vpop.permute.xlu0 %2846
    %2848 = vrot.lane.b32.xlu0 %v2425, 100
    %v2849 = vpop.permute.xlu0 %2848
    %vm2850 = vcmask 818176
    %v2851 = vsel %vm2850, %v2825, %v2827
    %v2852 = vsel %vm2850, %v2827, %v2829
    %v2853 = vsel %vm2850, %v2829, %v2831
    %v2854 = vsel %vm2850, %v2831, %v2833
    %v2855 = vsel %vm2850, %v2833, %v2835
    %v2856 = vsel %vm2850, %v2835, %v2837
    %v2857 = vsel %vm2850, %v2837, %v2839
    %v2858 = vsel %vm2850, %v2839, %v2841
    %v2859 = vsel %vm2850, %v2841, %v2843
    %v2860 = vsel %vm2850, %v2843, %v2845
    %v2861 = vsel %vm2850, %v2845, %v2847
    %v2862 = vsel %vm2850, %v2847, %v2849
    %2875 = vst [vmem:[#allocation4 + $0x2a0] sm:$0xff] %v2851
    %2876 = vst [vmem:[#allocation4 + $0x2a8] sm:$0xff] %v2852
    %2877 = vst [vmem:[#allocation4 + $0x2b0] sm:$0xff] %v2853
    %2878 = vst [vmem:[#allocation4 + $0x2b8] sm:$0xff] %v2854
    %2879 = vst [vmem:[#allocation4 + $0x2c0] sm:$0xff] %v2855
    %2880 = vst [vmem:[#allocation4 + $0x2c8] sm:$0xff] %v2856
    %2881 = vst [vmem:[#allocation4 + $0x2d0] sm:$0xff] %v2857
    %2882 = vst [vmem:[#allocation4 + $0x2d8] sm:$0xff] %v2858
    %2883 = vst [vmem:[#allocation4 + $0x2e0] sm:$0xff] %v2859
    %2884 = vst [vmem:[#allocation4 + $0x2e8] sm:$0xff] %v2860
    %2885 = vst [vmem:[#allocation4 + $0x2f0] sm:$0xff] %v2861
    %2886 = vst [vmem:[#allocation4 + $0x2f8] sm:$0xff] %v2862
    %2887 = vrot.lane.b32.xlu0 %v2413, 96
    %v2888 = vpop.permute.xlu0 %2887
    %2889 = vrot.lane.b32.xlu0 %v2414, 96
    %v2890 = vpop.permute.xlu0 %2889
    %2891 = vrot.lane.b32.xlu0 %v2415, 96
    %v2892 = vpop.permute.xlu0 %2891
    %2893 = vrot.lane.b32.xlu0 %v2416, 96
    %v2894 = vpop.permute.xlu0 %2893
    %2895 = vrot.lane.b32.xlu0 %v2417, 96
    %v2896 = vpop.permute.xlu0 %2895
    %2897 = vrot.lane.b32.xlu0 %v2418, 96
    %v2898 = vpop.permute.xlu0 %2897
    %2899 = vrot.lane.b32.xlu0 %v2419, 96
    %v2900 = vpop.permute.xlu0 %2899
    %2901 = vrot.lane.b32.xlu0 %v2420, 96
    %v2902 = vpop.permute.xlu0 %2901
    %2903 = vrot.lane.b32.xlu0 %v2421, 96
    %v2904 = vpop.permute.xlu0 %2903
    %2905 = vrot.lane.b32.xlu0 %v2422, 96
    %v2906 = vpop.permute.xlu0 %2905
    %2907 = vrot.lane.b32.xlu0 %v2423, 96
    %v2908 = vpop.permute.xlu0 %2907
    %2909 = vrot.lane.b32.xlu0 %v2424, 96
    %v2910 = vpop.permute.xlu0 %2909
    %2911 = vrot.lane.b32.xlu0 %v2425, 96
    %v2912 = vpop.permute.xlu0 %2911
    %v2913 = vsel %vm2355, %v2888, %v2890
    %v2914 = vsel %vm2355, %v2890, %v2892
    %v2915 = vsel %vm2355, %v2892, %v2894
    %v2916 = vsel %vm2355, %v2894, %v2896
    %v2917 = vsel %vm2355, %v2896, %v2898
    %v2918 = vsel %vm2355, %v2898, %v2900
    %v2919 = vsel %vm2355, %v2900, %v2902
    %v2920 = vsel %vm2355, %v2902, %v2904
    %v2921 = vsel %vm2355, %v2904, %v2906
    %v2922 = vsel %vm2355, %v2906, %v2908
    %v2923 = vsel %vm2355, %v2908, %v2910
    %v2924 = vsel %vm2355, %v2910, %v2912
    %2937 = vst [vmem:[#allocation4 + $0x300] sm:$0xff] %v2913
    %2938 = vst [vmem:[#allocation4 + $0x308] sm:$0xff] %v2914
    %2939 = vst [vmem:[#allocation4 + $0x310] sm:$0xff] %v2915
    %2940 = vst [vmem:[#allocation4 + $0x318] sm:$0xff] %v2916
    %2941 = vst [vmem:[#allocation4 + $0x320] sm:$0xff] %v2917
    %2942 = vst [vmem:[#allocation4 + $0x328] sm:$0xff] %v2918
    %2943 = vst [vmem:[#allocation4 + $0x330] sm:$0xff] %v2919
    %2944 = vst [vmem:[#allocation4 + $0x338] sm:$0xff] %v2920
    %2945 = vst [vmem:[#allocation4 + $0x340] sm:$0xff] %v2921
    %2946 = vst [vmem:[#allocation4 + $0x348] sm:$0xff] %v2922
    %2947 = vst [vmem:[#allocation4 + $0x350] sm:$0xff] %v2923
    %2948 = vst [vmem:[#allocation4 + $0x358] sm:$0xff] %v2924
    %2949 = vrot.lane.b32.xlu0 %v2413, 92
    %v2950 = vpop.permute.xlu0 %2949
    %2951 = vrot.lane.b32.xlu0 %v2414, 92
    %v2952 = vpop.permute.xlu0 %2951
    %2953 = vrot.lane.b32.xlu0 %v2415, 92
    %v2954 = vpop.permute.xlu0 %2953
    %2955 = vrot.lane.b32.xlu0 %v2416, 92
    %v2956 = vpop.permute.xlu0 %2955
    %2957 = vrot.lane.b32.xlu0 %v2417, 92
    %v2958 = vpop.permute.xlu0 %2957
    %2959 = vrot.lane.b32.xlu0 %v2418, 92
    %v2960 = vpop.permute.xlu0 %2959
    %2961 = vrot.lane.b32.xlu0 %v2419, 92
    %v2962 = vpop.permute.xlu0 %2961
    %2963 = vrot.lane.b32.xlu0 %v2420, 92
    %v2964 = vpop.permute.xlu0 %2963
    %2965 = vrot.lane.b32.xlu0 %v2421, 92
    %v2966 = vpop.permute.xlu0 %2965
    %2967 = vrot.lane.b32.xlu0 %v2422, 92
    %v2968 = vpop.permute.xlu0 %2967
    %2969 = vrot.lane.b32.xlu0 %v2423, 92
    %v2970 = vpop.permute.xlu0 %2969
    %2971 = vrot.lane.b32.xlu0 %v2424, 92
    %v2972 = vpop.permute.xlu0 %2971
    %2973 = vrot.lane.b32.xlu0 %v2425, 92
    %v2974 = vpop.permute.xlu0 %2973
    %vm2975 = vcmask 752640
    %v2976 = vsel %vm2975, %v2950, %v2952
    %v2977 = vsel %vm2975, %v2952, %v2954
    %v2978 = vsel %vm2975, %v2954, %v2956
    %v2979 = vsel %vm2975, %v2956, %v2958
    %v2980 = vsel %vm2975, %v2958, %v2960
    %v2981 = vsel %vm2975, %v2960, %v2962
    %v2982 = vsel %vm2975, %v2962, %v2964
    %v2983 = vsel %vm2975, %v2964, %v2966
    %v2984 = vsel %vm2975, %v2966, %v2968
    %v2985 = vsel %vm2975, %v2968, %v2970
    %v2986 = vsel %vm2975, %v2970, %v2972
    %v2987 = vsel %vm2975, %v2972, %v2974
    %3000 = vst [vmem:[#allocation4 + $0x360] sm:$0xff] %v2976
    %3001 = vst [vmem:[#allocation4 + $0x368] sm:$0xff] %v2977
    %3002 = vst [vmem:[#allocation4 + $0x370] sm:$0xff] %v2978
    %3003 = vst [vmem:[#allocation4 + $0x378] sm:$0xff] %v2979
    %3004 = vst [vmem:[#allocation4 + $0x380] sm:$0xff] %v2980
    %3005 = vst [vmem:[#allocation4 + $0x388] sm:$0xff] %v2981
    %3006 = vst [vmem:[#allocation4 + $0x390] sm:$0xff] %v2982
    %3007 = vst [vmem:[#allocation4 + $0x398] sm:$0xff] %v2983
    %3008 = vst [vmem:[#allocation4 + $0x3a0] sm:$0xff] %v2984
    %3009 = vst [vmem:[#allocation4 + $0x3a8] sm:$0xff] %v2985
    %3010 = vst [vmem:[#allocation4 + $0x3b0] sm:$0xff] %v2986
    %3011 = vst [vmem:[#allocation4 + $0x3b8] sm:$0xff] %v2987
    %3012 = vrot.lane.b32.xlu0 %v2413, 88
    %v3013 = vpop.permute.xlu0 %3012
    %3014 = vrot.lane.b32.xlu0 %v2414, 88
    %v3015 = vpop.permute.xlu0 %3014
    %3016 = vrot.lane.b32.xlu0 %v2415, 88
    %v3017 = vpop.permute.xlu0 %3016
    %3018 = vrot.lane.b32.xlu0 %v2416, 88
    %v3019 = vpop.permute.xlu0 %3018
    %3020 = vrot.lane.b32.xlu0 %v2417, 88
    %v3021 = vpop.permute.xlu0 %3020
    %3022 = vrot.lane.b32.xlu0 %v2418, 88
    %v3023 = vpop.permute.xlu0 %3022
    %3024 = vrot.lane.b32.xlu0 %v2419, 88
    %v3025 = vpop.permute.xlu0 %3024
    %3026 = vrot.lane.b32.xlu0 %v2420, 88
    %v3027 = vpop.permute.xlu0 %3026
    %3028 = vrot.lane.b32.xlu0 %v2421, 88
    %v3029 = vpop.permute.xlu0 %3028
    %3030 = vrot.lane.b32.xlu0 %v2422, 88
    %v3031 = vpop.permute.xlu0 %3030
    %3032 = vrot.lane.b32.xlu0 %v2423, 88
    %v3033 = vpop.permute.xlu0 %3032
    %3034 = vrot.lane.b32.xlu0 %v2424, 88
    %v3035 = vpop.permute.xlu0 %3034
    %3036 = vrot.lane.b32.xlu0 %v2425, 88
    %v3037 = vpop.permute.xlu0 %3036
    %v3038 = vsel %vm1027, %v3013, %v3015
    %v3039 = vsel %vm1027, %v3015, %v3017
    %v3040 = vsel %vm1027, %v3017, %v3019
    %v3041 = vsel %vm1027, %v3019, %v3021
    %v3042 = vsel %vm1027, %v3021, %v3023
    %v3043 = vsel %vm1027, %v3023, %v3025
    %v3044 = vsel %vm1027, %v3025, %v3027
    %v3045 = vsel %vm1027, %v3027, %v3029
    %v3046 = vsel %vm1027, %v3029, %v3031
    %v3047 = vsel %vm1027, %v3031, %v3033
    %v3048 = vsel %vm1027, %v3033, %v3035
    %v3049 = vsel %vm1027, %v3035, %v3037
    %3062 = vst [vmem:[#allocation4 + $0x3c0] sm:$0xff] %v3038
    %3063 = vst [vmem:[#allocation4 + $0x3c8] sm:$0xff] %v3039
    %3064 = vst [vmem:[#allocation4 + $0x3d0] sm:$0xff] %v3040
    %3065 = vst [vmem:[#allocation4 + $0x3d8] sm:$0xff] %v3041
    %3066 = vst [vmem:[#allocation4 + $0x3e0] sm:$0xff] %v3042
    %3067 = vst [vmem:[#allocation4 + $0x3e8] sm:$0xff] %v3043
    %3068 = vst [vmem:[#allocation4 + $0x3f0] sm:$0xff] %v3044
    %3069 = vst [vmem:[#allocation4 + $0x3f8] sm:$0xff] %v3045
    %3070 = vst [vmem:[#allocation4 + $0x400] sm:$0xff] %v3046
    %3071 = vst [vmem:[#allocation4 + $0x408] sm:$0xff] %v3047
    %3072 = vst [vmem:[#allocation4 + $0x410] sm:$0xff] %v3048
    %3073 = vst [vmem:[#allocation4 + $0x418] sm:$0xff] %v3049
    %3074 = vrot.lane.b32.xlu0 %v2413, 84
    %v3075 = vpop.permute.xlu0 %3074
    %3076 = vrot.lane.b32.xlu0 %v2414, 84
    %v3077 = vpop.permute.xlu0 %3076
    %3078 = vrot.lane.b32.xlu0 %v2415, 84
    %v3079 = vpop.permute.xlu0 %3078
    %3080 = vrot.lane.b32.xlu0 %v2416, 84
    %v3081 = vpop.permute.xlu0 %3080
    %3082 = vrot.lane.b32.xlu0 %v2417, 84
    %v3083 = vpop.permute.xlu0 %3082
    %3084 = vrot.lane.b32.xlu0 %v2418, 84
    %v3085 = vpop.permute.xlu0 %3084
    %3086 = vrot.lane.b32.xlu0 %v2419, 84
    %v3087 = vpop.permute.xlu0 %3086
    %3088 = vrot.lane.b32.xlu0 %v2420, 84
    %v3089 = vpop.permute.xlu0 %3088
    %3090 = vrot.lane.b32.xlu0 %v2421, 84
    %v3091 = vpop.permute.xlu0 %3090
    %3092 = vrot.lane.b32.xlu0 %v2422, 84
    %v3093 = vpop.permute.xlu0 %3092
    %3094 = vrot.lane.b32.xlu0 %v2423, 84
    %v3095 = vpop.permute.xlu0 %3094
    %3096 = vrot.lane.b32.xlu0 %v2424, 84
    %v3097 = vpop.permute.xlu0 %3096
    %3098 = vrot.lane.b32.xlu0 %v2425, 84
    %v3099 = vpop.permute.xlu0 %3098
    %vm3100 = vcmask 687104
    %v3101 = vsel %vm3100, %v3075, %v3077
    %v3102 = vsel %vm3100, %v3077, %v3079
    %v3103 = vsel %vm3100, %v3079, %v3081
    %v3104 = vsel %vm3100, %v3081, %v3083
    %v3105 = vsel %vm3100, %v3083, %v3085
    %v3106 = vsel %vm3100, %v3085, %v3087
    %v3107 = vsel %vm3100, %v3087, %v3089
    %v3108 = vsel %vm3100, %v3089, %v3091
    %v3109 = vsel %vm3100, %v3091, %v3093
    %v3110 = vsel %vm3100, %v3093, %v3095
    %v3111 = vsel %vm3100, %v3095, %v3097
    %v3112 = vsel %vm3100, %v3097, %v3099
    %3125 = vst [vmem:[#allocation4 + $0x420] sm:$0xff] %v3101
    %3126 = vst [vmem:[#allocation4 + $0x428] sm:$0xff] %v3102
    %3127 = vst [vmem:[#allocation4 + $0x430] sm:$0xff] %v3103
    %3128 = vst [vmem:[#allocation4 + $0x438] sm:$0xff] %v3104
    %3129 = vst [vmem:[#allocation4 + $0x440] sm:$0xff] %v3105
    %3130 = vst [vmem:[#allocation4 + $0x448] sm:$0xff] %v3106
    %3131 = vst [vmem:[#allocation4 + $0x450] sm:$0xff] %v3107
    %3132 = vst [vmem:[#allocation4 + $0x458] sm:$0xff] %v3108
    %3133 = vst [vmem:[#allocation4 + $0x460] sm:$0xff] %v3109
    %3134 = vst [vmem:[#allocation4 + $0x468] sm:$0xff] %v3110
    %3135 = vst [vmem:[#allocation4 + $0x470] sm:$0xff] %v3111
    %3136 = vst [vmem:[#allocation4 + $0x478] sm:$0xff] %v3112
    %3137 = vrot.lane.b32.xlu0 %v2413, 80
    %v3138 = vpop.permute.xlu0 %3137
    %3139 = vrot.lane.b32.xlu0 %v2414, 80
    %v3140 = vpop.permute.xlu0 %3139
    %3141 = vrot.lane.b32.xlu0 %v2415, 80
    %v3142 = vpop.permute.xlu0 %3141
    %3143 = vrot.lane.b32.xlu0 %v2416, 80
    %v3144 = vpop.permute.xlu0 %3143
    %3145 = vrot.lane.b32.xlu0 %v2417, 80
    %v3146 = vpop.permute.xlu0 %3145
    %3147 = vrot.lane.b32.xlu0 %v2418, 80
    %v3148 = vpop.permute.xlu0 %3147
    %3149 = vrot.lane.b32.xlu0 %v2419, 80
    %v3150 = vpop.permute.xlu0 %3149
    %3151 = vrot.lane.b32.xlu0 %v2420, 80
    %v3152 = vpop.permute.xlu0 %3151
    %3153 = vrot.lane.b32.xlu0 %v2421, 80
    %v3154 = vpop.permute.xlu0 %3153
    %3155 = vrot.lane.b32.xlu0 %v2422, 80
    %v3156 = vpop.permute.xlu0 %3155
    %3157 = vrot.lane.b32.xlu0 %v2423, 80
    %v3158 = vpop.permute.xlu0 %3157
    %3159 = vrot.lane.b32.xlu0 %v2424, 80
    %v3160 = vpop.permute.xlu0 %3159
    %3161 = vrot.lane.b32.xlu0 %v2425, 80
    %v3162 = vpop.permute.xlu0 %3161
    %v3163 = vsel %vm2349, %v3138, %v3140
    %v3164 = vsel %vm2349, %v3140, %v3142
    %v3165 = vsel %vm2349, %v3142, %v3144
    %v3166 = vsel %vm2349, %v3144, %v3146
    %v3167 = vsel %vm2349, %v3146, %v3148
    %v3168 = vsel %vm2349, %v3148, %v3150
    %v3169 = vsel %vm2349, %v3150, %v3152
    %v3170 = vsel %vm2349, %v3152, %v3154
    %v3171 = vsel %vm2349, %v3154, %v3156
    %v3172 = vsel %vm2349, %v3156, %v3158
    %v3173 = vsel %vm2349, %v3158, %v3160
    %v3174 = vsel %vm2349, %v3160, %v3162
    %3187 = vst [vmem:[#allocation4 + $0x480] sm:$0xff] %v3163
    %3188 = vst [vmem:[#allocation4 + $0x488] sm:$0xff] %v3164
    %3189 = vst [vmem:[#allocation4 + $0x490] sm:$0xff] %v3165
    %3190 = vst [vmem:[#allocation4 + $0x498] sm:$0xff] %v3166
    %3191 = vst [vmem:[#allocation4 + $0x4a0] sm:$0xff] %v3167
    %3192 = vst [vmem:[#allocation4 + $0x4a8] sm:$0xff] %v3168
    %3193 = vst [vmem:[#allocation4 + $0x4b0] sm:$0xff] %v3169
    %3194 = vst [vmem:[#allocation4 + $0x4b8] sm:$0xff] %v3170
    %3195 = vst [vmem:[#allocation4 + $0x4c0] sm:$0xff] %v3171
    %3196 = vst [vmem:[#allocation4 + $0x4c8] sm:$0xff] %v3172
    %3197 = vst [vmem:[#allocation4 + $0x4d0] sm:$0xff] %v3173
    %3198 = vst [vmem:[#allocation4 + $0x4d8] sm:$0xff] %v3174
    %3199 = vrot.lane.b32.xlu0 %v2413, 76
    %v3200 = vpop.permute.xlu0 %3199
    %3201 = vrot.lane.b32.xlu0 %v2414, 76
    %v3202 = vpop.permute.xlu0 %3201
    %3203 = vrot.lane.b32.xlu0 %v2415, 76
    %v3204 = vpop.permute.xlu0 %3203
    %3205 = vrot.lane.b32.xlu0 %v2416, 76
    %v3206 = vpop.permute.xlu0 %3205
    %3207 = vrot.lane.b32.xlu0 %v2417, 76
    %v3208 = vpop.permute.xlu0 %3207
    %3209 = vrot.lane.b32.xlu0 %v2418, 76
    %v3210 = vpop.permute.xlu0 %3209
    %3211 = vrot.lane.b32.xlu0 %v2419, 76
    %v3212 = vpop.permute.xlu0 %3211
    %3213 = vrot.lane.b32.xlu0 %v2420, 76
    %v3214 = vpop.permute.xlu0 %3213
    %3215 = vrot.lane.b32.xlu0 %v2421, 76
    %v3216 = vpop.permute.xlu0 %3215
    %3217 = vrot.lane.b32.xlu0 %v2422, 76
    %v3218 = vpop.permute.xlu0 %3217
    %3219 = vrot.lane.b32.xlu0 %v2423, 76
    %v3220 = vpop.permute.xlu0 %3219
    %3221 = vrot.lane.b32.xlu0 %v2424, 76
    %v3222 = vpop.permute.xlu0 %3221
    %3223 = vrot.lane.b32.xlu0 %v2425, 76
    %v3224 = vpop.permute.xlu0 %3223
    %vm3225 = vcmask 621568
    %v3226 = vsel %vm3225, %v3200, %v3202
    %v3227 = vsel %vm3225, %v3202, %v3204
    %v3228 = vsel %vm3225, %v3204, %v3206
    %v3229 = vsel %vm3225, %v3206, %v3208
    %v3230 = vsel %vm3225, %v3208, %v3210
    %v3231 = vsel %vm3225, %v3210, %v3212
    %v3232 = vsel %vm3225, %v3212, %v3214
    %v3233 = vsel %vm3225, %v3214, %v3216
    %v3234 = vsel %vm3225, %v3216, %v3218
    %v3235 = vsel %vm3225, %v3218, %v3220
    %v3236 = vsel %vm3225, %v3220, %v3222
    %v3237 = vsel %vm3225, %v3222, %v3224
    %3250 = vst [vmem:[#allocation4 + $0x4e0] sm:$0xff] %v3226
    %3251 = vst [vmem:[#allocation4 + $0x4e8] sm:$0xff] %v3227
    %3252 = vst [vmem:[#allocation4 + $0x4f0] sm:$0xff] %v3228
    %3253 = vst [vmem:[#allocation4 + $0x4f8] sm:$0xff] %v3229
    %3254 = vst [vmem:[#allocation4 + $0x500] sm:$0xff] %v3230
    %3255 = vst [vmem:[#allocation4 + $0x508] sm:$0xff] %v3231
    %3256 = vst [vmem:[#allocation4 + $0x510] sm:$0xff] %v3232
    %3257 = vst [vmem:[#allocation4 + $0x518] sm:$0xff] %v3233
    %3258 = vst [vmem:[#allocation4 + $0x520] sm:$0xff] %v3234
    %3259 = vst [vmem:[#allocation4 + $0x528] sm:$0xff] %v3235
    %3260 = vst [vmem:[#allocation4 + $0x530] sm:$0xff] %v3236
    %3261 = vst [vmem:[#allocation4 + $0x538] sm:$0xff] %v3237
    %3262 = vrot.lane.b32.xlu0 %v2413, 72
    %v3263 = vpop.permute.xlu0 %3262
    %3264 = vrot.lane.b32.xlu0 %v2414, 72
    %v3265 = vpop.permute.xlu0 %3264
    %3266 = vrot.lane.b32.xlu0 %v2415, 72
    %v3267 = vpop.permute.xlu0 %3266
    %3268 = vrot.lane.b32.xlu0 %v2416, 72
    %v3269 = vpop.permute.xlu0 %3268
    %3270 = vrot.lane.b32.xlu0 %v2417, 72
    %v3271 = vpop.permute.xlu0 %3270
    %3272 = vrot.lane.b32.xlu0 %v2418, 72
    %v3273 = vpop.permute.xlu0 %3272
    %3274 = vrot.lane.b32.xlu0 %v2419, 72
    %v3275 = vpop.permute.xlu0 %3274
    %3276 = vrot.lane.b32.xlu0 %v2420, 72
    %v3277 = vpop.permute.xlu0 %3276
    %3278 = vrot.lane.b32.xlu0 %v2421, 72
    %v3279 = vpop.permute.xlu0 %3278
    %3280 = vrot.lane.b32.xlu0 %v2422, 72
    %v3281 = vpop.permute.xlu0 %3280
    %3282 = vrot.lane.b32.xlu0 %v2423, 72
    %v3283 = vpop.permute.xlu0 %3282
    %3284 = vrot.lane.b32.xlu0 %v2424, 72
    %v3285 = vpop.permute.xlu0 %3284
    %3286 = vrot.lane.b32.xlu0 %v2425, 72
    %v3287 = vpop.permute.xlu0 %3286
    %v3288 = vsel %vm1015, %v3263, %v3265
    %v3289 = vsel %vm1015, %v3265, %v3267
    %v3290 = vsel %vm1015, %v3267, %v3269
    %v3291 = vsel %vm1015, %v3269, %v3271
    %v3292 = vsel %vm1015, %v3271, %v3273
    %v3293 = vsel %vm1015, %v3273, %v3275
    %v3294 = vsel %vm1015, %v3275, %v3277
    %v3295 = vsel %vm1015, %v3277, %v3279
    %v3296 = vsel %vm1015, %v3279, %v3281
    %v3297 = vsel %vm1015, %v3281, %v3283
    %v3298 = vsel %vm1015, %v3283, %v3285
    %v3299 = vsel %vm1015, %v3285, %v3287
    %3312 = vst [vmem:[#allocation4 + $0x540] sm:$0xff] %v3288
    %3313 = vst [vmem:[#allocation4 + $0x548] sm:$0xff] %v3289
    %3314 = vst [vmem:[#allocation4 + $0x550] sm:$0xff] %v3290
    %3315 = vst [vmem:[#allocation4 + $0x558] sm:$0xff] %v3291
    %3316 = vst [vmem:[#allocation4 + $0x560] sm:$0xff] %v3292
    %3317 = vst [vmem:[#allocation4 + $0x568] sm:$0xff] %v3293
    %3318 = vst [vmem:[#allocation4 + $0x570] sm:$0xff] %v3294
    %3319 = vst [vmem:[#allocation4 + $0x578] sm:$0xff] %v3295
    %3320 = vst [vmem:[#allocation4 + $0x580] sm:$0xff] %v3296
    %3321 = vst [vmem:[#allocation4 + $0x588] sm:$0xff] %v3297
    %3322 = vst [vmem:[#allocation4 + $0x590] sm:$0xff] %v3298
    %3323 = vst [vmem:[#allocation4 + $0x598] sm:$0xff] %v3299
    %3324 = vrot.lane.b32.xlu0 %v2413, 68
    %v3325 = vpop.permute.xlu0 %3324
    %3326 = vrot.lane.b32.xlu0 %v2414, 68
    %v3327 = vpop.permute.xlu0 %3326
    %3328 = vrot.lane.b32.xlu0 %v2415, 68
    %v3329 = vpop.permute.xlu0 %3328
    %3330 = vrot.lane.b32.xlu0 %v2416, 68
    %v3331 = vpop.permute.xlu0 %3330
    %3332 = vrot.lane.b32.xlu0 %v2417, 68
    %v3333 = vpop.permute.xlu0 %3332
    %3334 = vrot.lane.b32.xlu0 %v2418, 68
    %v3335 = vpop.permute.xlu0 %3334
    %3336 = vrot.lane.b32.xlu0 %v2419, 68
    %v3337 = vpop.permute.xlu0 %3336
    %3338 = vrot.lane.b32.xlu0 %v2420, 68
    %v3339 = vpop.permute.xlu0 %3338
    %3340 = vrot.lane.b32.xlu0 %v2421, 68
    %v3341 = vpop.permute.xlu0 %3340
    %3342 = vrot.lane.b32.xlu0 %v2422, 68
    %v3343 = vpop.permute.xlu0 %3342
    %3344 = vrot.lane.b32.xlu0 %v2423, 68
    %v3345 = vpop.permute.xlu0 %3344
    %3346 = vrot.lane.b32.xlu0 %v2424, 68
    %v3347 = vpop.permute.xlu0 %3346
    %3348 = vrot.lane.b32.xlu0 %v2425, 68
    %v3349 = vpop.permute.xlu0 %3348
    %vm3350 = vcmask 556032
    %v3351 = vsel %vm3350, %v3325, %v3327
    %v3352 = vsel %vm3350, %v3327, %v3329
    %v3353 = vsel %vm3350, %v3329, %v3331
    %v3354 = vsel %vm3350, %v3331, %v3333
    %v3355 = vsel %vm3350, %v3333, %v3335
    %v3356 = vsel %vm3350, %v3335, %v3337
    %v3357 = vsel %vm3350, %v3337, %v3339
    %v3358 = vsel %vm3350, %v3339, %v3341
    %v3359 = vsel %vm3350, %v3341, %v3343
    %v3360 = vsel %vm3350, %v3343, %v3345
    %v3361 = vsel %vm3350, %v3345, %v3347
    %v3362 = vsel %vm3350, %v3347, %v3349
    %3375 = vst [vmem:[#allocation4 + $0x5a0] sm:$0xff] %v3351
    %3376 = vst [vmem:[#allocation4 + $0x5a8] sm:$0xff] %v3352
    %3377 = vst [vmem:[#allocation4 + $0x5b0] sm:$0xff] %v3353
    %3378 = vst [vmem:[#allocation4 + $0x5b8] sm:$0xff] %v3354
    %3379 = vst [vmem:[#allocation4 + $0x5c0] sm:$0xff] %v3355
    %3380 = vst [vmem:[#allocation4 + $0x5c8] sm:$0xff] %v3356
    %3381 = vst [vmem:[#allocation4 + $0x5d0] sm:$0xff] %v3357
    %3382 = vst [vmem:[#allocation4 + $0x5d8] sm:$0xff] %v3358
    %3383 = vst [vmem:[#allocation4 + $0x5e0] sm:$0xff] %v3359
    %3384 = vst [vmem:[#allocation4 + $0x5e8] sm:$0xff] %v3360
    %3385 = vst [vmem:[#allocation4 + $0x5f0] sm:$0xff] %v3361
    %3386 = vst [vmem:[#allocation4 + $0x5f8] sm:$0xff] %v3362
    %v3387 = vld [vmem:[%s5] sm:$0xff]
    %v3388 = vld [vmem:[#allocation4] sm:$0xff]
    %v3389 = vld [vmem:[#allocation4 + $0x8] sm:$0xff]
    %v3390 = vld [vmem:[#allocation4 + $0x10] sm:$0xff]
    %v3391 = vld [vmem:[#allocation4 + $0x18] sm:$0xff]
    %v3392 = vld [vmem:[#allocation4 + $0x20] sm:$0xff]
    %v3393 = vld [vmem:[#allocation4 + $0x28] sm:$0xff]
    %v3394 = vld [vmem:[#allocation4 + $0x30] sm:$0xff]
    %v3395 = vld [vmem:[#allocation4 + $0x38] sm:$0xff]
    %v3396 = vld [vmem:[#allocation4 + $0x40] sm:$0xff]
    %v3397 = vld [vmem:[#allocation4 + $0x48] sm:$0xff]
    %v3398 = vld [vmem:[#allocation4 + $0x50] sm:$0xff]
    %v3399 = vld [vmem:[#allocation4 + $0x58] sm:$0xff]
    %v3400 = vld [vmem:[#allocation4 + $0x60] sm:$0xff]
    %v3401 = vld [vmem:[#allocation4 + $0x68] sm:$0xff]
    %v3402 = vld [vmem:[#allocation4 + $0x70] sm:$0xff]
    %v3403 = vld [vmem:[#allocation4 + $0x78] sm:$0xff]
    %v3404 = vld [vmem:[#allocation4 + $0x80] sm:$0xff]
    %v3405 = vld [vmem:[#allocation4 + $0x88] sm:$0xff]
    %v3406 = vld [vmem:[#allocation4 + $0x90] sm:$0xff]
    %v3407 = vld [vmem:[#allocation4 + $0x98] sm:$0xff]
    %v3408 = vld [vmem:[#allocation4 + $0xa0] sm:$0xff]
    %v3409 = vld [vmem:[#allocation4 + $0xa8] sm:$0xff]
    %v3410 = vld [vmem:[#allocation4 + $0xb0] sm:$0xff]
    %v3411 = vld [vmem:[#allocation4 + $0xb8] sm:$0xff]
    %v3412 = vld [vmem:[#allocation4 + $0xc0] sm:$0xff]
    %v3413 = vld [vmem:[#allocation4 + $0xc8] sm:$0xff]
    %v3414 = vld [vmem:[#allocation4 + $0xd0] sm:$0xff]
    %v3415 = vld [vmem:[#allocation4 + $0xd8] sm:$0xff]
    %v3416 = vld [vmem:[#allocation4 + $0xe0] sm:$0xff]
    %v3417 = vld [vmem:[#allocation4 + $0xe8] sm:$0xff]
    %v3418 = vld [vmem:[#allocation4 + $0xf0] sm:$0xff]
    %v3419 = vld [vmem:[#allocation4 + $0xf8] sm:$0xff]
    %v3420 = vld [vmem:[#allocation4 + $0x100] sm:$0xff]
    %v3421 = vld [vmem:[#allocation4 + $0x108] sm:$0xff]
    %v3422 = vld [vmem:[#allocation4 + $0x110] sm:$0xff]
    %v3423 = vld [vmem:[#allocation4 + $0x118] sm:$0xff]
    %v3424 = vld [vmem:[#allocation4 + $0x120] sm:$0xff]
    %v3425 = vld [vmem:[#allocation4 + $0x128] sm:$0xff]
    %v3426 = vld [vmem:[#allocation4 + $0x130] sm:$0xff]
    %v3427 = vld [vmem:[#allocation4 + $0x138] sm:$0xff]
    %v3428 = vld [vmem:[#allocation4 + $0x140] sm:$0xff]
    %v3429 = vld [vmem:[#allocation4 + $0x148] sm:$0xff]
    %v3430 = vld [vmem:[#allocation4 + $0x150] sm:$0xff]
    %v3431 = vld [vmem:[#allocation4 + $0x158] sm:$0xff]
    %v3432 = vld [vmem:[#allocation4 + $0x160] sm:$0xff]
    %v3433 = vld [vmem:[#allocation4 + $0x168] sm:$0xff]
    %v3434 = vld [vmem:[#allocation4 + $0x170] sm:$0xff]
    %v3435 = vld [vmem:[#allocation4 + $0x178] sm:$0xff]
    %v3436 = vld [vmem:[#allocation4 + $0x180] sm:$0xff]
    %v3437 = vld [vmem:[#allocation4 + $0x188] sm:$0xff]
    %v3438 = vld [vmem:[#allocation4 + $0x190] sm:$0xff]
    %v3439 = vld [vmem:[#allocation4 + $0x198] sm:$0xff]
    %v3440 = vld [vmem:[#allocation4 + $0x1a0] sm:$0xff]
    %v3441 = vld [vmem:[#allocation4 + $0x1a8] sm:$0xff]
    %v3442 = vld [vmem:[#allocation4 + $0x1b0] sm:$0xff]
    %v3443 = vld [vmem:[#allocation4 + $0x1b8] sm:$0xff]
    %v3444 = vld [vmem:[#allocation4 + $0x1c0] sm:$0xff]
    %v3445 = vld [vmem:[#allocation4 + $0x1c8] sm:$0xff]
    %v3446 = vld [vmem:[#allocation4 + $0x1d0] sm:$0xff]
    %v3447 = vld [vmem:[#allocation4 + $0x1d8] sm:$0xff]
    %v3448 = vld [vmem:[#allocation4 + $0x1e0] sm:$0xff]
    %v3449 = vld [vmem:[#allocation4 + $0x1e8] sm:$0xff]
    %v3450 = vld [vmem:[#allocation4 + $0x1f0] sm:$0xff]
    %v3451 = vld [vmem:[#allocation4 + $0x1f8] sm:$0xff]
    %v3452 = vld [vmem:[#allocation4 + $0x200] sm:$0xff]
    %v3453 = vld [vmem:[#allocation4 + $0x208] sm:$0xff]
    %v3454 = vld [vmem:[#allocation4 + $0x210] sm:$0xff]
    %v3455 = vld [vmem:[#allocation4 + $0x218] sm:$0xff]
    %v3456 = vld [vmem:[#allocation4 + $0x220] sm:$0xff]
    %v3457 = vld [vmem:[#allocation4 + $0x228] sm:$0xff]
    %v3458 = vld [vmem:[#allocation4 + $0x230] sm:$0xff]
    %v3459 = vld [vmem:[#allocation4 + $0x238] sm:$0xff]
    %v3460 = vld [vmem:[#allocation4 + $0x240] sm:$0xff]
    %v3461 = vld [vmem:[#allocation4 + $0x248] sm:$0xff]
    %v3462 = vld [vmem:[#allocation4 + $0x250] sm:$0xff]
    %v3463 = vld [vmem:[#allocation4 + $0x258] sm:$0xff]
    %v3464 = vld [vmem:[#allocation4 + $0x260] sm:$0xff]
    %v3465 = vld [vmem:[#allocation4 + $0x268] sm:$0xff]
    %v3466 = vld [vmem:[#allocation4 + $0x270] sm:$0xff]
    %v3467 = vld [vmem:[#allocation4 + $0x278] sm:$0xff]
    %v3468 = vld [vmem:[#allocation4 + $0x280] sm:$0xff]
    %v3469 = vld [vmem:[#allocation4 + $0x288] sm:$0xff]
    %v3470 = vld [vmem:[#allocation4 + $0x290] sm:$0xff]
    %v3471 = vld [vmem:[#allocation4 + $0x298] sm:$0xff]
    %v3472 = vld [vmem:[#allocation4 + $0x2a0] sm:$0xff]
    %v3473 = vld [vmem:[#allocation4 + $0x2a8] sm:$0xff]
    %v3474 = vld [vmem:[#allocation4 + $0x2b0] sm:$0xff]
    %v3475 = vld [vmem:[#allocation4 + $0x2b8] sm:$0xff]
    %v3476 = vld [vmem:[#allocation4 + $0x2c0] sm:$0xff]
    %v3477 = vld [vmem:[#allocation4 + $0x2c8] sm:$0xff]
    %v3478 = vld [vmem:[#allocation4 + $0x2d0] sm:$0xff]
    %v3479 = vld [vmem:[#allocation4 + $0x2d8] sm:$0xff]
    %v3480 = vld [vmem:[#allocation4 + $0x2e0] sm:$0xff]
    %v3481 = vld [vmem:[#allocation4 + $0x2e8] sm:$0xff]
    %v3482 = vld [vmem:[#allocation4 + $0x2f0] sm:$0xff]
    %v3483 = vld [vmem:[#allocation4 + $0x2f8] sm:$0xff]
    %v3484 = vld [vmem:[#allocation4 + $0x300] sm:$0xff]
    %v3485 = vld [vmem:[#allocation4 + $0x308] sm:$0xff]
    %v3486 = vld [vmem:[#allocation4 + $0x310] sm:$0xff]
    %v3487 = vld [vmem:[#allocation4 + $0x318] sm:$0xff]
    %v3488 = vld [vmem:[#allocation4 + $0x320] sm:$0xff]
    %v3489 = vld [vmem:[#allocation4 + $0x328] sm:$0xff]
    %v3490 = vld [vmem:[#allocation4 + $0x330] sm:$0xff]
    %v3491 = vld [vmem:[#allocation4 + $0x338] sm:$0xff]
    %v3492 = vld [vmem:[#allocation4 + $0x340] sm:$0xff]
    %v3493 = vld [vmem:[#allocation4 + $0x348] sm:$0xff]
    %v3494 = vld [vmem:[#allocation4 + $0x350] sm:$0xff]
    %v3495 = vld [vmem:[#allocation4 + $0x358] sm:$0xff]
    %v3496 = vld [vmem:[#allocation4 + $0x360] sm:$0xff]
    %v3497 = vld [vmem:[#allocation4 + $0x368] sm:$0xff]
    %v3498 = vld [vmem:[#allocation4 + $0x370] sm:$0xff]
    %v3499 = vld [vmem:[#allocation4 + $0x378] sm:$0xff]
    %v3500 = vld [vmem:[#allocation4 + $0x380] sm:$0xff]
    %v3501 = vld [vmem:[#allocation4 + $0x388] sm:$0xff]
    %v3502 = vld [vmem:[#allocation4 + $0x390] sm:$0xff]
    %v3503 = vld [vmem:[#allocation4 + $0x398] sm:$0xff]
    %v3504 = vld [vmem:[#allocation4 + $0x3a0] sm:$0xff]
    %v3505 = vld [vmem:[#allocation4 + $0x3a8] sm:$0xff]
    %v3506 = vld [vmem:[#allocation4 + $0x3b0] sm:$0xff]
    %v3507 = vld [vmem:[#allocation4 + $0x3b8] sm:$0xff]
    %v3508 = vld [vmem:[#allocation4 + $0x3c0] sm:$0xff]
    %v3509 = vld [vmem:[#allocation4 + $0x3c8] sm:$0xff]
    %v3510 = vld [vmem:[#allocation4 + $0x3d0] sm:$0xff]
    %v3511 = vld [vmem:[#allocation4 + $0x3d8] sm:$0xff]
    %v3512 = vld [vmem:[#allocation4 + $0x3e0] sm:$0xff]
    %v3513 = vld [vmem:[#allocation4 + $0x3e8] sm:$0xff]
    %v3514 = vld [vmem:[#allocation4 + $0x3f0] sm:$0xff]
    %v3515 = vld [vmem:[#allocation4 + $0x3f8] sm:$0xff]
    %v3516 = vld [vmem:[#allocation4 + $0x400] sm:$0xff]
    %v3517 = vld [vmem:[#allocation4 + $0x408] sm:$0xff]
    %v3518 = vld [vmem:[#allocation4 + $0x410] sm:$0xff]
    %v3519 = vld [vmem:[#allocation4 + $0x418] sm:$0xff]
    %v3520 = vld [vmem:[#allocation4 + $0x420] sm:$0xff]
    %v3521 = vld [vmem:[#allocation4 + $0x428] sm:$0xff]
    %v3522 = vld [vmem:[#allocation4 + $0x430] sm:$0xff]
    %v3523 = vld [vmem:[#allocation4 + $0x438] sm:$0xff]
    %v3524 = vld [vmem:[#allocation4 + $0x440] sm:$0xff]
    %v3525 = vld [vmem:[#allocation4 + $0x448] sm:$0xff]
    %v3526 = vld [vmem:[#allocation4 + $0x450] sm:$0xff]
    %v3527 = vld [vmem:[#allocation4 + $0x458] sm:$0xff]
    %v3528 = vld [vmem:[#allocation4 + $0x460] sm:$0xff]
    %v3529 = vld [vmem:[#allocation4 + $0x468] sm:$0xff]
    %v3530 = vld [vmem:[#allocation4 + $0x470] sm:$0xff]
    %v3531 = vld [vmem:[#allocation4 + $0x478] sm:$0xff]
    %v3532 = vld [vmem:[#allocation4 + $0x480] sm:$0xff]
    %v3533 = vld [vmem:[#allocation4 + $0x488] sm:$0xff]
    %v3534 = vld [vmem:[#allocation4 + $0x490] sm:$0xff]
    %v3535 = vld [vmem:[#allocation4 + $0x498] sm:$0xff]
    %v3536 = vld [vmem:[#allocation4 + $0x4a0] sm:$0xff]
    %v3537 = vld [vmem:[#allocation4 + $0x4a8] sm:$0xff]
    %v3538 = vld [vmem:[#allocation4 + $0x4b0] sm:$0xff]
    %v3539 = vld [vmem:[#allocation4 + $0x4b8] sm:$0xff]
    %v3540 = vld [vmem:[#allocation4 + $0x4c0] sm:$0xff]
    %v3541 = vld [vmem:[#allocation4 + $0x4c8] sm:$0xff]
    %v3542 = vld [vmem:[#allocation4 + $0x4d0] sm:$0xff]
    %v3543 = vld [vmem:[#allocation4 + $0x4d8] sm:$0xff]
    %v3544 = vld [vmem:[#allocation4 + $0x4e0] sm:$0xff]
    %v3545 = vld [vmem:[#allocation4 + $0x4e8] sm:$0xff]
    %v3546 = vld [vmem:[#allocation4 + $0x4f0] sm:$0xff]
    %v3547 = vld [vmem:[#allocation4 + $0x4f8] sm:$0xff]
    %v3548 = vld [vmem:[#allocation4 + $0x500] sm:$0xff]
    %v3549 = vld [vmem:[#allocation4 + $0x508] sm:$0xff]
    %v3550 = vld [vmem:[#allocation4 + $0x510] sm:$0xff]
    %v3551 = vld [vmem:[#allocation4 + $0x518] sm:$0xff]
    %v3552 = vld [vmem:[#allocation4 + $0x520] sm:$0xff]
    %v3553 = vld [vmem:[#allocation4 + $0x528] sm:$0xff]
    %v3554 = vld [vmem:[#allocation4 + $0x530] sm:$0xff]
    %v3555 = vld [vmem:[#allocation4 + $0x538] sm:$0xff]
    %v3556 = vld [vmem:[#allocation4 + $0x540] sm:$0xff]
    %v3557 = vld [vmem:[#allocation4 + $0x548] sm:$0xff]
    %v3558 = vld [vmem:[#allocation4 + $0x550] sm:$0xff]
    %v3559 = vld [vmem:[#allocation4 + $0x558] sm:$0xff]
    %v3560 = vld [vmem:[#allocation4 + $0x560] sm:$0xff]
    %v3561 = vld [vmem:[#allocation4 + $0x568] sm:$0xff]
    %v3562 = vld [vmem:[#allocation4 + $0x570] sm:$0xff]
    %v3563 = vld [vmem:[#allocation4 + $0x578] sm:$0xff]
    %v3564 = vld [vmem:[#allocation4 + $0x580] sm:$0xff]
    %v3565 = vld [vmem:[#allocation4 + $0x588] sm:$0xff]
    %v3566 = vld [vmem:[#allocation4 + $0x590] sm:$0xff]
    %v3567 = vld [vmem:[#allocation4 + $0x598] sm:$0xff]
    %v3568 = vld [vmem:[#allocation4 + $0x5a0] sm:$0xff]
    %v3569 = vld [vmem:[#allocation4 + $0x5a8] sm:$0xff]
    %v3570 = vld [vmem:[#allocation4 + $0x5b0] sm:$0xff]
    %v3571 = vld [vmem:[#allocation4 + $0x5b8] sm:$0xff]
    %v3572 = vld [vmem:[#allocation4 + $0x5c0] sm:$0xff]
    %v3573 = vld [vmem:[#allocation4 + $0x5c8] sm:$0xff]
    %v3574 = vld [vmem:[#allocation4 + $0x5d0] sm:$0xff]
    %v3575 = vld [vmem:[#allocation4 + $0x5d8] sm:$0xff]
    %v3576 = vld [vmem:[#allocation4 + $0x5e0] sm:$0xff]
    %v3577 = vld [vmem:[#allocation4 + $0x5e8] sm:$0xff]
    %v3578 = vld [vmem:[#allocation4 + $0x5f0] sm:$0xff]
    %v3579 = vld [vmem:[#allocation4 + $0x5f8] sm:$0xff]
    %v3580 = vld [vmem:[%s6] sm:$0xff]
    %3582 = vset.pattern.permute.xlu0 0
    %3583 = vperm.xlu0 %3582, %v3580
    %v3584 = vpop.permute.xlu0 %3583
    %v3586 = vand.u32 %v3389, 4294901760
    %3587 = vmatprep.subr.mxu0 %v3586
    %v3588 = vand.u32 %v3388, 4294901760
    %3589 = vmatpush1.msra.mxu0 %v3588
    %v3590 = vand.u32 %v3401, 4294901760
    %3591 = vmatprep.subr.mxu0 %v3590
    %v3592 = vand.u32 %v3400, 4294901760
    %3593 = vmatpush1.msra.mxu0 %v3592
    %v3594 = vand.u32 %v3413, 4294901760
    %3595 = vmatprep.subr.mxu0 %v3594
    %v3596 = vand.u32 %v3412, 4294901760
    %3597 = vmatpush1.msra.mxu0 %v3596
    %v3598 = vand.u32 %v3425, 4294901760
    %3599 = vmatprep.subr.mxu0 %v3598
    %v3600 = vand.u32 %v3424, 4294901760
    %3601 = vmatpush1.msra.mxu0 %v3600
    %v3602 = vand.u32 %v3437, 4294901760
    %3603 = vmatprep.subr.mxu0 %v3602
    %v3604 = vand.u32 %v3436, 4294901760
    %3605 = vmatpush1.msra.mxu0 %v3604
    %v3606 = vand.u32 %v3449, 4294901760
    %3607 = vmatprep.subr.mxu0 %v3606
    %v3608 = vand.u32 %v3448, 4294901760
    %3609 = vmatpush1.msra.mxu0 %v3608
    %v3610 = vand.u32 %v3461, 4294901760
    %3611 = vmatprep.subr.mxu0 %v3610
    %v3612 = vand.u32 %v3460, 4294901760
    %3613 = vmatpush1.msra.mxu0 %v3612
    %v3614 = vand.u32 %v3473, 4294901760
    %3615 = vmatprep.subr.mxu0 %v3614
    %v3616 = vand.u32 %v3472, 4294901760
    %3617 = vmatpush1.msra.mxu0 %v3616
    %v3618 = vand.u32 %v3485, 4294901760
    %3619 = vmatprep.subr.mxu0 %v3618
    %v3620 = vand.u32 %v3484, 4294901760
    %3621 = vmatpush1.msra.mxu0 %v3620
    %v3622 = vand.u32 %v3497, 4294901760
    %3623 = vmatprep.subr.mxu0 %v3622
    %v3624 = vand.u32 %v3496, 4294901760
    %3625 = vmatpush1.msra.mxu0 %v3624
    %v3626 = vand.u32 %v3509, 4294901760
    %3627 = vmatprep.subr.mxu0 %v3626
    %v3628 = vand.u32 %v3508, 4294901760
    %3629 = vmatpush1.msra.mxu0 %v3628
    %v3630 = vand.u32 %v3521, 4294901760
    %3631 = vmatprep.subr.mxu0 %v3630
    %v3632 = vand.u32 %v3520, 4294901760
    %3633 = vmatpush1.msra.mxu0 %v3632
    %v3634 = vand.u32 %v3533, 4294901760
    %3635 = vmatprep.subr.mxu0 %v3634
    %v3636 = vand.u32 %v3532, 4294901760
    %3637 = vmatpush1.msra.mxu0 %v3636
    %v3638 = vand.u32 %v3545, 4294901760
    %3639 = vmatprep.subr.mxu0 %v3638
    %v3640 = vand.u32 %v3544, 4294901760
    %3641 = vmatpush1.msra.mxu0 %v3640
    %v3642 = vand.u32 %v3557, 4294901760
    %3643 = vmatprep.subr.mxu0 %v3642
    %v3644 = vand.u32 %v3556, 4294901760
    %3645 = vmatpush1.msra.mxu0 %v3644
    %v3646 = vand.u32 %v3569, 4294901760
    %3647 = vmatprep.subr.mxu0 %v3646
    %v3648 = vand.u32 %v3568, 4294901760
    %3649 = vmatpush1.msra.mxu0 %v3648
    %3650 = vmatprep.subr.mxu0 0.0
    %3651 = vmatpush1.msra.mxu0 0.0
    %3652 = vmatprep.subr.mxu0 0.0
    %3653 = vmatpush1.msra.mxu0 0.0
    %3654 = vmatprep.subr.mxu0 0.0
    %3655 = vmatpush1.msra.mxu0 0.0
    %3656 = vmatprep.subr.mxu0 0.0
    %3657 = vmatpush1.msra.mxu0 0.0
    %3658 = vmatprep.subr.mxu0 0.0
    %3659 = vmatpush1.msra.mxu0 0.0
    %3660 = vmatprep.subr.mxu0 0.0
    %3661 = vmatpush1.msra.mxu0 0.0
    %3662 = vmatprep.subr.mxu0 0.0
    %3663 = vmatpush1.msra.mxu0 0.0
    %3664 = vmatprep.subr.mxu0 0.0
    %3665 = vmatpush1.msra.mxu0 0.0
    %3666 = vmatprep.subr.mxu0 0.0
    %3667 = vmatpush1.msra.mxu0 0.0
    %3668 = vmatprep.subr.mxu0 0.0
    %3669 = vmatpush1.msra.mxu0 0.0
    %3670 = vmatprep.subr.mxu0 0.0
    %3671 = vmatpush1.msra.mxu0 0.0
    %3672 = vmatprep.subr.mxu0 0.0
    %3673 = vmatpush1.msra.mxu0 0.0
    %3674 = vmatprep.subr.mxu0 0.0
    %3675 = vmatpush1.msra.mxu0 0.0
    %3676 = vmatprep.subr.mxu0 0.0
    %3677 = vmatpush1.msra.mxu0 0.0
    %3678 = vmatprep.subr.mxu0 0.0
    %3679 = vmatpush1.msra.mxu0 0.0
    %3680 = vmatprep.subr.mxu0 0.0
    %3681 = vmatpush1.msra.mxu0 0.0
    %3682 = vmatprep.mubr.f32.mxu0 0.0
    %v3683 = vand.u32 %v3387, 4294901760
    %v3684 = vsub.f32 %v3387, %v3683
    %v3685 = vand.u32 %v3684, 4294901760
    %v3686 = vsub.f32 %v3684, %v3685
    %v3687 = vand.u32 %v3686, 4294901760
    %3688 = vmatmul.mubr.f32.gmra.mrb[0].mxu0 %v3687
    %v3689 = vpop.f32.mrb[0].mxu0
    %v3690 = vadd.f32 %v3584, %v3689
    %v3691 = vpop.f32.mrb[0].mxu0
    %v3692 = vadd.f32 %v3584, %v3691
    %3693 = vdwg.mxu0
    %v3694 = vand.u32 %v3389, 4294901760
    %v3695 = vsub.f32 %v3389, %v3694
    %v3696 = vand.u32 %v3695, 4294901760
    %v3697 = vsub.f32 %v3695, %v3696
    %v3698 = vand.u32 %v3697, 4294901760
    %3699 = vmatprep.subr.mxu0 %v3698
    %v3700 = vand.u32 %v3388, 4294901760
    %v3701 = vsub.f32 %v3388, %v3700
    %v3702 = vand.u32 %v3701, 4294901760
    %v3703 = vsub.f32 %v3701, %v3702
    %v3704 = vand.u32 %v3703, 4294901760
    %3705 = vmatpush1.msra.mxu0 %v3704
    %v3706 = vand.u32 %v3401, 4294901760
    %v3707 = vsub.f32 %v3401, %v3706
    %v3708 = vand.u32 %v3707, 4294901760
    %v3709 = vsub.f32 %v3707, %v3708
    %v3710 = vand.u32 %v3709, 4294901760
    %3711 = vmatprep.subr.mxu0 %v3710
    %v3712 = vand.u32 %v3400, 4294901760
    %v3713 = vsub.f32 %v3400, %v3712
    %v3714 = vand.u32 %v3713, 4294901760
    %v3715 = vsub.f32 %v3713, %v3714
    %v3716 = vand.u32 %v3715, 4294901760
    %3717 = vmatpush1.msra.mxu0 %v3716
    %v3718 = vand.u32 %v3413, 4294901760
    %v3719 = vsub.f32 %v3413, %v3718
    %v3720 = vand.u32 %v3719, 4294901760
    %v3721 = vsub.f32 %v3719, %v3720
    %v3722 = vand.u32 %v3721, 4294901760
    %3723 = vmatprep.subr.mxu0 %v3722
    %v3724 = vand.u32 %v3412, 4294901760
    %v3725 = vsub.f32 %v3412, %v3724
    %v3726 = vand.u32 %v3725, 4294901760
    %v3727 = vsub.f32 %v3725, %v3726
    %v3728 = vand.u32 %v3727, 4294901760
    %3729 = vmatpush1.msra.mxu0 %v3728
    %v3730 = vand.u32 %v3425, 4294901760
    %v3731 = vsub.f32 %v3425, %v3730
    %v3732 = vand.u32 %v3731, 4294901760
    %v3733 = vsub.f32 %v3731, %v3732
    %v3734 = vand.u32 %v3733, 4294901760
    %3735 = vmatprep.subr.mxu0 %v3734
    %v3736 = vand.u32 %v3424, 4294901760
    %v3737 = vsub.f32 %v3424, %v3736
    %v3738 = vand.u32 %v3737, 4294901760
    %v3739 = vsub.f32 %v3737, %v3738
    %v3740 = vand.u32 %v3739, 4294901760
    %3741 = vmatpush1.msra.mxu0 %v3740
    %v3742 = vand.u32 %v3437, 4294901760
    %v3743 = vsub.f32 %v3437, %v3742
    %v3744 = vand.u32 %v3743, 4294901760
    %v3745 = vsub.f32 %v3743, %v3744
    %v3746 = vand.u32 %v3745, 4294901760
    %3747 = vmatprep.subr.mxu0 %v3746
    %v3748 = vand.u32 %v3436, 4294901760
    %v3749 = vsub.f32 %v3436, %v3748
    %v3750 = vand.u32 %v3749, 4294901760
    %v3751 = vsub.f32 %v3749, %v3750
    %v3752 = vand.u32 %v3751, 4294901760
    %3753 = vmatpush1.msra.mxu0 %v3752
    %v3754 = vand.u32 %v3449, 4294901760
    %v3755 = vsub.f32 %v3449, %v3754
    %v3756 = vand.u32 %v3755, 4294901760
    %v3757 = vsub.f32 %v3755, %v3756
    %v3758 = vand.u32 %v3757, 4294901760
    %3759 = vmatprep.subr.mxu0 %v3758
    %v3760 = vand.u32 %v3448, 4294901760
    %v3761 = vsub.f32 %v3448, %v3760
    %v3762 = vand.u32 %v3761, 4294901760
    %v3763 = vsub.f32 %v3761, %v3762
    %v3764 = vand.u32 %v3763, 4294901760
    %3765 = vmatpush1.msra.mxu0 %v3764
    %v3766 = vand.u32 %v3461, 4294901760
    %v3767 = vsub.f32 %v3461, %v3766
    %v3768 = vand.u32 %v3767, 4294901760
    %v3769 = vsub.f32 %v3767, %v3768
    %v3770 = vand.u32 %v3769, 4294901760
    %3771 = vmatprep.subr.mxu0 %v3770
    %v3772 = vand.u32 %v3460, 4294901760
    %v3773 = vsub.f32 %v3460, %v3772
    %v3774 = vand.u32 %v3773, 4294901760
    %v3775 = vsub.f32 %v3773, %v3774
    %v3776 = vand.u32 %v3775, 4294901760
    %3777 = vmatpush1.msra.mxu0 %v3776
    %v3778 = vand.u32 %v3473, 4294901760
    %v3779 = vsub.f32 %v3473, %v3778
    %v3780 = vand.u32 %v3779, 4294901760
    %v3781 = vsub.f32 %v3779, %v3780
    %v3782 = vand.u32 %v3781, 4294901760
    %3783 = vmatprep.subr.mxu0 %v3782
    %v3784 = vand.u32 %v3472, 4294901760
    %v3785 = vsub.f32 %v3472, %v3784
    %v3786 = vand.u32 %v3785, 4294901760
    %v3787 = vsub.f32 %v3785, %v3786
    %v3788 = vand.u32 %v3787, 4294901760
    %3789 = vmatpush1.msra.mxu0 %v3788
    %v3790 = vand.u32 %v3485, 4294901760
    %v3791 = vsub.f32 %v3485, %v3790
    %v3792 = vand.u32 %v3791, 4294901760
    %v3793 = vsub.f32 %v3791, %v3792
    %v3794 = vand.u32 %v3793, 4294901760
    %3795 = vmatprep.subr.mxu0 %v3794
    %v3796 = vand.u32 %v3484, 4294901760
    %v3797 = vsub.f32 %v3484, %v3796
    %v3798 = vand.u32 %v3797, 4294901760
    %v3799 = vsub.f32 %v3797, %v3798
    %v3800 = vand.u32 %v3799, 4294901760
    %3801 = vmatpush1.msra.mxu0 %v3800
    %v3802 = vand.u32 %v3497, 4294901760
    %v3803 = vsub.f32 %v3497, %v3802
    %v3804 = vand.u32 %v3803, 4294901760
    %v3805 = vsub.f32 %v3803, %v3804
    %v3806 = vand.u32 %v3805, 4294901760
    %3807 = vmatprep.subr.mxu0 %v3806
    %v3808 = vand.u32 %v3496, 4294901760
    %v3809 = vsub.f32 %v3496, %v3808
    %v3810 = vand.u32 %v3809, 4294901760
    %v3811 = vsub.f32 %v3809, %v3810
    %v3812 = vand.u32 %v3811, 4294901760
    %3813 = vmatpush1.msra.mxu0 %v3812
    %v3814 = vand.u32 %v3509, 4294901760
    %v3815 = vsub.f32 %v3509, %v3814
    %v3816 = vand.u32 %v3815, 4294901760
    %v3817 = vsub.f32 %v3815, %v3816
    %v3818 = vand.u32 %v3817, 4294901760
    %3819 = vmatprep.subr.mxu0 %v3818
    %v3820 = vand.u32 %v3508, 4294901760
    %v3821 = vsub.f32 %v3508, %v3820
    %v3822 = vand.u32 %v3821, 4294901760
    %v3823 = vsub.f32 %v3821, %v3822
    %v3824 = vand.u32 %v3823, 4294901760
    %3825 = vmatpush1.msra.mxu0 %v3824
    %v3826 = vand.u32 %v3521, 4294901760
    %v3827 = vsub.f32 %v3521, %v3826
    %v3828 = vand.u32 %v3827, 4294901760
    %v3829 = vsub.f32 %v3827, %v3828
    %v3830 = vand.u32 %v3829, 4294901760
    %3831 = vmatprep.subr.mxu0 %v3830
    %v3832 = vand.u32 %v3520, 4294901760
    %v3833 = vsub.f32 %v3520, %v3832
    %v3834 = vand.u32 %v3833, 4294901760
    %v3835 = vsub.f32 %v3833, %v3834
    %v3836 = vand.u32 %v3835, 4294901760
    %3837 = vmatpush1.msra.mxu0 %v3836
    %v3838 = vand.u32 %v3533, 4294901760
    %v3839 = vsub.f32 %v3533, %v3838
    %v3840 = vand.u32 %v3839, 4294901760
    %v3841 = vsub.f32 %v3839, %v3840
    %v3842 = vand.u32 %v3841, 4294901760
    %3843 = vmatprep.subr.mxu0 %v3842
    %v3844 = vand.u32 %v3532, 4294901760
    %v3845 = vsub.f32 %v3532, %v3844
    %v3846 = vand.u32 %v3845, 4294901760
    %v3847 = vsub.f32 %v3845, %v3846
    %v3848 = vand.u32 %v3847, 4294901760
    %3849 = vmatpush1.msra.mxu0 %v3848
    %v3850 = vand.u32 %v3545, 4294901760
    %v3851 = vsub.f32 %v3545, %v3850
    %v3852 = vand.u32 %v3851, 4294901760
    %v3853 = vsub.f32 %v3851, %v3852
    %v3854 = vand.u32 %v3853, 4294901760
    %3855 = vmatprep.subr.mxu0 %v3854
    %v3856 = vand.u32 %v3544, 4294901760
    %v3857 = vsub.f32 %v3544, %v3856
    %v3858 = vand.u32 %v3857, 4294901760
    %v3859 = vsub.f32 %v3857, %v3858
    %v3860 = vand.u32 %v3859, 4294901760
    %3861 = vmatpush1.msra.mxu0 %v3860
    %v3862 = vand.u32 %v3557, 4294901760
    %v3863 = vsub.f32 %v3557, %v3862
    %v3864 = vand.u32 %v3863, 4294901760
    %v3865 = vsub.f32 %v3863, %v3864
    %v3866 = vand.u32 %v3865, 4294901760
    %3867 = vmatprep.subr.mxu0 %v3866
    %v3868 = vand.u32 %v3556, 4294901760
    %v3869 = vsub.f32 %v3556, %v3868
    %v3870 = vand.u32 %v3869, 4294901760
    %v3871 = vsub.f32 %v3869, %v3870
    %v3872 = vand.u32 %v3871, 4294901760
    %3873 = vmatpush1.msra.mxu0 %v3872
    %v3874 = vand.u32 %v3569, 4294901760
    %v3875 = vsub.f32 %v3569, %v3874
    %v3876 = vand.u32 %v3875, 4294901760
    %v3877 = vsub.f32 %v3875, %v3876
    %v3878 = vand.u32 %v3877, 4294901760
    %3879 = vmatprep.subr.mxu0 %v3878
    %v3880 = vand.u32 %v3568, 4294901760
    %v3881 = vsub.f32 %v3568, %v3880
    %v3882 = vand.u32 %v3881, 4294901760
    %v3883 = vsub.f32 %v3881, %v3882
    %v3884 = vand.u32 %v3883, 4294901760
    %3885 = vmatpush1.msra.mxu0 %v3884
    %3886 = vmatprep.subr.mxu0 0.0
    %3887 = vmatpush1.msra.mxu0 0.0
    %3888 = vmatprep.subr.mxu0 0.0
    %3889 = vmatpush1.msra.mxu0 0.0
    %3890 = vmatprep.subr.mxu0 0.0
    %3891 = vmatpush1.msra.mxu0 0.0
    %3892 = vmatprep.subr.mxu0 0.0
    %3893 = vmatpush1.msra.mxu0 0.0
    %3894 = vmatprep.subr.mxu0 0.0
    %3895 = vmatpush1.msra.mxu0 0.0
    %3896 = vmatprep.subr.mxu0 0.0
    %3897 = vmatpush1.msra.mxu0 0.0
    %3898 = vmatprep.subr.mxu0 0.0
    %3899 = vmatpush1.msra.mxu0 0.0
    %3900 = vmatprep.subr.mxu0 0.0
    %3901 = vmatpush1.msra.mxu0 0.0
    %3902 = vmatprep.subr.mxu0 0.0
    %3903 = vmatpush1.msra.mxu0 0.0
    %3904 = vmatprep.subr.mxu0 0.0
    %3905 = vmatpush1.msra.mxu0 0.0
    %3906 = vmatprep.subr.mxu0 0.0
    %3907 = vmatpush1.msra.mxu0 0.0
    %3908 = vmatprep.subr.mxu0 0.0
    %3909 = vmatpush1.msra.mxu0 0.0
    %3910 = vmatprep.subr.mxu0 0.0
    %3911 = vmatpush1.msra.mxu0 0.0
    %3912 = vmatprep.subr.mxu0 0.0
    %3913 = vmatpush1.msra.mxu0 0.0
    %3914 = vmatprep.subr.mxu0 0.0
    %3915 = vmatpush1.msra.mxu0 0.0
    %3916 = vmatprep.subr.mxu0 0.0
    %3917 = vmatpush1.msra.mxu0 0.0
    %3918 = vmatprep.mubr.f32.mxu0 0.0
    %v3919 = vand.u32 %v3387, 4294901760
    %3920 = vmatmul.mubr.f32.gmra.mrb[0].mxu0 %v3919
    %v3921 = vpop.f32.mrb[0].mxu0
    %v3922 = vadd.f32 %v3690, %v3921
    %v3923 = vpop.f32.mrb[0].mxu0
    %v3924 = vadd.f32 %v3692, %v3923
    %3925 = vdwg.mxu0
    %v3926 = vand.u32 %v3389, 4294901760
    %v3927 = vsub.f32 %v3389, %v3926
    %3928 = vmatprep.subr.mxu0 %v3927
    %v3929 = vand.u32 %v3388, 4294901760
    %v3930 = vsub.f32 %v3388, %v3929
    %3931 = vmatpush1.msra.mxu0 %v3930
    %v3932 = vand.u32 %v3401, 4294901760
    %v3933 = vsub.f32 %v3401, %v3932
    %3934 = vmatprep.subr.mxu0 %v3933
    %v3935 = vand.u32 %v3400, 4294901760
    %v3936 = vsub.f32 %v3400, %v3935
    %3937 = vmatpush1.msra.mxu0 %v3936
    %v3938 = vand.u32 %v3413, 4294901760
    %v3939 = vsub.f32 %v3413, %v3938
    %3940 = vmatprep.subr.mxu0 %v3939
    %v3941 = vand.u32 %v3412, 4294901760
    %v3942 = vsub.f32 %v3412, %v3941
    %3943 = vmatpush1.msra.mxu0 %v3942
    %v3944 = vand.u32 %v3425, 4294901760
    %v3945 = vsub.f32 %v3425, %v3944
    %3946 = vmatprep.subr.mxu0 %v3945
    %v3947 = vand.u32 %v3424, 4294901760
    %v3948 = vsub.f32 %v3424, %v3947
    %3949 = vmatpush1.msra.mxu0 %v3948
    %v3950 = vand.u32 %v3437, 4294901760
    %v3951 = vsub.f32 %v3437, %v3950
    %3952 = vmatprep.subr.mxu0 %v3951
    %v3953 = vand.u32 %v3436, 4294901760
    %v3954 = vsub.f32 %v3436, %v3953
    %3955 = vmatpush1.msra.mxu0 %v3954
    %v3956 = vand.u32 %v3449, 4294901760
    %v3957 = vsub.f32 %v3449, %v3956
    %3958 = vmatprep.subr.mxu0 %v3957
    %v3959 = vand.u32 %v3448, 4294901760
    %v3960 = vsub.f32 %v3448, %v3959
    %3961 = vmatpush1.msra.mxu0 %v3960
    %v3962 = vand.u32 %v3461, 4294901760
    %v3963 = vsub.f32 %v3461, %v3962
    %3964 = vmatprep.subr.mxu0 %v3963
    %v3965 = vand.u32 %v3460, 4294901760
    %v3966 = vsub.f32 %v3460, %v3965
    %3967 = vmatpush1.msra.mxu0 %v3966
    %v3968 = vand.u32 %v3473, 4294901760
    %v3969 = vsub.f32 %v3473, %v3968
    %3970 = vmatprep.subr.mxu0 %v3969
    %v3971 = vand.u32 %v3472, 4294901760
    %v3972 = vsub.f32 %v3472, %v3971
    %3973 = vmatpush1.msra.mxu0 %v3972
    %v3974 = vand.u32 %v3485, 4294901760
    %v3975 = vsub.f32 %v3485, %v3974
    %3976 = vmatprep.subr.mxu0 %v3975
    %v3977 = vand.u32 %v3484, 4294901760
    %v3978 = vsub.f32 %v3484, %v3977
    %3979 = vmatpush1.msra.mxu0 %v3978
    %v3980 = vand.u32 %v3497, 4294901760
    %v3981 = vsub.f32 %v3497, %v3980
    %3982 = vmatprep.subr.mxu0 %v3981
    %v3983 = vand.u32 %v3496, 4294901760
    %v3984 = vsub.f32 %v3496, %v3983
    %3985 = vmatpush1.msra.mxu0 %v3984
    %v3986 = vand.u32 %v3509, 4294901760
    %v3987 = vsub.f32 %v3509, %v3986
    %3988 = vmatprep.subr.mxu0 %v3987
    %v3989 = vand.u32 %v3508, 4294901760
    %v3990 = vsub.f32 %v3508, %v3989
    %3991 = vmatpush1.msra.mxu0 %v3990
    %v3992 = vand.u32 %v3521, 4294901760
    %v3993 = vsub.f32 %v3521, %v3992
    %3994 = vmatprep.subr.mxu0 %v3993
    %v3995 = vand.u32 %v3520, 4294901760
    %v3996 = vsub.f32 %v3520, %v3995
    %3997 = vmatpush1.msra.mxu0 %v3996
    %v3998 = vand.u32 %v3533, 4294901760
    %v3999 = vsub.f32 %v3533, %v3998
    %4000 = vmatprep.subr.mxu0 %v3999
    %v4001 = vand.u32 %v3532, 4294901760
    %v4002 = vsub.f32 %v3532, %v4001
    %4003 = vmatpush1.msra.mxu0 %v4002
    %v4004 = vand.u32 %v3545, 4294901760
    %v4005 = vsub.f32 %v3545, %v4004
    %4006 = vmatprep.subr.mxu0 %v4005
    %v4007 = vand.u32 %v3544, 4294901760
    %v4008 = vsub.f32 %v3544, %v4007
    %4009 = vmatpush1.msra.mxu0 %v4008
    %v4010 = vand.u32 %v3557, 4294901760
    %v4011 = vsub.f32 %v3557, %v4010
    %4012 = vmatprep.subr.mxu0 %v4011
    %v4013 = vand.u32 %v3556, 4294901760
    %v4014 = vsub.f32 %v3556, %v4013
    %4015 = vmatpush1.msra.mxu0 %v4014
    %v4016 = vand.u32 %v3569, 4294901760
    %v4017 = vsub.f32 %v3569, %v4016
    %4018 = vmatprep.subr.mxu0 %v4017
    %v4019 = vand.u32 %v3568, 4294901760
    %v4020 = vsub.f32 %v3568, %v4019
    %4021 = vmatpush1.msra.mxu0 %v4020
    %4022 = vmatprep.subr.mxu0 0.0
    %4023 = vmatpush1.msra.mxu0 0.0
    %4024 = vmatprep.subr.mxu0 0.0
    %4025 = vmatpush1.msra.mxu0 0.0
    %4026 = vmatprep.subr.mxu0 0.0
    %4027 = vmatpush1.msra.mxu0 0.0
    %4028 = vmatprep.subr.mxu0 0.0
    %4029 = vmatpush1.msra.mxu0 0.0
    %4030 = vmatprep.subr.mxu0 0.0
    %4031 = vmatpush1.msra.mxu0 0.0
    %4032 = vmatprep.subr.mxu0 0.0
    %4033 = vmatpush1.msra.mxu0 0.0
    %4034 = vmatprep.subr.mxu0 0.0
    %4035 = vmatpush1.msra.mxu0 0.0
    %4036 = vmatprep.subr.mxu0 0.0
    %4037 = vmatpush1.msra.mxu0 0.0
    %4038 = vmatprep.subr.mxu0 0.0
    %4039 = vmatpush1.msra.mxu0 0.0
    %4040 = vmatprep.subr.mxu0 0.0
    %4041 = vmatpush1.msra.mxu0 0.0
    %4042 = vmatprep.subr.mxu0 0.0
    %4043 = vmatpush1.msra.mxu0 0.0
    %4044 = vmatprep.subr.mxu0 0.0
    %4045 = vmatpush1.msra.mxu0 0.0
    %4046 = vmatprep.subr.mxu0 0.0
    %4047 = vmatpush1.msra.mxu0 0.0
    %4048 = vmatprep.subr.mxu0 0.0
    %4049 = vmatpush1.msra.mxu0 0.0
    %4050 = vmatprep.subr.mxu0 0.0
    %4051 = vmatpush1.msra.mxu0 0.0
    %4052 = vmatprep.subr.mxu0 0.0
    %4053 = vmatpush1.msra.mxu0 0.0
    %4054 = vmatprep.mubr.f32.mxu0 0.0
    %v4055 = vand.u32 %v3387, 4294901760
    %v4056 = vsub.f32 %v3387, %v4055
    %4057 = vmatmul.mubr.f32.gmra.mrb[0].mxu0 %v4056
    %v4058 = vpop.f32.mrb[0].mxu0
    %v4059 = vadd.f32 %v3922, %v4058
    %v4060 = vpop.f32.mrb[0].mxu0
    %v4061 = vadd.f32 %v3924, %v4060
    %4062 = vdwg.mxu0
    %v4063 = vand.u32 %v3389, 4294901760
    %4064 = vmatprep.subr.mxu0 %v4063
    %v4065 = vand.u32 %v3388, 4294901760
    %4066 = vmatpush1.msra.mxu0 %v4065
    %v4067 = vand.u32 %v3401, 4294901760
    %4068 = vmatprep.subr.mxu0 %v4067
    %v4069 = vand.u32 %v3400, 4294901760
    %4070 = vmatpush1.msra.mxu0 %v4069
    %v4071 = vand.u32 %v3413, 4294901760
    %4072 = vmatprep.subr.mxu0 %v4071
    %v4073 = vand.u32 %v3412, 4294901760
    %4074 = vmatpush1.msra.mxu0 %v4073
    %v4075 = vand.u32 %v3425, 4294901760
    %4076 = vmatprep.subr.mxu0 %v4075
    %v4077 = vand.u32 %v3424, 4294901760
    %4078 = vmatpush1.msra.mxu0 %v4077
    %v4079 = vand.u32 %v3437, 4294901760
    %4080 = vmatprep.subr.mxu0 %v4079
    %v4081 = vand.u32 %v3436, 4294901760
    %4082 = vmatpush1.msra.mxu0 %v4081
    %v4083 = vand.u32 %v3449, 4294901760
    %4084 = vmatprep.subr.mxu0 %v4083
    %v4085 = vand.u32 %v3448, 4294901760
    %4086 = vmatpush1.msra.mxu0 %v4085
    %v4087 = vand.u32 %v3461, 4294901760
    %4088 = vmatprep.subr.mxu0 %v4087
    %v4089 = vand.u32 %v3460, 4294901760
    %4090 = vmatpush1.msra.mxu0 %v4089
    %v4091 = vand.u32 %v3473, 4294901760
    %4092 = vmatprep.subr.mxu0 %v4091
    %v4093 = vand.u32 %v3472, 4294901760
    %4094 = vmatpush1.msra.mxu0 %v4093
    %v4095 = vand.u32 %v3485, 4294901760
    %4096 = vmatprep.subr.mxu0 %v4095
    %v4097 = vand.u32 %v3484, 4294901760
    %4098 = vmatpush1.msra.mxu0 %v4097
    %v4099 = vand.u32 %v3497, 4294901760
    %4100 = vmatprep.subr.mxu0 %v4099
    %v4101 = vand.u32 %v3496, 4294901760
    %4102 = vmatpush1.msra.mxu0 %v4101
    %v4103 = vand.u32 %v3509, 4294901760
    %4104 = vmatprep.subr.mxu0 %v4103
    %v4105 = vand.u32 %v3508, 4294901760
    %4106 = vmatpush1.msra.mxu0 %v4105
    %v4107 = vand.u32 %v3521, 4294901760
    %4108 = vmatprep.subr.mxu0 %v4107
    %v4109 = vand.u32 %v3520, 4294901760
    %4110 = vmatpush1.msra.mxu0 %v4109
    %v4111 = vand.u32 %v3533, 4294901760
    %4112 = vmatprep.subr.mxu0 %v4111
    %v4113 = vand.u32 %v3532, 4294901760
    %4114 = vmatpush1.msra.mxu0 %v4113
    %v4115 = vand.u32 %v3545, 4294901760
    %4116 = vmatprep.subr.mxu0 %v4115
    %v4117 = vand.u32 %v3544, 4294901760
    %4118 = vmatpush1.msra.mxu0 %v4117
    %v4119 = vand.u32 %v3557, 4294901760
    %4120 = vmatprep.subr.mxu0 %v4119
    %v4121 = vand.u32 %v3556, 4294901760
    %4122 = vmatpush1.msra.mxu0 %v4121
    %v4123 = vand.u32 %v3569, 4294901760
    %4124 = vmatprep.subr.mxu0 %v4123
    %v4125 = vand.u32 %v3568, 4294901760
    %4126 = vmatpush1.msra.mxu0 %v4125
    %4127 = vmatprep.subr.mxu0 0.0
    %4128 = vmatpush1.msra.mxu0 0.0
    %4129 = vmatprep.subr.mxu0 0.0
    %4130 = vmatpush1.msra.mxu0 0.0
    %4131 = vmatprep.subr.mxu0 0.0
    %4132 = vmatpush1.msra.mxu0 0.0
    %4133 = vmatprep.subr.mxu0 0.0
    %4134 = vmatpush1.msra.mxu0 0.0
    %4135 = vmatprep.subr.mxu0 0.0
    %4136 = vmatpush1.msra.mxu0 0.0
    %4137 = vmatprep.subr.mxu0 0.0
    %4138 = vmatpush1.msra.mxu0 0.0
    %4139 = vmatprep.subr.mxu0 0.0
    %4140 = vmatpush1.msra.mxu0 0.0
    %4141 = vmatprep.subr.mxu0 0.0
    %4142 = vmatpush1.msra.mxu0 0.0
    %4143 = vmatprep.subr.mxu0 0.0
    %4144 = vmatpush1.msra.mxu0 0.0
    %4145 = vmatprep.subr.mxu0 0.0
    %4146 = vmatpush1.msra.mxu0 0.0
    %4147 = vmatprep.subr.mxu0 0.0
    %4148 = vmatpush1.msra.mxu0 0.0
    %4149 = vmatprep.subr.mxu0 0.0
    %4150 = vmatpush1.msra.mxu0 0.0
    %4151 = vmatprep.subr.mxu0 0.0
    %4152 = vmatpush1.msra.mxu0 0.0
    %4153 = vmatprep.subr.mxu0 0.0
    %4154 = vmatpush1.msra.mxu0 0.0
    %4155 = vmatprep.subr.mxu0 0.0
    %4156 = vmatpush1.msra.mxu0 0.0
    %4157 = vmatprep.subr.mxu0 0.0
    %4158 = vmatpush1.msra.mxu0 0.0
    %4159 = vmatprep.mubr.f32.mxu0 0.0
    %v4160 = vand.u32 %v3387, 4294901760
    %v4161 = vsub.f32 %v3387, %v4160
    %v4162 = vand.u32 %v4161, 4294901760
    %4163 = vmatmul.mubr.f32.gmra.mrb[0].mxu0 %v4162
    %v4164 = vpop.f32.mrb[0].mxu0
    %v4165 = vadd.f32 %v4059, %v4164
    %v4166 = vpop.f32.mrb[0].mxu0
    %v4167 = vadd.f32 %v4061, %v4166
    %4168 = vdwg.mxu0
    %v4169 = vand.u32 %v3389, 4294901760
    %v4170 = vsub.f32 %v3389, %v4169
    %v4171 = vand.u32 %v4170, 4294901760
    %4172 = vmatprep.subr.mxu0 %v4171
    %v4173 = vand.u32 %v3388, 4294901760
    %v4174 = vsub.f32 %v3388, %v4173
    %v4175 = vand.u32 %v4174, 4294901760
    %4176 = vmatpush1.msra.mxu0 %v4175
    %v4177 = vand.u32 %v3401, 4294901760
    %v4178 = vsub.f32 %v3401, %v4177
    %v4179 = vand.u32 %v4178, 4294901760
    %4180 = vmatprep.subr.mxu0 %v4179
    %v4181 = vand.u32 %v3400, 4294901760
    %v4182 = vsub.f32 %v3400, %v4181
    %v4183 = vand.u32 %v4182, 4294901760
    %4184 = vmatpush1.msra.mxu0 %v4183
    %v4185 = vand.u32 %v3413, 4294901760
    %v4186 = vsub.f32 %v3413, %v4185
    %v4187 = vand.u32 %v4186, 4294901760
    %4188 = vmatprep.subr.mxu0 %v4187
    %v4189 = vand.u32 %v3412, 4294901760
    %v4190 = vsub.f32 %v3412, %v4189
    %v4191 = vand.u32 %v4190, 4294901760
    %4192 = vmatpush1.msra.mxu0 %v4191
    %v4193 = vand.u32 %v3425, 4294901760
    %v4194 = vsub.f32 %v3425, %v4193
    %v4195 = vand.u32 %v4194, 4294901760
    %4196 = vmatprep.subr.mxu0 %v4195
    %v4197 = vand.u32 %v3424, 4294901760
    %v4198 = vsub.f32 %v3424, %v4197
    %v4199 = vand.u32 %v4198, 4294901760
    %4200 = vmatpush1.msra.mxu0 %v4199
    %v4201 = vand.u32 %v3437, 4294901760
    %v4202 = vsub.f32 %v3437, %v4201
    %v4203 = vand.u32 %v4202, 4294901760
    %4204 = vmatprep.subr.mxu0 %v4203
    %v4205 = vand.u32 %v3436, 4294901760
    %v4206 = vsub.f32 %v3436, %v4205
    %v4207 = vand.u32 %v4206, 4294901760
    %4208 = vmatpush1.msra.mxu0 %v4207
    %v4209 = vand.u32 %v3449, 4294901760
    %v4210 = vsub.f32 %v3449, %v4209
    %v4211 = vand.u32 %v4210, 4294901760
    %4212 = vmatprep.subr.mxu0 %v4211
    %v4213 = vand.u32 %v3448, 4294901760
    %v4214 = vsub.f32 %v3448, %v4213
    %v4215 = vand.u32 %v4214, 4294901760
    %4216 = vmatpush1.msra.mxu0 %v4215
    %v4217 = vand.u32 %v3461, 4294901760
    %v4218 = vsub.f32 %v3461, %v4217
    %v4219 = vand.u32 %v4218, 4294901760
    %4220 = vmatprep.subr.mxu0 %v4219
    %v4221 = vand.u32 %v3460, 4294901760
    %v4222 = vsub.f32 %v3460, %v4221
    %v4223 = vand.u32 %v4222, 4294901760
    %4224 = vmatpush1.msra.mxu0 %v4223
    %v4225 = vand.u32 %v3473, 4294901760
    %v4226 = vsub.f32 %v3473, %v4225
    %v4227 = vand.u32 %v4226, 4294901760
    %4228 = vmatprep.subr.mxu0 %v4227
    %v4229 = vand.u32 %v3472, 4294901760
    %v4230 = vsub.f32 %v3472, %v4229
    %v4231 = vand.u32 %v4230, 4294901760
    %4232 = vmatpush1.msra.mxu0 %v4231
    %v4233 = vand.u32 %v3485, 4294901760
    %v4234 = vsub.f32 %v3485, %v4233
    %v4235 = vand.u32 %v4234, 4294901760
    %4236 = vmatprep.subr.mxu0 %v4235
    %v4237 = vand.u32 %v3484, 4294901760
    %v4238 = vsub.f32 %v3484, %v4237
    %v4239 = vand.u32 %v4238, 4294901760
    %4240 = vmatpush1.msra.mxu0 %v4239
    %v4241 = vand.u32 %v3497, 4294901760
    %v4242 = vsub.f32 %v3497, %v4241
    %v4243 = vand.u32 %v4242, 4294901760
    %4244 = vmatprep.subr.mxu0 %v4243
    %v4245 = vand.u32 %v3496, 4294901760
    %v4246 = vsub.f32 %v3496, %v4245
    %v4247 = vand.u32 %v4246, 4294901760
    %4248 = vmatpush1.msra.mxu0 %v4247
    %v4249 = vand.u32 %v3509, 4294901760
    %v4250 = vsub.f32 %v3509, %v4249
    %v4251 = vand.u32 %v4250, 4294901760
    %4252 = vmatprep.subr.mxu0 %v4251
    %v4253 = vand.u32 %v3508, 4294901760
    %v4254 = vsub.f32 %v3508, %v4253
    %v4255 = vand.u32 %v4254, 4294901760
    %4256 = vmatpush1.msra.mxu0 %v4255
    %v4257 = vand.u32 %v3521, 4294901760
    %v4258 = vsub.f32 %v3521, %v4257
    %v4259 = vand.u32 %v4258, 4294901760
    %4260 = vmatprep.subr.mxu0 %v4259
    %v4261 = vand.u32 %v3520, 4294901760
    %v4262 = vsub.f32 %v3520, %v4261
    %v4263 = vand.u32 %v4262, 4294901760
    %4264 = vmatpush1.msra.mxu0 %v4263
    %v4265 = vand.u32 %v3533, 4294901760
    %v4266 = vsub.f32 %v3533, %v4265
    %v4267 = vand.u32 %v4266, 4294901760
    %4268 = vmatprep.subr.mxu0 %v4267
    %v4269 = vand.u32 %v3532, 4294901760
    %v4270 = vsub.f32 %v3532, %v4269
    %v4271 = vand.u32 %v4270, 4294901760
    %4272 = vmatpush1.msra.mxu0 %v4271
    %v4273 = vand.u32 %v3545, 4294901760
    %v4274 = vsub.f32 %v3545, %v4273
    %v4275 = vand.u32 %v4274, 4294901760
    %4276 = vmatprep.subr.mxu0 %v4275
    %v4277 = vand.u32 %v3544, 4294901760
    %v4278 = vsub.f32 %v3544, %v4277
    %v4279 = vand.u32 %v4278, 4294901760
    %4280 = vmatpush1.msra.mxu0 %v4279
    %v4281 = vand.u32 %v3557, 4294901760
    %v4282 = vsub.f32 %v3557, %v4281
    %v4283 = vand.u32 %v4282, 4294901760
    %4284 = vmatprep.subr.mxu0 %v4283
    %v4285 = vand.u32 %v3556, 4294901760
    %v4286 = vsub.f32 %v3556, %v4285
    %v4287 = vand.u32 %v4286, 4294901760
    %4288 = vmatpush1.msra.mxu0 %v4287
    %v4289 = vand.u32 %v3569, 4294901760
    %v4290 = vsub.f32 %v3569, %v4289
    %v4291 = vand.u32 %v4290, 4294901760
    %4292 = vmatprep.subr.mxu0 %v4291
    %v4293 = vand.u32 %v3568, 4294901760
    %v4294 = vsub.f32 %v3568, %v4293
    %v4295 = vand.u32 %v4294, 4294901760
    %4296 = vmatpush1.msra.mxu0 %v4295
    %4297 = vmatprep.subr.mxu0 0.0
    %4298 = vmatpush1.msra.mxu0 0.0
    %4299 = vmatprep.subr.mxu0 0.0
    %4300 = vmatpush1.msra.mxu0 0.0
    %4301 = vmatprep.subr.mxu0 0.0
    %4302 = vmatpush1.msra.mxu0 0.0
    %4303 = vmatprep.subr.mxu0 0.0
    %4304 = vmatpush1.msra.mxu0 0.0
    %4305 = vmatprep.subr.mxu0 0.0
    %4306 = vmatpush1.msra.mxu0 0.0
    %4307 = vmatprep.subr.mxu0 0.0
    %4308 = vmatpush1.msra.mxu0 0.0
    %4309 = vmatprep.subr.mxu0 0.0
    %4310 = vmatpush1.msra.mxu0 0.0
    %4311 = vmatprep.subr.mxu0 0.0
    %4312 = vmatpush1.msra.mxu0 0.0
    %4313 = vmatprep.subr.mxu0 0.0
    %4314 = vmatpush1.msra.mxu0 0.0
    %4315 = vmatprep.subr.mxu0 0.0
    %4316 = vmatpush1.msra.mxu0 0.0
    %4317 = vmatprep.subr.mxu0 0.0
    %4318 = vmatpush1.msra.mxu0 0.0
    %4319 = vmatprep.subr.mxu0 0.0
    %4320 = vmatpush1.msra.mxu0 0.0
    %4321 = vmatprep.subr.mxu0 0.0
    %4322 = vmatpush1.msra.mxu0 0.0
    %4323 = vmatprep.subr.mxu0 0.0
    %4324 = vmatpush1.msra.mxu0 0.0
    %4325 = vmatprep.subr.mxu0 0.0
    %4326 = vmatpush1.msra.mxu0 0.0
    %4327 = vmatprep.subr.mxu0 0.0
    %4328 = vmatpush1.msra.mxu0 0.0
    %4329 = vmatprep.mubr.f32.mxu0 0.0
    %v4330 = vand.u32 %v3387, 4294901760
    %4331 = vmatmul.mubr.f32.gmra.mrb[0].mxu0 %v4330
    %v4332 = vpop.f32.mrb[0].mxu0
    %v4333 = vadd.f32 %v4165, %v4332
    %v4334 = vpop.f32.mrb[0].mxu0
    %v4335 = vadd.f32 %v4167, %v4334
    %4336 = vdwg.mxu0
    %v4337 = vand.u32 %v3389, 4294901760
    %4338 = vmatprep.subr.mxu0 %v4337
    %v4339 = vand.u32 %v3388, 4294901760
    %4340 = vmatpush1.msra.mxu0 %v4339
    %v4341 = vand.u32 %v3401, 4294901760
    %4342 = vmatprep.subr.mxu0 %v4341
    %v4343 = vand.u32 %v3400, 4294901760
    %4344 = vmatpush1.msra.mxu0 %v4343
    %v4345 = vand.u32 %v3413, 4294901760
    %4346 = vmatprep.subr.mxu0 %v4345
    %v4347 = vand.u32 %v3412, 4294901760
    %4348 = vmatpush1.msra.mxu0 %v4347
    %v4349 = vand.u32 %v3425, 4294901760
    %4350 = vmatprep.subr.mxu0 %v4349
    %v4351 = vand.u32 %v3424, 4294901760
    %4352 = vmatpush1.msra.mxu0 %v4351
    %v4353 = vand.u32 %v3437, 4294901760
    %4354 = vmatprep.subr.mxu0 %v4353
    %v4355 = vand.u32 %v3436, 4294901760
    %4356 = vmatpush1.msra.mxu0 %v4355
    %v4357 = vand.u32 %v3449, 4294901760
    %4358 = vmatprep.subr.mxu0 %v4357
    %v4359 = vand.u32 %v3448, 4294901760
    %4360 = vmatpush1.msra.mxu0 %v4359
    %v4361 = vand.u32 %v3461, 4294901760
    %4362 = vmatprep.subr.mxu0 %v4361
    %v4363 = vand.u32 %v3460, 4294901760
    %4364 = vmatpush1.msra.mxu0 %v4363
    %v4365 = vand.u32 %v3473, 4294901760
    %4366 = vmatprep.subr.mxu0 %v4365
    %v4367 = vand.u32 %v3472, 4294901760
    %4368 = vmatpush1.msra.mxu0 %v4367
    %v4369 = vand.u32 %v3485, 4294901760
    %4370 = vmatprep.subr.mxu0 %v4369
    %v4371 = vand.u32 %v3484, 4294901760
    %4372 = vmatpush1.msra.mxu0 %v4371
    %v4373 = vand.u32 %v3497, 4294901760
    %4374 = vmatprep.subr.mxu0 %v4373
    %v4375 = vand.u32 %v3496, 4294901760
    %4376 = vmatpush1.msra.mxu0 %v4375
    %v4377 = vand.u32 %v3509, 4294901760
    %4378 = vmatprep.subr.mxu0 %v4377
    %v4379 = vand.u32 %v3508, 4294901760
    %4380 = vmatpush1.msra.mxu0 %v4379
    %v4381 = vand.u32 %v3521, 4294901760
    %4382 = vmatprep.subr.mxu0 %v4381
    %v4383 = vand.u32 %v3520, 4294901760
    %4384 = vmatpush1.msra.mxu0 %v4383
    %v4385 = vand.u32 %v3533, 4294901760
    %4386 = vmatprep.subr.mxu0 %v4385
    %v4387 = vand.u32 %v3532, 4294901760
    %4388 = vmatpush1.msra.mxu0 %v4387
    %v4389 = vand.u32 %v3545, 4294901760
    %4390 = vmatprep.subr.mxu0 %v4389
    %v4391 = vand.u32 %v3544, 4294901760
    %4392 = vmatpush1.msra.mxu0 %v4391
    %v4393 = vand.u32 %v3557, 4294901760
    %4394 = vmatprep.subr.mxu0 %v4393
    %v4395 = vand.u32 %v3556, 4294901760
    %4396 = vmatpush1.msra.mxu0 %v4395
    %v4397 = vand.u32 %v3569, 4294901760
    %4398 = vmatprep.subr.mxu0 %v4397
    %v4399 = vand.u32 %v3568, 4294901760
    %4400 = vmatpush1.msra.mxu0 %v4399
    %4401 = vmatprep.subr.mxu0 0.0
    %4402 = vmatpush1.msra.mxu0 0.0
    %4403 = vmatprep.subr.mxu0 0.0
    %4404 = vmatpush1.msra.mxu0 0.0
    %4405 = vmatprep.subr.mxu0 0.0
    %4406 = vmatpush1.msra.mxu0 0.0
    %4407 = vmatprep.subr.mxu0 0.0
    %4408 = vmatpush1.msra.mxu0 0.0
    %4409 = vmatprep.subr.mxu0 0.0
    %4410 = vmatpush1.msra.mxu0 0.0
    %4411 = vmatprep.subr.mxu0 0.0
    %4412 = vmatpush1.msra.mxu0 0.0
    %4413 = vmatprep.subr.mxu0 0.0
    %4414 = vmatpush1.msra.mxu0 0.0
    %4415 = vmatprep.subr.mxu0 0.0
    %4416 = vmatpush1.msra.mxu0 0.0
    %4417 = vmatprep.subr.mxu0 0.0
    %4418 = vmatpush1.msra.mxu0 0.0
    %4419 = vmatprep.subr.mxu0 0.0
    %4420 = vmatpush1.msra.mxu0 0.0
    %4421 = vmatprep.subr.mxu0 0.0
    %4422 = vmatpush1.msra.mxu0 0.0
    %4423 = vmatprep.subr.mxu0 0.0
    %4424 = vmatpush1.msra.mxu0 0.0
    %4425 = vmatprep.subr.mxu0 0.0
    %4426 = vmatpush1.msra.mxu0 0.0
    %4427 = vmatprep.subr.mxu0 0.0
    %4428 = vmatpush1.msra.mxu0 0.0
    %4429 = vmatprep.subr.mxu0 0.0
    %4430 = vmatpush1.msra.mxu0 0.0
    %4431 = vmatprep.subr.mxu0 0.0
    %4432 = vmatpush1.msra.mxu0 0.0
    %4433 = vmatprep.mubr.f32.mxu0 0.0
    %v4434 = vand.u32 %v3387, 4294901760
    %4435 = vmatmul.mubr.f32.gmra.mrb[0].mxu0 %v4434
    %v4436 = vpop.f32.mrb[0].mxu0
    %v4437 = vadd.f32 %v4333, %v4436
    %v4438 = vpop.f32.mrb[0].mxu0
    %v4439 = vadd.f32 %v4335, %v4438
    %4440 = vdwg.mxu0
    %v4441 = vand.u32 %v3391, 4294901760
    %4442 = vmatprep.subr.mxu0 %v4441
    %v4443 = vand.u32 %v3390, 4294901760
    %4444 = vmatpush1.msra.mxu0 %v4443
    %v4445 = vand.u32 %v3403, 4294901760
    %4446 = vmatprep.subr.mxu0 %v4445
    %v4447 = vand.u32 %v3402, 4294901760
    %4448 = vmatpush1.msra.mxu0 %v4447
    %v4449 = vand.u32 %v3415, 4294901760
    %4450 = vmatprep.subr.mxu0 %v4449
    %v4451 = vand.u32 %v3414, 4294901760
    %4452 = vmatpush1.msra.mxu0 %v4451
    %v4453 = vand.u32 %v3427, 4294901760
    %4454 = vmatprep.subr.mxu0 %v4453
    %v4455 = vand.u32 %v3426, 4294901760
    %4456 = vmatpush1.msra.mxu0 %v4455
    %v4457 = vand.u32 %v3439, 4294901760
    %4458 = vmatprep.subr.mxu0 %v4457
    %v4459 = vand.u32 %v3438, 4294901760
    %4460 = vmatpush1.msra.mxu0 %v4459
    %v4461 = vand.u32 %v3451, 4294901760
    %4462 = vmatprep.subr.mxu0 %v4461
    %v4463 = vand.u32 %v3450, 4294901760
    %4464 = vmatpush1.msra.mxu0 %v4463
    %v4465 = vand.u32 %v3463, 4294901760
    %4466 = vmatprep.subr.mxu0 %v4465
    %v4467 = vand.u32 %v3462, 4294901760
    %4468 = vmatpush1.msra.mxu0 %v4467
    %v4469 = vand.u32 %v3475, 4294901760
    %4470 = vmatprep.subr.mxu0 %v4469
    %v4471 = vand.u32 %v3474, 4294901760
    %4472 = vmatpush1.msra.mxu0 %v4471
    %v4473 = vand.u32 %v3487, 4294901760
    %4474 = vmatprep.subr.mxu0 %v4473
    %v4475 = vand.u32 %v3486, 4294901760
    %4476 = vmatpush1.msra.mxu0 %v4475
    %v4477 = vand.u32 %v3499, 4294901760
    %4478 = vmatprep.subr.mxu0 %v4477
    %v4479 = vand.u32 %v3498, 4294901760
    %4480 = vmatpush1.msra.mxu0 %v4479
    %v4481 = vand.u32 %v3511, 4294901760
    %4482 = vmatprep.subr.mxu0 %v4481
    %v4483 = vand.u32 %v3510, 4294901760
    %4484 = vmatpush1.msra.mxu0 %v4483
    %v4485 = vand.u32 %v3523, 4294901760
    %4486 = vmatprep.subr.mxu0 %v4485
    %v4487 = vand.u32 %v3522, 4294901760
    %4488 = vmatpush1.msra.mxu0 %v4487
    %v4489 = vand.u32 %v3535, 4294901760
    %4490 = vmatprep.subr.mxu0 %v4489
    %v4491 = vand.u32 %v3534, 4294901760
    %4492 = vmatpush1.msra.mxu0 %v4491
    %v4493 = vand.u32 %v3547, 4294901760
    %4494 = vmatprep.subr.mxu0 %v4493
    %v4495 = vand.u32 %v3546, 4294901760
    %4496 = vmatpush1.msra.mxu0 %v4495
    %v4497 = vand.u32 %v3559, 4294901760
    %4498 = vmatprep.subr.mxu0 %v4497
    %v4499 = vand.u32 %v3558, 4294901760
    %4500 = vmatpush1.msra.mxu0 %v4499
    %v4501 = vand.u32 %v3571, 4294901760
    %4502 = vmatprep.subr.mxu0 %v4501
    %v4503 = vand.u32 %v3570, 4294901760
    %4504 = vmatpush1.msra.mxu0 %v4503
    %4505 = vmatprep.subr.mxu0 0.0
    %4506 = vmatpush1.msra.mxu0 0.0
    %4507 = vmatprep.subr.mxu0 0.0
    %4508 = vmatpush1.msra.mxu0 0.0
    %4509 = vmatprep.subr.mxu0 0.0
    %4510 = vmatpush1.msra.mxu0 0.0
    %4511 = vmatprep.subr.mxu0 0.0
    %4512 = vmatpush1.msra.mxu0 0.0
    %4513 = vmatprep.subr.mxu0 0.0
    %4514 = vmatpush1.msra.mxu0 0.0
    %4515 = vmatprep.subr.mxu0 0.0
    %4516 = vmatpush1.msra.mxu0 0.0
    %4517 = vmatprep.subr.mxu0 0.0
    %4518 = vmatpush1.msra.mxu0 0.0
    %4519 = vmatprep.subr.mxu0 0.0
    %4520 = vmatpush1.msra.mxu0 0.0
    %4521 = vmatprep.subr.mxu0 0.0
    %4522 = vmatpush1.msra.mxu0 0.0
    %4523 = vmatprep.subr.mxu0 0.0
    %4524 = vmatpush1.msra.mxu0 0.0
    %4525 = vmatprep.subr.mxu0 0.0
    %4526 = vmatpush1.msra.mxu0 0.0
    %4527 = vmatprep.subr.mxu0 0.0
    %4528 = vmatpush1.msra.mxu0 0.0
    %4529 = vmatprep.subr.mxu0 0.0
    %4530 = vmatpush1.msra.mxu0 0.0
    %4531 = vmatprep.subr.mxu0 0.0
    %4532 = vmatpush1.msra.mxu0 0.0
    %4533 = vmatprep.subr.mxu0 0.0
    %4534 = vmatpush1.msra.mxu0 0.0
    %4535 = vmatprep.subr.mxu0 0.0
    %4536 = vmatpush1.msra.mxu0 0.0
    %4537 = vmatprep.mubr.f32.mxu0 0.0
    %v4538 = vand.u32 %v3387, 4294901760
    %v4539 = vsub.f32 %v3387, %v4538
    %v4540 = vand.u32 %v4539, 4294901760
    %v4541 = vsub.f32 %v4539, %v4540
    %v4542 = vand.u32 %v4541, 4294901760
    %4543 = vmatmul.mubr.f32.gmra.mrb[0].mxu0 %v4542
    %v4544 = vpop.f32.mrb[0].mxu0
    %v4545 = vadd.f32 %v3584, %v4544
    %v4546 = vpop.f32.mrb[0].mxu0
    %v4547 = vadd.f32 %v3584, %v4546
    %4548 = vdwg.mxu0
    %v4549 = vand.u32 %v3391, 4294901760
    %v4550 = vsub.f32 %v3391, %v4549
    %v4551 = vand.u32 %v4550, 4294901760
    %v4552 = vsub.f32 %v4550, %v4551
    %v4553 = vand.u32 %v4552, 4294901760
    %4554 = vmatprep.subr.mxu0 %v4553
    %v4555 = vand.u32 %v3390, 4294901760
    %v4556 = vsub.f32 %v3390, %v4555
    %v4557 = vand.u32 %v4556, 4294901760
    %v4558 = vsub.f32 %v4556, %v4557
    %v4559 = vand.u32 %v4558, 4294901760
    %4560 = vmatpush1.msra.mxu0 %v4559
    %v4561 = vand.u32 %v3403, 4294901760
    %v4562 = vsub.f32 %v3403, %v4561
    %v4563 = vand.u32 %v4562, 4294901760
    %v4564 = vsub.f32 %v4562, %v4563
    %v4565 = vand.u32 %v4564, 4294901760
    %4566 = vmatprep.subr.mxu0 %v4565
    %v4567 = vand.u32 %v3402, 4294901760
    %v4568 = vsub.f32 %v3402, %v4567
    %v4569 = vand.u32 %v4568, 4294901760
    %v4570 = vsub.f32 %v4568, %v4569
    %v4571 = vand.u32 %v4570, 4294901760
    %4572 = vmatpush1.msra.mxu0 %v4571
    %v4573 = vand.u32 %v3415, 4294901760
    %v4574 = vsub.f32 %v3415, %v4573
    %v4575 = vand.u32 %v4574, 4294901760
    %v4576 = vsub.f32 %v4574, %v4575
    %v4577 = vand.u32 %v4576, 4294901760
    %4578 = vmatprep.subr.mxu0 %v4577
    %v4579 = vand.u32 %v3414, 4294901760
    %v4580 = vsub.f32 %v3414, %v4579
    %v4581 = vand.u32 %v4580, 4294901760
    %v4582 = vsub.f32 %v4580, %v4581
    %v4583 = vand.u32 %v4582, 4294901760
    %4584 = vmatpush1.msra.mxu0 %v4583
    %v4585 = vand.u32 %v3427, 4294901760
    %v4586 = vsub.f32 %v3427, %v4585
    %v4587 = vand.u32 %v4586, 4294901760
    %v4588 = vsub.f32 %v4586, %v4587
    %v4589 = vand.u32 %v4588, 4294901760
    %4590 = vmatprep.subr.mxu0 %v4589
    %v4591 = vand.u32 %v3426, 4294901760
    %v4592 = vsub.f32 %v3426, %v4591
    %v4593 = vand.u32 %v4592, 4294901760
    %v4594 = vsub.f32 %v4592, %v4593
    %v4595 = vand.u32 %v4594, 4294901760
    %4596 = vmatpush1.msra.mxu0 %v4595
    %v4597 = vand.u32 %v3439, 4294901760
    %v4598 = vsub.f32 %v3439, %v4597
    %v4599 = vand.u32 %v4598, 4294901760
    %v4600 = vsub.f32 %v4598, %v4599
    %v4601 = vand.u32 %v4600, 4294901760
    %4602 = vmatprep.subr.mxu0 %v4601
    %v4603 = vand.u32 %v3438, 4294901760
    %v4604 = vsub.f32 %v3438, %v4603
    %v4605 = vand.u32 %v4604, 4294901760
    %v4606 = vsub.f32 %v4604, %v4605
    %v4607 = vand.u32 %v4606, 4294901760
    %4608 = vmatpush1.msra.mxu0 %v4607
    %v4609 = vand.u32 %v3451, 4294901760
    %v4610 = vsub.f32 %v3451, %v4609
    %v4611 = vand.u32 %v4610, 4294901760
    %v4612 = vsub.f32 %v4610, %v4611
    %v4613 = vand.u32 %v4612, 4294901760
    %4614 = vmatprep.subr.mxu0 %v4613
    %v4615 = vand.u32 %v3450, 4294901760
    %v4616 = vsub.f32 %v3450, %v4615
    %v4617 = vand.u32 %v4616, 4294901760
    %v4618 = vsub.f32 %v4616, %v4617
    %v4619 = vand.u32 %v4618, 4294901760
    %4620 = vmatpush1.msra.mxu0 %v4619
    %v4621 = vand.u32 %v3463, 4294901760
    %v4622 = vsub.f32 %v3463, %v4621
    %v4623 = vand.u32 %v4622, 4294901760
    %v4624 = vsub.f32 %v4622, %v4623
    %v4625 = vand.u32 %v4624, 4294901760
    %4626 = vmatprep.subr.mxu0 %v4625
    %v4627 = vand.u32 %v3462, 4294901760
    %v4628 = vsub.f32 %v3462, %v4627
    %v4629 = vand.u32 %v4628, 4294901760
    %v4630 = vsub.f32 %v4628, %v4629
    %v4631 = vand.u32 %v4630, 4294901760
    %4632 = vmatpush1.msra.mxu0 %v4631
    %v4633 = vand.u32 %v3475, 4294901760
    %v4634 = vsub.f32 %v3475, %v4633
    %v4635 = vand.u32 %v4634, 4294901760
    %v4636 = vsub.f32 %v4634, %v4635
    %v4637 = vand.u32 %v4636, 4294901760
    %4638 = vmatprep.subr.mxu0 %v4637
    %v4639 = vand.u32 %v3474, 4294901760
    %v4640 = vsub.f32 %v3474, %v4639
    %v4641 = vand.u32 %v4640, 4294901760
    %v4642 = vsub.f32 %v4640, %v4641
    %v4643 = vand.u32 %v4642, 4294901760
    %4644 = vmatpush1.msra.mxu0 %v4643
    %v4645 = vand.u32 %v3487, 4294901760
    %v4646 = vsub.f32 %v3487, %v4645
    %v4647 = vand.u32 %v4646, 4294901760
    %v4648 = vsub.f32 %v4646, %v4647
    %v4649 = vand.u32 %v4648, 4294901760
    %4650 = vmatprep.subr.mxu0 %v4649
    %v4651 = vand.u32 %v3486, 4294901760
    %v4652 = vsub.f32 %v3486, %v4651
    %v4653 = vand.u32 %v4652, 4294901760
    %v4654 = vsub.f32 %v4652, %v4653
    %v4655 = vand.u32 %v4654, 4294901760
    %4656 = vmatpush1.msra.mxu0 %v4655
    %v4657 = vand.u32 %v3499, 4294901760
    %v4658 = vsub.f32 %v3499, %v4657
    %v4659 = vand.u32 %v4658, 4294901760
    %v4660 = vsub.f32 %v4658, %v4659
    %v4661 = vand.u32 %v4660, 4294901760
    %4662 = vmatprep.subr.mxu0 %v4661
    %v4663 = vand.u32 %v3498, 4294901760
    %v4664 = vsub.f32 %v3498, %v4663
    %v4665 = vand.u32 %v4664, 4294901760
    %v4666 = vsub.f32 %v4664, %v4665
    %v4667 = vand.u32 %v4666, 4294901760
    %4668 = vmatpush1.msra.mxu0 %v4667
    %v4669 = vand.u32 %v3511, 4294901760
    %v4670 = vsub.f32 %v3511, %v4669
    %v4671 = vand.u32 %v4670, 4294901760
    %v4672 = vsub.f32 %v4670, %v4671
    %v4673 = vand.u32 %v4672, 4294901760
    %4674 = vmatprep.subr.mxu0 %v4673
    %v4675 = vand.u32 %v3510, 4294901760
    %v4676 = vsub.f32 %v3510, %v4675
    %v4677 = vand.u32 %v4676, 4294901760
    %v4678 = vsub.f32 %v4676, %v4677
    %v4679 = vand.u32 %v4678, 4294901760
    %4680 = vmatpush1.msra.mxu0 %v4679
    %v4681 = vand.u32 %v3523, 4294901760
    %v4682 = vsub.f32 %v3523, %v4681
    %v4683 = vand.u32 %v4682, 4294901760
    %v4684 = vsub.f32 %v4682, %v4683
    %v4685 = vand.u32 %v4684, 4294901760
    %4686 = vmatprep.subr.mxu0 %v4685
    %v4687 = vand.u32 %v3522, 4294901760
    %v4688 = vsub.f32 %v3522, %v4687
    %v4689 = vand.u32 %v4688, 4294901760
    %v4690 = vsub.f32 %v4688, %v4689
    %v4691 = vand.u32 %v4690, 4294901760
    %4692 = vmatpush1.msra.mxu0 %v4691
    %v4693 = vand.u32 %v3535, 4294901760
    %v4694 = vsub.f32 %v3535, %v4693
    %v4695 = vand.u32 %v4694, 4294901760
    %v4696 = vsub.f32 %v4694, %v4695
    %v4697 = vand.u32 %v4696, 4294901760
    %4698 = vmatprep.subr.mxu0 %v4697
    %v4699 = vand.u32 %v3534, 4294901760
    %v4700 = vsub.f32 %v3534, %v4699
    %v4701 = vand.u32 %v4700, 4294901760
    %v4702 = vsub.f32 %v4700, %v4701
    %v4703 = vand.u32 %v4702, 4294901760
    %4704 = vmatpush1.msra.mxu0 %v4703
    %v4705 = vand.u32 %v3547, 4294901760
    %v4706 = vsub.f32 %v3547, %v4705
    %v4707 = vand.u32 %v4706, 4294901760
    %v4708 = vsub.f32 %v4706, %v4707
    %v4709 = vand.u32 %v4708, 4294901760
    %4710 = vmatprep.subr.mxu0 %v4709
    %v4711 = vand.u32 %v3546, 4294901760
    %v4712 = vsub.f32 %v3546, %v4711
    %v4713 = vand.u32 %v4712, 4294901760
    %v4714 = vsub.f32 %v4712, %v4713
    %v4715 = vand.u32 %v4714, 4294901760
    %4716 = vmatpush1.msra.mxu0 %v4715
    %v4717 = vand.u32 %v3559, 4294901760
    %v4718 = vsub.f32 %v3559, %v4717
    %v4719 = vand.u32 %v4718, 4294901760
    %v4720 = vsub.f32 %v4718, %v4719
    %v4721 = vand.u32 %v4720, 4294901760
    %4722 = vmatprep.subr.mxu0 %v4721
    %v4723 = vand.u32 %v3558, 4294901760
    %v4724 = vsub.f32 %v3558, %v4723
    %v4725 = vand.u32 %v4724, 4294901760
    %v4726 = vsub.f32 %v4724, %v4725
    %v4727 = vand.u32 %v4726, 4294901760
    %4728 = vmatpush1.msra.mxu0 %v4727
    %v4729 = vand.u32 %v3571, 4294901760
    %v4730 = vsub.f32 %v3571, %v4729
    %v4731 = vand.u32 %v4730, 4294901760
    %v4732 = vsub.f32 %v4730, %v4731
    %v4733 = vand.u32 %v4732, 4294901760
    %4734 = vmatprep.subr.mxu0 %v4733
    %v4735 = vand.u32 %v3570, 4294901760
    %v4736 = vsub.f32 %v3570, %v4735
    %v4737 = vand.u32 %v4736, 4294901760
    %v4738 = vsub.f32 %v4736, %v4737
    %v4739 = vand.u32 %v4738, 4294901760
    %4740 = vmatpush1.msra.mxu0 %v4739
    %4741 = vmatprep.subr.mxu0 0.0
    %4742 = vmatpush1.msra.mxu0 0.0
    %4743 = vmatprep.subr.mxu0 0.0
    %4744 = vmatpush1.msra.mxu0 0.0
    %4745 = vmatprep.subr.mxu0 0.0
    %4746 = vmatpush1.msra.mxu0 0.0
    %4747 = vmatprep.subr.mxu0 0.0
    %4748 = vmatpush1.msra.mxu0 0.0
    %4749 = vmatprep.subr.mxu0 0.0
    %4750 = vmatpush1.msra.mxu0 0.0
    %4751 = vmatprep.subr.mxu0 0.0
    %4752 = vmatpush1.msra.mxu0 0.0
    %4753 = vmatprep.subr.mxu0 0.0
    %4754 = vmatpush1.msra.mxu0 0.0
    %4755 = vmatprep.subr.mxu0 0.0
    %4756 = vmatpush1.msra.mxu0 0.0
    %4757 = vmatprep.subr.mxu0 0.0
    %4758 = vmatpush1.msra.mxu0 0.0
    %4759 = vmatprep.subr.mxu0 0.0
    %4760 = vmatpush1.msra.mxu0 0.0
    %4761 = vmatprep.subr.mxu0 0.0
    %4762 = vmatpush1.msra.mxu0 0.0
    %4763 = vmatprep.subr.mxu0 0.0
    %4764 = vmatpush1.msra.mxu0 0.0
    %4765 = vmatprep.subr.mxu0 0.0
    %4766 = vmatpush1.msra.mxu0 0.0
    %4767 = vmatprep.subr.mxu0 0.0
    %4768 = vmatpush1.msra.mxu0 0.0
    %4769 = vmatprep.subr.mxu0 0.0
    %4770 = vmatpush1.msra.mxu0 0.0
    %4771 = vmatprep.subr.mxu0 0.0
    %4772 = vmatpush1.msra.mxu0 0.0
    %4773 = vmatprep.mubr.f32.mxu0 0.0
    %v4774 = vand.u32 %v3387, 4294901760
    %4775 = vmatmul.mubr.f32.gmra.mrb[0].mxu0 %v4774
    %v4776 = vpop.f32.mrb[0].mxu0
    %v4777 = vadd.f32 %v4545, %v4776
    %v4778 = vpop.f32.mrb[0].mxu0
    %v4779 = vadd.f32 %v4547, %v4778
    %4780 = vdwg.mxu0
    %v4781 = vand.u32 %v3391, 4294901760
    %v4782 = vsub.f32 %v3391, %v4781
    %4783 = vmatprep.subr.mxu0 %v4782
    %v4784 = vand.u32 %v3390, 4294901760
    %v4785 = vsub.f32 %v3390, %v4784
    %4786 = vmatpush1.msra.mxu0 %v4785
    %v4787 = vand.u32 %v3403, 4294901760
    %v4788 = vsub.f32 %v3403, %v4787
    %4789 = vmatprep.subr.mxu0 %v4788
    %v4790 = vand.u32 %v3402, 4294901760
    %v4791 = vsub.f32 %v3402, %v4790
    %4792 = vmatpush1.msra.mxu0 %v4791
    %v4793 = vand.u32 %v3415, 4294901760
    %v4794 = vsub.f32 %v3415, %v4793
    %4795 = vmatprep.subr.mxu0 %v4794
    %v4796 = vand.u32 %v3414, 4294901760
    %v4797 = vsub.f32 %v3414, %v4796
    %4798 = vmatpush1.msra.mxu0 %v4797
    %v4799 = vand.u32 %v3427, 4294901760
    %v4800 = vsub.f32 %v3427, %v4799
    %4801 = vmatprep.subr.mxu0 %v4800
    %v4802 = vand.u32 %v3426, 4294901760
    %v4803 = vsub.f32 %v3426, %v4802
    %4804 = vmatpush1.msra.mxu0 %v4803
    %v4805 = vand.u32 %v3439, 4294901760
    %v4806 = vsub.f32 %v3439, %v4805
    %4807 = vmatprep.subr.mxu0 %v4806
    %v4808 = vand.u32 %v3438, 4294901760
    %v4809 = vsub.f32 %v3438, %v4808
    %4810 = vmatpush1.msra.mxu0 %v4809
    %v4811 = vand.u32 %v3451, 4294901760
    %v4812 = vsub.f32 %v3451, %v4811
    %4813 = vmatprep.subr.mxu0 %v4812
    %v4814 = vand.u32 %v3450, 4294901760
    %v4815 = vsub.f32 %v3450, %v4814
    %4816 = vmatpush1.msra.mxu0 %v4815
    %v4817 = vand.u32 %v3463, 4294901760
    %v4818 = vsub.f32 %v3463, %v4817
    %4819 = vmatprep.subr.mxu0 %v4818
    %v4820 = vand.u32 %v3462, 4294901760
    %v4821 = vsub.f32 %v3462, %v4820
    %4822 = vmatpush1.msra.mxu0 %v4821
    %v4823 = vand.u32 %v3475, 4294901760
    %v4824 = vsub.f32 %v3475, %v4823
    %4825 = vmatprep.subr.mxu0 %v4824
    %v4826 = vand.u32 %v3474, 4294901760
    %v4827 = vsub.f32 %v3474, %v4826
    %4828 = vmatpush1.msra.mxu0 %v4827
    %v4829 = vand.u32 %v3487, 4294901760
    %v4830 = vsub.f32 %v3487, %v4829
    %4831 = vmatprep.subr.mxu0 %v4830
    %v4832 = vand.u32 %v3486, 4294901760
    %v4833 = vsub.f32 %v3486, %v4832
    %4834 = vmatpush1.msra.mxu0 %v4833
    %v4835 = vand.u32 %v3499, 4294901760
    %v4836 = vsub.f32 %v3499, %v4835
    %4837 = vmatprep.subr.mxu0 %v4836
    %v4838 = vand.u32 %v3498, 4294901760
    %v4839 = vsub.f32 %v3498, %v4838
    %4840 = vmatpush1.msra.mxu0 %v4839
    %v4841 = vand.u32 %v3511, 4294901760
    %v4842 = vsub.f32 %v3511, %v4841
    %4843 = vmatprep.subr.mxu0 %v4842
    %v4844 = vand.u32 %v3510, 4294901760
    %v4845 = vsub.f32 %v3510, %v4844
    %4846 = vmatpush1.msra.mxu0 %v4845
    %v4847 = vand.u32 %v3523, 4294901760
    %v4848 = vsub.f32 %v3523, %v4847
    %4849 = vmatprep.subr.mxu0 %v4848
    %v4850 = vand.u32 %v3522, 4294901760
    %v4851 = vsub.f32 %v3522, %v4850
    %4852 = vmatpush1.msra.mxu0 %v4851
    %v4853 = vand.u32 %v3535, 4294901760
    %v4854 = vsub.f32 %v3535, %v4853
    %4855 = vmatprep.subr.mxu0 %v4854
    %v4856 = vand.u32 %v3534, 4294901760
    %v4857 = vsub.f32 %v3534, %v4856
    %4858 = vmatpush1.msra.mxu0 %v4857
    %v4859 = vand.u32 %v3547, 4294901760
    %v4860 = vsub.f32 %v3547, %v4859
    %4861 = vmatprep.subr.mxu0 %v4860
    %v4862 = vand.u32 %v3546, 4294901760
    %v4863 = vsub.f32 %v3546, %v4862
    %4864 = vmatpush1.msra.mxu0 %v4863
    %v4865 = vand.u32 %v3559, 4294901760
    %v4866 = vsub.f32 %v3559, %v4865
    %4867 = vmatprep.subr.mxu0 %v4866
    %v4868 = vand.u32 %v3558, 4294901760
    %v4869 = vsub.f32 %v3558, %v4868
    %4870 = vmatpush1.msra.mxu0 %v4869
    %v4871 = vand.u32 %v3571, 4294901760
    %v4872 = vsub.f32 %v3571, %v4871
    %4873 = vmatprep.subr.mxu0 %v4872
    %v4874 = vand.u32 %v3570, 4294901760
    %v4875 = vsub.f32 %v3570, %v4874
    %4876 = vmatpush1.msra.mxu0 %v4875
    %4877 = vmatprep.subr.mxu0 0.0
    %4878 = vmatpush1.msra.mxu0 0.0
    %4879 = vmatprep.subr.mxu0 0.0
    %4880 = vmatpush1.msra.mxu0 0.0
    %4881 = vmatprep.subr.mxu0 0.0
    %4882 = vmatpush1.msra.mxu0 0.0
    %4883 = vmatprep.subr.mxu0 0.0
    %4884 = vmatpush1.msra.mxu0 0.0
    %4885 = vmatprep.subr.mxu0 0.0
    %4886 = vmatpush1.msra.mxu0 0.0
    %4887 = vmatprep.subr.mxu0 0.0
    %4888 = vmatpush1.msra.mxu0 0.0
    %4889 = vmatprep.subr.mxu0 0.0
    %4890 = vmatpush1.msra.mxu0 0.0
    %4891 = vmatprep.subr.mxu0 0.0
    %4892 = vmatpush1.msra.mxu0 0.0
    %4893 = vmatprep.subr.mxu0 0.0
    %4894 = vmatpush1.msra.mxu0 0.0
    %4895 = vmatprep.subr.mxu0 0.0
    %4896 = vmatpush1.msra.mxu0 0.0
    %4897 = vmatprep.subr.mxu0 0.0
    %4898 = vmatpush1.msra.mxu0 0.0
    %4899 = vmatprep.subr.mxu0 0.0
    %4900 = vmatpush1.msra.mxu0 0.0
    %4901 = vmatprep.subr.mxu0 0.0
    %4902 = vmatpush1.msra.mxu0 0.0
    %4903 = vmatprep.subr.mxu0 0.0
    %4904 = vmatpush1.msra.mxu0 0.0
    %4905 = vmatprep.subr.mxu0 0.0
    %4906 = vmatpush1.msra.mxu0 0.0
    %4907 = vmatprep.subr.mxu0 0.0
    %4908 = vmatpush1.msra.mxu0 0.0
    %4909 = vmatprep.mubr.f32.mxu0 0.0
    %v4910 = vand.u32 %v3387, 4294901760
    %v4911 = vsub.f32 %v3387, %v4910
    %4912 = vmatmul.mubr.f32.gmra.mrb[0].mxu0 %v4911
    %v4913 = vpop.f32.mrb[0].mxu0
    %v4914 = vadd.f32 %v4777, %v4913
    %v4915 = vpop.f32.mrb[0].mxu0
    %v4916 = vadd.f32 %v4779, %v4915
    %4917 = vdwg.mxu0
    %v4918 = vand.u32 %v3391, 4294901760
    %4919 = vmatprep.subr.mxu0 %v4918
    %v4920 = vand.u32 %v3390, 4294901760
    %4921 = vmatpush1.msra.mxu0 %v4920
    %v4922 = vand.u32 %v3403, 4294901760
    %4923 = vmatprep.subr.mxu0 %v4922
    %v4924 = vand.u32 %v3402, 4294901760
    %4925 = vmatpush1.msra.mxu0 %v4924
    %v4926 = vand.u32 %v3415, 4294901760
    %4927 = vmatprep.subr.mxu0 %v4926
    %v4928 = vand.u32 %v3414, 4294901760
    %4929 = vmatpush1.msra.mxu0 %v4928
    %v4930 = vand.u32 %v3427, 4294901760
    %4931 = vmatprep.subr.mxu0 %v4930
    %v4932 = vand.u32 %v3426, 4294901760
    %4933 = vmatpush1.msra.mxu0 %v4932
    %v4934 = vand.u32 %v3439, 4294901760
    %4935 = vmatprep.subr.mxu0 %v4934
    %v4936 = vand.u32 %v3438, 4294901760
    %4937 = vmatpush1.msra.mxu0 %v4936
    %v4938 = vand.u32 %v3451, 4294901760
    %4939 = vmatprep.subr.mxu0 %v4938
    %v4940 = vand.u32 %v3450, 4294901760
    %4941 = vmatpush1.msra.mxu0 %v4940
    %v4942 = vand.u32 %v3463, 4294901760
    %4943 = vmatprep.subr.mxu0 %v4942
    %v4944 = vand.u32 %v3462, 4294901760
    %4945 = vmatpush1.msra.mxu0 %v4944
    %v4946 = vand.u32 %v3475, 4294901760
    %4947 = vmatprep.subr.mxu0 %v4946
    %v4948 = vand.u32 %v3474, 4294901760
    %4949 = vmatpush1.msra.mxu0 %v4948
    %v4950 = vand.u32 %v3487, 4294901760
    %4951 = vmatprep.subr.mxu0 %v4950
    %v4952 = vand.u32 %v3486, 4294901760
    %4953 = vmatpush1.msra.mxu0 %v4952
    %v4954 = vand.u32 %v3499, 4294901760
    %4955 = vmatprep.subr.mxu0 %v4954
    %v4956 = vand.u32 %v3498, 4294901760
    %4957 = vmatpush1.msra.mxu0 %v4956
    %v4958 = vand.u32 %v3511, 4294901760
    %4959 = vmatprep.subr.mxu0 %v4958
    %v4960 = vand.u32 %v3510, 4294901760
    %4961 = vmatpush1.msra.mxu0 %v4960
    %v4962 = vand.u32 %v3523, 4294901760
    %4963 = vmatprep.subr.mxu0 %v4962
    %v4964 = vand.u32 %v3522, 4294901760
    %4965 = vmatpush1.msra.mxu0 %v4964
    %v4966 = vand.u32 %v3535, 4294901760
    %4967 = vmatprep.subr.mxu0 %v4966
    %v4968 = vand.u32 %v3534, 4294901760
    %4969 = vmatpush1.msra.mxu0 %v4968
    %v4970 = vand.u32 %v3547, 4294901760
    %4971 = vmatprep.subr.mxu0 %v4970
    %v4972 = vand.u32 %v3546, 4294901760
    %4973 = vmatpush1.msra.mxu0 %v4972
    %v4974 = vand.u32 %v3559, 4294901760
    %4975 = vmatprep.subr.mxu0 %v4974
    %v4976 = vand.u32 %v3558, 4294901760
    %4977 = vmatpush1.msra.mxu0 %v4976
    %v4978 = vand.u32 %v3571, 4294901760
    %4979 = vmatprep.subr.mxu0 %v4978
    %v4980 = vand.u32 %v3570, 4294901760
    %4981 = vmatpush1.msra.mxu0 %v4980
    %4982 = vmatprep.subr.mxu0 0.0
    %4983 = vmatpush1.msra.mxu0 0.0
    %4984 = vmatprep.subr.mxu0 0.0
    %4985 = vmatpush1.msra.mxu0 0.0
    %4986 = vmatprep.subr.mxu0 0.0
    %4987 = vmatpush1.msra.mxu0 0.0
    %4988 = vmatprep.subr.mxu0 0.0
    %4989 = vmatpush1.msra.mxu0 0.0
    %4990 = vmatprep.subr.mxu0 0.0
    %4991 = vmatpush1.msra.mxu0 0.0
    %4992 = vmatprep.subr.mxu0 0.0
    %4993 = vmatpush1.msra.mxu0 0.0
    %4994 = vmatprep.subr.mxu0 0.0
    %4995 = vmatpush1.msra.mxu0 0.0
    %4996 = vmatprep.subr.mxu0 0.0
    %4997 = vmatpush1.msra.mxu0 0.0
    %4998 = vmatprep.subr.mxu0 0.0
    %4999 = vmatpush1.msra.mxu0 0.0
    %5000 = vmatprep.subr.mxu0 0.0
    %5001 = vmatpush1.msra.mxu0 0.0
    %5002 = vmatprep.subr.mxu0 0.0
    %5003 = vmatpush1.msra.mxu0 0.0
    %5004 = vmatprep.subr.mxu0 0.0
    %5005 = vmatpush1.msra.mxu0 0.0
    %5006 = vmatprep.subr.mxu0 0.0
    %5007 = vmatpush1.msra.mxu0 0.0
    %5008 = vmatprep.subr.mxu0 0.0
    %5009 = vmatpush1.msra.mxu0 0.0
    %5010 = vmatprep.subr.mxu0 0.0
    %5011 = vmatpush1.msra.mxu0 0.0
    %5012 = vmatprep.subr.mxu0 0.0
    %5013 = vmatpush1.msra.mxu0 0.0
    %5014 = vmatprep.mubr.f32.mxu0 0.0
    %v5015 = vand.u32 %v3387, 4294901760
    %v5016 = vsub.f32 %v3387, %v5015
    %v5017 = vand.u32 %v5016, 4294901760
    %5018 = vmatmul.mubr.f32.gmra.mrb[0].mxu0 %v5017
    %v5019 = vpop.f32.mrb[0].mxu0
    %v5020 = vadd.f32 %v4914, %v5019
    %v5021 = vpop.f32.mrb[0].mxu0
    %v5022 = vadd.f32 %v4916, %v5021
    %5023 = vdwg.mxu0
    %v5024 = vand.u32 %v3391, 4294901760
    %v5025 = vsub.f32 %v3391, %v5024
    %v5026 = vand.u32 %v5025, 4294901760
    %5027 = vmatprep.subr.mxu0 %v5026
    %v5028 = vand.u32 %v3390, 4294901760
    %v5029 = vsub.f32 %v3390, %v5028
    %v5030 = vand.u32 %v5029, 4294901760
    %5031 = vmatpush1.msra.mxu0 %v5030
    %v5032 = vand.u32 %v3403, 4294901760
    %v5033 = vsub.f32 %v3403, %v5032
    %v5034 = vand.u32 %v5033, 4294901760
    %5035 = vmatprep.subr.mxu0 %v5034
    %v5036 = vand.u32 %v3402, 4294901760
    %v5037 = vsub.f32 %v3402, %v5036
    %v5038 = vand.u32 %v5037, 4294901760
    %5039 = vmatpush1.msra.mxu0 %v5038
    %v5040 = vand.u32 %v3415, 4294901760
    %v5041 = vsub.f32 %v3415, %v5040
    %v5042 = vand.u32 %v5041, 4294901760
    %5043 = vmatprep.subr.mxu0 %v5042
    %v5044 = vand.u32 %v3414, 4294901760
    %v5045 = vsub.f32 %v3414, %v5044
    %v5046 = vand.u32 %v5045, 4294901760
    %5047 = vmatpush1.msra.mxu0 %v5046
    %v5048 = vand.u32 %v3427, 4294901760
    %v5049 = vsub.f32 %v3427, %v5048
    %v5050 = vand.u32 %v5049, 4294901760
    %5051 = vmatprep.subr.mxu0 %v5050
    %v5052 = vand.u32 %v3426, 4294901760
    %v5053 = vsub.f32 %v3426, %v5052
    %v5054 = vand.u32 %v5053, 4294901760
    %5055 = vmatpush1.msra.mxu0 %v5054
    %v5056 = vand.u32 %v3439, 4294901760
    %v5057 = vsub.f32 %v3439, %v5056
    %v5058 = vand.u32 %v5057, 4294901760
    %5059 = vmatprep.subr.mxu0 %v5058
    %v5060 = vand.u32 %v3438, 4294901760
    %v5061 = vsub.f32 %v3438, %v5060
    %v5062 = vand.u32 %v5061, 4294901760
    %5063 = vmatpush1.msra.mxu0 %v5062
    %v5064 = vand.u32 %v3451, 4294901760
    %v5065 = vsub.f32 %v3451, %v5064
    %v5066 = vand.u32 %v5065, 4294901760
    %5067 = vmatprep.subr.mxu0 %v5066
    %v5068 = vand.u32 %v3450, 4294901760
    %v5069 = vsub.f32 %v3450, %v5068
    %v5070 = vand.u32 %v5069, 4294901760
    %5071 = vmatpush1.msra.mxu0 %v5070
    %v5072 = vand.u32 %v3463, 4294901760
    %v5073 = vsub.f32 %v3463, %v5072
    %v5074 = vand.u32 %v5073, 4294901760
    %5075 = vmatprep.subr.mxu0 %v5074
    %v5076 = vand.u32 %v3462, 4294901760
    %v5077 = vsub.f32 %v3462, %v5076
    %v5078 = vand.u32 %v5077, 4294901760
    %5079 = vmatpush1.msra.mxu0 %v5078
    %v5080 = vand.u32 %v3475, 4294901760
    %v5081 = vsub.f32 %v3475, %v5080
    %v5082 = vand.u32 %v5081, 4294901760
    %5083 = vmatprep.subr.mxu0 %v5082
    %v5084 = vand.u32 %v3474, 4294901760
    %v5085 = vsub.f32 %v3474, %v5084
    %v5086 = vand.u32 %v5085, 4294901760
    %5087 = vmatpush1.msra.mxu0 %v5086
    %v5088 = vand.u32 %v3487, 4294901760
    %v5089 = vsub.f32 %v3487, %v5088
    %v5090 = vand.u32 %v5089, 4294901760
    %5091 = vmatprep.subr.mxu0 %v5090
    %v5092 = vand.u32 %v3486, 4294901760
    %v5093 = vsub.f32 %v3486, %v5092
    %v5094 = vand.u32 %v5093, 4294901760
    %5095 = vmatpush1.msra.mxu0 %v5094
    %v5096 = vand.u32 %v3499, 4294901760
    %v5097 = vsub.f32 %v3499, %v5096
    %v5098 = vand.u32 %v5097, 4294901760
    %5099 = vmatprep.subr.mxu0 %v5098
    %v5100 = vand.u32 %v3498, 4294901760
    %v5101 = vsub.f32 %v3498, %v5100
    %v5102 = vand.u32 %v5101, 4294901760
    %5103 = vmatpush1.msra.mxu0 %v5102
    %v5104 = vand.u32 %v3511, 4294901760
    %v5105 = vsub.f32 %v3511, %v5104
    %v5106 = vand.u32 %v5105, 4294901760
    %5107 = vmatprep.subr.mxu0 %v5106
    %v5108 = vand.u32 %v3510, 4294901760
    %v5109 = vsub.f32 %v3510, %v5108
    %v5110 = vand.u32 %v5109, 4294901760
    %5111 = vmatpush1.msra.mxu0 %v5110
    %v5112 = vand.u32 %v3523, 4294901760
    %v5113 = vsub.f32 %v3523, %v5112
    %v5114 = vand.u32 %v5113, 4294901760
    %5115 = vmatprep.subr.mxu0 %v5114
    %v5116 = vand.u32 %v3522, 4294901760
    %v5117 = vsub.f32 %v3522, %v5116
    %v5118 = vand.u32 %v5117, 4294901760
    %5119 = vmatpush1.msra.mxu0 %v5118
    %v5120 = vand.u32 %v3535, 4294901760
    %v5121 = vsub.f32 %v3535, %v5120
    %v5122 = vand.u32 %v5121, 4294901760
    %5123 = vmatprep.subr.mxu0 %v5122
    %v5124 = vand.u32 %v3534, 4294901760
    %v5125 = vsub.f32 %v3534, %v5124
    %v5126 = vand.u32 %v5125, 4294901760
    %5127 = vmatpush1.msra.mxu0 %v5126
    %v5128 = vand.u32 %v3547, 4294901760
    %v5129 = vsub.f32 %v3547, %v5128
    %v5130 = vand.u32 %v5129, 4294901760
    %5131 = vmatprep.subr.mxu0 %v5130
    %v5132 = vand.u32 %v3546, 4294901760
    %v5133 = vsub.f32 %v3546, %v5132
    %v5134 = vand.u32 %v5133, 4294901760
    %5135 = vmatpush1.msra.mxu0 %v5134
    %v5136 = vand.u32 %v3559, 4294901760
    %v5137 = vsub.f32 %v3559, %v5136
    %v5138 = vand.u32 %v5137, 4294901760
    %5139 = vmatprep.subr.mxu0 %v5138
    %v5140 = vand.u32 %v3558, 4294901760
    %v5141 = vsub.f32 %v3558, %v5140
    %v5142 = vand.u32 %v5141, 4294901760
    %5143 = vmatpush1.msra.mxu0 %v5142
    %v5144 = vand.u32 %v3571, 4294901760
    %v5145 = vsub.f32 %v3571, %v5144
    %v5146 = vand.u32 %v5145, 4294901760
    %5147 = vmatprep.subr.mxu0 %v5146
    %v5148 = vand.u32 %v3570, 4294901760
    %v5149 = vsub.f32 %v3570, %v5148
    %v5150 = vand.u32 %v5149, 4294901760
    %5151 = vmatpush1.msra.mxu0 %v5150
    %5152 = vmatprep.subr.mxu0 0.0
    %5153 = vmatpush1.msra.mxu0 0.0
    %5154 = vmatprep.subr.mxu0 0.0
    %5155 = vmatpush1.msra.mxu0 0.0
    %5156 = vmatprep.subr.mxu0 0.0
    %5157 = vmatpush1.msra.mxu0 0.0
    %5158 = vmatprep.subr.mxu0 0.0
    %5159 = vmatpush1.msra.mxu0 0.0
    %5160 = vmatprep.subr.mxu0 0.0
    %5161 = vmatpush1.msra.mxu0 0.0
    %5162 = vmatprep.subr.mxu0 0.0
    %5163 = vmatpush1.msra.mxu0 0.0
    %5164 = vmatprep.subr.mxu0 0.0
    %5165 = vmatpush1.msra.mxu0 0.0
    %5166 = vmatprep.subr.mxu0 0.0
    %5167 = vmatpush1.msra.mxu0 0.0
    %5168 = vmatprep.subr.mxu0 0.0
    %5169 = vmatpush1.msra.mxu0 0.0
    %5170 = vmatprep.subr.mxu0 0.0
    %5171 = vmatpush1.msra.mxu0 0.0
    %5172 = vmatprep.subr.mxu0 0.0
    %5173 = vmatpush1.msra.mxu0 0.0
    %5174 = vmatprep.subr.mxu0 0.0
    %5175 = vmatpush1.msra.mxu0 0.0
    %5176 = vmatprep.subr.mxu0 0.0
    %5177 = vmatpush1.msra.mxu0 0.0
    %5178 = vmatprep.subr.mxu0 0.0
    %5179 = vmatpush1.msra.mxu0 0.0
    %5180 = vmatprep.subr.mxu0 0.0
    %5181 = vmatpush1.msra.mxu0 0.0
    %5182 = vmatprep.subr.mxu0 0.0
    %5183 = vmatpush1.msra.mxu0 0.0
    %5184 = vmatprep.mubr.f32.mxu0 0.0
    %v5185 = vand.u32 %v3387, 4294901760
    %5186 = vmatmul.mubr.f32.gmra.mrb[0].mxu0 %v5185
    %v5187 = vpop.f32.mrb[0].mxu0
    %v5188 = vadd.f32 %v5020, %v5187
    %v5189 = vpop.f32.mrb[0].mxu0
    %v5190 = vadd.f32 %v5022, %v5189
    %5191 = vdwg.mxu0
    %v5192 = vand.u32 %v3391, 4294901760
    %5193 = vmatprep.subr.mxu0 %v5192
    %v5194 = vand.u32 %v3390, 4294901760
    %5195 = vmatpush1.msra.mxu0 %v5194
    %v5196 = vand.u32 %v3403, 4294901760
    %5197 = vmatprep.subr.mxu0 %v5196
    %v5198 = vand.u32 %v3402, 4294901760
    %5199 = vmatpush1.msra.mxu0 %v5198
    %v5200 = vand.u32 %v3415, 4294901760
    %5201 = vmatprep.subr.mxu0 %v5200
    %v5202 = vand.u32 %v3414, 4294901760
    %5203 = vmatpush1.msra.mxu0 %v5202
    %v5204 = vand.u32 %v3427, 4294901760
    %5205 = vmatprep.subr.mxu0 %v5204
    %v5206 = vand.u32 %v3426, 4294901760
    %5207 = vmatpush1.msra.mxu0 %v5206
    %v5208 = vand.u32 %v3439, 4294901760
    %5209 = vmatprep.subr.mxu0 %v5208
    %v5210 = vand.u32 %v3438, 4294901760
    %5211 = vmatpush1.msra.mxu0 %v5210
    %v5212 = vand.u32 %v3451, 4294901760
    %5213 = vmatprep.subr.mxu0 %v5212
    %v5214 = vand.u32 %v3450, 4294901760
    %5215 = vmatpush1.msra.mxu0 %v5214
    %v5216 = vand.u32 %v3463, 4294901760
    %5217 = vmatprep.subr.mxu0 %v5216
    %v5218 = vand.u32 %v3462, 4294901760
    %5219 = vmatpush1.msra.mxu0 %v5218
    %v5220 = vand.u32 %v3475, 4294901760
    %5221 = vmatprep.subr.mxu0 %v5220
    %v5222 = vand.u32 %v3474, 4294901760
    %5223 = vmatpush1.msra.mxu0 %v5222
    %v5224 = vand.u32 %v3487, 4294901760
    %5225 = vmatprep.subr.mxu0 %v5224
    %v5226 = vand.u32 %v3486, 4294901760
    %5227 = vmatpush1.msra.mxu0 %v5226
    %v5228 = vand.u32 %v3499, 4294901760
    %5229 = vmatprep.subr.mxu0 %v5228
    %v5230 = vand.u32 %v3498, 4294901760
    %5231 = vmatpush1.msra.mxu0 %v5230
    %v5232 = vand.u32 %v3511, 4294901760
    %5233 = vmatprep.subr.mxu0 %v5232
    %v5234 = vand.u32 %v3510, 4294901760
    %5235 = vmatpush1.msra.mxu0 %v5234
    %v5236 = vand.u32 %v3523, 4294901760
    %5237 = vmatprep.subr.mxu0 %v5236
    %v5238 = vand.u32 %v3522, 4294901760
    %5239 = vmatpush1.msra.mxu0 %v5238
    %v5240 = vand.u32 %v3535, 4294901760
    %5241 = vmatprep.subr.mxu0 %v5240
    %v5242 = vand.u32 %v3534, 4294901760
    %5243 = vmatpush1.msra.mxu0 %v5242
    %v5244 = vand.u32 %v3547, 4294901760
    %5245 = vmatprep.subr.mxu0 %v5244
    %v5246 = vand.u32 %v3546, 4294901760
    %5247 = vmatpush1.msra.mxu0 %v5246
    %v5248 = vand.u32 %v3559, 4294901760
    %5249 = vmatprep.subr.mxu0 %v5248
    %v5250 = vand.u32 %v3558, 4294901760
    %5251 = vmatpush1.msra.mxu0 %v5250
    %v5252 = vand.u32 %v3571, 4294901760
    %5253 = vmatprep.subr.mxu0 %v5252
    %v5254 = vand.u32 %v3570, 4294901760
    %5255 = vmatpush1.msra.mxu0 %v5254
    %5256 = vmatprep.subr.mxu0 0.0
    %5257 = vmatpush1.msra.mxu0 0.0
    %5258 = vmatprep.subr.mxu0 0.0
    %5259 = vmatpush1.msra.mxu0 0.0
    %5260 = vmatprep.subr.mxu0 0.0
    %5261 = vmatpush1.msra.mxu0 0.0
    %5262 = vmatprep.subr.mxu0 0.0
    %5263 = vmatpush1.msra.mxu0 0.0
    %5264 = vmatprep.subr.mxu0 0.0
    %5265 = vmatpush1.msra.mxu0 0.0
    %5266 = vmatprep.subr.mxu0 0.0
    %5267 = vmatpush1.msra.mxu0 0.0
    %5268 = vmatprep.subr.mxu0 0.0
    %5269 = vmatpush1.msra.mxu0 0.0
    %5270 = vmatprep.subr.mxu0 0.0
    %5271 = vmatpush1.msra.mxu0 0.0
    %5272 = vmatprep.subr.mxu0 0.0
    %5273 = vmatpush1.msra.mxu0 0.0
    %5274 = vmatprep.subr.mxu0 0.0
    %5275 = vmatpush1.msra.mxu0 0.0
    %5276 = vmatprep.subr.mxu0 0.0
    %5277 = vmatpush1.msra.mxu0 0.0
    %5278 = vmatprep.subr.mxu0 0.0
    %5279 = vmatpush1.msra.mxu0 0.0
    %5280 = vmatprep.subr.mxu0 0.0
    %5281 = vmatpush1.msra.mxu0 0.0
    %5282 = vmatprep.subr.mxu0 0.0
    %5283 = vmatpush1.msra.mxu0 0.0
    %5284 = vmatprep.subr.mxu0 0.0
    %5285 = vmatpush1.msra.mxu0 0.0
    %5286 = vmatprep.subr.mxu0 0.0
    %5287 = vmatpush1.msra.mxu0 0.0
    %5288 = vmatprep.mubr.f32.mxu0 0.0
    %v5289 = vand.u32 %v3387, 4294901760
    %5290 = vmatmul.mubr.f32.gmra.mrb[0].mxu0 %v5289
    %v5291 = vpop.f32.mrb[0].mxu0
    %v5292 = vadd.f32 %v5188, %v5291
    %v5293 = vpop.f32.mrb[0].mxu0
    %v5294 = vadd.f32 %v5190, %v5293
    %5295 = vdwg.mxu0
    %v5296 = vand.u32 %v3393, 4294901760
    %5297 = vmatprep.subr.mxu0 %v5296
    %v5298 = vand.u32 %v3392, 4294901760
    %5299 = vmatpush1.msra.mxu0 %v5298
    %v5300 = vand.u32 %v3405, 4294901760
    %5301 = vmatprep.subr.mxu0 %v5300
    %v5302 = vand.u32 %v3404, 4294901760
    %5303 = vmatpush1.msra.mxu0 %v5302
    %v5304 = vand.u32 %v3417, 4294901760
    %5305 = vmatprep.subr.mxu0 %v5304
    %v5306 = vand.u32 %v3416, 4294901760
    %5307 = vmatpush1.msra.mxu0 %v5306
    %v5308 = vand.u32 %v3429, 4294901760
    %5309 = vmatprep.subr.mxu0 %v5308
    %v5310 = vand.u32 %v3428, 4294901760
    %5311 = vmatpush1.msra.mxu0 %v5310
    %v5312 = vand.u32 %v3441, 4294901760
    %5313 = vmatprep.subr.mxu0 %v5312
    %v5314 = vand.u32 %v3440, 4294901760
    %5315 = vmatpush1.msra.mxu0 %v5314
    %v5316 = vand.u32 %v3453, 4294901760
    %5317 = vmatprep.subr.mxu0 %v5316
    %v5318 = vand.u32 %v3452, 4294901760
    %5319 = vmatpush1.msra.mxu0 %v5318
    %v5320 = vand.u32 %v3465, 4294901760
    %5321 = vmatprep.subr.mxu0 %v5320
    %v5322 = vand.u32 %v3464, 4294901760
    %5323 = vmatpush1.msra.mxu0 %v5322
    %v5324 = vand.u32 %v3477, 4294901760
    %5325 = vmatprep.subr.mxu0 %v5324
    %v5326 = vand.u32 %v3476, 4294901760
    %5327 = vmatpush1.msra.mxu0 %v5326
    %v5328 = vand.u32 %v3489, 4294901760
    %5329 = vmatprep.subr.mxu0 %v5328
    %v5330 = vand.u32 %v3488, 4294901760
    %5331 = vmatpush1.msra.mxu0 %v5330
    %v5332 = vand.u32 %v3501, 4294901760
    %5333 = vmatprep.subr.mxu0 %v5332
    %v5334 = vand.u32 %v3500, 4294901760
    %5335 = vmatpush1.msra.mxu0 %v5334
    %v5336 = vand.u32 %v3513, 4294901760
    %5337 = vmatprep.subr.mxu0 %v5336
    %v5338 = vand.u32 %v3512, 4294901760
    %5339 = vmatpush1.msra.mxu0 %v5338
    %v5340 = vand.u32 %v3525, 4294901760
    %5341 = vmatprep.subr.mxu0 %v5340
    %v5342 = vand.u32 %v3524, 4294901760
    %5343 = vmatpush1.msra.mxu0 %v5342
    %v5344 = vand.u32 %v3537, 4294901760
    %5345 = vmatprep.subr.mxu0 %v5344
    %v5346 = vand.u32 %v3536, 4294901760
    %5347 = vmatpush1.msra.mxu0 %v5346
    %v5348 = vand.u32 %v3549, 4294901760
    %5349 = vmatprep.subr.mxu0 %v5348
    %v5350 = vand.u32 %v3548, 4294901760
    %5351 = vmatpush1.msra.mxu0 %v5350
    %v5352 = vand.u32 %v3561, 4294901760
    %5353 = vmatprep.subr.mxu0 %v5352
    %v5354 = vand.u32 %v3560, 4294901760
    %5355 = vmatpush1.msra.mxu0 %v5354
    %v5356 = vand.u32 %v3573, 4294901760
    %5357 = vmatprep.subr.mxu0 %v5356
    %v5358 = vand.u32 %v3572, 4294901760
    %5359 = vmatpush1.msra.mxu0 %v5358
    %5360 = vmatprep.subr.mxu0 0.0
    %5361 = vmatpush1.msra.mxu0 0.0
    %5362 = vmatprep.subr.mxu0 0.0
    %5363 = vmatpush1.msra.mxu0 0.0
    %5364 = vmatprep.subr.mxu0 0.0
    %5365 = vmatpush1.msra.mxu0 0.0
    %5366 = vmatprep.subr.mxu0 0.0
    %5367 = vmatpush1.msra.mxu0 0.0
    %5368 = vmatprep.subr.mxu0 0.0
    %5369 = vmatpush1.msra.mxu0 0.0
    %5370 = vmatprep.subr.mxu0 0.0
    %5371 = vmatpush1.msra.mxu0 0.0
    %5372 = vmatprep.subr.mxu0 0.0
    %5373 = vmatpush1.msra.mxu0 0.0
    %5374 = vmatprep.subr.mxu0 0.0
    %5375 = vmatpush1.msra.mxu0 0.0
    %5376 = vmatprep.subr.mxu0 0.0
    %5377 = vmatpush1.msra.mxu0 0.0
    %5378 = vmatprep.subr.mxu0 0.0
    %5379 = vmatpush1.msra.mxu0 0.0
    %5380 = vmatprep.subr.mxu0 0.0
    %5381 = vmatpush1.msra.mxu0 0.0
    %5382 = vmatprep.subr.mxu0 0.0
    %5383 = vmatpush1.msra.mxu0 0.0
    %5384 = vmatprep.subr.mxu0 0.0
    %5385 = vmatpush1.msra.mxu0 0.0
    %5386 = vmatprep.subr.mxu0 0.0
    %5387 = vmatpush1.msra.mxu0 0.0
    %5388 = vmatprep.subr.mxu0 0.0
    %5389 = vmatpush1.msra.mxu0 0.0
    %5390 = vmatprep.subr.mxu0 0.0
    %5391 = vmatpush1.msra.mxu0 0.0
    %5392 = vmatprep.mubr.f32.mxu0 0.0
    %v5393 = vand.u32 %v3387, 4294901760
    %v5394 = vsub.f32 %v3387, %v5393
    %v5395 = vand.u32 %v5394, 4294901760
    %v5396 = vsub.f32 %v5394, %v5395
    %v5397 = vand.u32 %v5396, 4294901760
    %5398 = vmatmul.mubr.f32.gmra.mrb[0].mxu0 %v5397
    %v5399 = vpop.f32.mrb[0].mxu0
    %v5400 = vadd.f32 %v3584, %v5399
    %v5401 = vpop.f32.mrb[0].mxu0
    %v5402 = vadd.f32 %v3584, %v5401
    %5403 = vdwg.mxu0
    %v5404 = vand.u32 %v3393, 4294901760
    %v5405 = vsub.f32 %v3393, %v5404
    %v5406 = vand.u32 %v5405, 4294901760
    %v5407 = vsub.f32 %v5405, %v5406
    %v5408 = vand.u32 %v5407, 4294901760
    %5409 = vmatprep.subr.mxu0 %v5408
    %v5410 = vand.u32 %v3392, 4294901760
    %v5411 = vsub.f32 %v3392, %v5410
    %v5412 = vand.u32 %v5411, 4294901760
    %v5413 = vsub.f32 %v5411, %v5412
    %v5414 = vand.u32 %v5413, 4294901760
    %5415 = vmatpush1.msra.mxu0 %v5414
    %v5416 = vand.u32 %v3405, 4294901760
    %v5417 = vsub.f32 %v3405, %v5416
    %v5418 = vand.u32 %v5417, 4294901760
    %v5419 = vsub.f32 %v5417, %v5418
    %v5420 = vand.u32 %v5419, 4294901760
    %5421 = vmatprep.subr.mxu0 %v5420
    %v5422 = vand.u32 %v3404, 4294901760
    %v5423 = vsub.f32 %v3404, %v5422
    %v5424 = vand.u32 %v5423, 4294901760
    %v5425 = vsub.f32 %v5423, %v5424
    %v5426 = vand.u32 %v5425, 4294901760
    %5427 = vmatpush1.msra.mxu0 %v5426
    %v5428 = vand.u32 %v3417, 4294901760
    %v5429 = vsub.f32 %v3417, %v5428
    %v5430 = vand.u32 %v5429, 4294901760
    %v5431 = vsub.f32 %v5429, %v5430
    %v5432 = vand.u32 %v5431, 4294901760
    %5433 = vmatprep.subr.mxu0 %v5432
    %v5434 = vand.u32 %v3416, 4294901760
    %v5435 = vsub.f32 %v3416, %v5434
    %v5436 = vand.u32 %v5435, 4294901760
    %v5437 = vsub.f32 %v5435, %v5436
    %v5438 = vand.u32 %v5437, 4294901760
    %5439 = vmatpush1.msra.mxu0 %v5438
    %v5440 = vand.u32 %v3429, 4294901760
    %v5441 = vsub.f32 %v3429, %v5440
    %v5442 = vand.u32 %v5441, 4294901760
    %v5443 = vsub.f32 %v5441, %v5442
    %v5444 = vand.u32 %v5443, 4294901760
    %5445 = vmatprep.subr.mxu0 %v5444
    %v5446 = vand.u32 %v3428, 4294901760
    %v5447 = vsub.f32 %v3428, %v5446
    %v5448 = vand.u32 %v5447, 4294901760
    %v5449 = vsub.f32 %v5447, %v5448
    %v5450 = vand.u32 %v5449, 4294901760
    %5451 = vmatpush1.msra.mxu0 %v5450
    %v5452 = vand.u32 %v3441, 4294901760
    %v5453 = vsub.f32 %v3441, %v5452
    %v5454 = vand.u32 %v5453, 4294901760
    %v5455 = vsub.f32 %v5453, %v5454
    %v5456 = vand.u32 %v5455, 4294901760
    %5457 = vmatprep.subr.mxu0 %v5456
    %v5458 = vand.u32 %v3440, 4294901760
    %v5459 = vsub.f32 %v3440, %v5458
    %v5460 = vand.u32 %v5459, 4294901760
    %v5461 = vsub.f32 %v5459, %v5460
    %v5462 = vand.u32 %v5461, 4294901760
    %5463 = vmatpush1.msra.mxu0 %v5462
    %v5464 = vand.u32 %v3453, 4294901760
    %v5465 = vsub.f32 %v3453, %v5464
    %v5466 = vand.u32 %v5465, 4294901760
    %v5467 = vsub.f32 %v5465, %v5466
    %v5468 = vand.u32 %v5467, 4294901760
    %5469 = vmatprep.subr.mxu0 %v5468
    %v5470 = vand.u32 %v3452, 4294901760
    %v5471 = vsub.f32 %v3452, %v5470
    %v5472 = vand.u32 %v5471, 4294901760
    %v5473 = vsub.f32 %v5471, %v5472
    %v5474 = vand.u32 %v5473, 4294901760
    %5475 = vmatpush1.msra.mxu0 %v5474
    %v5476 = vand.u32 %v3465, 4294901760
    %v5477 = vsub.f32 %v3465, %v5476
    %v5478 = vand.u32 %v5477, 4294901760
    %v5479 = vsub.f32 %v5477, %v5478
    %v5480 = vand.u32 %v5479, 4294901760
    %5481 = vmatprep.subr.mxu0 %v5480
    %v5482 = vand.u32 %v3464, 4294901760
    %v5483 = vsub.f32 %v3464, %v5482
    %v5484 = vand.u32 %v5483, 4294901760
    %v5485 = vsub.f32 %v5483, %v5484
    %v5486 = vand.u32 %v5485, 4294901760
    %5487 = vmatpush1.msra.mxu0 %v5486
    %v5488 = vand.u32 %v3477, 4294901760
    %v5489 = vsub.f32 %v3477, %v5488
    %v5490 = vand.u32 %v5489, 4294901760
    %v5491 = vsub.f32 %v5489, %v5490
    %v5492 = vand.u32 %v5491, 4294901760
    %5493 = vmatprep.subr.mxu0 %v5492
    %v5494 = vand.u32 %v3476, 4294901760
    %v5495 = vsub.f32 %v3476, %v5494
    %v5496 = vand.u32 %v5495, 4294901760
    %v5497 = vsub.f32 %v5495, %v5496
    %v5498 = vand.u32 %v5497, 4294901760
    %5499 = vmatpush1.msra.mxu0 %v5498
    %v5500 = vand.u32 %v3489, 4294901760
    %v5501 = vsub.f32 %v3489, %v5500
    %v5502 = vand.u32 %v5501, 4294901760
    %v5503 = vsub.f32 %v5501, %v5502
    %v5504 = vand.u32 %v5503, 4294901760
    %5505 = vmatprep.subr.mxu0 %v5504
    %v5506 = vand.u32 %v3488, 4294901760
    %v5507 = vsub.f32 %v3488, %v5506
    %v5508 = vand.u32 %v5507, 4294901760
    %v5509 = vsub.f32 %v5507, %v5508
    %v5510 = vand.u32 %v5509, 4294901760
    %5511 = vmatpush1.msra.mxu0 %v5510
    %v5512 = vand.u32 %v3501, 4294901760
    %v5513 = vsub.f32 %v3501, %v5512
    %v5514 = vand.u32 %v5513, 4294901760
    %v5515 = vsub.f32 %v5513, %v5514
    %v5516 = vand.u32 %v5515, 4294901760
    %5517 = vmatprep.subr.mxu0 %v5516
    %v5518 = vand.u32 %v3500, 4294901760
    %v5519 = vsub.f32 %v3500, %v5518
    %v5520 = vand.u32 %v5519, 4294901760
    %v5521 = vsub.f32 %v5519, %v5520
    %v5522 = vand.u32 %v5521, 4294901760
    %5523 = vmatpush1.msra.mxu0 %v5522
    %v5524 = vand.u32 %v3513, 4294901760
    %v5525 = vsub.f32 %v3513, %v5524
    %v5526 = vand.u32 %v5525, 4294901760
    %v5527 = vsub.f32 %v5525, %v5526
    %v5528 = vand.u32 %v5527, 4294901760
    %5529 = vmatprep.subr.mxu0 %v5528
    %v5530 = vand.u32 %v3512, 4294901760
    %v5531 = vsub.f32 %v3512, %v5530
    %v5532 = vand.u32 %v5531, 4294901760
    %v5533 = vsub.f32 %v5531, %v5532
    %v5534 = vand.u32 %v5533, 4294901760
    %5535 = vmatpush1.msra.mxu0 %v5534
    %v5536 = vand.u32 %v3525, 4294901760
    %v5537 = vsub.f32 %v3525, %v5536
    %v5538 = vand.u32 %v5537, 4294901760
    %v5539 = vsub.f32 %v5537, %v5538
    %v5540 = vand.u32 %v5539, 4294901760
    %5541 = vmatprep.subr.mxu0 %v5540
    %v5542 = vand.u32 %v3524, 4294901760
    %v5543 = vsub.f32 %v3524, %v5542
    %v5544 = vand.u32 %v5543, 4294901760
    %v5545 = vsub.f32 %v5543, %v5544
    %v5546 = vand.u32 %v5545, 4294901760
    %5547 = vmatpush1.msra.mxu0 %v5546
    %v5548 = vand.u32 %v3537, 4294901760
    %v5549 = vsub.f32 %v3537, %v5548
    %v5550 = vand.u32 %v5549, 4294901760
    %v5551 = vsub.f32 %v5549, %v5550
    %v5552 = vand.u32 %v5551, 4294901760
    %5553 = vmatprep.subr.mxu0 %v5552
    %v5554 = vand.u32 %v3536, 4294901760
    %v5555 = vsub.f32 %v3536, %v5554
    %v5556 = vand.u32 %v5555, 4294901760
    %v5557 = vsub.f32 %v5555, %v5556
    %v5558 = vand.u32 %v5557, 4294901760
    %5559 = vmatpush1.msra.mxu0 %v5558
    %v5560 = vand.u32 %v3549, 4294901760
    %v5561 = vsub.f32 %v3549, %v5560
    %v5562 = vand.u32 %v5561, 4294901760
    %v5563 = vsub.f32 %v5561, %v5562
    %v5564 = vand.u32 %v5563, 4294901760
    %5565 = vmatprep.subr.mxu0 %v5564
    %v5566 = vand.u32 %v3548, 4294901760
    %v5567 = vsub.f32 %v3548, %v5566
    %v5568 = vand.u32 %v5567, 4294901760
    %v5569 = vsub.f32 %v5567, %v5568
    %v5570 = vand.u32 %v5569, 4294901760
    %5571 = vmatpush1.msra.mxu0 %v5570
    %v5572 = vand.u32 %v3561, 4294901760
    %v5573 = vsub.f32 %v3561, %v5572
    %v5574 = vand.u32 %v5573, 4294901760
    %v5575 = vsub.f32 %v5573, %v5574
    %v5576 = vand.u32 %v5575, 4294901760
    %5577 = vmatprep.subr.mxu0 %v5576
    %v5578 = vand.u32 %v3560, 4294901760
    %v5579 = vsub.f32 %v3560, %v5578
    %v5580 = vand.u32 %v5579, 4294901760
    %v5581 = vsub.f32 %v5579, %v5580
    %v5582 = vand.u32 %v5581, 4294901760
    %5583 = vmatpush1.msra.mxu0 %v5582
    %v5584 = vand.u32 %v3573, 4294901760
    %v5585 = vsub.f32 %v3573, %v5584
    %v5586 = vand.u32 %v5585, 4294901760
    %v5587 = vsub.f32 %v5585, %v5586
    %v5588 = vand.u32 %v5587, 4294901760
    %5589 = vmatprep.subr.mxu0 %v5588
    %v5590 = vand.u32 %v3572, 4294901760
    %v5591 = vsub.f32 %v3572, %v5590
    %v5592 = vand.u32 %v5591, 4294901760
    %v5593 = vsub.f32 %v5591, %v5592
    %v5594 = vand.u32 %v5593, 4294901760
    %5595 = vmatpush1.msra.mxu0 %v5594
    %5596 = vmatprep.subr.mxu0 0.0
    %5597 = vmatpush1.msra.mxu0 0.0
    %5598 = vmatprep.subr.mxu0 0.0
    %5599 = vmatpush1.msra.mxu0 0.0
    %5600 = vmatprep.subr.mxu0 0.0
    %5601 = vmatpush1.msra.mxu0 0.0
    %5602 = vmatprep.subr.mxu0 0.0
    %5603 = vmatpush1.msra.mxu0 0.0
    %5604 = vmatprep.subr.mxu0 0.0
    %5605 = vmatpush1.msra.mxu0 0.0
    %5606 = vmatprep.subr.mxu0 0.0
    %5607 = vmatpush1.msra.mxu0 0.0
    %5608 = vmatprep.subr.mxu0 0.0
    %5609 = vmatpush1.msra.mxu0 0.0
    %5610 = vmatprep.subr.mxu0 0.0
    %5611 = vmatpush1.msra.mxu0 0.0
    %5612 = vmatprep.subr.mxu0 0.0
    %5613 = vmatpush1.msra.mxu0 0.0
    %5614 = vmatprep.subr.mxu0 0.0
    %5615 = vmatpush1.msra.mxu0 0.0
    %5616 = vmatprep.subr.mxu0 0.0
    %5617 = vmatpush1.msra.mxu0 0.0
    %5618 = vmatprep.subr.mxu0 0.0
    %5619 = vmatpush1.msra.mxu0 0.0
    %5620 = vmatprep.subr.mxu0 0.0
    %5621 = vmatpush1.msra.mxu0 0.0
    %5622 = vmatprep.subr.mxu0 0.0
    %5623 = vmatpush1.msra.mxu0 0.0
    %5624 = vmatprep.subr.mxu0 0.0
    %5625 = vmatpush1.msra.mxu0 0.0
    %5626 = vmatprep.subr.mxu0 0.0
    %5627 = vmatpush1.msra.mxu0 0.0
    %5628 = vmatprep.mubr.f32.mxu0 0.0
    %v5629 = vand.u32 %v3387, 4294901760
    %5630 = vmatmul.mubr.f32.gmra.mrb[0].mxu0 %v5629
    %v5631 = vpop.f32.mrb[0].mxu0
    %v5632 = vadd.f32 %v5400, %v5631
    %v5633 = vpop.f32.mrb[0].mxu0
    %v5634 = vadd.f32 %v5402, %v5633
    %5635 = vdwg.mxu0
    %v5636 = vand.u32 %v3393, 4294901760
    %v5637 = vsub.f32 %v3393, %v5636
    %5638 = vmatprep.subr.mxu0 %v5637
    %v5639 = vand.u32 %v3392, 4294901760
    %v5640 = vsub.f32 %v3392, %v5639
    %5641 = vmatpush1.msra.mxu0 %v5640
    %v5642 = vand.u32 %v3405, 4294901760
    %v5643 = vsub.f32 %v3405, %v5642
    %5644 = vmatprep.subr.mxu0 %v5643
    %v5645 = vand.u32 %v3404, 4294901760
    %v5646 = vsub.f32 %v3404, %v5645
    %5647 = vmatpush1.msra.mxu0 %v5646
    %v5648 = vand.u32 %v3417, 4294901760
    %v5649 = vsub.f32 %v3417, %v5648
    %5650 = vmatprep.subr.mxu0 %v5649
    %v5651 = vand.u32 %v3416, 4294901760
    %v5652 = vsub.f32 %v3416, %v5651
    %5653 = vmatpush1.msra.mxu0 %v5652
    %v5654 = vand.u32 %v3429, 4294901760
    %v5655 = vsub.f32 %v3429, %v5654
    %5656 = vmatprep.subr.mxu0 %v5655
    %v5657 = vand.u32 %v3428, 4294901760
    %v5658 = vsub.f32 %v3428, %v5657
    %5659 = vmatpush1.msra.mxu0 %v5658
    %v5660 = vand.u32 %v3441, 4294901760
    %v5661 = vsub.f32 %v3441, %v5660
    %5662 = vmatprep.subr.mxu0 %v5661
    %v5663 = vand.u32 %v3440, 4294901760
    %v5664 = vsub.f32 %v3440, %v5663
    %5665 = vmatpush1.msra.mxu0 %v5664
    %v5666 = vand.u32 %v3453, 4294901760
    %v5667 = vsub.f32 %v3453, %v5666
    %5668 = vmatprep.subr.mxu0 %v5667
    %v5669 = vand.u32 %v3452, 4294901760
    %v5670 = vsub.f32 %v3452, %v5669
    %5671 = vmatpush1.msra.mxu0 %v5670
    %v5672 = vand.u32 %v3465, 4294901760
    %v5673 = vsub.f32 %v3465, %v5672
    %5674 = vmatprep.subr.mxu0 %v5673
    %v5675 = vand.u32 %v3464, 4294901760
    %v5676 = vsub.f32 %v3464, %v5675
    %5677 = vmatpush1.msra.mxu0 %v5676
    %v5678 = vand.u32 %v3477, 4294901760
    %v5679 = vsub.f32 %v3477, %v5678
    %5680 = vmatprep.subr.mxu0 %v5679
    %v5681 = vand.u32 %v3476, 4294901760
    %v5682 = vsub.f32 %v3476, %v5681
    %5683 = vmatpush1.msra.mxu0 %v5682
    %v5684 = vand.u32 %v3489, 4294901760
    %v5685 = vsub.f32 %v3489, %v5684
    %5686 = vmatprep.subr.mxu0 %v5685
    %v5687 = vand.u32 %v3488, 4294901760
    %v5688 = vsub.f32 %v3488, %v5687
    %5689 = vmatpush1.msra.mxu0 %v5688
    %v5690 = vand.u32 %v3501, 4294901760
    %v5691 = vsub.f32 %v3501, %v5690
    %5692 = vmatprep.subr.mxu0 %v5691
    %v5693 = vand.u32 %v3500, 4294901760
    %v5694 = vsub.f32 %v3500, %v5693
    %5695 = vmatpush1.msra.mxu0 %v5694
    %v5696 = vand.u32 %v3513, 4294901760
    %v5697 = vsub.f32 %v3513, %v5696
    %5698 = vmatprep.subr.mxu0 %v5697
    %v5699 = vand.u32 %v3512, 4294901760
    %v5700 = vsub.f32 %v3512, %v5699
    %5701 = vmatpush1.msra.mxu0 %v5700
    %v5702 = vand.u32 %v3525, 4294901760
    %v5703 = vsub.f32 %v3525, %v5702
    %5704 = vmatprep.subr.mxu0 %v5703
    %v5705 = vand.u32 %v3524, 4294901760
    %v5706 = vsub.f32 %v3524, %v5705
    %5707 = vmatpush1.msra.mxu0 %v5706
    %v5708 = vand.u32 %v3537, 4294901760
    %v5709 = vsub.f32 %v3537, %v5708
    %5710 = vmatprep.subr.mxu0 %v5709
    %v5711 = vand.u32 %v3536, 4294901760
    %v5712 = vsub.f32 %v3536, %v5711
    %5713 = vmatpush1.msra.mxu0 %v5712
    %v5714 = vand.u32 %v3549, 4294901760
    %v5715 = vsub.f32 %v3549, %v5714
    %5716 = vmatprep.subr.mxu0 %v5715
    %v5717 = vand.u32 %v3548, 4294901760
    %v5718 = vsub.f32 %v3548, %v5717
    %5719 = vmatpush1.msra.mxu0 %v5718
    %v5720 = vand.u32 %v3561, 4294901760
    %v5721 = vsub.f32 %v3561, %v5720
    %5722 = vmatprep.subr.mxu0 %v5721
    %v5723 = vand.u32 %v3560, 4294901760
    %v5724 = vsub.f32 %v3560, %v5723
    %5725 = vmatpush1.msra.mxu0 %v5724
    %v5726 = vand.u32 %v3573, 4294901760
    %v5727 = vsub.f32 %v3573, %v5726
    %5728 = vmatprep.subr.mxu0 %v5727
    %v5729 = vand.u32 %v3572, 4294901760
    %v5730 = vsub.f32 %v3572, %v5729
    %5731 = vmatpush1.msra.mxu0 %v5730
    %5732 = vmatprep.subr.mxu0 0.0
    %5733 = vmatpush1.msra.mxu0 0.0
    %5734 = vmatprep.subr.mxu0 0.0
    %5735 = vmatpush1.msra.mxu0 0.0
    %5736 = vmatprep.subr.mxu0 0.0
    %5737 = vmatpush1.msra.mxu0 0.0
    %5738 = vmatprep.subr.mxu0 0.0
    %5739 = vmatpush1.msra.mxu0 0.0
    %5740 = vmatprep.subr.mxu0 0.0
    %5741 = vmatpush1.msra.mxu0 0.0
    %5742 = vmatprep.subr.mxu0 0.0
    %5743 = vmatpush1.msra.mxu0 0.0
    %5744 = vmatprep.subr.mxu0 0.0
    %5745 = vmatpush1.msra.mxu0 0.0
    %5746 = vmatprep.subr.mxu0 0.0
    %5747 = vmatpush1.msra.mxu0 0.0
    %5748 = vmatprep.subr.mxu0 0.0
    %5749 = vmatpush1.msra.mxu0 0.0
    %5750 = vmatprep.subr.mxu0 0.0
    %5751 = vmatpush1.msra.mxu0 0.0
    %5752 = vmatprep.subr.mxu0 0.0
    %5753 = vmatpush1.msra.mxu0 0.0
    %5754 = vmatprep.subr.mxu0 0.0
    %5755 = vmatpush1.msra.mxu0 0.0
    %5756 = vmatprep.subr.mxu0 0.0
    %5757 = vmatpush1.msra.mxu0 0.0
    %5758 = vmatprep.subr.mxu0 0.0
    %5759 = vmatpush1.msra.mxu0 0.0
    %5760 = vmatprep.subr.mxu0 0.0
    %5761 = vmatpush1.msra.mxu0 0.0
    %5762 = vmatprep.subr.mxu0 0.0
    %5763 = vmatpush1.msra.mxu0 0.0
    %5764 = vmatprep.mubr.f32.mxu0 0.0
    %v5765 = vand.u32 %v3387, 4294901760
    %v5766 = vsub.f32 %v3387, %v5765
    %5767 = vmatmul.mubr.f32.gmra.mrb[0].mxu0 %v5766
    %v5768 = vpop.f32.mrb[0].mxu0
    %v5769 = vadd.f32 %v5632, %v5768
    %v5770 = vpop.f32.mrb[0].mxu0
    %v5771 = vadd.f32 %v5634, %v5770
    %5772 = vdwg.mxu0
    %v5773 = vand.u32 %v3393, 4294901760
    %5774 = vmatprep.subr.mxu0 %v5773
    %v5775 = vand.u32 %v3392, 4294901760
    %5776 = vmatpush1.msra.mxu0 %v5775
    %v5777 = vand.u32 %v3405, 4294901760
    %5778 = vmatprep.subr.mxu0 %v5777
    %v5779 = vand.u32 %v3404, 4294901760
    %5780 = vmatpush1.msra.mxu0 %v5779
    %v5781 = vand.u32 %v3417, 4294901760
    %5782 = vmatprep.subr.mxu0 %v5781
    %v5783 = vand.u32 %v3416, 4294901760
    %5784 = vmatpush1.msra.mxu0 %v5783
    %v5785 = vand.u32 %v3429, 4294901760
    %5786 = vmatprep.subr.mxu0 %v5785
    %v5787 = vand.u32 %v3428, 4294901760
    %5788 = vmatpush1.msra.mxu0 %v5787
    %v5789 = vand.u32 %v3441, 4294901760
    %5790 = vmatprep.subr.mxu0 %v5789
    %v5791 = vand.u32 %v3440, 4294901760
    %5792 = vmatpush1.msra.mxu0 %v5791
    %v5793 = vand.u32 %v3453, 4294901760
    %5794 = vmatprep.subr.mxu0 %v5793
    %v5795 = vand.u32 %v3452, 4294901760
    %5796 = vmatpush1.msra.mxu0 %v5795
    %v5797 = vand.u32 %v3465, 4294901760
    %5798 = vmatprep.subr.mxu0 %v5797
    %v5799 = vand.u32 %v3464, 4294901760
    %5800 = vmatpush1.msra.mxu0 %v5799
    %v5801 = vand.u32 %v3477, 4294901760
    %5802 = vmatprep.subr.mxu0 %v5801
    %v5803 = vand.u32 %v3476, 4294901760
    %5804 = vmatpush1.msra.mxu0 %v5803
    %v5805 = vand.u32 %v3489, 4294901760
    %5806 = vmatprep.subr.mxu0 %v5805
    %v5807 = vand.u32 %v3488, 4294901760
    %5808 = vmatpush1.msra.mxu0 %v5807
    %v5809 = vand.u32 %v3501, 4294901760
    %5810 = vmatprep.subr.mxu0 %v5809
    %v5811 = vand.u32 %v3500, 4294901760
    %5812 = vmatpush1.msra.mxu0 %v5811
    %v5813 = vand.u32 %v3513, 4294901760
    %5814 = vmatprep.subr.mxu0 %v5813
    %v5815 = vand.u32 %v3512, 4294901760
    %5816 = vmatpush1.msra.mxu0 %v5815
    %v5817 = vand.u32 %v3525, 4294901760
    %5818 = vmatprep.subr.mxu0 %v5817
    %v5819 = vand.u32 %v3524, 4294901760
    %5820 = vmatpush1.msra.mxu0 %v5819
    %v5821 = vand.u32 %v3537, 4294901760
    %5822 = vmatprep.subr.mxu0 %v5821
    %v5823 = vand.u32 %v3536, 4294901760
    %5824 = vmatpush1.msra.mxu0 %v5823
    %v5825 = vand.u32 %v3549, 4294901760
    %5826 = vmatprep.subr.mxu0 %v5825
    %v5827 = vand.u32 %v3548, 4294901760
    %5828 = vmatpush1.msra.mxu0 %v5827
    %v5829 = vand.u32 %v3561, 4294901760
    %5830 = vmatprep.subr.mxu0 %v5829
    %v5831 = vand.u32 %v3560, 4294901760
    %5832 = vmatpush1.msra.mxu0 %v5831
    %v5833 = vand.u32 %v3573, 4294901760
    %5834 = vmatprep.subr.mxu0 %v5833
    %v5835 = vand.u32 %v3572, 4294901760
    %5836 = vmatpush1.msra.mxu0 %v5835
    %5837 = vmatprep.subr.mxu0 0.0
    %5838 = vmatpush1.msra.mxu0 0.0
    %5839 = vmatprep.subr.mxu0 0.0
    %5840 = vmatpush1.msra.mxu0 0.0
    %5841 = vmatprep.subr.mxu0 0.0
    %5842 = vmatpush1.msra.mxu0 0.0
    %5843 = vmatprep.subr.mxu0 0.0
    %5844 = vmatpush1.msra.mxu0 0.0
    %5845 = vmatprep.subr.mxu0 0.0
    %5846 = vmatpush1.msra.mxu0 0.0
    %5847 = vmatprep.subr.mxu0 0.0
    %5848 = vmatpush1.msra.mxu0 0.0
    %5849 = vmatprep.subr.mxu0 0.0
    %5850 = vmatpush1.msra.mxu0 0.0
    %5851 = vmatprep.subr.mxu0 0.0
    %5852 = vmatpush1.msra.mxu0 0.0
    %5853 = vmatprep.subr.mxu0 0.0
    %5854 = vmatpush1.msra.mxu0 0.0
    %5855 = vmatprep.subr.mxu0 0.0
    %5856 = vmatpush1.msra.mxu0 0.0
    %5857 = vmatprep.subr.mxu0 0.0
    %5858 = vmatpush1.msra.mxu0 0.0
    %5859 = vmatprep.subr.mxu0 0.0
    %5860 = vmatpush1.msra.mxu0 0.0
    %5861 = vmatprep.subr.mxu0 0.0
    %5862 = vmatpush1.msra.mxu0 0.0
    %5863 = vmatprep.subr.mxu0 0.0
    %5864 = vmatpush1.msra.mxu0 0.0
    %5865 = vmatprep.subr.mxu0 0.0
    %5866 = vmatpush1.msra.mxu0 0.0
    %5867 = vmatprep.subr.mxu0 0.0
    %5868 = vmatpush1.msra.mxu0 0.0
    %5869 = vmatprep.mubr.f32.mxu0 0.0
    %v5870 = vand.u32 %v3387, 4294901760
    %v5871 = vsub.f32 %v3387, %v5870
    %v5872 = vand.u32 %v5871, 4294901760
    %5873 = vmatmul.mubr.f32.gmra.mrb[0].mxu0 %v5872
    %v5874 = vpop.f32.mrb[0].mxu0
    %v5875 = vadd.f32 %v5769, %v5874
    %v5876 = vpop.f32.mrb[0].mxu0
    %v5877 = vadd.f32 %v5771, %v5876
    %5878 = vdwg.mxu0
    %v5879 = vand.u32 %v3393, 4294901760
    %v5880 = vsub.f32 %v3393, %v5879
    %v5881 = vand.u32 %v5880, 4294901760
    %5882 = vmatprep.subr.mxu0 %v5881
    %v5883 = vand.u32 %v3392, 4294901760
    %v5884 = vsub.f32 %v3392, %v5883
    %v5885 = vand.u32 %v5884, 4294901760
    %5886 = vmatpush1.msra.mxu0 %v5885
    %v5887 = vand.u32 %v3405, 4294901760
    %v5888 = vsub.f32 %v3405, %v5887
    %v5889 = vand.u32 %v5888, 4294901760
    %5890 = vmatprep.subr.mxu0 %v5889
    %v5891 = vand.u32 %v3404, 4294901760
    %v5892 = vsub.f32 %v3404, %v5891
    %v5893 = vand.u32 %v5892, 4294901760
    %5894 = vmatpush1.msra.mxu0 %v5893
    %v5895 = vand.u32 %v3417, 4294901760
    %v5896 = vsub.f32 %v3417, %v5895
    %v5897 = vand.u32 %v5896, 4294901760
    %5898 = vmatprep.subr.mxu0 %v5897
    %v5899 = vand.u32 %v3416, 4294901760
    %v5900 = vsub.f32 %v3416, %v5899
    %v5901 = vand.u32 %v5900, 4294901760
    %5902 = vmatpush1.msra.mxu0 %v5901
    %v5903 = vand.u32 %v3429, 4294901760
    %v5904 = vsub.f32 %v3429, %v5903
    %v5905 = vand.u32 %v5904, 4294901760
    %5906 = vmatprep.subr.mxu0 %v5905
    %v5907 = vand.u32 %v3428, 4294901760
    %v5908 = vsub.f32 %v3428, %v5907
    %v5909 = vand.u32 %v5908, 4294901760
    %5910 = vmatpush1.msra.mxu0 %v5909
    %v5911 = vand.u32 %v3441, 4294901760
    %v5912 = vsub.f32 %v3441, %v5911
    %v5913 = vand.u32 %v5912, 4294901760
    %5914 = vmatprep.subr.mxu0 %v5913
    %v5915 = vand.u32 %v3440, 4294901760
    %v5916 = vsub.f32 %v3440, %v5915
    %v5917 = vand.u32 %v5916, 4294901760
    %5918 = vmatpush1.msra.mxu0 %v5917
    %v5919 = vand.u32 %v3453, 4294901760
    %v5920 = vsub.f32 %v3453, %v5919
    %v5921 = vand.u32 %v5920, 4294901760
    %5922 = vmatprep.subr.mxu0 %v5921
    %v5923 = vand.u32 %v3452, 4294901760
    %v5924 = vsub.f32 %v3452, %v5923
    %v5925 = vand.u32 %v5924, 4294901760
    %5926 = vmatpush1.msra.mxu0 %v5925
    %v5927 = vand.u32 %v3465, 4294901760
    %v5928 = vsub.f32 %v3465, %v5927
    %v5929 = vand.u32 %v5928, 4294901760
    %5930 = vmatprep.subr.mxu0 %v5929
    %v5931 = vand.u32 %v3464, 4294901760
    %v5932 = vsub.f32 %v3464, %v5931
    %v5933 = vand.u32 %v5932, 4294901760
    %5934 = vmatpush1.msra.mxu0 %v5933
    %v5935 = vand.u32 %v3477, 4294901760
    %v5936 = vsub.f32 %v3477, %v5935
    %v5937 = vand.u32 %v5936, 4294901760
    %5938 = vmatprep.subr.mxu0 %v5937
    %v5939 = vand.u32 %v3476, 4294901760
    %v5940 = vsub.f32 %v3476, %v5939
    %v5941 = vand.u32 %v5940, 4294901760
    %5942 = vmatpush1.msra.mxu0 %v5941
    %v5943 = vand.u32 %v3489, 4294901760
    %v5944 = vsub.f32 %v3489, %v5943
    %v5945 = vand.u32 %v5944, 4294901760
    %5946 = vmatprep.subr.mxu0 %v5945
    %v5947 = vand.u32 %v3488, 4294901760
    %v5948 = vsub.f32 %v3488, %v5947
    %v5949 = vand.u32 %v5948, 4294901760
    %5950 = vmatpush1.msra.mxu0 %v5949
    %v5951 = vand.u32 %v3501, 4294901760
    %v5952 = vsub.f32 %v3501, %v5951
    %v5953 = vand.u32 %v5952, 4294901760
    %5954 = vmatprep.subr.mxu0 %v5953
    %v5955 = vand.u32 %v3500, 4294901760
    %v5956 = vsub.f32 %v3500, %v5955
    %v5957 = vand.u32 %v5956, 4294901760
    %5958 = vmatpush1.msra.mxu0 %v5957
    %v5959 = vand.u32 %v3513, 4294901760
    %v5960 = vsub.f32 %v3513, %v5959
    %v5961 = vand.u32 %v5960, 4294901760
    %5962 = vmatprep.subr.mxu0 %v5961
    %v5963 = vand.u32 %v3512, 4294901760
    %v5964 = vsub.f32 %v3512, %v5963
    %v5965 = vand.u32 %v5964, 4294901760
    %5966 = vmatpush1.msra.mxu0 %v5965
    %v5967 = vand.u32 %v3525, 4294901760
    %v5968 = vsub.f32 %v3525, %v5967
    %v5969 = vand.u32 %v5968, 4294901760
    %5970 = vmatprep.subr.mxu0 %v5969
    %v5971 = vand.u32 %v3524, 4294901760
    %v5972 = vsub.f32 %v3524, %v5971
    %v5973 = vand.u32 %v5972, 4294901760
    %5974 = vmatpush1.msra.mxu0 %v5973
    %v5975 = vand.u32 %v3537, 4294901760
    %v5976 = vsub.f32 %v3537, %v5975
    %v5977 = vand.u32 %v5976, 4294901760
    %5978 = vmatprep.subr.mxu0 %v5977
    %v5979 = vand.u32 %v3536, 4294901760
    %v5980 = vsub.f32 %v3536, %v5979
    %v5981 = vand.u32 %v5980, 4294901760
    %5982 = vmatpush1.msra.mxu0 %v5981
    %v5983 = vand.u32 %v3549, 4294901760
    %v5984 = vsub.f32 %v3549, %v5983
    %v5985 = vand.u32 %v5984, 4294901760
    %5986 = vmatprep.subr.mxu0 %v5985
    %v5987 = vand.u32 %v3548, 4294901760
    %v5988 = vsub.f32 %v3548, %v5987
    %v5989 = vand.u32 %v5988, 4294901760
    %5990 = vmatpush1.msra.mxu0 %v5989
    %v5991 = vand.u32 %v3561, 4294901760
    %v5992 = vsub.f32 %v3561, %v5991
    %v5993 = vand.u32 %v5992, 4294901760
    %5994 = vmatprep.subr.mxu0 %v5993
    %v5995 = vand.u32 %v3560, 4294901760
    %v5996 = vsub.f32 %v3560, %v5995
    %v5997 = vand.u32 %v5996, 4294901760
    %5998 = vmatpush1.msra.mxu0 %v5997
    %v5999 = vand.u32 %v3573, 4294901760
    %v6000 = vsub.f32 %v3573, %v5999
    %v6001 = vand.u32 %v6000, 4294901760
    %6002 = vmatprep.subr.mxu0 %v6001
    %v6003 = vand.u32 %v3572, 4294901760
    %v6004 = vsub.f32 %v3572, %v6003
    %v6005 = vand.u32 %v6004, 4294901760
    %6006 = vmatpush1.msra.mxu0 %v6005
    %6007 = vmatprep.subr.mxu0 0.0
    %6008 = vmatpush1.msra.mxu0 0.0
    %6009 = vmatprep.subr.mxu0 0.0
    %6010 = vmatpush1.msra.mxu0 0.0
    %6011 = vmatprep.subr.mxu0 0.0
    %6012 = vmatpush1.msra.mxu0 0.0
    %6013 = vmatprep.subr.mxu0 0.0
    %6014 = vmatpush1.msra.mxu0 0.0
    %6015 = vmatprep.subr.mxu0 0.0
    %6016 = vmatpush1.msra.mxu0 0.0
    %6017 = vmatprep.subr.mxu0 0.0
    %6018 = vmatpush1.msra.mxu0 0.0
    %6019 = vmatprep.subr.mxu0 0.0
    %6020 = vmatpush1.msra.mxu0 0.0
    %6021 = vmatprep.subr.mxu0 0.0
    %6022 = vmatpush1.msra.mxu0 0.0
    %6023 = vmatprep.subr.mxu0 0.0
    %6024 = vmatpush1.msra.mxu0 0.0
    %6025 = vmatprep.subr.mxu0 0.0
    %6026 = vmatpush1.msra.mxu0 0.0
    %6027 = vmatprep.subr.mxu0 0.0
    %6028 = vmatpush1.msra.mxu0 0.0
    %6029 = vmatprep.subr.mxu0 0.0
    %6030 = vmatpush1.msra.mxu0 0.0
    %6031 = vmatprep.subr.mxu0 0.0
    %6032 = vmatpush1.msra.mxu0 0.0
    %6033 = vmatprep.subr.mxu0 0.0
    %6034 = vmatpush1.msra.mxu0 0.0
    %6035 = vmatprep.subr.mxu0 0.0
    %6036 = vmatpush1.msra.mxu0 0.0
    %6037 = vmatprep.subr.mxu0 0.0
    %6038 = vmatpush1.msra.mxu0 0.0
    %6039 = vmatprep.mubr.f32.mxu0 0.0
    %v6040 = vand.u32 %v3387, 4294901760
    %6041 = vmatmul.mubr.f32.gmra.mrb[0].mxu0 %v6040
    %v6042 = vpop.f32.mrb[0].mxu0
    %v6043 = vadd.f32 %v5875, %v6042
    %v6044 = vpop.f32.mrb[0].mxu0
    %v6045 = vadd.f32 %v5877, %v6044
    %6046 = vdwg.mxu0
    %v6047 = vand.u32 %v3393, 4294901760
    %6048 = vmatprep.subr.mxu0 %v6047
    %v6049 = vand.u32 %v3392, 4294901760
    %6050 = vmatpush1.msra.mxu0 %v6049
    %v6051 = vand.u32 %v3405, 4294901760
    %6052 = vmatprep.subr.mxu0 %v6051
    %v6053 = vand.u32 %v3404, 4294901760
    %6054 = vmatpush1.msra.mxu0 %v6053
    %v6055 = vand.u32 %v3417, 4294901760
    %6056 = vmatprep.subr.mxu0 %v6055
    %v6057 = vand.u32 %v3416, 4294901760
    %6058 = vmatpush1.msra.mxu0 %v6057
    %v6059 = vand.u32 %v3429, 4294901760
    %6060 = vmatprep.subr.mxu0 %v6059
    %v6061 = vand.u32 %v3428, 4294901760
    %6062 = vmatpush1.msra.mxu0 %v6061
    %v6063 = vand.u32 %v3441, 4294901760
    %6064 = vmatprep.subr.mxu0 %v6063
    %v6065 = vand.u32 %v3440, 4294901760
    %6066 = vmatpush1.msra.mxu0 %v6065
    %v6067 = vand.u32 %v3453, 4294901760
    %6068 = vmatprep.subr.mxu0 %v6067
    %v6069 = vand.u32 %v3452, 4294901760
    %6070 = vmatpush1.msra.mxu0 %v6069
    %v6071 = vand.u32 %v3465, 4294901760
    %6072 = vmatprep.subr.mxu0 %v6071
    %v6073 = vand.u32 %v3464, 4294901760
    %6074 = vmatpush1.msra.mxu0 %v6073
    %v6075 = vand.u32 %v3477, 4294901760
    %6076 = vmatprep.subr.mxu0 %v6075
    %v6077 = vand.u32 %v3476, 4294901760
    %6078 = vmatpush1.msra.mxu0 %v6077
    %v6079 = vand.u32 %v3489, 4294901760
    %6080 = vmatprep.subr.mxu0 %v6079
    %v6081 = vand.u32 %v3488, 4294901760
    %6082 = vmatpush1.msra.mxu0 %v6081
    %v6083 = vand.u32 %v3501, 4294901760
    %6084 = vmatprep.subr.mxu0 %v6083
    %v6085 = vand.u32 %v3500, 4294901760
    %6086 = vmatpush1.msra.mxu0 %v6085
    %v6087 = vand.u32 %v3513, 4294901760
    %6088 = vmatprep.subr.mxu0 %v6087
    %v6089 = vand.u32 %v3512, 4294901760
    %6090 = vmatpush1.msra.mxu0 %v6089
    %v6091 = vand.u32 %v3525, 4294901760
    %6092 = vmatprep.subr.mxu0 %v6091
    %v6093 = vand.u32 %v3524, 4294901760
    %6094 = vmatpush1.msra.mxu0 %v6093
    %v6095 = vand.u32 %v3537, 4294901760
    %6096 = vmatprep.subr.mxu0 %v6095
    %v6097 = vand.u32 %v3536, 4294901760
    %6098 = vmatpush1.msra.mxu0 %v6097
    %v6099 = vand.u32 %v3549, 4294901760
    %6100 = vmatprep.subr.mxu0 %v6099
    %v6101 = vand.u32 %v3548, 4294901760
    %6102 = vmatpush1.msra.mxu0 %v6101
    %v6103 = vand.u32 %v3561, 4294901760
    %6104 = vmatprep.subr.mxu0 %v6103
    %v6105 = vand.u32 %v3560, 4294901760
    %6106 = vmatpush1.msra.mxu0 %v6105
    %v6107 = vand.u32 %v3573, 4294901760
    %6108 = vmatprep.subr.mxu0 %v6107
    %v6109 = vand.u32 %v3572, 4294901760
    %6110 = vmatpush1.msra.mxu0 %v6109
    %6111 = vmatprep.subr.mxu0 0.0
    %6112 = vmatpush1.msra.mxu0 0.0
    %6113 = vmatprep.subr.mxu0 0.0
    %6114 = vmatpush1.msra.mxu0 0.0
    %6115 = vmatprep.subr.mxu0 0.0
    %6116 = vmatpush1.msra.mxu0 0.0
    %6117 = vmatprep.subr.mxu0 0.0
    %6118 = vmatpush1.msra.mxu0 0.0
    %6119 = vmatprep.subr.mxu0 0.0
    %6120 = vmatpush1.msra.mxu0 0.0
    %6121 = vmatprep.subr.mxu0 0.0
    %6122 = vmatpush1.msra.mxu0 0.0
    %6123 = vmatprep.subr.mxu0 0.0
    %6124 = vmatpush1.msra.mxu0 0.0
    %6125 = vmatprep.subr.mxu0 0.0
    %6126 = vmatpush1.msra.mxu0 0.0
    %6127 = vmatprep.subr.mxu0 0.0
    %6128 = vmatpush1.msra.mxu0 0.0
    %6129 = vmatprep.subr.mxu0 0.0
    %6130 = vmatpush1.msra.mxu0 0.0
    %6131 = vmatprep.subr.mxu0 0.0
    %6132 = vmatpush1.msra.mxu0 0.0
    %6133 = vmatprep.subr.mxu0 0.0
    %6134 = vmatpush1.msra.mxu0 0.0
    %6135 = vmatprep.subr.mxu0 0.0
    %6136 = vmatpush1.msra.mxu0 0.0
    %6137 = vmatprep.subr.mxu0 0.0
    %6138 = vmatpush1.msra.mxu0 0.0
    %6139 = vmatprep.subr.mxu0 0.0
    %6140 = vmatpush1.msra.mxu0 0.0
    %6141 = vmatprep.subr.mxu0 0.0
    %6142 = vmatpush1.msra.mxu0 0.0
    %6143 = vmatprep.mubr.f32.mxu0 0.0
    %v6144 = vand.u32 %v3387, 4294901760
    %6145 = vmatmul.mubr.f32.gmra.mrb[0].mxu0 %v6144
    %v6146 = vpop.f32.mrb[0].mxu0
    %v6147 = vadd.f32 %v6043, %v6146
    %v6148 = vpop.f32.mrb[0].mxu0
    %v6149 = vadd.f32 %v6045, %v6148
    %6150 = vdwg.mxu0
    %v6151 = vand.u32 %v3395, 4294901760
    %6152 = vmatprep.subr.mxu0 %v6151
    %v6153 = vand.u32 %v3394, 4294901760
    %6154 = vmatpush1.msra.mxu0 %v6153
    %v6155 = vand.u32 %v3407, 4294901760
    %6156 = vmatprep.subr.mxu0 %v6155
    %v6157 = vand.u32 %v3406, 4294901760
    %6158 = vmatpush1.msra.mxu0 %v6157
    %v6159 = vand.u32 %v3419, 4294901760
    %6160 = vmatprep.subr.mxu0 %v6159
    %v6161 = vand.u32 %v3418, 4294901760
    %6162 = vmatpush1.msra.mxu0 %v6161
    %v6163 = vand.u32 %v3431, 4294901760
    %6164 = vmatprep.subr.mxu0 %v6163
    %v6165 = vand.u32 %v3430, 4294901760
    %6166 = vmatpush1.msra.mxu0 %v6165
    %v6167 = vand.u32 %v3443, 4294901760
    %6168 = vmatprep.subr.mxu0 %v6167
    %v6169 = vand.u32 %v3442, 4294901760
    %6170 = vmatpush1.msra.mxu0 %v6169
    %v6171 = vand.u32 %v3455, 4294901760
    %6172 = vmatprep.subr.mxu0 %v6171
    %v6173 = vand.u32 %v3454, 4294901760
    %6174 = vmatpush1.msra.mxu0 %v6173
    %v6175 = vand.u32 %v3467, 4294901760
    %6176 = vmatprep.subr.mxu0 %v6175
    %v6177 = vand.u32 %v3466, 4294901760
    %6178 = vmatpush1.msra.mxu0 %v6177
    %v6179 = vand.u32 %v3479, 4294901760
    %6180 = vmatprep.subr.mxu0 %v6179
    %v6181 = vand.u32 %v3478, 4294901760
    %6182 = vmatpush1.msra.mxu0 %v6181
    %v6183 = vand.u32 %v3491, 4294901760
    %6184 = vmatprep.subr.mxu0 %v6183
    %v6185 = vand.u32 %v3490, 4294901760
    %6186 = vmatpush1.msra.mxu0 %v6185
    %v6187 = vand.u32 %v3503, 4294901760
    %6188 = vmatprep.subr.mxu0 %v6187
    %v6189 = vand.u32 %v3502, 4294901760
    %6190 = vmatpush1.msra.mxu0 %v6189
    %v6191 = vand.u32 %v3515, 4294901760
    %6192 = vmatprep.subr.mxu0 %v6191
    %v6193 = vand.u32 %v3514, 4294901760
    %6194 = vmatpush1.msra.mxu0 %v6193
    %v6195 = vand.u32 %v3527, 4294901760
    %6196 = vmatprep.subr.mxu0 %v6195
    %v6197 = vand.u32 %v3526, 4294901760
    %6198 = vmatpush1.msra.mxu0 %v6197
    %v6199 = vand.u32 %v3539, 4294901760
    %6200 = vmatprep.subr.mxu0 %v6199
    %v6201 = vand.u32 %v3538, 4294901760
    %6202 = vmatpush1.msra.mxu0 %v6201
    %v6203 = vand.u32 %v3551, 4294901760
    %6204 = vmatprep.subr.mxu0 %v6203
    %v6205 = vand.u32 %v3550, 4294901760
    %6206 = vmatpush1.msra.mxu0 %v6205
    %v6207 = vand.u32 %v3563, 4294901760
    %6208 = vmatprep.subr.mxu0 %v6207
    %v6209 = vand.u32 %v3562, 4294901760
    %6210 = vmatpush1.msra.mxu0 %v6209
    %v6211 = vand.u32 %v3575, 4294901760
    %6212 = vmatprep.subr.mxu0 %v6211
    %v6213 = vand.u32 %v3574, 4294901760
    %6214 = vmatpush1.msra.mxu0 %v6213
    %6215 = vmatprep.subr.mxu0 0.0
    %6216 = vmatpush1.msra.mxu0 0.0
    %6217 = vmatprep.subr.mxu0 0.0
    %6218 = vmatpush1.msra.mxu0 0.0
    %6219 = vmatprep.subr.mxu0 0.0
    %6220 = vmatpush1.msra.mxu0 0.0
    %6221 = vmatprep.subr.mxu0 0.0
    %6222 = vmatpush1.msra.mxu0 0.0
    %6223 = vmatprep.subr.mxu0 0.0
    %6224 = vmatpush1.msra.mxu0 0.0
    %6225 = vmatprep.subr.mxu0 0.0
    %6226 = vmatpush1.msra.mxu0 0.0
    %6227 = vmatprep.subr.mxu0 0.0
    %6228 = vmatpush1.msra.mxu0 0.0
    %6229 = vmatprep.subr.mxu0 0.0
    %6230 = vmatpush1.msra.mxu0 0.0
    %6231 = vmatprep.subr.mxu0 0.0
    %6232 = vmatpush1.msra.mxu0 0.0
    %6233 = vmatprep.subr.mxu0 0.0
    %6234 = vmatpush1.msra.mxu0 0.0
    %6235 = vmatprep.subr.mxu0 0.0
    %6236 = vmatpush1.msra.mxu0 0.0
    %6237 = vmatprep.subr.mxu0 0.0
    %6238 = vmatpush1.msra.mxu0 0.0
    %6239 = vmatprep.subr.mxu0 0.0
    %6240 = vmatpush1.msra.mxu0 0.0
    %6241 = vmatprep.subr.mxu0 0.0
    %6242 = vmatpush1.msra.mxu0 0.0
    %6243 = vmatprep.subr.mxu0 0.0
    %6244 = vmatpush1.msra.mxu0 0.0
    %6245 = vmatprep.subr.mxu0 0.0
    %6246 = vmatpush1.msra.mxu0 0.0
    %6247 = vmatprep.mubr.f32.mxu0 0.0
    %v6248 = vand.u32 %v3387, 4294901760
    %v6249 = vsub.f32 %v3387, %v6248
    %v6250 = vand.u32 %v6249, 4294901760
    %v6251 = vsub.f32 %v6249, %v6250
    %v6252 = vand.u32 %v6251, 4294901760
    %6253 = vmatmul.mubr.f32.gmra.mrb[0].mxu0 %v6252
    %v6254 = vpop.f32.mrb[0].mxu0
    %v6255 = vadd.f32 %v3584, %v6254
    %v6256 = vpop.f32.mrb[0].mxu0
    %v6257 = vadd.f32 %v3584, %v6256
    %6258 = vdwg.mxu0
    %v6259 = vand.u32 %v3395, 4294901760
    %v6260 = vsub.f32 %v3395, %v6259
    %v6261 = vand.u32 %v6260, 4294901760
    %v6262 = vsub.f32 %v6260, %v6261
    %v6263 = vand.u32 %v6262, 4294901760
    %6264 = vmatprep.subr.mxu0 %v6263
    %v6265 = vand.u32 %v3394, 4294901760
    %v6266 = vsub.f32 %v3394, %v6265
    %v6267 = vand.u32 %v6266, 4294901760
    %v6268 = vsub.f32 %v6266, %v6267
    %v6269 = vand.u32 %v6268, 4294901760
    %6270 = vmatpush1.msra.mxu0 %v6269
    %v6271 = vand.u32 %v3407, 4294901760
    %v6272 = vsub.f32 %v3407, %v6271
    %v6273 = vand.u32 %v6272, 4294901760
    %v6274 = vsub.f32 %v6272, %v6273
    %v6275 = vand.u32 %v6274, 4294901760
    %6276 = vmatprep.subr.mxu0 %v6275
    %v6277 = vand.u32 %v3406, 4294901760
    %v6278 = vsub.f32 %v3406, %v6277
    %v6279 = vand.u32 %v6278, 4294901760
    %v6280 = vsub.f32 %v6278, %v6279
    %v6281 = vand.u32 %v6280, 4294901760
    %6282 = vmatpush1.msra.mxu0 %v6281
    %v6283 = vand.u32 %v3419, 4294901760
    %v6284 = vsub.f32 %v3419, %v6283
    %v6285 = vand.u32 %v6284, 4294901760
    %v6286 = vsub.f32 %v6284, %v6285
    %v6287 = vand.u32 %v6286, 4294901760
    %6288 = vmatprep.subr.mxu0 %v6287
    %v6289 = vand.u32 %v3418, 4294901760
    %v6290 = vsub.f32 %v3418, %v6289
    %v6291 = vand.u32 %v6290, 4294901760
    %v6292 = vsub.f32 %v6290, %v6291
    %v6293 = vand.u32 %v6292, 4294901760
    %6294 = vmatpush1.msra.mxu0 %v6293
    %v6295 = vand.u32 %v3431, 4294901760
    %v6296 = vsub.f32 %v3431, %v6295
    %v6297 = vand.u32 %v6296, 4294901760
    %v6298 = vsub.f32 %v6296, %v6297
    %v6299 = vand.u32 %v6298, 4294901760
    %6300 = vmatprep.subr.mxu0 %v6299
    %v6301 = vand.u32 %v3430, 4294901760
    %v6302 = vsub.f32 %v3430, %v6301
    %v6303 = vand.u32 %v6302, 4294901760
    %v6304 = vsub.f32 %v6302, %v6303
    %v6305 = vand.u32 %v6304, 4294901760
    %6306 = vmatpush1.msra.mxu0 %v6305
    %v6307 = vand.u32 %v3443, 4294901760
    %v6308 = vsub.f32 %v3443, %v6307
    %v6309 = vand.u32 %v6308, 4294901760
    %v6310 = vsub.f32 %v6308, %v6309
    %v6311 = vand.u32 %v6310, 4294901760
    %6312 = vmatprep.subr.mxu0 %v6311
    %v6313 = vand.u32 %v3442, 4294901760
    %v6314 = vsub.f32 %v3442, %v6313
    %v6315 = vand.u32 %v6314, 4294901760
    %v6316 = vsub.f32 %v6314, %v6315
    %v6317 = vand.u32 %v6316, 4294901760
    %6318 = vmatpush1.msra.mxu0 %v6317
    %v6319 = vand.u32 %v3455, 4294901760
    %v6320 = vsub.f32 %v3455, %v6319
    %v6321 = vand.u32 %v6320, 4294901760
    %v6322 = vsub.f32 %v6320, %v6321
    %v6323 = vand.u32 %v6322, 4294901760
    %6324 = vmatprep.subr.mxu0 %v6323
    %v6325 = vand.u32 %v3454, 4294901760
    %v6326 = vsub.f32 %v3454, %v6325
    %v6327 = vand.u32 %v6326, 4294901760
    %v6328 = vsub.f32 %v6326, %v6327
    %v6329 = vand.u32 %v6328, 4294901760
    %6330 = vmatpush1.msra.mxu0 %v6329
    %v6331 = vand.u32 %v3467, 4294901760
    %v6332 = vsub.f32 %v3467, %v6331
    %v6333 = vand.u32 %v6332, 4294901760
    %v6334 = vsub.f32 %v6332, %v6333
    %v6335 = vand.u32 %v6334, 4294901760
    %6336 = vmatprep.subr.mxu0 %v6335
    %v6337 = vand.u32 %v3466, 4294901760
    %v6338 = vsub.f32 %v3466, %v6337
    %v6339 = vand.u32 %v6338, 4294901760
    %v6340 = vsub.f32 %v6338, %v6339
    %v6341 = vand.u32 %v6340, 4294901760
    %6342 = vmatpush1.msra.mxu0 %v6341
    %v6343 = vand.u32 %v3479, 4294901760
    %v6344 = vsub.f32 %v3479, %v6343
    %v6345 = vand.u32 %v6344, 4294901760
    %v6346 = vsub.f32 %v6344, %v6345
    %v6347 = vand.u32 %v6346, 4294901760
    %6348 = vmatprep.subr.mxu0 %v6347
    %v6349 = vand.u32 %v3478, 4294901760
    %v6350 = vsub.f32 %v3478, %v6349
    %v6351 = vand.u32 %v6350, 4294901760
    %v6352 = vsub.f32 %v6350, %v6351
    %v6353 = vand.u32 %v6352, 4294901760
    %6354 = vmatpush1.msra.mxu0 %v6353
    %v6355 = vand.u32 %v3491, 4294901760
    %v6356 = vsub.f32 %v3491, %v6355
    %v6357 = vand.u32 %v6356, 4294901760
    %v6358 = vsub.f32 %v6356, %v6357
    %v6359 = vand.u32 %v6358, 4294901760
    %6360 = vmatprep.subr.mxu0 %v6359
    %v6361 = vand.u32 %v3490, 4294901760
    %v6362 = vsub.f32 %v3490, %v6361
    %v6363 = vand.u32 %v6362, 4294901760
    %v6364 = vsub.f32 %v6362, %v6363
    %v6365 = vand.u32 %v6364, 4294901760
    %6366 = vmatpush1.msra.mxu0 %v6365
    %v6367 = vand.u32 %v3503, 4294901760
    %v6368 = vsub.f32 %v3503, %v6367
    %v6369 = vand.u32 %v6368, 4294901760
    %v6370 = vsub.f32 %v6368, %v6369
    %v6371 = vand.u32 %v6370, 4294901760
    %6372 = vmatprep.subr.mxu0 %v6371
    %v6373 = vand.u32 %v3502, 4294901760
    %v6374 = vsub.f32 %v3502, %v6373
    %v6375 = vand.u32 %v6374, 4294901760
    %v6376 = vsub.f32 %v6374, %v6375
    %v6377 = vand.u32 %v6376, 4294901760
    %6378 = vmatpush1.msra.mxu0 %v6377
    %v6379 = vand.u32 %v3515, 4294901760
    %v6380 = vsub.f32 %v3515, %v6379
    %v6381 = vand.u32 %v6380, 4294901760
    %v6382 = vsub.f32 %v6380, %v6381
    %v6383 = vand.u32 %v6382, 4294901760
    %6384 = vmatprep.subr.mxu0 %v6383
    %v6385 = vand.u32 %v3514, 4294901760
    %v6386 = vsub.f32 %v3514, %v6385
    %v6387 = vand.u32 %v6386, 4294901760
    %v6388 = vsub.f32 %v6386, %v6387
    %v6389 = vand.u32 %v6388, 4294901760
    %6390 = vmatpush1.msra.mxu0 %v6389
    %v6391 = vand.u32 %v3527, 4294901760
    %v6392 = vsub.f32 %v3527, %v6391
    %v6393 = vand.u32 %v6392, 4294901760
    %v6394 = vsub.f32 %v6392, %v6393
    %v6395 = vand.u32 %v6394, 4294901760
    %6396 = vmatprep.subr.mxu0 %v6395
    %v6397 = vand.u32 %v3526, 4294901760
    %v6398 = vsub.f32 %v3526, %v6397
    %v6399 = vand.u32 %v6398, 4294901760
    %v6400 = vsub.f32 %v6398, %v6399
    %v6401 = vand.u32 %v6400, 4294901760
    %6402 = vmatpush1.msra.mxu0 %v6401
    %v6403 = vand.u32 %v3539, 4294901760
    %v6404 = vsub.f32 %v3539, %v6403
    %v6405 = vand.u32 %v6404, 4294901760
    %v6406 = vsub.f32 %v6404, %v6405
    %v6407 = vand.u32 %v6406, 4294901760
    %6408 = vmatprep.subr.mxu0 %v6407
    %v6409 = vand.u32 %v3538, 4294901760
    %v6410 = vsub.f32 %v3538, %v6409
    %v6411 = vand.u32 %v6410, 4294901760
    %v6412 = vsub.f32 %v6410, %v6411
    %v6413 = vand.u32 %v6412, 4294901760
    %6414 = vmatpush1.msra.mxu0 %v6413
    %v6415 = vand.u32 %v3551, 4294901760
    %v6416 = vsub.f32 %v3551, %v6415
    %v6417 = vand.u32 %v6416, 4294901760
    %v6418 = vsub.f32 %v6416, %v6417
    %v6419 = vand.u32 %v6418, 4294901760
    %6420 = vmatprep.subr.mxu0 %v6419
    %v6421 = vand.u32 %v3550, 4294901760
    %v6422 = vsub.f32 %v3550, %v6421
    %v6423 = vand.u32 %v6422, 4294901760
    %v6424 = vsub.f32 %v6422, %v6423
    %v6425 = vand.u32 %v6424, 4294901760
    %6426 = vmatpush1.msra.mxu0 %v6425
    %v6427 = vand.u32 %v3563, 4294901760
    %v6428 = vsub.f32 %v3563, %v6427
    %v6429 = vand.u32 %v6428, 4294901760
    %v6430 = vsub.f32 %v6428, %v6429
    %v6431 = vand.u32 %v6430, 4294901760
    %6432 = vmatprep.subr.mxu0 %v6431
    %v6433 = vand.u32 %v3562, 4294901760
    %v6434 = vsub.f32 %v3562, %v6433
    %v6435 = vand.u32 %v6434, 4294901760
    %v6436 = vsub.f32 %v6434, %v6435
    %v6437 = vand.u32 %v6436, 4294901760
    %6438 = vmatpush1.msra.mxu0 %v6437
    %v6439 = vand.u32 %v3575, 4294901760
    %v6440 = vsub.f32 %v3575, %v6439
    %v6441 = vand.u32 %v6440, 4294901760
    %v6442 = vsub.f32 %v6440, %v6441
    %v6443 = vand.u32 %v6442, 4294901760
    %6444 = vmatprep.subr.mxu0 %v6443
    %v6445 = vand.u32 %v3574, 4294901760
    %v6446 = vsub.f32 %v3574, %v6445
    %v6447 = vand.u32 %v6446, 4294901760
    %v6448 = vsub.f32 %v6446, %v6447
    %v6449 = vand.u32 %v6448, 4294901760
    %6450 = vmatpush1.msra.mxu0 %v6449
    %6451 = vmatprep.subr.mxu0 0.0
    %6452 = vmatpush1.msra.mxu0 0.0
    %6453 = vmatprep.subr.mxu0 0.0
    %6454 = vmatpush1.msra.mxu0 0.0
    %6455 = vmatprep.subr.mxu0 0.0
    %6456 = vmatpush1.msra.mxu0 0.0
    %6457 = vmatprep.subr.mxu0 0.0
    %6458 = vmatpush1.msra.mxu0 0.0
    %6459 = vmatprep.subr.mxu0 0.0
    %6460 = vmatpush1.msra.mxu0 0.0
    %6461 = vmatprep.subr.mxu0 0.0
    %6462 = vmatpush1.msra.mxu0 0.0
    %6463 = vmatprep.subr.mxu0 0.0
    %6464 = vmatpush1.msra.mxu0 0.0
    %6465 = vmatprep.subr.mxu0 0.0
    %6466 = vmatpush1.msra.mxu0 0.0
    %6467 = vmatprep.subr.mxu0 0.0
    %6468 = vmatpush1.msra.mxu0 0.0
    %6469 = vmatprep.subr.mxu0 0.0
    %6470 = vmatpush1.msra.mxu0 0.0
    %6471 = vmatprep.subr.mxu0 0.0
    %6472 = vmatpush1.msra.mxu0 0.0
    %6473 = vmatprep.subr.mxu0 0.0
    %6474 = vmatpush1.msra.mxu0 0.0
    %6475 = vmatprep.subr.mxu0 0.0
    %6476 = vmatpush1.msra.mxu0 0.0
    %6477 = vmatprep.subr.mxu0 0.0
    %6478 = vmatpush1.msra.mxu0 0.0
    %6479 = vmatprep.subr.mxu0 0.0
    %6480 = vmatpush1.msra.mxu0 0.0
    %6481 = vmatprep.subr.mxu0 0.0
    %6482 = vmatpush1.msra.mxu0 0.0
    %6483 = vmatprep.mubr.f32.mxu0 0.0
    %v6484 = vand.u32 %v3387, 4294901760
    %6485 = vmatmul.mubr.f32.gmra.mrb[0].mxu0 %v6484
    %v6486 = vpop.f32.mrb[0].mxu0
    %v6487 = vadd.f32 %v6255, %v6486
    %v6488 = vpop.f32.mrb[0].mxu0
    %v6489 = vadd.f32 %v6257, %v6488
    %6490 = vdwg.mxu0
    %v6491 = vand.u32 %v3395, 4294901760
    %v6492 = vsub.f32 %v3395, %v6491
    %6493 = vmatprep.subr.mxu0 %v6492
    %v6494 = vand.u32 %v3394, 4294901760
    %v6495 = vsub.f32 %v3394, %v6494
    %6496 = vmatpush1.msra.mxu0 %v6495
    %v6497 = vand.u32 %v3407, 4294901760
    %v6498 = vsub.f32 %v3407, %v6497
    %6499 = vmatprep.subr.mxu0 %v6498
    %v6500 = vand.u32 %v3406, 4294901760
    %v6501 = vsub.f32 %v3406, %v6500
    %6502 = vmatpush1.msra.mxu0 %v6501
    %v6503 = vand.u32 %v3419, 4294901760
    %v6504 = vsub.f32 %v3419, %v6503
    %6505 = vmatprep.subr.mxu0 %v6504
    %v6506 = vand.u32 %v3418, 4294901760
    %v6507 = vsub.f32 %v3418, %v6506
    %6508 = vmatpush1.msra.mxu0 %v6507
    %v6509 = vand.u32 %v3431, 4294901760
    %v6510 = vsub.f32 %v3431, %v6509
    %6511 = vmatprep.subr.mxu0 %v6510
    %v6512 = vand.u32 %v3430, 4294901760
    %v6513 = vsub.f32 %v3430, %v6512
    %6514 = vmatpush1.msra.mxu0 %v6513
    %v6515 = vand.u32 %v3443, 4294901760
    %v6516 = vsub.f32 %v3443, %v6515
    %6517 = vmatprep.subr.mxu0 %v6516
    %v6518 = vand.u32 %v3442, 4294901760
    %v6519 = vsub.f32 %v3442, %v6518
    %6520 = vmatpush1.msra.mxu0 %v6519
    %v6521 = vand.u32 %v3455, 4294901760
    %v6522 = vsub.f32 %v3455, %v6521
    %6523 = vmatprep.subr.mxu0 %v6522
    %v6524 = vand.u32 %v3454, 4294901760
    %v6525 = vsub.f32 %v3454, %v6524
    %6526 = vmatpush1.msra.mxu0 %v6525
    %v6527 = vand.u32 %v3467, 4294901760
    %v6528 = vsub.f32 %v3467, %v6527
    %6529 = vmatprep.subr.mxu0 %v6528
    %v6530 = vand.u32 %v3466, 4294901760
    %v6531 = vsub.f32 %v3466, %v6530
    %6532 = vmatpush1.msra.mxu0 %v6531
    %v6533 = vand.u32 %v3479, 4294901760
    %v6534 = vsub.f32 %v3479, %v6533
    %6535 = vmatprep.subr.mxu0 %v6534
    %v6536 = vand.u32 %v3478, 4294901760
    %v6537 = vsub.f32 %v3478, %v6536
    %6538 = vmatpush1.msra.mxu0 %v6537
    %v6539 = vand.u32 %v3491, 4294901760
    %v6540 = vsub.f32 %v3491, %v6539
    %6541 = vmatprep.subr.mxu0 %v6540
    %v6542 = vand.u32 %v3490, 4294901760
    %v6543 = vsub.f32 %v3490, %v6542
    %6544 = vmatpush1.msra.mxu0 %v6543
    %v6545 = vand.u32 %v3503, 4294901760
    %v6546 = vsub.f32 %v3503, %v6545
    %6547 = vmatprep.subr.mxu0 %v6546
    %v6548 = vand.u32 %v3502, 4294901760
    %v6549 = vsub.f32 %v3502, %v6548
    %6550 = vmatpush1.msra.mxu0 %v6549
    %v6551 = vand.u32 %v3515, 4294901760
    %v6552 = vsub.f32 %v3515, %v6551
    %6553 = vmatprep.subr.mxu0 %v6552
    %v6554 = vand.u32 %v3514, 4294901760
    %v6555 = vsub.f32 %v3514, %v6554
    %6556 = vmatpush1.msra.mxu0 %v6555
    %v6557 = vand.u32 %v3527, 4294901760
    %v6558 = vsub.f32 %v3527, %v6557
    %6559 = vmatprep.subr.mxu0 %v6558
    %v6560 = vand.u32 %v3526, 4294901760
    %v6561 = vsub.f32 %v3526, %v6560
    %6562 = vmatpush1.msra.mxu0 %v6561
    %v6563 = vand.u32 %v3539, 4294901760
    %v6564 = vsub.f32 %v3539, %v6563
    %6565 = vmatprep.subr.mxu0 %v6564
    %v6566 = vand.u32 %v3538, 4294901760
    %v6567 = vsub.f32 %v3538, %v6566
    %6568 = vmatpush1.msra.mxu0 %v6567
    %v6569 = vand.u32 %v3551, 4294901760
    %v6570 = vsub.f32 %v3551, %v6569
    %6571 = vmatprep.subr.mxu0 %v6570
    %v6572 = vand.u32 %v3550, 4294901760
    %v6573 = vsub.f32 %v3550, %v6572
    %6574 = vmatpush1.msra.mxu0 %v6573
    %v6575 = vand.u32 %v3563, 4294901760
    %v6576 = vsub.f32 %v3563, %v6575
    %6577 = vmatprep.subr.mxu0 %v6576
    %v6578 = vand.u32 %v3562, 4294901760
    %v6579 = vsub.f32 %v3562, %v6578
    %6580 = vmatpush1.msra.mxu0 %v6579
    %v6581 = vand.u32 %v3575, 4294901760
    %v6582 = vsub.f32 %v3575, %v6581
    %6583 = vmatprep.subr.mxu0 %v6582
    %v6584 = vand.u32 %v3574, 4294901760
    %v6585 = vsub.f32 %v3574, %v6584
    %6586 = vmatpush1.msra.mxu0 %v6585
    %6587 = vmatprep.subr.mxu0 0.0
    %6588 = vmatpush1.msra.mxu0 0.0
    %6589 = vmatprep.subr.mxu0 0.0
    %6590 = vmatpush1.msra.mxu0 0.0
    %6591 = vmatprep.subr.mxu0 0.0
    %6592 = vmatpush1.msra.mxu0 0.0
    %6593 = vmatprep.subr.mxu0 0.0
    %6594 = vmatpush1.msra.mxu0 0.0
    %6595 = vmatprep.subr.mxu0 0.0
    %6596 = vmatpush1.msra.mxu0 0.0
    %6597 = vmatprep.subr.mxu0 0.0
    %6598 = vmatpush1.msra.mxu0 0.0
    %6599 = vmatprep.subr.mxu0 0.0
    %6600 = vmatpush1.msra.mxu0 0.0
    %6601 = vmatprep.subr.mxu0 0.0
    %6602 = vmatpush1.msra.mxu0 0.0
    %6603 = vmatprep.subr.mxu0 0.0
    %6604 = vmatpush1.msra.mxu0 0.0
    %6605 = vmatprep.subr.mxu0 0.0
    %6606 = vmatpush1.msra.mxu0 0.0
    %6607 = vmatprep.subr.mxu0 0.0
    %6608 = vmatpush1.msra.mxu0 0.0
    %6609 = vmatprep.subr.mxu0 0.0
    %6610 = vmatpush1.msra.mxu0 0.0
    %6611 = vmatprep.subr.mxu0 0.0
    %6612 = vmatpush1.msra.mxu0 0.0
    %6613 = vmatprep.subr.mxu0 0.0
    %6614 = vmatpush1.msra.mxu0 0.0
    %6615 = vmatprep.subr.mxu0 0.0
    %6616 = vmatpush1.msra.mxu0 0.0
    %6617 = vmatprep.subr.mxu0 0.0
    %6618 = vmatpush1.msra.mxu0 0.0
    %6619 = vmatprep.mubr.f32.mxu0 0.0
    %v6620 = vand.u32 %v3387, 4294901760
    %v6621 = vsub.f32 %v3387, %v6620
    %6622 = vmatmul.mubr.f32.gmra.mrb[0].mxu0 %v6621
    %v6623 = vpop.f32.mrb[0].mxu0
    %v6624 = vadd.f32 %v6487, %v6623
    %v6625 = vpop.f32.mrb[0].mxu0
    %v6626 = vadd.f32 %v6489, %v6625
    %6627 = vdwg.mxu0
    %v6628 = vand.u32 %v3395, 4294901760
    %6629 = vmatprep.subr.mxu0 %v6628
    %v6630 = vand.u32 %v3394, 4294901760
    %6631 = vmatpush1.msra.mxu0 %v6630
    %v6632 = vand.u32 %v3407, 4294901760
    %6633 = vmatprep.subr.mxu0 %v6632
    %v6634 = vand.u32 %v3406, 4294901760
    %6635 = vmatpush1.msra.mxu0 %v6634
    %v6636 = vand.u32 %v3419, 4294901760
    %6637 = vmatprep.subr.mxu0 %v6636
    %v6638 = vand.u32 %v3418, 4294901760
    %6639 = vmatpush1.msra.mxu0 %v6638
    %v6640 = vand.u32 %v3431, 4294901760
    %6641 = vmatprep.subr.mxu0 %v6640
    %v6642 = vand.u32 %v3430, 4294901760
    %6643 = vmatpush1.msra.mxu0 %v6642
    %v6644 = vand.u32 %v3443, 4294901760
    %6645 = vmatprep.subr.mxu0 %v6644
    %v6646 = vand.u32 %v3442, 4294901760
    %6647 = vmatpush1.msra.mxu0 %v6646
    %v6648 = vand.u32 %v3455, 4294901760
    %6649 = vmatprep.subr.mxu0 %v6648
    %v6650 = vand.u32 %v3454, 4294901760
    %6651 = vmatpush1.msra.mxu0 %v6650
    %v6652 = vand.u32 %v3467, 4294901760
    %6653 = vmatprep.subr.mxu0 %v6652
    %v6654 = vand.u32 %v3466, 4294901760
    %6655 = vmatpush1.msra.mxu0 %v6654
    %v6656 = vand.u32 %v3479, 4294901760
    %6657 = vmatprep.subr.mxu0 %v6656
    %v6658 = vand.u32 %v3478, 4294901760
    %6659 = vmatpush1.msra.mxu0 %v6658
    %v6660 = vand.u32 %v3491, 4294901760
    %6661 = vmatprep.subr.mxu0 %v6660
    %v6662 = vand.u32 %v3490, 4294901760
    %6663 = vmatpush1.msra.mxu0 %v6662
    %v6664 = vand.u32 %v3503, 4294901760
    %6665 = vmatprep.subr.mxu0 %v6664
    %v6666 = vand.u32 %v3502, 4294901760
    %6667 = vmatpush1.msra.mxu0 %v6666
    %v6668 = vand.u32 %v3515, 4294901760
    %6669 = vmatprep.subr.mxu0 %v6668
    %v6670 = vand.u32 %v3514, 4294901760
    %6671 = vmatpush1.msra.mxu0 %v6670
    %v6672 = vand.u32 %v3527, 4294901760
    %6673 = vmatprep.subr.mxu0 %v6672
    %v6674 = vand.u32 %v3526, 4294901760
    %6675 = vmatpush1.msra.mxu0 %v6674
    %v6676 = vand.u32 %v3539, 4294901760
    %6677 = vmatprep.subr.mxu0 %v6676
    %v6678 = vand.u32 %v3538, 4294901760
    %6679 = vmatpush1.msra.mxu0 %v6678
    %v6680 = vand.u32 %v3551, 4294901760
    %6681 = vmatprep.subr.mxu0 %v6680
    %v6682 = vand.u32 %v3550, 4294901760
    %6683 = vmatpush1.msra.mxu0 %v6682
    %v6684 = vand.u32 %v3563, 4294901760
    %6685 = vmatprep.subr.mxu0 %v6684
    %v6686 = vand.u32 %v3562, 4294901760
    %6687 = vmatpush1.msra.mxu0 %v6686
    %v6688 = vand.u32 %v3575, 4294901760
    %6689 = vmatprep.subr.mxu0 %v6688
    %v6690 = vand.u32 %v3574, 4294901760
    %6691 = vmatpush1.msra.mxu0 %v6690
    %6692 = vmatprep.subr.mxu0 0.0
    %6693 = vmatpush1.msra.mxu0 0.0
    %6694 = vmatprep.subr.mxu0 0.0
    %6695 = vmatpush1.msra.mxu0 0.0
    %6696 = vmatprep.subr.mxu0 0.0
    %6697 = vmatpush1.msra.mxu0 0.0
    %6698 = vmatprep.subr.mxu0 0.0
    %6699 = vmatpush1.msra.mxu0 0.0
    %6700 = vmatprep.subr.mxu0 0.0
    %6701 = vmatpush1.msra.mxu0 0.0
    %6702 = vmatprep.subr.mxu0 0.0
    %6703 = vmatpush1.msra.mxu0 0.0
    %6704 = vmatprep.subr.mxu0 0.0
    %6705 = vmatpush1.msra.mxu0 0.0
    %6706 = vmatprep.subr.mxu0 0.0
    %6707 = vmatpush1.msra.mxu0 0.0
    %6708 = vmatprep.subr.mxu0 0.0
    %6709 = vmatpush1.msra.mxu0 0.0
    %6710 = vmatprep.subr.mxu0 0.0
    %6711 = vmatpush1.msra.mxu0 0.0
    %6712 = vmatprep.subr.mxu0 0.0
    %6713 = vmatpush1.msra.mxu0 0.0
    %6714 = vmatprep.subr.mxu0 0.0
    %6715 = vmatpush1.msra.mxu0 0.0
    %6716 = vmatprep.subr.mxu0 0.0
    %6717 = vmatpush1.msra.mxu0 0.0
    %6718 = vmatprep.subr.mxu0 0.0
    %6719 = vmatpush1.msra.mxu0 0.0
    %6720 = vmatprep.subr.mxu0 0.0
    %6721 = vmatpush1.msra.mxu0 0.0
    %6722 = vmatprep.subr.mxu0 0.0
    %6723 = vmatpush1.msra.mxu0 0.0
    %6724 = vmatprep.mubr.f32.mxu0 0.0
    %v6725 = vand.u32 %v3387, 4294901760
    %v6726 = vsub.f32 %v3387, %v6725
    %v6727 = vand.u32 %v6726, 4294901760
    %6728 = vmatmul.mubr.f32.gmra.mrb[0].mxu0 %v6727
    %v6729 = vpop.f32.mrb[0].mxu0
    %v6730 = vadd.f32 %v6624, %v6729
    %v6731 = vpop.f32.mrb[0].mxu0
    %v6732 = vadd.f32 %v6626, %v6731
    %6733 = vdwg.mxu0
    %v6734 = vand.u32 %v3395, 4294901760
    %v6735 = vsub.f32 %v3395, %v6734
    %v6736 = vand.u32 %v6735, 4294901760
    %6737 = vmatprep.subr.mxu0 %v6736
    %v6738 = vand.u32 %v3394, 4294901760
    %v6739 = vsub.f32 %v3394, %v6738
    %v6740 = vand.u32 %v6739, 4294901760
    %6741 = vmatpush1.msra.mxu0 %v6740
    %v6742 = vand.u32 %v3407, 4294901760
    %v6743 = vsub.f32 %v3407, %v6742
    %v6744 = vand.u32 %v6743, 4294901760
    %6745 = vmatprep.subr.mxu0 %v6744
    %v6746 = vand.u32 %v3406, 4294901760
    %v6747 = vsub.f32 %v3406, %v6746
    %v6748 = vand.u32 %v6747, 4294901760
    %6749 = vmatpush1.msra.mxu0 %v6748
    %v6750 = vand.u32 %v3419, 4294901760
    %v6751 = vsub.f32 %v3419, %v6750
    %v6752 = vand.u32 %v6751, 4294901760
    %6753 = vmatprep.subr.mxu0 %v6752
    %v6754 = vand.u32 %v3418, 4294901760
    %v6755 = vsub.f32 %v3418, %v6754
    %v6756 = vand.u32 %v6755, 4294901760
    %6757 = vmatpush1.msra.mxu0 %v6756
    %v6758 = vand.u32 %v3431, 4294901760
    %v6759 = vsub.f32 %v3431, %v6758
    %v6760 = vand.u32 %v6759, 4294901760
    %6761 = vmatprep.subr.mxu0 %v6760
    %v6762 = vand.u32 %v3430, 4294901760
    %v6763 = vsub.f32 %v3430, %v6762
    %v6764 = vand.u32 %v6763, 4294901760
    %6765 = vmatpush1.msra.mxu0 %v6764
    %v6766 = vand.u32 %v3443, 4294901760
    %v6767 = vsub.f32 %v3443, %v6766
    %v6768 = vand.u32 %v6767, 4294901760
    %6769 = vmatprep.subr.mxu0 %v6768
    %v6770 = vand.u32 %v3442, 4294901760
    %v6771 = vsub.f32 %v3442, %v6770
    %v6772 = vand.u32 %v6771, 4294901760
    %6773 = vmatpush1.msra.mxu0 %v6772
    %v6774 = vand.u32 %v3455, 4294901760
    %v6775 = vsub.f32 %v3455, %v6774
    %v6776 = vand.u32 %v6775, 4294901760
    %6777 = vmatprep.subr.mxu0 %v6776
    %v6778 = vand.u32 %v3454, 4294901760
    %v6779 = vsub.f32 %v3454, %v6778
    %v6780 = vand.u32 %v6779, 4294901760
    %6781 = vmatpush1.msra.mxu0 %v6780
    %v6782 = vand.u32 %v3467, 4294901760
    %v6783 = vsub.f32 %v3467, %v6782
    %v6784 = vand.u32 %v6783, 4294901760
    %6785 = vmatprep.subr.mxu0 %v6784
    %v6786 = vand.u32 %v3466, 4294901760
    %v6787 = vsub.f32 %v3466, %v6786
    %v6788 = vand.u32 %v6787, 4294901760
    %6789 = vmatpush1.msra.mxu0 %v6788
    %v6790 = vand.u32 %v3479, 4294901760
    %v6791 = vsub.f32 %v3479, %v6790
    %v6792 = vand.u32 %v6791, 4294901760
    %6793 = vmatprep.subr.mxu0 %v6792
    %v6794 = vand.u32 %v3478, 4294901760
    %v6795 = vsub.f32 %v3478, %v6794
    %v6796 = vand.u32 %v6795, 4294901760
    %6797 = vmatpush1.msra.mxu0 %v6796
    %v6798 = vand.u32 %v3491, 4294901760
    %v6799 = vsub.f32 %v3491, %v6798
    %v6800 = vand.u32 %v6799, 4294901760
    %6801 = vmatprep.subr.mxu0 %v6800
    %v6802 = vand.u32 %v3490, 4294901760
    %v6803 = vsub.f32 %v3490, %v6802
    %v6804 = vand.u32 %v6803, 4294901760
    %6805 = vmatpush1.msra.mxu0 %v6804
    %v6806 = vand.u32 %v3503, 4294901760
    %v6807 = vsub.f32 %v3503, %v6806
    %v6808 = vand.u32 %v6807, 4294901760
    %6809 = vmatprep.subr.mxu0 %v6808
    %v6810 = vand.u32 %v3502, 4294901760
    %v6811 = vsub.f32 %v3502, %v6810
    %v6812 = vand.u32 %v6811, 4294901760
    %6813 = vmatpush1.msra.mxu0 %v6812
    %v6814 = vand.u32 %v3515, 4294901760
    %v6815 = vsub.f32 %v3515, %v6814
    %v6816 = vand.u32 %v6815, 4294901760
    %6817 = vmatprep.subr.mxu0 %v6816
    %v6818 = vand.u32 %v3514, 4294901760
    %v6819 = vsub.f32 %v3514, %v6818
    %v6820 = vand.u32 %v6819, 4294901760
    %6821 = vmatpush1.msra.mxu0 %v6820
    %v6822 = vand.u32 %v3527, 4294901760
    %v6823 = vsub.f32 %v3527, %v6822
    %v6824 = vand.u32 %v6823, 4294901760
    %6825 = vmatprep.subr.mxu0 %v6824
    %v6826 = vand.u32 %v3526, 4294901760
    %v6827 = vsub.f32 %v3526, %v6826
    %v6828 = vand.u32 %v6827, 4294901760
    %6829 = vmatpush1.msra.mxu0 %v6828
    %v6830 = vand.u32 %v3539, 4294901760
    %v6831 = vsub.f32 %v3539, %v6830
    %v6832 = vand.u32 %v6831, 4294901760
    %6833 = vmatprep.subr.mxu0 %v6832
    %v6834 = vand.u32 %v3538, 4294901760
    %v6835 = vsub.f32 %v3538, %v6834
    %v6836 = vand.u32 %v6835, 4294901760
    %6837 = vmatpush1.msra.mxu0 %v6836
    %v6838 = vand.u32 %v3551, 4294901760
    %v6839 = vsub.f32 %v3551, %v6838
    %v6840 = vand.u32 %v6839, 4294901760
    %6841 = vmatprep.subr.mxu0 %v6840
    %v6842 = vand.u32 %v3550, 4294901760
    %v6843 = vsub.f32 %v3550, %v6842
    %v6844 = vand.u32 %v6843, 4294901760
    %6845 = vmatpush1.msra.mxu0 %v6844
    %v6846 = vand.u32 %v3563, 4294901760
    %v6847 = vsub.f32 %v3563, %v6846
    %v6848 = vand.u32 %v6847, 4294901760
    %6849 = vmatprep.subr.mxu0 %v6848
    %v6850 = vand.u32 %v3562, 4294901760
    %v6851 = vsub.f32 %v3562, %v6850
    %v6852 = vand.u32 %v6851, 4294901760
    %6853 = vmatpush1.msra.mxu0 %v6852
    %v6854 = vand.u32 %v3575, 4294901760
    %v6855 = vsub.f32 %v3575, %v6854
    %v6856 = vand.u32 %v6855, 4294901760
    %6857 = vmatprep.subr.mxu0 %v6856
    %v6858 = vand.u32 %v3574, 4294901760
    %v6859 = vsub.f32 %v3574, %v6858
    %v6860 = vand.u32 %v6859, 4294901760
    %6861 = vmatpush1.msra.mxu0 %v6860
    %6862 = vmatprep.subr.mxu0 0.0
    %6863 = vmatpush1.msra.mxu0 0.0
    %6864 = vmatprep.subr.mxu0 0.0
    %6865 = vmatpush1.msra.mxu0 0.0
    %6866 = vmatprep.subr.mxu0 0.0
    %6867 = vmatpush1.msra.mxu0 0.0
    %6868 = vmatprep.subr.mxu0 0.0
    %6869 = vmatpush1.msra.mxu0 0.0
    %6870 = vmatprep.subr.mxu0 0.0
    %6871 = vmatpush1.msra.mxu0 0.0
    %6872 = vmatprep.subr.mxu0 0.0
    %6873 = vmatpush1.msra.mxu0 0.0
    %6874 = vmatprep.subr.mxu0 0.0
    %6875 = vmatpush1.msra.mxu0 0.0
    %6876 = vmatprep.subr.mxu0 0.0
    %6877 = vmatpush1.msra.mxu0 0.0
    %6878 = vmatprep.subr.mxu0 0.0
    %6879 = vmatpush1.msra.mxu0 0.0
    %6880 = vmatprep.subr.mxu0 0.0
    %6881 = vmatpush1.msra.mxu0 0.0
    %6882 = vmatprep.subr.mxu0 0.0
    %6883 = vmatpush1.msra.mxu0 0.0
    %6884 = vmatprep.subr.mxu0 0.0
    %6885 = vmatpush1.msra.mxu0 0.0
    %6886 = vmatprep.subr.mxu0 0.0
    %6887 = vmatpush1.msra.mxu0 0.0
    %6888 = vmatprep.subr.mxu0 0.0
    %6889 = vmatpush1.msra.mxu0 0.0
    %6890 = vmatprep.subr.mxu0 0.0
    %6891 = vmatpush1.msra.mxu0 0.0
    %6892 = vmatprep.subr.mxu0 0.0
    %6893 = vmatpush1.msra.mxu0 0.0
    %6894 = vmatprep.mubr.f32.mxu0 0.0
    %v6895 = vand.u32 %v3387, 4294901760
    %6896 = vmatmul.mubr.f32.gmra.mrb[0].mxu0 %v6895
    %v6897 = vpop.f32.mrb[0].mxu0
    %v6898 = vadd.f32 %v6730, %v6897
    %v6899 = vpop.f32.mrb[0].mxu0
    %v6900 = vadd.f32 %v6732, %v6899
    %6901 = vdwg.mxu0
    %v6902 = vand.u32 %v3395, 4294901760
    %6903 = vmatprep.subr.mxu0 %v6902
    %v6904 = vand.u32 %v3394, 4294901760
    %6905 = vmatpush1.msra.mxu0 %v6904
    %v6906 = vand.u32 %v3407, 4294901760
    %6907 = vmatprep.subr.mxu0 %v6906
    %v6908 = vand.u32 %v3406, 4294901760
    %6909 = vmatpush1.msra.mxu0 %v6908
    %v6910 = vand.u32 %v3419, 4294901760
    %6911 = vmatprep.subr.mxu0 %v6910
    %v6912 = vand.u32 %v3418, 4294901760
    %6913 = vmatpush1.msra.mxu0 %v6912
    %v6914 = vand.u32 %v3431, 4294901760
    %6915 = vmatprep.subr.mxu0 %v6914
    %v6916 = vand.u32 %v3430, 4294901760
    %6917 = vmatpush1.msra.mxu0 %v6916
    %v6918 = vand.u32 %v3443, 4294901760
    %6919 = vmatprep.subr.mxu0 %v6918
    %v6920 = vand.u32 %v3442, 4294901760
    %6921 = vmatpush1.msra.mxu0 %v6920
    %v6922 = vand.u32 %v3455, 4294901760
    %6923 = vmatprep.subr.mxu0 %v6922
    %v6924 = vand.u32 %v3454, 4294901760
    %6925 = vmatpush1.msra.mxu0 %v6924
    %v6926 = vand.u32 %v3467, 4294901760
    %6927 = vmatprep.subr.mxu0 %v6926
    %v6928 = vand.u32 %v3466, 4294901760
    %6929 = vmatpush1.msra.mxu0 %v6928
    %v6930 = vand.u32 %v3479, 4294901760
    %6931 = vmatprep.subr.mxu0 %v6930
    %v6932 = vand.u32 %v3478, 4294901760
    %6933 = vmatpush1.msra.mxu0 %v6932
    %v6934 = vand.u32 %v3491, 4294901760
    %6935 = vmatprep.subr.mxu0 %v6934
    %v6936 = vand.u32 %v3490, 4294901760
    %6937 = vmatpush1.msra.mxu0 %v6936
    %v6938 = vand.u32 %v3503, 4294901760
    %6939 = vmatprep.subr.mxu0 %v6938
    %v6940 = vand.u32 %v3502, 4294901760
    %6941 = vmatpush1.msra.mxu0 %v6940
    %v6942 = vand.u32 %v3515, 4294901760
    %6943 = vmatprep.subr.mxu0 %v6942
    %v6944 = vand.u32 %v3514, 4294901760
    %6945 = vmatpush1.msra.mxu0 %v6944
    %v6946 = vand.u32 %v3527, 4294901760
    %6947 = vmatprep.subr.mxu0 %v6946
    %v6948 = vand.u32 %v3526, 4294901760
    %6949 = vmatpush1.msra.mxu0 %v6948
    %v6950 = vand.u32 %v3539, 4294901760
    %6951 = vmatprep.subr.mxu0 %v6950
    %v6952 = vand.u32 %v3538, 4294901760
    %6953 = vmatpush1.msra.mxu0 %v6952
    %v6954 = vand.u32 %v3551, 4294901760
    %6955 = vmatprep.subr.mxu0 %v6954
    %v6956 = vand.u32 %v3550, 4294901760
    %6957 = vmatpush1.msra.mxu0 %v6956
    %v6958 = vand.u32 %v3563, 4294901760
    %6959 = vmatprep.subr.mxu0 %v6958
    %v6960 = vand.u32 %v3562, 4294901760
    %6961 = vmatpush1.msra.mxu0 %v6960
    %v6962 = vand.u32 %v3575, 4294901760
    %6963 = vmatprep.subr.mxu0 %v6962
    %v6964 = vand.u32 %v3574, 4294901760
    %6965 = vmatpush1.msra.mxu0 %v6964
    %6966 = vmatprep.subr.mxu0 0.0
    %6967 = vmatpush1.msra.mxu0 0.0
    %6968 = vmatprep.subr.mxu0 0.0
    %6969 = vmatpush1.msra.mxu0 0.0
    %6970 = vmatprep.subr.mxu0 0.0
    %6971 = vmatpush1.msra.mxu0 0.0
    %6972 = vmatprep.subr.mxu0 0.0
    %6973 = vmatpush1.msra.mxu0 0.0
    %6974 = vmatprep.subr.mxu0 0.0
    %6975 = vmatpush1.msra.mxu0 0.0
    %6976 = vmatprep.subr.mxu0 0.0
    %6977 = vmatpush1.msra.mxu0 0.0
    %6978 = vmatprep.subr.mxu0 0.0
    %6979 = vmatpush1.msra.mxu0 0.0
    %6980 = vmatprep.subr.mxu0 0.0
    %6981 = vmatpush1.msra.mxu0 0.0
    %6982 = vmatprep.subr.mxu0 0.0
    %6983 = vmatpush1.msra.mxu0 0.0
    %6984 = vmatprep.subr.mxu0 0.0
    %6985 = vmatpush1.msra.mxu0 0.0
    %6986 = vmatprep.subr.mxu0 0.0
    %6987 = vmatpush1.msra.mxu0 0.0
    %6988 = vmatprep.subr.mxu0 0.0
    %6989 = vmatpush1.msra.mxu0 0.0
    %6990 = vmatprep.subr.mxu0 0.0
    %6991 = vmatpush1.msra.mxu0 0.0
    %6992 = vmatprep.subr.mxu0 0.0
    %6993 = vmatpush1.msra.mxu0 0.0
    %6994 = vmatprep.subr.mxu0 0.0
    %6995 = vmatpush1.msra.mxu0 0.0
    %6996 = vmatprep.subr.mxu0 0.0
    %6997 = vmatpush1.msra.mxu0 0.0
    %6998 = vmatprep.mubr.f32.mxu0 0.0
    %v6999 = vand.u32 %v3387, 4294901760
    %7000 = vmatmul.mubr.f32.gmra.mrb[0].mxu0 %v6999
    %v7001 = vpop.f32.mrb[0].mxu0
    %v7002 = vadd.f32 %v6898, %v7001
    %v7003 = vpop.f32.mrb[0].mxu0
    %v7004 = vadd.f32 %v6900, %v7003
    %7005 = vdwg.mxu0
    %v7006 = vand.u32 %v3397, 4294901760
    %7007 = vmatprep.subr.mxu0 %v7006
    %v7008 = vand.u32 %v3396, 4294901760
    %7009 = vmatpush1.msra.mxu0 %v7008
    %v7010 = vand.u32 %v3409, 4294901760
    %7011 = vmatprep.subr.mxu0 %v7010
    %v7012 = vand.u32 %v3408, 4294901760
    %7013 = vmatpush1.msra.mxu0 %v7012
    %v7014 = vand.u32 %v3421, 4294901760
    %7015 = vmatprep.subr.mxu0 %v7014
    %v7016 = vand.u32 %v3420, 4294901760
    %7017 = vmatpush1.msra.mxu0 %v7016
    %v7018 = vand.u32 %v3433, 4294901760
    %7019 = vmatprep.subr.mxu0 %v7018
    %v7020 = vand.u32 %v3432, 4294901760
    %7021 = vmatpush1.msra.mxu0 %v7020
    %v7022 = vand.u32 %v3445, 4294901760
    %7023 = vmatprep.subr.mxu0 %v7022
    %v7024 = vand.u32 %v3444, 4294901760
    %7025 = vmatpush1.msra.mxu0 %v7024
    %v7026 = vand.u32 %v3457, 4294901760
    %7027 = vmatprep.subr.mxu0 %v7026
    %v7028 = vand.u32 %v3456, 4294901760
    %7029 = vmatpush1.msra.mxu0 %v7028
    %v7030 = vand.u32 %v3469, 4294901760
    %7031 = vmatprep.subr.mxu0 %v7030
    %v7032 = vand.u32 %v3468, 4294901760
    %7033 = vmatpush1.msra.mxu0 %v7032
    %v7034 = vand.u32 %v3481, 4294901760
    %7035 = vmatprep.subr.mxu0 %v7034
    %v7036 = vand.u32 %v3480, 4294901760
    %7037 = vmatpush1.msra.mxu0 %v7036
    %v7038 = vand.u32 %v3493, 4294901760
    %7039 = vmatprep.subr.mxu0 %v7038
    %v7040 = vand.u32 %v3492, 4294901760
    %7041 = vmatpush1.msra.mxu0 %v7040
    %v7042 = vand.u32 %v3505, 4294901760
    %7043 = vmatprep.subr.mxu0 %v7042
    %v7044 = vand.u32 %v3504, 4294901760
    %7045 = vmatpush1.msra.mxu0 %v7044
    %v7046 = vand.u32 %v3517, 4294901760
    %7047 = vmatprep.subr.mxu0 %v7046
    %v7048 = vand.u32 %v3516, 4294901760
    %7049 = vmatpush1.msra.mxu0 %v7048
    %v7050 = vand.u32 %v3529, 4294901760
    %7051 = vmatprep.subr.mxu0 %v7050
    %v7052 = vand.u32 %v3528, 4294901760
    %7053 = vmatpush1.msra.mxu0 %v7052
    %v7054 = vand.u32 %v3541, 4294901760
    %7055 = vmatprep.subr.mxu0 %v7054
    %v7056 = vand.u32 %v3540, 4294901760
    %7057 = vmatpush1.msra.mxu0 %v7056
    %v7058 = vand.u32 %v3553, 4294901760
    %7059 = vmatprep.subr.mxu0 %v7058
    %v7060 = vand.u32 %v3552, 4294901760
    %7061 = vmatpush1.msra.mxu0 %v7060
    %v7062 = vand.u32 %v3565, 4294901760
    %7063 = vmatprep.subr.mxu0 %v7062
    %v7064 = vand.u32 %v3564, 4294901760
    %7065 = vmatpush1.msra.mxu0 %v7064
    %v7066 = vand.u32 %v3577, 4294901760
    %7067 = vmatprep.subr.mxu0 %v7066
    %v7068 = vand.u32 %v3576, 4294901760
    %7069 = vmatpush1.msra.mxu0 %v7068
    %7070 = vmatprep.subr.mxu0 0.0
    %7071 = vmatpush1.msra.mxu0 0.0
    %7072 = vmatprep.subr.mxu0 0.0
    %7073 = vmatpush1.msra.mxu0 0.0
    %7074 = vmatprep.subr.mxu0 0.0
    %7075 = vmatpush1.msra.mxu0 0.0
    %7076 = vmatprep.subr.mxu0 0.0
    %7077 = vmatpush1.msra.mxu0 0.0
    %7078 = vmatprep.subr.mxu0 0.0
    %7079 = vmatpush1.msra.mxu0 0.0
    %7080 = vmatprep.subr.mxu0 0.0
    %7081 = vmatpush1.msra.mxu0 0.0
    %7082 = vmatprep.subr.mxu0 0.0
    %7083 = vmatpush1.msra.mxu0 0.0
    %7084 = vmatprep.subr.mxu0 0.0
    %7085 = vmatpush1.msra.mxu0 0.0
    %7086 = vmatprep.subr.mxu0 0.0
    %7087 = vmatpush1.msra.mxu0 0.0
    %7088 = vmatprep.subr.mxu0 0.0
    %7089 = vmatpush1.msra.mxu0 0.0
    %7090 = vmatprep.subr.mxu0 0.0
    %7091 = vmatpush1.msra.mxu0 0.0
    %7092 = vmatprep.subr.mxu0 0.0
    %7093 = vmatpush1.msra.mxu0 0.0
    %7094 = vmatprep.subr.mxu0 0.0
    %7095 = vmatpush1.msra.mxu0 0.0
    %7096 = vmatprep.subr.mxu0 0.0
    %7097 = vmatpush1.msra.mxu0 0.0
    %7098 = vmatprep.subr.mxu0 0.0
    %7099 = vmatpush1.msra.mxu0 0.0
    %7100 = vmatprep.subr.mxu0 0.0
    %7101 = vmatpush1.msra.mxu0 0.0
    %7102 = vmatprep.mubr.f32.mxu0 0.0
    %v7103 = vand.u32 %v3387, 4294901760
    %v7104 = vsub.f32 %v3387, %v7103
    %v7105 = vand.u32 %v7104, 4294901760
    %v7106 = vsub.f32 %v7104, %v7105
    %v7107 = vand.u32 %v7106, 4294901760
    %7108 = vmatmul.mubr.f32.gmra.mrb[0].mxu0 %v7107
    %v7109 = vpop.f32.mrb[0].mxu0
    %v7110 = vadd.f32 %v3584, %v7109
    %v7111 = vpop.f32.mrb[0].mxu0
    %v7112 = vadd.f32 %v3584, %v7111
    %7113 = vdwg.mxu0
    %v7114 = vand.u32 %v3397, 4294901760
    %v7115 = vsub.f32 %v3397, %v7114
    %v7116 = vand.u32 %v7115, 4294901760
    %v7117 = vsub.f32 %v7115, %v7116
    %v7118 = vand.u32 %v7117, 4294901760
    %7119 = vmatprep.subr.mxu0 %v7118
    %v7120 = vand.u32 %v3396, 4294901760
    %v7121 = vsub.f32 %v3396, %v7120
    %v7122 = vand.u32 %v7121, 4294901760
    %v7123 = vsub.f32 %v7121, %v7122
    %v7124 = vand.u32 %v7123, 4294901760
    %7125 = vmatpush1.msra.mxu0 %v7124
    %v7126 = vand.u32 %v3409, 4294901760
    %v7127 = vsub.f32 %v3409, %v7126
    %v7128 = vand.u32 %v7127, 4294901760
    %v7129 = vsub.f32 %v7127, %v7128
    %v7130 = vand.u32 %v7129, 4294901760
    %7131 = vmatprep.subr.mxu0 %v7130
    %v7132 = vand.u32 %v3408, 4294901760
    %v7133 = vsub.f32 %v3408, %v7132
    %v7134 = vand.u32 %v7133, 4294901760
    %v7135 = vsub.f32 %v7133, %v7134
    %v7136 = vand.u32 %v7135, 4294901760
    %7137 = vmatpush1.msra.mxu0 %v7136
    %v7138 = vand.u32 %v3421, 4294901760
    %v7139 = vsub.f32 %v3421, %v7138
    %v7140 = vand.u32 %v7139, 4294901760
    %v7141 = vsub.f32 %v7139, %v7140
    %v7142 = vand.u32 %v7141, 4294901760
    %7143 = vmatprep.subr.mxu0 %v7142
    %v7144 = vand.u32 %v3420, 4294901760
    %v7145 = vsub.f32 %v3420, %v7144
    %v7146 = vand.u32 %v7145, 4294901760
    %v7147 = vsub.f32 %v7145, %v7146
    %v7148 = vand.u32 %v7147, 4294901760
    %7149 = vmatpush1.msra.mxu0 %v7148
    %v7150 = vand.u32 %v3433, 4294901760
    %v7151 = vsub.f32 %v3433, %v7150
    %v7152 = vand.u32 %v7151, 4294901760
    %v7153 = vsub.f32 %v7151, %v7152
    %v7154 = vand.u32 %v7153, 4294901760
    %7155 = vmatprep.subr.mxu0 %v7154
    %v7156 = vand.u32 %v3432, 4294901760
    %v7157 = vsub.f32 %v3432, %v7156
    %v7158 = vand.u32 %v7157, 4294901760
    %v7159 = vsub.f32 %v7157, %v7158
    %v7160 = vand.u32 %v7159, 4294901760
    %7161 = vmatpush1.msra.mxu0 %v7160
    %v7162 = vand.u32 %v3445, 4294901760
    %v7163 = vsub.f32 %v3445, %v7162
    %v7164 = vand.u32 %v7163, 4294901760
    %v7165 = vsub.f32 %v7163, %v7164
    %v7166 = vand.u32 %v7165, 4294901760
    %7167 = vmatprep.subr.mxu0 %v7166
    %v7168 = vand.u32 %v3444, 4294901760
    %v7169 = vsub.f32 %v3444, %v7168
    %v7170 = vand.u32 %v7169, 4294901760
    %v7171 = vsub.f32 %v7169, %v7170
    %v7172 = vand.u32 %v7171, 4294901760
    %7173 = vmatpush1.msra.mxu0 %v7172
    %v7174 = vand.u32 %v3457, 4294901760
    %v7175 = vsub.f32 %v3457, %v7174
    %v7176 = vand.u32 %v7175, 4294901760
    %v7177 = vsub.f32 %v7175, %v7176
    %v7178 = vand.u32 %v7177, 4294901760
    %7179 = vmatprep.subr.mxu0 %v7178
    %v7180 = vand.u32 %v3456, 4294901760
    %v7181 = vsub.f32 %v3456, %v7180
    %v7182 = vand.u32 %v7181, 4294901760
    %v7183 = vsub.f32 %v7181, %v7182
    %v7184 = vand.u32 %v7183, 4294901760
    %7185 = vmatpush1.msra.mxu0 %v7184
    %v7186 = vand.u32 %v3469, 4294901760
    %v7187 = vsub.f32 %v3469, %v7186
    %v7188 = vand.u32 %v7187, 4294901760
    %v7189 = vsub.f32 %v7187, %v7188
    %v7190 = vand.u32 %v7189, 4294901760
    %7191 = vmatprep.subr.mxu0 %v7190
    %v7192 = vand.u32 %v3468, 4294901760
    %v7193 = vsub.f32 %v3468, %v7192
    %v7194 = vand.u32 %v7193, 4294901760
    %v7195 = vsub.f32 %v7193, %v7194
    %v7196 = vand.u32 %v7195, 4294901760
    %7197 = vmatpush1.msra.mxu0 %v7196
    %v7198 = vand.u32 %v3481, 4294901760
    %v7199 = vsub.f32 %v3481, %v7198
    %v7200 = vand.u32 %v7199, 4294901760
    %v7201 = vsub.f32 %v7199, %v7200
    %v7202 = vand.u32 %v7201, 4294901760
    %7203 = vmatprep.subr.mxu0 %v7202
    %v7204 = vand.u32 %v3480, 4294901760
    %v7205 = vsub.f32 %v3480, %v7204
    %v7206 = vand.u32 %v7205, 4294901760
    %v7207 = vsub.f32 %v7205, %v7206
    %v7208 = vand.u32 %v7207, 4294901760
    %7209 = vmatpush1.msra.mxu0 %v7208
    %v7210 = vand.u32 %v3493, 4294901760
    %v7211 = vsub.f32 %v3493, %v7210
    %v7212 = vand.u32 %v7211, 4294901760
    %v7213 = vsub.f32 %v7211, %v7212
    %v7214 = vand.u32 %v7213, 4294901760
    %7215 = vmatprep.subr.mxu0 %v7214
    %v7216 = vand.u32 %v3492, 4294901760
    %v7217 = vsub.f32 %v3492, %v7216
    %v7218 = vand.u32 %v7217, 4294901760
    %v7219 = vsub.f32 %v7217, %v7218
    %v7220 = vand.u32 %v7219, 4294901760
    %7221 = vmatpush1.msra.mxu0 %v7220
    %v7222 = vand.u32 %v3505, 4294901760
    %v7223 = vsub.f32 %v3505, %v7222
    %v7224 = vand.u32 %v7223, 4294901760
    %v7225 = vsub.f32 %v7223, %v7224
    %v7226 = vand.u32 %v7225, 4294901760
    %7227 = vmatprep.subr.mxu0 %v7226
    %v7228 = vand.u32 %v3504, 4294901760
    %v7229 = vsub.f32 %v3504, %v7228
    %v7230 = vand.u32 %v7229, 4294901760
    %v7231 = vsub.f32 %v7229, %v7230
    %v7232 = vand.u32 %v7231, 4294901760
    %7233 = vmatpush1.msra.mxu0 %v7232
    %v7234 = vand.u32 %v3517, 4294901760
    %v7235 = vsub.f32 %v3517, %v7234
    %v7236 = vand.u32 %v7235, 4294901760
    %v7237 = vsub.f32 %v7235, %v7236
    %v7238 = vand.u32 %v7237, 4294901760
    %7239 = vmatprep.subr.mxu0 %v7238
    %v7240 = vand.u32 %v3516, 4294901760
    %v7241 = vsub.f32 %v3516, %v7240
    %v7242 = vand.u32 %v7241, 4294901760
    %v7243 = vsub.f32 %v7241, %v7242
    %v7244 = vand.u32 %v7243, 4294901760
    %7245 = vmatpush1.msra.mxu0 %v7244
    %v7246 = vand.u32 %v3529, 4294901760
    %v7247 = vsub.f32 %v3529, %v7246
    %v7248 = vand.u32 %v7247, 4294901760
    %v7249 = vsub.f32 %v7247, %v7248
    %v7250 = vand.u32 %v7249, 4294901760
    %7251 = vmatprep.subr.mxu0 %v7250
    %v7252 = vand.u32 %v3528, 4294901760
    %v7253 = vsub.f32 %v3528, %v7252
    %v7254 = vand.u32 %v7253, 4294901760
    %v7255 = vsub.f32 %v7253, %v7254
    %v7256 = vand.u32 %v7255, 4294901760
    %7257 = vmatpush1.msra.mxu0 %v7256
    %v7258 = vand.u32 %v3541, 4294901760
    %v7259 = vsub.f32 %v3541, %v7258
    %v7260 = vand.u32 %v7259, 4294901760
    %v7261 = vsub.f32 %v7259, %v7260
    %v7262 = vand.u32 %v7261, 4294901760
    %7263 = vmatprep.subr.mxu0 %v7262
    %v7264 = vand.u32 %v3540, 4294901760
    %v7265 = vsub.f32 %v3540, %v7264
    %v7266 = vand.u32 %v7265, 4294901760
    %v7267 = vsub.f32 %v7265, %v7266
    %v7268 = vand.u32 %v7267, 4294901760
    %7269 = vmatpush1.msra.mxu0 %v7268
    %v7270 = vand.u32 %v3553, 4294901760
    %v7271 = vsub.f32 %v3553, %v7270
    %v7272 = vand.u32 %v7271, 4294901760
    %v7273 = vsub.f32 %v7271, %v7272
    %v7274 = vand.u32 %v7273, 4294901760
    %7275 = vmatprep.subr.mxu0 %v7274
    %v7276 = vand.u32 %v3552, 4294901760
    %v7277 = vsub.f32 %v3552, %v7276
    %v7278 = vand.u32 %v7277, 4294901760
    %v7279 = vsub.f32 %v7277, %v7278
    %v7280 = vand.u32 %v7279, 4294901760
    %7281 = vmatpush1.msra.mxu0 %v7280
    %v7282 = vand.u32 %v3565, 4294901760
    %v7283 = vsub.f32 %v3565, %v7282
    %v7284 = vand.u32 %v7283, 4294901760
    %v7285 = vsub.f32 %v7283, %v7284
    %v7286 = vand.u32 %v7285, 4294901760
    %7287 = vmatprep.subr.mxu0 %v7286
    %v7288 = vand.u32 %v3564, 4294901760
    %v7289 = vsub.f32 %v3564, %v7288
    %v7290 = vand.u32 %v7289, 4294901760
    %v7291 = vsub.f32 %v7289, %v7290
    %v7292 = vand.u32 %v7291, 4294901760
    %7293 = vmatpush1.msra.mxu0 %v7292
    %v7294 = vand.u32 %v3577, 4294901760
    %v7295 = vsub.f32 %v3577, %v7294
    %v7296 = vand.u32 %v7295, 4294901760
    %v7297 = vsub.f32 %v7295, %v7296
    %v7298 = vand.u32 %v7297, 4294901760
    %7299 = vmatprep.subr.mxu0 %v7298
    %v7300 = vand.u32 %v3576, 4294901760
    %v7301 = vsub.f32 %v3576, %v7300
    %v7302 = vand.u32 %v7301, 4294901760
    %v7303 = vsub.f32 %v7301, %v7302
    %v7304 = vand.u32 %v7303, 4294901760
    %7305 = vmatpush1.msra.mxu0 %v7304
    %7306 = vmatprep.subr.mxu0 0.0
    %7307 = vmatpush1.msra.mxu0 0.0
    %7308 = vmatprep.subr.mxu0 0.0
    %7309 = vmatpush1.msra.mxu0 0.0
    %7310 = vmatprep.subr.mxu0 0.0
    %7311 = vmatpush1.msra.mxu0 0.0
    %7312 = vmatprep.subr.mxu0 0.0
    %7313 = vmatpush1.msra.mxu0 0.0
    %7314 = vmatprep.subr.mxu0 0.0
    %7315 = vmatpush1.msra.mxu0 0.0
    %7316 = vmatprep.subr.mxu0 0.0
    %7317 = vmatpush1.msra.mxu0 0.0
    %7318 = vmatprep.subr.mxu0 0.0
    %7319 = vmatpush1.msra.mxu0 0.0
    %7320 = vmatprep.subr.mxu0 0.0
    %7321 = vmatpush1.msra.mxu0 0.0
    %7322 = vmatprep.subr.mxu0 0.0
    %7323 = vmatpush1.msra.mxu0 0.0
    %7324 = vmatprep.subr.mxu0 0.0
    %7325 = vmatpush1.msra.mxu0 0.0
    %7326 = vmatprep.subr.mxu0 0.0
    %7327 = vmatpush1.msra.mxu0 0.0
    %7328 = vmatprep.subr.mxu0 0.0
    %7329 = vmatpush1.msra.mxu0 0.0
    %7330 = vmatprep.subr.mxu0 0.0
    %7331 = vmatpush1.msra.mxu0 0.0
    %7332 = vmatprep.subr.mxu0 0.0
    %7333 = vmatpush1.msra.mxu0 0.0
    %7334 = vmatprep.subr.mxu0 0.0
    %7335 = vmatpush1.msra.mxu0 0.0
    %7336 = vmatprep.subr.mxu0 0.0
    %7337 = vmatpush1.msra.mxu0 0.0
    %7338 = vmatprep.mubr.f32.mxu0 0.0
    %v7339 = vand.u32 %v3387, 4294901760
    %7340 = vmatmul.mubr.f32.gmra.mrb[0].mxu0 %v7339
    %v7341 = vpop.f32.mrb[0].mxu0
    %v7342 = vadd.f32 %v7110, %v7341
    %v7343 = vpop.f32.mrb[0].mxu0
    %v7344 = vadd.f32 %v7112, %v7343
    %7345 = vdwg.mxu0
    %v7346 = vand.u32 %v3397, 4294901760
    %v7347 = vsub.f32 %v3397, %v7346
    %7348 = vmatprep.subr.mxu0 %v7347
    %v7349 = vand.u32 %v3396, 4294901760
    %v7350 = vsub.f32 %v3396, %v7349
    %7351 = vmatpush1.msra.mxu0 %v7350
    %v7352 = vand.u32 %v3409, 4294901760
    %v7353 = vsub.f32 %v3409, %v7352
    %7354 = vmatprep.subr.mxu0 %v7353
    %v7355 = vand.u32 %v3408, 4294901760
    %v7356 = vsub.f32 %v3408, %v7355
    %7357 = vmatpush1.msra.mxu0 %v7356
    %v7358 = vand.u32 %v3421, 4294901760
    %v7359 = vsub.f32 %v3421, %v7358
    %7360 = vmatprep.subr.mxu0 %v7359
    %v7361 = vand.u32 %v3420, 4294901760
    %v7362 = vsub.f32 %v3420, %v7361
    %7363 = vmatpush1.msra.mxu0 %v7362
    %v7364 = vand.u32 %v3433, 4294901760
    %v7365 = vsub.f32 %v3433, %v7364
    %7366 = vmatprep.subr.mxu0 %v7365
    %v7367 = vand.u32 %v3432, 4294901760
    %v7368 = vsub.f32 %v3432, %v7367
    %7369 = vmatpush1.msra.mxu0 %v7368
    %v7370 = vand.u32 %v3445, 4294901760
    %v7371 = vsub.f32 %v3445, %v7370
    %7372 = vmatprep.subr.mxu0 %v7371
    %v7373 = vand.u32 %v3444, 4294901760
    %v7374 = vsub.f32 %v3444, %v7373
    %7375 = vmatpush1.msra.mxu0 %v7374
    %v7376 = vand.u32 %v3457, 4294901760
    %v7377 = vsub.f32 %v3457, %v7376
    %7378 = vmatprep.subr.mxu0 %v7377
    %v7379 = vand.u32 %v3456, 4294901760
    %v7380 = vsub.f32 %v3456, %v7379
    %7381 = vmatpush1.msra.mxu0 %v7380
    %v7382 = vand.u32 %v3469, 4294901760
    %v7383 = vsub.f32 %v3469, %v7382
    %7384 = vmatprep.subr.mxu0 %v7383
    %v7385 = vand.u32 %v3468, 4294901760
    %v7386 = vsub.f32 %v3468, %v7385
    %7387 = vmatpush1.msra.mxu0 %v7386
    %v7388 = vand.u32 %v3481, 4294901760
    %v7389 = vsub.f32 %v3481, %v7388
    %7390 = vmatprep.subr.mxu0 %v7389
    %v7391 = vand.u32 %v3480, 4294901760
    %v7392 = vsub.f32 %v3480, %v7391
    %7393 = vmatpush1.msra.mxu0 %v7392
    %v7394 = vand.u32 %v3493, 4294901760
    %v7395 = vsub.f32 %v3493, %v7394
    %7396 = vmatprep.subr.mxu0 %v7395
    %v7397 = vand.u32 %v3492, 4294901760
    %v7398 = vsub.f32 %v3492, %v7397
    %7399 = vmatpush1.msra.mxu0 %v7398
    %v7400 = vand.u32 %v3505, 4294901760
    %v7401 = vsub.f32 %v3505, %v7400
    %7402 = vmatprep.subr.mxu0 %v7401
    %v7403 = vand.u32 %v3504, 4294901760
    %v7404 = vsub.f32 %v3504, %v7403
    %7405 = vmatpush1.msra.mxu0 %v7404
    %v7406 = vand.u32 %v3517, 4294901760
    %v7407 = vsub.f32 %v3517, %v7406
    %7408 = vmatprep.subr.mxu0 %v7407
    %v7409 = vand.u32 %v3516, 4294901760
    %v7410 = vsub.f32 %v3516, %v7409
    %7411 = vmatpush1.msra.mxu0 %v7410
    %v7412 = vand.u32 %v3529, 4294901760
    %v7413 = vsub.f32 %v3529, %v7412
    %7414 = vmatprep.subr.mxu0 %v7413
    %v7415 = vand.u32 %v3528, 4294901760
    %v7416 = vsub.f32 %v3528, %v7415
    %7417 = vmatpush1.msra.mxu0 %v7416
    %v7418 = vand.u32 %v3541, 4294901760
    %v7419 = vsub.f32 %v3541, %v7418
    %7420 = vmatprep.subr.mxu0 %v7419
    %v7421 = vand.u32 %v3540, 4294901760
    %v7422 = vsub.f32 %v3540, %v7421
    %7423 = vmatpush1.msra.mxu0 %v7422
    %v7424 = vand.u32 %v3553, 4294901760
    %v7425 = vsub.f32 %v3553, %v7424
    %7426 = vmatprep.subr.mxu0 %v7425
    %v7427 = vand.u32 %v3552, 4294901760
    %v7428 = vsub.f32 %v3552, %v7427
    %7429 = vmatpush1.msra.mxu0 %v7428
    %v7430 = vand.u32 %v3565, 4294901760
    %v7431 = vsub.f32 %v3565, %v7430
    %7432 = vmatprep.subr.mxu0 %v7431
    %v7433 = vand.u32 %v3564, 4294901760
    %v7434 = vsub.f32 %v3564, %v7433
    %7435 = vmatpush1.msra.mxu0 %v7434
    %v7436 = vand.u32 %v3577, 4294901760
    %v7437 = vsub.f32 %v3577, %v7436
    %7438 = vmatprep.subr.mxu0 %v7437
    %v7439 = vand.u32 %v3576, 4294901760
    %v7440 = vsub.f32 %v3576, %v7439
    %7441 = vmatpush1.msra.mxu0 %v7440
    %7442 = vmatprep.subr.mxu0 0.0
    %7443 = vmatpush1.msra.mxu0 0.0
    %7444 = vmatprep.subr.mxu0 0.0
    %7445 = vmatpush1.msra.mxu0 0.0
    %7446 = vmatprep.subr.mxu0 0.0
    %7447 = vmatpush1.msra.mxu0 0.0
    %7448 = vmatprep.subr.mxu0 0.0
    %7449 = vmatpush1.msra.mxu0 0.0
    %7450 = vmatprep.subr.mxu0 0.0
    %7451 = vmatpush1.msra.mxu0 0.0
    %7452 = vmatprep.subr.mxu0 0.0
    %7453 = vmatpush1.msra.mxu0 0.0
    %7454 = vmatprep.subr.mxu0 0.0
    %7455 = vmatpush1.msra.mxu0 0.0
    %7456 = vmatprep.subr.mxu0 0.0
    %7457 = vmatpush1.msra.mxu0 0.0
    %7458 = vmatprep.subr.mxu0 0.0
    %7459 = vmatpush1.msra.mxu0 0.0
    %7460 = vmatprep.subr.mxu0 0.0
    %7461 = vmatpush1.msra.mxu0 0.0
    %7462 = vmatprep.subr.mxu0 0.0
    %7463 = vmatpush1.msra.mxu0 0.0
    %7464 = vmatprep.subr.mxu0 0.0
    %7465 = vmatpush1.msra.mxu0 0.0
    %7466 = vmatprep.subr.mxu0 0.0
    %7467 = vmatpush1.msra.mxu0 0.0
    %7468 = vmatprep.subr.mxu0 0.0
    %7469 = vmatpush1.msra.mxu0 0.0
    %7470 = vmatprep.subr.mxu0 0.0
    %7471 = vmatpush1.msra.mxu0 0.0
    %7472 = vmatprep.subr.mxu0 0.0
    %7473 = vmatpush1.msra.mxu0 0.0
    %7474 = vmatprep.mubr.f32.mxu0 0.0
    %v7475 = vand.u32 %v3387, 4294901760
    %v7476 = vsub.f32 %v3387, %v7475
    %7477 = vmatmul.mubr.f32.gmra.mrb[0].mxu0 %v7476
    %v7478 = vpop.f32.mrb[0].mxu0
    %v7479 = vadd.f32 %v7342, %v7478
    %v7480 = vpop.f32.mrb[0].mxu0
    %v7481 = vadd.f32 %v7344, %v7480
    %7482 = vdwg.mxu0
    %v7483 = vand.u32 %v3397, 4294901760
    %7484 = vmatprep.subr.mxu0 %v7483
    %v7485 = vand.u32 %v3396, 4294901760
    %7486 = vmatpush1.msra.mxu0 %v7485
    %v7487 = vand.u32 %v3409, 4294901760
    %7488 = vmatprep.subr.mxu0 %v7487
    %v7489 = vand.u32 %v3408, 4294901760
    %7490 = vmatpush1.msra.mxu0 %v7489
    %v7491 = vand.u32 %v3421, 4294901760
    %7492 = vmatprep.subr.mxu0 %v7491
    %v7493 = vand.u32 %v3420, 4294901760
    %7494 = vmatpush1.msra.mxu0 %v7493
    %v7495 = vand.u32 %v3433, 4294901760
    %7496 = vmatprep.subr.mxu0 %v7495
    %v7497 = vand.u32 %v3432, 4294901760
    %7498 = vmatpush1.msra.mxu0 %v7497
    %v7499 = vand.u32 %v3445, 4294901760
    %7500 = vmatprep.subr.mxu0 %v7499
    %v7501 = vand.u32 %v3444, 4294901760
    %7502 = vmatpush1.msra.mxu0 %v7501
    %v7503 = vand.u32 %v3457, 4294901760
    %7504 = vmatprep.subr.mxu0 %v7503
    %v7505 = vand.u32 %v3456, 4294901760
    %7506 = vmatpush1.msra.mxu0 %v7505
    %v7507 = vand.u32 %v3469, 4294901760
    %7508 = vmatprep.subr.mxu0 %v7507
    %v7509 = vand.u32 %v3468, 4294901760
    %7510 = vmatpush1.msra.mxu0 %v7509
    %v7511 = vand.u32 %v3481, 4294901760
    %7512 = vmatprep.subr.mxu0 %v7511
    %v7513 = vand.u32 %v3480, 4294901760
    %7514 = vmatpush1.msra.mxu0 %v7513
    %v7515 = vand.u32 %v3493, 4294901760
    %7516 = vmatprep.subr.mxu0 %v7515
    %v7517 = vand.u32 %v3492, 4294901760
    %7518 = vmatpush1.msra.mxu0 %v7517
    %v7519 = vand.u32 %v3505, 4294901760
    %7520 = vmatprep.subr.mxu0 %v7519
    %v7521 = vand.u32 %v3504, 4294901760
    %7522 = vmatpush1.msra.mxu0 %v7521
    %v7523 = vand.u32 %v3517, 4294901760
    %7524 = vmatprep.subr.mxu0 %v7523
    %v7525 = vand.u32 %v3516, 4294901760
    %7526 = vmatpush1.msra.mxu0 %v7525
    %v7527 = vand.u32 %v3529, 4294901760
    %7528 = vmatprep.subr.mxu0 %v7527
    %v7529 = vand.u32 %v3528, 4294901760
    %7530 = vmatpush1.msra.mxu0 %v7529
    %v7531 = vand.u32 %v3541, 4294901760
    %7532 = vmatprep.subr.mxu0 %v7531
    %v7533 = vand.u32 %v3540, 4294901760
    %7534 = vmatpush1.msra.mxu0 %v7533
    %v7535 = vand.u32 %v3553, 4294901760
    %7536 = vmatprep.subr.mxu0 %v7535
    %v7537 = vand.u32 %v3552, 4294901760
    %7538 = vmatpush1.msra.mxu0 %v7537
    %v7539 = vand.u32 %v3565, 4294901760
    %7540 = vmatprep.subr.mxu0 %v7539
    %v7541 = vand.u32 %v3564, 4294901760
    %7542 = vmatpush1.msra.mxu0 %v7541
    %v7543 = vand.u32 %v3577, 4294901760
    %7544 = vmatprep.subr.mxu0 %v7543
    %v7545 = vand.u32 %v3576, 4294901760
    %7546 = vmatpush1.msra.mxu0 %v7545
    %7547 = vmatprep.subr.mxu0 0.0
    %7548 = vmatpush1.msra.mxu0 0.0
    %7549 = vmatprep.subr.mxu0 0.0
    %7550 = vmatpush1.msra.mxu0 0.0
    %7551 = vmatprep.subr.mxu0 0.0
    %7552 = vmatpush1.msra.mxu0 0.0
    %7553 = vmatprep.subr.mxu0 0.0
    %7554 = vmatpush1.msra.mxu0 0.0
    %7555 = vmatprep.subr.mxu0 0.0
    %7556 = vmatpush1.msra.mxu0 0.0
    %7557 = vmatprep.subr.mxu0 0.0
    %7558 = vmatpush1.msra.mxu0 0.0
    %7559 = vmatprep.subr.mxu0 0.0
    %7560 = vmatpush1.msra.mxu0 0.0
    %7561 = vmatprep.subr.mxu0 0.0
    %7562 = vmatpush1.msra.mxu0 0.0
    %7563 = vmatprep.subr.mxu0 0.0
    %7564 = vmatpush1.msra.mxu0 0.0
    %7565 = vmatprep.subr.mxu0 0.0
    %7566 = vmatpush1.msra.mxu0 0.0
    %7567 = vmatprep.subr.mxu0 0.0
    %7568 = vmatpush1.msra.mxu0 0.0
    %7569 = vmatprep.subr.mxu0 0.0
    %7570 = vmatpush1.msra.mxu0 0.0
    %7571 = vmatprep.subr.mxu0 0.0
    %7572 = vmatpush1.msra.mxu0 0.0
    %7573 = vmatprep.subr.mxu0 0.0
    %7574 = vmatpush1.msra.mxu0 0.0
    %7575 = vmatprep.subr.mxu0 0.0
    %7576 = vmatpush1.msra.mxu0 0.0
    %7577 = vmatprep.subr.mxu0 0.0
    %7578 = vmatpush1.msra.mxu0 0.0
    %7579 = vmatprep.mubr.f32.mxu0 0.0
    %v7580 = vand.u32 %v3387, 4294901760
    %v7581 = vsub.f32 %v3387, %v7580
    %v7582 = vand.u32 %v7581, 4294901760
    %7583 = vmatmul.mubr.f32.gmra.mrb[0].mxu0 %v7582
    %v7584 = vpop.f32.mrb[0].mxu0
    %v7585 = vadd.f32 %v7479, %v7584
    %v7586 = vpop.f32.mrb[0].mxu0
    %v7587 = vadd.f32 %v7481, %v7586
    %7588 = vdwg.mxu0
    %v7589 = vand.u32 %v3397, 4294901760
    %v7590 = vsub.f32 %v3397, %v7589
    %v7591 = vand.u32 %v7590, 4294901760
    %7592 = vmatprep.subr.mxu0 %v7591
    %v7593 = vand.u32 %v3396, 4294901760
    %v7594 = vsub.f32 %v3396, %v7593
    %v7595 = vand.u32 %v7594, 4294901760
    %7596 = vmatpush1.msra.mxu0 %v7595
    %v7597 = vand.u32 %v3409, 4294901760
    %v7598 = vsub.f32 %v3409, %v7597
    %v7599 = vand.u32 %v7598, 4294901760
    %7600 = vmatprep.subr.mxu0 %v7599
    %v7601 = vand.u32 %v3408, 4294901760
    %v7602 = vsub.f32 %v3408, %v7601
    %v7603 = vand.u32 %v7602, 4294901760
    %7604 = vmatpush1.msra.mxu0 %v7603
    %v7605 = vand.u32 %v3421, 4294901760
    %v7606 = vsub.f32 %v3421, %v7605
    %v7607 = vand.u32 %v7606, 4294901760
    %7608 = vmatprep.subr.mxu0 %v7607
    %v7609 = vand.u32 %v3420, 4294901760
    %v7610 = vsub.f32 %v3420, %v7609
    %v7611 = vand.u32 %v7610, 4294901760
    %7612 = vmatpush1.msra.mxu0 %v7611
    %v7613 = vand.u32 %v3433, 4294901760
    %v7614 = vsub.f32 %v3433, %v7613
    %v7615 = vand.u32 %v7614, 4294901760
    %7616 = vmatprep.subr.mxu0 %v7615
    %v7617 = vand.u32 %v3432, 4294901760
    %v7618 = vsub.f32 %v3432, %v7617
    %v7619 = vand.u32 %v7618, 4294901760
    %7620 = vmatpush1.msra.mxu0 %v7619
    %v7621 = vand.u32 %v3445, 4294901760
    %v7622 = vsub.f32 %v3445, %v7621
    %v7623 = vand.u32 %v7622, 4294901760
    %7624 = vmatprep.subr.mxu0 %v7623
    %v7625 = vand.u32 %v3444, 4294901760
    %v7626 = vsub.f32 %v3444, %v7625
    %v7627 = vand.u32 %v7626, 4294901760
    %7628 = vmatpush1.msra.mxu0 %v7627
    %v7629 = vand.u32 %v3457, 4294901760
    %v7630 = vsub.f32 %v3457, %v7629
    %v7631 = vand.u32 %v7630, 4294901760
    %7632 = vmatprep.subr.mxu0 %v7631
    %v7633 = vand.u32 %v3456, 4294901760
    %v7634 = vsub.f32 %v3456, %v7633
    %v7635 = vand.u32 %v7634, 4294901760
    %7636 = vmatpush1.msra.mxu0 %v7635
    %v7637 = vand.u32 %v3469, 4294901760
    %v7638 = vsub.f32 %v3469, %v7637
    %v7639 = vand.u32 %v7638, 4294901760
    %7640 = vmatprep.subr.mxu0 %v7639
    %v7641 = vand.u32 %v3468, 4294901760
    %v7642 = vsub.f32 %v3468, %v7641
    %v7643 = vand.u32 %v7642, 4294901760
    %7644 = vmatpush1.msra.mxu0 %v7643
    %v7645 = vand.u32 %v3481, 4294901760
    %v7646 = vsub.f32 %v3481, %v7645
    %v7647 = vand.u32 %v7646, 4294901760
    %7648 = vmatprep.subr.mxu0 %v7647
    %v7649 = vand.u32 %v3480, 4294901760
    %v7650 = vsub.f32 %v3480, %v7649
    %v7651 = vand.u32 %v7650, 4294901760
    %7652 = vmatpush1.msra.mxu0 %v7651
    %v7653 = vand.u32 %v3493, 4294901760
    %v7654 = vsub.f32 %v3493, %v7653
    %v7655 = vand.u32 %v7654, 4294901760
    %7656 = vmatprep.subr.mxu0 %v7655
    %v7657 = vand.u32 %v3492, 4294901760
    %v7658 = vsub.f32 %v3492, %v7657
    %v7659 = vand.u32 %v7658, 4294901760
    %7660 = vmatpush1.msra.mxu0 %v7659
    %v7661 = vand.u32 %v3505, 4294901760
    %v7662 = vsub.f32 %v3505, %v7661
    %v7663 = vand.u32 %v7662, 4294901760
    %7664 = vmatprep.subr.mxu0 %v7663
    %v7665 = vand.u32 %v3504, 4294901760
    %v7666 = vsub.f32 %v3504, %v7665
    %v7667 = vand.u32 %v7666, 4294901760
    %7668 = vmatpush1.msra.mxu0 %v7667
    %v7669 = vand.u32 %v3517, 4294901760
    %v7670 = vsub.f32 %v3517, %v7669
    %v7671 = vand.u32 %v7670, 4294901760
    %7672 = vmatprep.subr.mxu0 %v7671
    %v7673 = vand.u32 %v3516, 4294901760
    %v7674 = vsub.f32 %v3516, %v7673
    %v7675 = vand.u32 %v7674, 4294901760
    %7676 = vmatpush1.msra.mxu0 %v7675
    %v7677 = vand.u32 %v3529, 4294901760
    %v7678 = vsub.f32 %v3529, %v7677
    %v7679 = vand.u32 %v7678, 4294901760
    %7680 = vmatprep.subr.mxu0 %v7679
    %v7681 = vand.u32 %v3528, 4294901760
    %v7682 = vsub.f32 %v3528, %v7681
    %v7683 = vand.u32 %v7682, 4294901760
    %7684 = vmatpush1.msra.mxu0 %v7683
    %v7685 = vand.u32 %v3541, 4294901760
    %v7686 = vsub.f32 %v3541, %v7685
    %v7687 = vand.u32 %v7686, 4294901760
    %7688 = vmatprep.subr.mxu0 %v7687
    %v7689 = vand.u32 %v3540, 4294901760
    %v7690 = vsub.f32 %v3540, %v7689
    %v7691 = vand.u32 %v7690, 4294901760
    %7692 = vmatpush1.msra.mxu0 %v7691
    %v7693 = vand.u32 %v3553, 4294901760
    %v7694 = vsub.f32 %v3553, %v7693
    %v7695 = vand.u32 %v7694, 4294901760
    %7696 = vmatprep.subr.mxu0 %v7695
    %v7697 = vand.u32 %v3552, 4294901760
    %v7698 = vsub.f32 %v3552, %v7697
    %v7699 = vand.u32 %v7698, 4294901760
    %7700 = vmatpush1.msra.mxu0 %v7699
    %v7701 = vand.u32 %v3565, 4294901760
    %v7702 = vsub.f32 %v3565, %v7701
    %v7703 = vand.u32 %v7702, 4294901760
    %7704 = vmatprep.subr.mxu0 %v7703
    %v7705 = vand.u32 %v3564, 4294901760
    %v7706 = vsub.f32 %v3564, %v7705
    %v7707 = vand.u32 %v7706, 4294901760
    %7708 = vmatpush1.msra.mxu0 %v7707
    %v7709 = vand.u32 %v3577, 4294901760
    %v7710 = vsub.f32 %v3577, %v7709
    %v7711 = vand.u32 %v7710, 4294901760
    %7712 = vmatprep.subr.mxu0 %v7711
    %v7713 = vand.u32 %v3576, 4294901760
    %v7714 = vsub.f32 %v3576, %v7713
    %v7715 = vand.u32 %v7714, 4294901760
    %7716 = vmatpush1.msra.mxu0 %v7715
    %7717 = vmatprep.subr.mxu0 0.0
    %7718 = vmatpush1.msra.mxu0 0.0
    %7719 = vmatprep.subr.mxu0 0.0
    %7720 = vmatpush1.msra.mxu0 0.0
    %7721 = vmatprep.subr.mxu0 0.0
    %7722 = vmatpush1.msra.mxu0 0.0
    %7723 = vmatprep.subr.mxu0 0.0
    %7724 = vmatpush1.msra.mxu0 0.0
    %7725 = vmatprep.subr.mxu0 0.0
    %7726 = vmatpush1.msra.mxu0 0.0
    %7727 = vmatprep.subr.mxu0 0.0
    %7728 = vmatpush1.msra.mxu0 0.0
    %7729 = vmatprep.subr.mxu0 0.0
    %7730 = vmatpush1.msra.mxu0 0.0
    %7731 = vmatprep.subr.mxu0 0.0
    %7732 = vmatpush1.msra.mxu0 0.0
    %7733 = vmatprep.subr.mxu0 0.0
    %7734 = vmatpush1.msra.mxu0 0.0
    %7735 = vmatprep.subr.mxu0 0.0
    %7736 = vmatpush1.msra.mxu0 0.0
    %7737 = vmatprep.subr.mxu0 0.0
    %7738 = vmatpush1.msra.mxu0 0.0
    %7739 = vmatprep.subr.mxu0 0.0
    %7740 = vmatpush1.msra.mxu0 0.0
    %7741 = vmatprep.subr.mxu0 0.0
    %7742 = vmatpush1.msra.mxu0 0.0
    %7743 = vmatprep.subr.mxu0 0.0
    %7744 = vmatpush1.msra.mxu0 0.0
    %7745 = vmatprep.subr.mxu0 0.0
    %7746 = vmatpush1.msra.mxu0 0.0
    %7747 = vmatprep.subr.mxu0 0.0
    %7748 = vmatpush1.msra.mxu0 0.0
    %7749 = vmatprep.mubr.f32.mxu0 0.0
    %v7750 = vand.u32 %v3387, 4294901760
    %7751 = vmatmul.mubr.f32.gmra.mrb[0].mxu0 %v7750
    %v7752 = vpop.f32.mrb[0].mxu0
    %v7753 = vadd.f32 %v7585, %v7752
    %v7754 = vpop.f32.mrb[0].mxu0
    %v7755 = vadd.f32 %v7587, %v7754
    %7756 = vdwg.mxu0
    %v7757 = vand.u32 %v3397, 4294901760
    %7758 = vmatprep.subr.mxu0 %v7757
    %v7759 = vand.u32 %v3396, 4294901760
    %7760 = vmatpush1.msra.mxu0 %v7759
    %v7761 = vand.u32 %v3409, 4294901760
    %7762 = vmatprep.subr.mxu0 %v7761
    %v7763 = vand.u32 %v3408, 4294901760
    %7764 = vmatpush1.msra.mxu0 %v7763
    %v7765 = vand.u32 %v3421, 4294901760
    %7766 = vmatprep.subr.mxu0 %v7765
    %v7767 = vand.u32 %v3420, 4294901760
    %7768 = vmatpush1.msra.mxu0 %v7767
    %v7769 = vand.u32 %v3433, 4294901760
    %7770 = vmatprep.subr.mxu0 %v7769
    %v7771 = vand.u32 %v3432, 4294901760
    %7772 = vmatpush1.msra.mxu0 %v7771
    %v7773 = vand.u32 %v3445, 4294901760
    %7774 = vmatprep.subr.mxu0 %v7773
    %v7775 = vand.u32 %v3444, 4294901760
    %7776 = vmatpush1.msra.mxu0 %v7775
    %v7777 = vand.u32 %v3457, 4294901760
    %7778 = vmatprep.subr.mxu0 %v7777
    %v7779 = vand.u32 %v3456, 4294901760
    %7780 = vmatpush1.msra.mxu0 %v7779
    %v7781 = vand.u32 %v3469, 4294901760
    %7782 = vmatprep.subr.mxu0 %v7781
    %v7783 = vand.u32 %v3468, 4294901760
    %7784 = vmatpush1.msra.mxu0 %v7783
    %v7785 = vand.u32 %v3481, 4294901760
    %7786 = vmatprep.subr.mxu0 %v7785
    %v7787 = vand.u32 %v3480, 4294901760
    %7788 = vmatpush1.msra.mxu0 %v7787
    %v7789 = vand.u32 %v3493, 4294901760
    %7790 = vmatprep.subr.mxu0 %v7789
    %v7791 = vand.u32 %v3492, 4294901760
    %7792 = vmatpush1.msra.mxu0 %v7791
    %v7793 = vand.u32 %v3505, 4294901760
    %7794 = vmatprep.subr.mxu0 %v7793
    %v7795 = vand.u32 %v3504, 4294901760
    %7796 = vmatpush1.msra.mxu0 %v7795
    %v7797 = vand.u32 %v3517, 4294901760
    %7798 = vmatprep.subr.mxu0 %v7797
    %v7799 = vand.u32 %v3516, 4294901760
    %7800 = vmatpush1.msra.mxu0 %v7799
    %v7801 = vand.u32 %v3529, 4294901760
    %7802 = vmatprep.subr.mxu0 %v7801
    %v7803 = vand.u32 %v3528, 4294901760
    %7804 = vmatpush1.msra.mxu0 %v7803
    %v7805 = vand.u32 %v3541, 4294901760
    %7806 = vmatprep.subr.mxu0 %v7805
    %v7807 = vand.u32 %v3540, 4294901760
    %7808 = vmatpush1.msra.mxu0 %v7807
    %v7809 = vand.u32 %v3553, 4294901760
    %7810 = vmatprep.subr.mxu0 %v7809
    %v7811 = vand.u32 %v3552, 4294901760
    %7812 = vmatpush1.msra.mxu0 %v7811
    %v7813 = vand.u32 %v3565, 4294901760
    %7814 = vmatprep.subr.mxu0 %v7813
    %v7815 = vand.u32 %v3564, 4294901760
    %7816 = vmatpush1.msra.mxu0 %v7815
    %v7817 = vand.u32 %v3577, 4294901760
    %7818 = vmatprep.subr.mxu0 %v7817
    %v7819 = vand.u32 %v3576, 4294901760
    %7820 = vmatpush1.msra.mxu0 %v7819
    %7821 = vmatprep.subr.mxu0 0.0
    %7822 = vmatpush1.msra.mxu0 0.0
    %7823 = vmatprep.subr.mxu0 0.0
    %7824 = vmatpush1.msra.mxu0 0.0
    %7825 = vmatprep.subr.mxu0 0.0
    %7826 = vmatpush1.msra.mxu0 0.0
    %7827 = vmatprep.subr.mxu0 0.0
    %7828 = vmatpush1.msra.mxu0 0.0
    %7829 = vmatprep.subr.mxu0 0.0
    %7830 = vmatpush1.msra.mxu0 0.0
    %7831 = vmatprep.subr.mxu0 0.0
    %7832 = vmatpush1.msra.mxu0 0.0
    %7833 = vmatprep.subr.mxu0 0.0
    %7834 = vmatpush1.msra.mxu0 0.0
    %7835 = vmatprep.subr.mxu0 0.0
    %7836 = vmatpush1.msra.mxu0 0.0
    %7837 = vmatprep.subr.mxu0 0.0
    %7838 = vmatpush1.msra.mxu0 0.0
    %7839 = vmatprep.subr.mxu0 0.0
    %7840 = vmatpush1.msra.mxu0 0.0
    %7841 = vmatprep.subr.mxu0 0.0
    %7842 = vmatpush1.msra.mxu0 0.0
    %7843 = vmatprep.subr.mxu0 0.0
    %7844 = vmatpush1.msra.mxu0 0.0
    %7845 = vmatprep.subr.mxu0 0.0
    %7846 = vmatpush1.msra.mxu0 0.0
    %7847 = vmatprep.subr.mxu0 0.0
    %7848 = vmatpush1.msra.mxu0 0.0
    %7849 = vmatprep.subr.mxu0 0.0
    %7850 = vmatpush1.msra.mxu0 0.0
    %7851 = vmatprep.subr.mxu0 0.0
    %7852 = vmatpush1.msra.mxu0 0.0
    %7853 = vmatprep.mubr.f32.mxu0 0.0
    %v7854 = vand.u32 %v3387, 4294901760
    %7855 = vmatmul.mubr.f32.gmra.mrb[0].mxu0 %v7854
    %v7856 = vpop.f32.mrb[0].mxu0
    %v7857 = vadd.f32 %v7753, %v7856
    %v7858 = vpop.f32.mrb[0].mxu0
    %v7859 = vadd.f32 %v7755, %v7858
    %7860 = vdwg.mxu0
    %v7861 = vand.u32 %v3399, 4294901760
    %7862 = vmatprep.subr.mxu0 %v7861
    %v7863 = vand.u32 %v3398, 4294901760
    %7864 = vmatpush1.msra.mxu0 %v7863
    %v7865 = vand.u32 %v3411, 4294901760
    %7866 = vmatprep.subr.mxu0 %v7865
    %v7867 = vand.u32 %v3410, 4294901760
    %7868 = vmatpush1.msra.mxu0 %v7867
    %v7869 = vand.u32 %v3423, 4294901760
    %7870 = vmatprep.subr.mxu0 %v7869
    %v7871 = vand.u32 %v3422, 4294901760
    %7872 = vmatpush1.msra.mxu0 %v7871
    %v7873 = vand.u32 %v3435, 4294901760
    %7874 = vmatprep.subr.mxu0 %v7873
    %v7875 = vand.u32 %v3434, 4294901760
    %7876 = vmatpush1.msra.mxu0 %v7875
    %v7877 = vand.u32 %v3447, 4294901760
    %7878 = vmatprep.subr.mxu0 %v7877
    %v7879 = vand.u32 %v3446, 4294901760
    %7880 = vmatpush1.msra.mxu0 %v7879
    %v7881 = vand.u32 %v3459, 4294901760
    %7882 = vmatprep.subr.mxu0 %v7881
    %v7883 = vand.u32 %v3458, 4294901760
    %7884 = vmatpush1.msra.mxu0 %v7883
    %v7885 = vand.u32 %v3471, 4294901760
    %7886 = vmatprep.subr.mxu0 %v7885
    %v7887 = vand.u32 %v3470, 4294901760
    %7888 = vmatpush1.msra.mxu0 %v7887
    %v7889 = vand.u32 %v3483, 4294901760
    %7890 = vmatprep.subr.mxu0 %v7889
    %v7891 = vand.u32 %v3482, 4294901760
    %7892 = vmatpush1.msra.mxu0 %v7891
    %v7893 = vand.u32 %v3495, 4294901760
    %7894 = vmatprep.subr.mxu0 %v7893
    %v7895 = vand.u32 %v3494, 4294901760
    %7896 = vmatpush1.msra.mxu0 %v7895
    %v7897 = vand.u32 %v3507, 4294901760
    %7898 = vmatprep.subr.mxu0 %v7897
    %v7899 = vand.u32 %v3506, 4294901760
    %7900 = vmatpush1.msra.mxu0 %v7899
    %v7901 = vand.u32 %v3519, 4294901760
    %7902 = vmatprep.subr.mxu0 %v7901
    %v7903 = vand.u32 %v3518, 4294901760
    %7904 = vmatpush1.msra.mxu0 %v7903
    %v7905 = vand.u32 %v3531, 4294901760
    %7906 = vmatprep.subr.mxu0 %v7905
    %v7907 = vand.u32 %v3530, 4294901760
    %7908 = vmatpush1.msra.mxu0 %v7907
    %v7909 = vand.u32 %v3543, 4294901760
    %7910 = vmatprep.subr.mxu0 %v7909
    %v7911 = vand.u32 %v3542, 4294901760
    %7912 = vmatpush1.msra.mxu0 %v7911
    %v7913 = vand.u32 %v3555, 4294901760
    %7914 = vmatprep.subr.mxu0 %v7913
    %v7915 = vand.u32 %v3554, 4294901760
    %7916 = vmatpush1.msra.mxu0 %v7915
    %v7917 = vand.u32 %v3567, 4294901760
    %7918 = vmatprep.subr.mxu0 %v7917
    %v7919 = vand.u32 %v3566, 4294901760
    %7920 = vmatpush1.msra.mxu0 %v7919
    %v7921 = vand.u32 %v3579, 4294901760
    %7922 = vmatprep.subr.mxu0 %v7921
    %v7923 = vand.u32 %v3578, 4294901760
    %7924 = vmatpush1.msra.mxu0 %v7923
    %7925 = vmatprep.subr.mxu0 0.0
    %7926 = vmatpush1.msra.mxu0 0.0
    %7927 = vmatprep.subr.mxu0 0.0
    %7928 = vmatpush1.msra.mxu0 0.0
    %7929 = vmatprep.subr.mxu0 0.0
    %7930 = vmatpush1.msra.mxu0 0.0
    %7931 = vmatprep.subr.mxu0 0.0
    %7932 = vmatpush1.msra.mxu0 0.0
    %7933 = vmatprep.subr.mxu0 0.0
    %7934 = vmatpush1.msra.mxu0 0.0
    %7935 = vmatprep.subr.mxu0 0.0
    %7936 = vmatpush1.msra.mxu0 0.0
    %7937 = vmatprep.subr.mxu0 0.0
    %7938 = vmatpush1.msra.mxu0 0.0
    %7939 = vmatprep.subr.mxu0 0.0
    %7940 = vmatpush1.msra.mxu0 0.0
    %7941 = vmatprep.subr.mxu0 0.0
    %7942 = vmatpush1.msra.mxu0 0.0
    %7943 = vmatprep.subr.mxu0 0.0
    %7944 = vmatpush1.msra.mxu0 0.0
    %7945 = vmatprep.subr.mxu0 0.0
    %7946 = vmatpush1.msra.mxu0 0.0
    %7947 = vmatprep.subr.mxu0 0.0
    %7948 = vmatpush1.msra.mxu0 0.0
    %7949 = vmatprep.subr.mxu0 0.0
    %7950 = vmatpush1.msra.mxu0 0.0
    %7951 = vmatprep.subr.mxu0 0.0
    %7952 = vmatpush1.msra.mxu0 0.0
    %7953 = vmatprep.subr.mxu0 0.0
    %7954 = vmatpush1.msra.mxu0 0.0
    %7955 = vmatprep.subr.mxu0 0.0
    %7956 = vmatpush1.msra.mxu0 0.0
    %7957 = vmatprep.mubr.f32.mxu0 0.0
    %v7958 = vand.u32 %v3387, 4294901760
    %v7959 = vsub.f32 %v3387, %v7958
    %v7960 = vand.u32 %v7959, 4294901760
    %v7961 = vsub.f32 %v7959, %v7960
    %v7962 = vand.u32 %v7961, 4294901760
    %7963 = vmatmul.mubr.f32.gmra.mrb[0].mxu0 %v7962
    %v7964 = vpop.f32.mrb[0].mxu0
    %v7965 = vadd.f32 %v3584, %v7964
    %v7966 = vpop.f32.mrb[0].mxu0
    %v7967 = vadd.f32 %v3584, %v7966
    %7968 = vdwg.mxu0
    %v7969 = vand.u32 %v3399, 4294901760
    %v7970 = vsub.f32 %v3399, %v7969
    %v7971 = vand.u32 %v7970, 4294901760
    %v7972 = vsub.f32 %v7970, %v7971
    %v7973 = vand.u32 %v7972, 4294901760
    %7974 = vmatprep.subr.mxu0 %v7973
    %v7975 = vand.u32 %v3398, 4294901760
    %v7976 = vsub.f32 %v3398, %v7975
    %v7977 = vand.u32 %v7976, 4294901760
    %v7978 = vsub.f32 %v7976, %v7977
    %v7979 = vand.u32 %v7978, 4294901760
    %7980 = vmatpush1.msra.mxu0 %v7979
    %v7981 = vand.u32 %v3411, 4294901760
    %v7982 = vsub.f32 %v3411, %v7981
    %v7983 = vand.u32 %v7982, 4294901760
    %v7984 = vsub.f32 %v7982, %v7983
    %v7985 = vand.u32 %v7984, 4294901760
    %7986 = vmatprep.subr.mxu0 %v7985
    %v7987 = vand.u32 %v3410, 4294901760
    %v7988 = vsub.f32 %v3410, %v7987
    %v7989 = vand.u32 %v7988, 4294901760
    %v7990 = vsub.f32 %v7988, %v7989
    %v7991 = vand.u32 %v7990, 4294901760
    %7992 = vmatpush1.msra.mxu0 %v7991
    %v7993 = vand.u32 %v3423, 4294901760
    %v7994 = vsub.f32 %v3423, %v7993
    %v7995 = vand.u32 %v7994, 4294901760
    %v7996 = vsub.f32 %v7994, %v7995
    %v7997 = vand.u32 %v7996, 4294901760
    %7998 = vmatprep.subr.mxu0 %v7997
    %v7999 = vand.u32 %v3422, 4294901760
    %v8000 = vsub.f32 %v3422, %v7999
    %v8001 = vand.u32 %v8000, 4294901760
    %v8002 = vsub.f32 %v8000, %v8001
    %v8003 = vand.u32 %v8002, 4294901760
    %8004 = vmatpush1.msra.mxu0 %v8003
    %v8005 = vand.u32 %v3435, 4294901760
    %v8006 = vsub.f32 %v3435, %v8005
    %v8007 = vand.u32 %v8006, 4294901760
    %v8008 = vsub.f32 %v8006, %v8007
    %v8009 = vand.u32 %v8008, 4294901760
    %8010 = vmatprep.subr.mxu0 %v8009
    %v8011 = vand.u32 %v3434, 4294901760
    %v8012 = vsub.f32 %v3434, %v8011
    %v8013 = vand.u32 %v8012, 4294901760
    %v8014 = vsub.f32 %v8012, %v8013
    %v8015 = vand.u32 %v8014, 4294901760
    %8016 = vmatpush1.msra.mxu0 %v8015
    %v8017 = vand.u32 %v3447, 4294901760
    %v8018 = vsub.f32 %v3447, %v8017
    %v8019 = vand.u32 %v8018, 4294901760
    %v8020 = vsub.f32 %v8018, %v8019
    %v8021 = vand.u32 %v8020, 4294901760
    %8022 = vmatprep.subr.mxu0 %v8021
    %v8023 = vand.u32 %v3446, 4294901760
    %v8024 = vsub.f32 %v3446, %v8023
    %v8025 = vand.u32 %v8024, 4294901760
    %v8026 = vsub.f32 %v8024, %v8025
    %v8027 = vand.u32 %v8026, 4294901760
    %8028 = vmatpush1.msra.mxu0 %v8027
    %v8029 = vand.u32 %v3459, 4294901760
    %v8030 = vsub.f32 %v3459, %v8029
    %v8031 = vand.u32 %v8030, 4294901760
    %v8032 = vsub.f32 %v8030, %v8031
    %v8033 = vand.u32 %v8032, 4294901760
    %8034 = vmatprep.subr.mxu0 %v8033
    %v8035 = vand.u32 %v3458, 4294901760
    %v8036 = vsub.f32 %v3458, %v8035
    %v8037 = vand.u32 %v8036, 4294901760
    %v8038 = vsub.f32 %v8036, %v8037
    %v8039 = vand.u32 %v8038, 4294901760
    %8040 = vmatpush1.msra.mxu0 %v8039
    %v8041 = vand.u32 %v3471, 4294901760
    %v8042 = vsub.f32 %v3471, %v8041
    %v8043 = vand.u32 %v8042, 4294901760
    %v8044 = vsub.f32 %v8042, %v8043
    %v8045 = vand.u32 %v8044, 4294901760
    %8046 = vmatprep.subr.mxu0 %v8045
    %v8047 = vand.u32 %v3470, 4294901760
    %v8048 = vsub.f32 %v3470, %v8047
    %v8049 = vand.u32 %v8048, 4294901760
    %v8050 = vsub.f32 %v8048, %v8049
    %v8051 = vand.u32 %v8050, 4294901760
    %8052 = vmatpush1.msra.mxu0 %v8051
    %v8053 = vand.u32 %v3483, 4294901760
    %v8054 = vsub.f32 %v3483, %v8053
    %v8055 = vand.u32 %v8054, 4294901760
    %v8056 = vsub.f32 %v8054, %v8055
    %v8057 = vand.u32 %v8056, 4294901760
    %8058 = vmatprep.subr.mxu0 %v8057
    %v8059 = vand.u32 %v3482, 4294901760
    %v8060 = vsub.f32 %v3482, %v8059
    %v8061 = vand.u32 %v8060, 4294901760
    %v8062 = vsub.f32 %v8060, %v8061
    %v8063 = vand.u32 %v8062, 4294901760
    %8064 = vmatpush1.msra.mxu0 %v8063
    %v8065 = vand.u32 %v3495, 4294901760
    %v8066 = vsub.f32 %v3495, %v8065
    %v8067 = vand.u32 %v8066, 4294901760
    %v8068 = vsub.f32 %v8066, %v8067
    %v8069 = vand.u32 %v8068, 4294901760
    %8070 = vmatprep.subr.mxu0 %v8069
    %v8071 = vand.u32 %v3494, 4294901760
    %v8072 = vsub.f32 %v3494, %v8071
    %v8073 = vand.u32 %v8072, 4294901760
    %v8074 = vsub.f32 %v8072, %v8073
    %v8075 = vand.u32 %v8074, 4294901760
    %8076 = vmatpush1.msra.mxu0 %v8075
    %v8077 = vand.u32 %v3507, 4294901760
    %v8078 = vsub.f32 %v3507, %v8077
    %v8079 = vand.u32 %v8078, 4294901760
    %v8080 = vsub.f32 %v8078, %v8079
    %v8081 = vand.u32 %v8080, 4294901760
    %8082 = vmatprep.subr.mxu0 %v8081
    %v8083 = vand.u32 %v3506, 4294901760
    %v8084 = vsub.f32 %v3506, %v8083
    %v8085 = vand.u32 %v8084, 4294901760
    %v8086 = vsub.f32 %v8084, %v8085
    %v8087 = vand.u32 %v8086, 4294901760
    %8088 = vmatpush1.msra.mxu0 %v8087
    %v8089 = vand.u32 %v3519, 4294901760
    %v8090 = vsub.f32 %v3519, %v8089
    %v8091 = vand.u32 %v8090, 4294901760
    %v8092 = vsub.f32 %v8090, %v8091
    %v8093 = vand.u32 %v8092, 4294901760
    %8094 = vmatprep.subr.mxu0 %v8093
    %v8095 = vand.u32 %v3518, 4294901760
    %v8096 = vsub.f32 %v3518, %v8095
    %v8097 = vand.u32 %v8096, 4294901760
    %v8098 = vsub.f32 %v8096, %v8097
    %v8099 = vand.u32 %v8098, 4294901760
    %8100 = vmatpush1.msra.mxu0 %v8099
    %v8101 = vand.u32 %v3531, 4294901760
    %v8102 = vsub.f32 %v3531, %v8101
    %v8103 = vand.u32 %v8102, 4294901760
    %v8104 = vsub.f32 %v8102, %v8103
    %v8105 = vand.u32 %v8104, 4294901760
    %8106 = vmatprep.subr.mxu0 %v8105
    %v8107 = vand.u32 %v3530, 4294901760
    %v8108 = vsub.f32 %v3530, %v8107
    %v8109 = vand.u32 %v8108, 4294901760
    %v8110 = vsub.f32 %v8108, %v8109
    %v8111 = vand.u32 %v8110, 4294901760
    %8112 = vmatpush1.msra.mxu0 %v8111
    %v8113 = vand.u32 %v3543, 4294901760
    %v8114 = vsub.f32 %v3543, %v8113
    %v8115 = vand.u32 %v8114, 4294901760
    %v8116 = vsub.f32 %v8114, %v8115
    %v8117 = vand.u32 %v8116, 4294901760
    %8118 = vmatprep.subr.mxu0 %v8117
    %v8119 = vand.u32 %v3542, 4294901760
    %v8120 = vsub.f32 %v3542, %v8119
    %v8121 = vand.u32 %v8120, 4294901760
    %v8122 = vsub.f32 %v8120, %v8121
    %v8123 = vand.u32 %v8122, 4294901760
    %8124 = vmatpush1.msra.mxu0 %v8123
    %v8125 = vand.u32 %v3555, 4294901760
    %v8126 = vsub.f32 %v3555, %v8125
    %v8127 = vand.u32 %v8126, 4294901760
    %v8128 = vsub.f32 %v8126, %v8127
    %v8129 = vand.u32 %v8128, 4294901760
    %8130 = vmatprep.subr.mxu0 %v8129
    %v8131 = vand.u32 %v3554, 4294901760
    %v8132 = vsub.f32 %v3554, %v8131
    %v8133 = vand.u32 %v8132, 4294901760
    %v8134 = vsub.f32 %v8132, %v8133
    %v8135 = vand.u32 %v8134, 4294901760
    %8136 = vmatpush1.msra.mxu0 %v8135
    %v8137 = vand.u32 %v3567, 4294901760
    %v8138 = vsub.f32 %v3567, %v8137
    %v8139 = vand.u32 %v8138, 4294901760
    %v8140 = vsub.f32 %v8138, %v8139
    %v8141 = vand.u32 %v8140, 4294901760
    %8142 = vmatprep.subr.mxu0 %v8141
    %v8143 = vand.u32 %v3566, 4294901760
    %v8144 = vsub.f32 %v3566, %v8143
    %v8145 = vand.u32 %v8144, 4294901760
    %v8146 = vsub.f32 %v8144, %v8145
    %v8147 = vand.u32 %v8146, 4294901760
    %8148 = vmatpush1.msra.mxu0 %v8147
    %v8149 = vand.u32 %v3579, 4294901760
    %v8150 = vsub.f32 %v3579, %v8149
    %v8151 = vand.u32 %v8150, 4294901760
    %v8152 = vsub.f32 %v8150, %v8151
    %v8153 = vand.u32 %v8152, 4294901760
    %8154 = vmatprep.subr.mxu0 %v8153
    %v8155 = vand.u32 %v3578, 4294901760
    %v8156 = vsub.f32 %v3578, %v8155
    %v8157 = vand.u32 %v8156, 4294901760
    %v8158 = vsub.f32 %v8156, %v8157
    %v8159 = vand.u32 %v8158, 4294901760
    %8160 = vmatpush1.msra.mxu0 %v8159
    %8161 = vmatprep.subr.mxu0 0.0
    %8162 = vmatpush1.msra.mxu0 0.0
    %8163 = vmatprep.subr.mxu0 0.0
    %8164 = vmatpush1.msra.mxu0 0.0
    %8165 = vmatprep.subr.mxu0 0.0
    %8166 = vmatpush1.msra.mxu0 0.0
    %8167 = vmatprep.subr.mxu0 0.0
    %8168 = vmatpush1.msra.mxu0 0.0
    %8169 = vmatprep.subr.mxu0 0.0
    %8170 = vmatpush1.msra.mxu0 0.0
    %8171 = vmatprep.subr.mxu0 0.0
    %8172 = vmatpush1.msra.mxu0 0.0
    %8173 = vmatprep.subr.mxu0 0.0
    %8174 = vmatpush1.msra.mxu0 0.0
    %8175 = vmatprep.subr.mxu0 0.0
    %8176 = vmatpush1.msra.mxu0 0.0
    %8177 = vmatprep.subr.mxu0 0.0
    %8178 = vmatpush1.msra.mxu0 0.0
    %8179 = vmatprep.subr.mxu0 0.0
    %8180 = vmatpush1.msra.mxu0 0.0
    %8181 = vmatprep.subr.mxu0 0.0
    %8182 = vmatpush1.msra.mxu0 0.0
    %8183 = vmatprep.subr.mxu0 0.0
    %8184 = vmatpush1.msra.mxu0 0.0
    %8185 = vmatprep.subr.mxu0 0.0
    %8186 = vmatpush1.msra.mxu0 0.0
    %8187 = vmatprep.subr.mxu0 0.0
    %8188 = vmatpush1.msra.mxu0 0.0
    %8189 = vmatprep.subr.mxu0 0.0
    %8190 = vmatpush1.msra.mxu0 0.0
    %8191 = vmatprep.subr.mxu0 0.0
    %8192 = vmatpush1.msra.mxu0 0.0
    %8193 = vmatprep.mubr.f32.mxu0 0.0
    %v8194 = vand.u32 %v3387, 4294901760
    %8195 = vmatmul.mubr.f32.gmra.mrb[0].mxu0 %v8194
    %v8196 = vpop.f32.mrb[0].mxu0
    %v8197 = vadd.f32 %v7965, %v8196
    %v8198 = vpop.f32.mrb[0].mxu0
    %v8199 = vadd.f32 %v7967, %v8198
    %8200 = vdwg.mxu0
    %v8201 = vand.u32 %v3399, 4294901760
    %v8202 = vsub.f32 %v3399, %v8201
    %8203 = vmatprep.subr.mxu0 %v8202
    %v8204 = vand.u32 %v3398, 4294901760
    %v8205 = vsub.f32 %v3398, %v8204
    %8206 = vmatpush1.msra.mxu0 %v8205
    %v8207 = vand.u32 %v3411, 4294901760
    %v8208 = vsub.f32 %v3411, %v8207
    %8209 = vmatprep.subr.mxu0 %v8208
    %v8210 = vand.u32 %v3410, 4294901760
    %v8211 = vsub.f32 %v3410, %v8210
    %8212 = vmatpush1.msra.mxu0 %v8211
    %v8213 = vand.u32 %v3423, 4294901760
    %v8214 = vsub.f32 %v3423, %v8213
    %8215 = vmatprep.subr.mxu0 %v8214
    %v8216 = vand.u32 %v3422, 4294901760
    %v8217 = vsub.f32 %v3422, %v8216
    %8218 = vmatpush1.msra.mxu0 %v8217
    %v8219 = vand.u32 %v3435, 4294901760
    %v8220 = vsub.f32 %v3435, %v8219
    %8221 = vmatprep.subr.mxu0 %v8220
    %v8222 = vand.u32 %v3434, 4294901760
    %v8223 = vsub.f32 %v3434, %v8222
    %8224 = vmatpush1.msra.mxu0 %v8223
    %v8225 = vand.u32 %v3447, 4294901760
    %v8226 = vsub.f32 %v3447, %v8225
    %8227 = vmatprep.subr.mxu0 %v8226
    %v8228 = vand.u32 %v3446, 4294901760
    %v8229 = vsub.f32 %v3446, %v8228
    %8230 = vmatpush1.msra.mxu0 %v8229
    %v8231 = vand.u32 %v3459, 4294901760
    %v8232 = vsub.f32 %v3459, %v8231
    %8233 = vmatprep.subr.mxu0 %v8232
    %v8234 = vand.u32 %v3458, 4294901760
    %v8235 = vsub.f32 %v3458, %v8234
    %8236 = vmatpush1.msra.mxu0 %v8235
    %v8237 = vand.u32 %v3471, 4294901760
    %v8238 = vsub.f32 %v3471, %v8237
    %8239 = vmatprep.subr.mxu0 %v8238
    %v8240 = vand.u32 %v3470, 4294901760
    %v8241 = vsub.f32 %v3470, %v8240
    %8242 = vmatpush1.msra.mxu0 %v8241
    %v8243 = vand.u32 %v3483, 4294901760
    %v8244 = vsub.f32 %v3483, %v8243
    %8245 = vmatprep.subr.mxu0 %v8244
    %v8246 = vand.u32 %v3482, 4294901760
    %v8247 = vsub.f32 %v3482, %v8246
    %8248 = vmatpush1.msra.mxu0 %v8247
    %v8249 = vand.u32 %v3495, 4294901760
    %v8250 = vsub.f32 %v3495, %v8249
    %8251 = vmatprep.subr.mxu0 %v8250
    %v8252 = vand.u32 %v3494, 4294901760
    %v8253 = vsub.f32 %v3494, %v8252
    %8254 = vmatpush1.msra.mxu0 %v8253
    %v8255 = vand.u32 %v3507, 4294901760
    %v8256 = vsub.f32 %v3507, %v8255
    %8257 = vmatprep.subr.mxu0 %v8256
    %v8258 = vand.u32 %v3506, 4294901760
    %v8259 = vsub.f32 %v3506, %v8258
    %8260 = vmatpush1.msra.mxu0 %v8259
    %v8261 = vand.u32 %v3519, 4294901760
    %v8262 = vsub.f32 %v3519, %v8261
    %8263 = vmatprep.subr.mxu0 %v8262
    %v8264 = vand.u32 %v3518, 4294901760
    %v8265 = vsub.f32 %v3518, %v8264
    %8266 = vmatpush1.msra.mxu0 %v8265
    %v8267 = vand.u32 %v3531, 4294901760
    %v8268 = vsub.f32 %v3531, %v8267
    %8269 = vmatprep.subr.mxu0 %v8268
    %v8270 = vand.u32 %v3530, 4294901760
    %v8271 = vsub.f32 %v3530, %v8270
    %8272 = vmatpush1.msra.mxu0 %v8271
    %v8273 = vand.u32 %v3543, 4294901760
    %v8274 = vsub.f32 %v3543, %v8273
    %8275 = vmatprep.subr.mxu0 %v8274
    %v8276 = vand.u32 %v3542, 4294901760
    %v8277 = vsub.f32 %v3542, %v8276
    %8278 = vmatpush1.msra.mxu0 %v8277
    %v8279 = vand.u32 %v3555, 4294901760
    %v8280 = vsub.f32 %v3555, %v8279
    %8281 = vmatprep.subr.mxu0 %v8280
    %v8282 = vand.u32 %v3554, 4294901760
    %v8283 = vsub.f32 %v3554, %v8282
    %8284 = vmatpush1.msra.mxu0 %v8283
    %v8285 = vand.u32 %v3567, 4294901760
    %v8286 = vsub.f32 %v3567, %v8285
    %8287 = vmatprep.subr.mxu0 %v8286
    %v8288 = vand.u32 %v3566, 4294901760
    %v8289 = vsub.f32 %v3566, %v8288
    %8290 = vmatpush1.msra.mxu0 %v8289
    %v8291 = vand.u32 %v3579, 4294901760
    %v8292 = vsub.f32 %v3579, %v8291
    %8293 = vmatprep.subr.mxu0 %v8292
    %v8294 = vand.u32 %v3578, 4294901760
    %v8295 = vsub.f32 %v3578, %v8294
    %8296 = vmatpush1.msra.mxu0 %v8295
    %8297 = vmatprep.subr.mxu0 0.0
    %8298 = vmatpush1.msra.mxu0 0.0
    %8299 = vmatprep.subr.mxu0 0.0
    %8300 = vmatpush1.msra.mxu0 0.0
    %8301 = vmatprep.subr.mxu0 0.0
    %8302 = vmatpush1.msra.mxu0 0.0
    %8303 = vmatprep.subr.mxu0 0.0
    %8304 = vmatpush1.msra.mxu0 0.0
    %8305 = vmatprep.subr.mxu0 0.0
    %8306 = vmatpush1.msra.mxu0 0.0
    %8307 = vmatprep.subr.mxu0 0.0
    %8308 = vmatpush1.msra.mxu0 0.0
    %8309 = vmatprep.subr.mxu0 0.0
    %8310 = vmatpush1.msra.mxu0 0.0
    %8311 = vmatprep.subr.mxu0 0.0
    %8312 = vmatpush1.msra.mxu0 0.0
    %8313 = vmatprep.subr.mxu0 0.0
    %8314 = vmatpush1.msra.mxu0 0.0
    %8315 = vmatprep.subr.mxu0 0.0
    %8316 = vmatpush1.msra.mxu0 0.0
    %8317 = vmatprep.subr.mxu0 0.0
    %8318 = vmatpush1.msra.mxu0 0.0
    %8319 = vmatprep.subr.mxu0 0.0
    %8320 = vmatpush1.msra.mxu0 0.0
    %8321 = vmatprep.subr.mxu0 0.0
    %8322 = vmatpush1.msra.mxu0 0.0
    %8323 = vmatprep.subr.mxu0 0.0
    %8324 = vmatpush1.msra.mxu0 0.0
    %8325 = vmatprep.subr.mxu0 0.0
    %8326 = vmatpush1.msra.mxu0 0.0
    %8327 = vmatprep.subr.mxu0 0.0
    %8328 = vmatpush1.msra.mxu0 0.0
    %8329 = vmatprep.mubr.f32.mxu0 0.0
    %v8330 = vand.u32 %v3387, 4294901760
    %v8331 = vsub.f32 %v3387, %v8330
    %8332 = vmatmul.mubr.f32.gmra.mrb[0].mxu0 %v8331
    %v8333 = vpop.f32.mrb[0].mxu0
    %v8334 = vadd.f32 %v8197, %v8333
    %v8335 = vpop.f32.mrb[0].mxu0
    %v8336 = vadd.f32 %v8199, %v8335
    %8337 = vdwg.mxu0
    %v8338 = vand.u32 %v3399, 4294901760
    %8339 = vmatprep.subr.mxu0 %v8338
    %v8340 = vand.u32 %v3398, 4294901760
    %8341 = vmatpush1.msra.mxu0 %v8340
    %v8342 = vand.u32 %v3411, 4294901760
    %8343 = vmatprep.subr.mxu0 %v8342
    %v8344 = vand.u32 %v3410, 4294901760
    %8345 = vmatpush1.msra.mxu0 %v8344
    %v8346 = vand.u32 %v3423, 4294901760
    %8347 = vmatprep.subr.mxu0 %v8346
    %v8348 = vand.u32 %v3422, 4294901760
    %8349 = vmatpush1.msra.mxu0 %v8348
    %v8350 = vand.u32 %v3435, 4294901760
    %8351 = vmatprep.subr.mxu0 %v8350
    %v8352 = vand.u32 %v3434, 4294901760
    %8353 = vmatpush1.msra.mxu0 %v8352
    %v8354 = vand.u32 %v3447, 4294901760
    %8355 = vmatprep.subr.mxu0 %v8354
    %v8356 = vand.u32 %v3446, 4294901760
    %8357 = vmatpush1.msra.mxu0 %v8356
    %v8358 = vand.u32 %v3459, 4294901760
    %8359 = vmatprep.subr.mxu0 %v8358
    %v8360 = vand.u32 %v3458, 4294901760
    %8361 = vmatpush1.msra.mxu0 %v8360
    %v8362 = vand.u32 %v3471, 4294901760
    %8363 = vmatprep.subr.mxu0 %v8362
    %v8364 = vand.u32 %v3470, 4294901760
    %8365 = vmatpush1.msra.mxu0 %v8364
    %v8366 = vand.u32 %v3483, 4294901760
    %8367 = vmatprep.subr.mxu0 %v8366
    %v8368 = vand.u32 %v3482, 4294901760
    %8369 = vmatpush1.msra.mxu0 %v8368
    %v8370 = vand.u32 %v3495, 4294901760
    %8371 = vmatprep.subr.mxu0 %v8370
    %v8372 = vand.u32 %v3494, 4294901760
    %8373 = vmatpush1.msra.mxu0 %v8372
    %v8374 = vand.u32 %v3507, 4294901760
    %8375 = vmatprep.subr.mxu0 %v8374
    %v8376 = vand.u32 %v3506, 4294901760
    %8377 = vmatpush1.msra.mxu0 %v8376
    %v8378 = vand.u32 %v3519, 4294901760
    %8379 = vmatprep.subr.mxu0 %v8378
    %v8380 = vand.u32 %v3518, 4294901760
    %8381 = vmatpush1.msra.mxu0 %v8380
    %v8382 = vand.u32 %v3531, 4294901760
    %8383 = vmatprep.subr.mxu0 %v8382
    %v8384 = vand.u32 %v3530, 4294901760
    %8385 = vmatpush1.msra.mxu0 %v8384
    %v8386 = vand.u32 %v3543, 4294901760
    %8387 = vmatprep.subr.mxu0 %v8386
    %v8388 = vand.u32 %v3542, 4294901760
    %8389 = vmatpush1.msra.mxu0 %v8388
    %v8390 = vand.u32 %v3555, 4294901760
    %8391 = vmatprep.subr.mxu0 %v8390
    %v8392 = vand.u32 %v3554, 4294901760
    %8393 = vmatpush1.msra.mxu0 %v8392
    %v8394 = vand.u32 %v3567, 4294901760
    %8395 = vmatprep.subr.mxu0 %v8394
    %v8396 = vand.u32 %v3566, 4294901760
    %8397 = vmatpush1.msra.mxu0 %v8396
    %v8398 = vand.u32 %v3579, 4294901760
    %8399 = vmatprep.subr.mxu0 %v8398
    %v8400 = vand.u32 %v3578, 4294901760
    %8401 = vmatpush1.msra.mxu0 %v8400
    %8402 = vmatprep.subr.mxu0 0.0
    %8403 = vmatpush1.msra.mxu0 0.0
    %8404 = vmatprep.subr.mxu0 0.0
    %8405 = vmatpush1.msra.mxu0 0.0
    %8406 = vmatprep.subr.mxu0 0.0
    %8407 = vmatpush1.msra.mxu0 0.0
    %8408 = vmatprep.subr.mxu0 0.0
    %8409 = vmatpush1.msra.mxu0 0.0
    %8410 = vmatprep.subr.mxu0 0.0
    %8411 = vmatpush1.msra.mxu0 0.0
    %8412 = vmatprep.subr.mxu0 0.0
    %8413 = vmatpush1.msra.mxu0 0.0
    %8414 = vmatprep.subr.mxu0 0.0
    %8415 = vmatpush1.msra.mxu0 0.0
    %8416 = vmatprep.subr.mxu0 0.0
    %8417 = vmatpush1.msra.mxu0 0.0
    %8418 = vmatprep.subr.mxu0 0.0
    %8419 = vmatpush1.msra.mxu0 0.0
    %8420 = vmatprep.subr.mxu0 0.0
    %8421 = vmatpush1.msra.mxu0 0.0
    %8422 = vmatprep.subr.mxu0 0.0
    %8423 = vmatpush1.msra.mxu0 0.0
    %8424 = vmatprep.subr.mxu0 0.0
    %8425 = vmatpush1.msra.mxu0 0.0
    %8426 = vmatprep.subr.mxu0 0.0
    %8427 = vmatpush1.msra.mxu0 0.0
    %8428 = vmatprep.subr.mxu0 0.0
    %8429 = vmatpush1.msra.mxu0 0.0
    %8430 = vmatprep.subr.mxu0 0.0
    %8431 = vmatpush1.msra.mxu0 0.0
    %8432 = vmatprep.subr.mxu0 0.0
    %8433 = vmatpush1.msra.mxu0 0.0
    %8434 = vmatprep.mubr.f32.mxu0 0.0
    %v8435 = vand.u32 %v3387, 4294901760
    %v8436 = vsub.f32 %v3387, %v8435
    %v8437 = vand.u32 %v8436, 4294901760
    %8438 = vmatmul.mubr.f32.gmra.mrb[0].mxu0 %v8437
    %v8439 = vpop.f32.mrb[0].mxu0
    %v8440 = vadd.f32 %v8334, %v8439
    %v8441 = vpop.f32.mrb[0].mxu0
    %v8442 = vadd.f32 %v8336, %v8441
    %8443 = vdwg.mxu0
    %v8444 = vand.u32 %v3399, 4294901760
    %v8445 = vsub.f32 %v3399, %v8444
    %v8446 = vand.u32 %v8445, 4294901760
    %8447 = vmatprep.subr.mxu0 %v8446
    %v8448 = vand.u32 %v3398, 4294901760
    %v8449 = vsub.f32 %v3398, %v8448
    %v8450 = vand.u32 %v8449, 4294901760
    %8451 = vmatpush1.msra.mxu0 %v8450
    %v8452 = vand.u32 %v3411, 4294901760
    %v8453 = vsub.f32 %v3411, %v8452
    %v8454 = vand.u32 %v8453, 4294901760
    %8455 = vmatprep.subr.mxu0 %v8454
    %v8456 = vand.u32 %v3410, 4294901760
    %v8457 = vsub.f32 %v3410, %v8456
    %v8458 = vand.u32 %v8457, 4294901760
    %8459 = vmatpush1.msra.mxu0 %v8458
    %v8460 = vand.u32 %v3423, 4294901760
    %v8461 = vsub.f32 %v3423, %v8460
    %v8462 = vand.u32 %v8461, 4294901760
    %8463 = vmatprep.subr.mxu0 %v8462
    %v8464 = vand.u32 %v3422, 4294901760
    %v8465 = vsub.f32 %v3422, %v8464
    %v8466 = vand.u32 %v8465, 4294901760
    %8467 = vmatpush1.msra.mxu0 %v8466
    %v8468 = vand.u32 %v3435, 4294901760
    %v8469 = vsub.f32 %v3435, %v8468
    %v8470 = vand.u32 %v8469, 4294901760
    %8471 = vmatprep.subr.mxu0 %v8470
    %v8472 = vand.u32 %v3434, 4294901760
    %v8473 = vsub.f32 %v3434, %v8472
    %v8474 = vand.u32 %v8473, 4294901760
    %8475 = vmatpush1.msra.mxu0 %v8474
    %v8476 = vand.u32 %v3447, 4294901760
    %v8477 = vsub.f32 %v3447, %v8476
    %v8478 = vand.u32 %v8477, 4294901760
    %8479 = vmatprep.subr.mxu0 %v8478
    %v8480 = vand.u32 %v3446, 4294901760
    %v8481 = vsub.f32 %v3446, %v8480
    %v8482 = vand.u32 %v8481, 4294901760
    %8483 = vmatpush1.msra.mxu0 %v8482
    %v8484 = vand.u32 %v3459, 4294901760
    %v8485 = vsub.f32 %v3459, %v8484
    %v8486 = vand.u32 %v8485, 4294901760
    %8487 = vmatprep.subr.mxu0 %v8486
    %v8488 = vand.u32 %v3458, 4294901760
    %v8489 = vsub.f32 %v3458, %v8488
    %v8490 = vand.u32 %v8489, 4294901760
    %8491 = vmatpush1.msra.mxu0 %v8490
    %v8492 = vand.u32 %v3471, 4294901760
    %v8493 = vsub.f32 %v3471, %v8492
    %v8494 = vand.u32 %v8493, 4294901760
    %8495 = vmatprep.subr.mxu0 %v8494
    %v8496 = vand.u32 %v3470, 4294901760
    %v8497 = vsub.f32 %v3470, %v8496
    %v8498 = vand.u32 %v8497, 4294901760
    %8499 = vmatpush1.msra.mxu0 %v8498
    %v8500 = vand.u32 %v3483, 4294901760
    %v8501 = vsub.f32 %v3483, %v8500
    %v8502 = vand.u32 %v8501, 4294901760
    %8503 = vmatprep.subr.mxu0 %v8502
    %v8504 = vand.u32 %v3482, 4294901760
    %v8505 = vsub.f32 %v3482, %v8504
    %v8506 = vand.u32 %v8505, 4294901760
    %8507 = vmatpush1.msra.mxu0 %v8506
    %v8508 = vand.u32 %v3495, 4294901760
    %v8509 = vsub.f32 %v3495, %v8508
    %v8510 = vand.u32 %v8509, 4294901760
    %8511 = vmatprep.subr.mxu0 %v8510
    %v8512 = vand.u32 %v3494, 4294901760
    %v8513 = vsub.f32 %v3494, %v8512
    %v8514 = vand.u32 %v8513, 4294901760
    %8515 = vmatpush1.msra.mxu0 %v8514
    %v8516 = vand.u32 %v3507, 4294901760
    %v8517 = vsub.f32 %v3507, %v8516
    %v8518 = vand.u32 %v8517, 4294901760
    %8519 = vmatprep.subr.mxu0 %v8518
    %v8520 = vand.u32 %v3506, 4294901760
    %v8521 = vsub.f32 %v3506, %v8520
    %v8522 = vand.u32 %v8521, 4294901760
    %8523 = vmatpush1.msra.mxu0 %v8522
    %v8524 = vand.u32 %v3519, 4294901760
    %v8525 = vsub.f32 %v3519, %v8524
    %v8526 = vand.u32 %v8525, 4294901760
    %8527 = vmatprep.subr.mxu0 %v8526
    %v8528 = vand.u32 %v3518, 4294901760
    %v8529 = vsub.f32 %v3518, %v8528
    %v8530 = vand.u32 %v8529, 4294901760
    %8531 = vmatpush1.msra.mxu0 %v8530
    %v8532 = vand.u32 %v3531, 4294901760
    %v8533 = vsub.f32 %v3531, %v8532
    %v8534 = vand.u32 %v8533, 4294901760
    %8535 = vmatprep.subr.mxu0 %v8534
    %v8536 = vand.u32 %v3530, 4294901760
    %v8537 = vsub.f32 %v3530, %v8536
    %v8538 = vand.u32 %v8537, 4294901760
    %8539 = vmatpush1.msra.mxu0 %v8538
    %v8540 = vand.u32 %v3543, 4294901760
    %v8541 = vsub.f32 %v3543, %v8540
    %v8542 = vand.u32 %v8541, 4294901760
    %8543 = vmatprep.subr.mxu0 %v8542
    %v8544 = vand.u32 %v3542, 4294901760
    %v8545 = vsub.f32 %v3542, %v8544
    %v8546 = vand.u32 %v8545, 4294901760
    %8547 = vmatpush1.msra.mxu0 %v8546
    %v8548 = vand.u32 %v3555, 4294901760
    %v8549 = vsub.f32 %v3555, %v8548
    %v8550 = vand.u32 %v8549, 4294901760
    %8551 = vmatprep.subr.mxu0 %v8550
    %v8552 = vand.u32 %v3554, 4294901760
    %v8553 = vsub.f32 %v3554, %v8552
    %v8554 = vand.u32 %v8553, 4294901760
    %8555 = vmatpush1.msra.mxu0 %v8554
    %v8556 = vand.u32 %v3567, 4294901760
    %v8557 = vsub.f32 %v3567, %v8556
    %v8558 = vand.u32 %v8557, 4294901760
    %8559 = vmatprep.subr.mxu0 %v8558
    %v8560 = vand.u32 %v3566, 4294901760
    %v8561 = vsub.f32 %v3566, %v8560
    %v8562 = vand.u32 %v8561, 4294901760
    %8563 = vmatpush1.msra.mxu0 %v8562
    %v8564 = vand.u32 %v3579, 4294901760
    %v8565 = vsub.f32 %v3579, %v8564
    %v8566 = vand.u32 %v8565, 4294901760
    %8567 = vmatprep.subr.mxu0 %v8566
    %v8568 = vand.u32 %v3578, 4294901760
    %v8569 = vsub.f32 %v3578, %v8568
    %v8570 = vand.u32 %v8569, 4294901760
    %8571 = vmatpush1.msra.mxu0 %v8570
    %8572 = vmatprep.subr.mxu0 0.0
    %8573 = vmatpush1.msra.mxu0 0.0
    %8574 = vmatprep.subr.mxu0 0.0
    %8575 = vmatpush1.msra.mxu0 0.0
    %8576 = vmatprep.subr.mxu0 0.0
    %8577 = vmatpush1.msra.mxu0 0.0
    %8578 = vmatprep.subr.mxu0 0.0
    %8579 = vmatpush1.msra.mxu0 0.0
    %8580 = vmatprep.subr.mxu0 0.0
    %8581 = vmatpush1.msra.mxu0 0.0
    %8582 = vmatprep.subr.mxu0 0.0
    %8583 = vmatpush1.msra.mxu0 0.0
    %8584 = vmatprep.subr.mxu0 0.0
    %8585 = vmatpush1.msra.mxu0 0.0
    %8586 = vmatprep.subr.mxu0 0.0
    %8587 = vmatpush1.msra.mxu0 0.0
    %8588 = vmatprep.subr.mxu0 0.0
    %8589 = vmatpush1.msra.mxu0 0.0
    %8590 = vmatprep.subr.mxu0 0.0
    %8591 = vmatpush1.msra.mxu0 0.0
    %8592 = vmatprep.subr.mxu0 0.0
    %8593 = vmatpush1.msra.mxu0 0.0
    %8594 = vmatprep.subr.mxu0 0.0
    %8595 = vmatpush1.msra.mxu0 0.0
    %8596 = vmatprep.subr.mxu0 0.0
    %8597 = vmatpush1.msra.mxu0 0.0
    %8598 = vmatprep.subr.mxu0 0.0
    %8599 = vmatpush1.msra.mxu0 0.0
    %8600 = vmatprep.subr.mxu0 0.0
    %8601 = vmatpush1.msra.mxu0 0.0
    %8602 = vmatprep.subr.mxu0 0.0
    %8603 = vmatpush1.msra.mxu0 0.0
    %8604 = vmatprep.mubr.f32.mxu0 0.0
    %v8605 = vand.u32 %v3387, 4294901760
    %8606 = vmatmul.mubr.f32.gmra.mrb[0].mxu0 %v8605
    %v8607 = vpop.f32.mrb[0].mxu0
    %v8608 = vadd.f32 %v8440, %v8607
    %v8609 = vpop.f32.mrb[0].mxu0
    %v8610 = vadd.f32 %v8442, %v8609
    %8611 = vdwg.mxu0
    %v8612 = vand.u32 %v3399, 4294901760
    %8613 = vmatprep.subr.mxu0 %v8612
    %v8614 = vand.u32 %v3398, 4294901760
    %8615 = vmatpush1.msra.mxu0 %v8614
    %v8616 = vand.u32 %v3411, 4294901760
    %8617 = vmatprep.subr.mxu0 %v8616
    %v8618 = vand.u32 %v3410, 4294901760
    %8619 = vmatpush1.msra.mxu0 %v8618
    %v8620 = vand.u32 %v3423, 4294901760
    %8621 = vmatprep.subr.mxu0 %v8620
    %v8622 = vand.u32 %v3422, 4294901760
    %8623 = vmatpush1.msra.mxu0 %v8622
    %v8624 = vand.u32 %v3435, 4294901760
    %8625 = vmatprep.subr.mxu0 %v8624
    %v8626 = vand.u32 %v3434, 4294901760
    %8627 = vmatpush1.msra.mxu0 %v8626
    %v8628 = vand.u32 %v3447, 4294901760
    %8629 = vmatprep.subr.mxu0 %v8628
    %v8630 = vand.u32 %v3446, 4294901760
    %8631 = vmatpush1.msra.mxu0 %v8630
    %v8632 = vand.u32 %v3459, 4294901760
    %8633 = vmatprep.subr.mxu0 %v8632
    %v8634 = vand.u32 %v3458, 4294901760
    %8635 = vmatpush1.msra.mxu0 %v8634
    %v8636 = vand.u32 %v3471, 4294901760
    %8637 = vmatprep.subr.mxu0 %v8636
    %v8638 = vand.u32 %v3470, 4294901760
    %8639 = vmatpush1.msra.mxu0 %v8638
    %v8640 = vand.u32 %v3483, 4294901760
    %8641 = vmatprep.subr.mxu0 %v8640
    %v8642 = vand.u32 %v3482, 4294901760
    %8643 = vmatpush1.msra.mxu0 %v8642
    %v8644 = vand.u32 %v3495, 4294901760
    %8645 = vmatprep.subr.mxu0 %v8644
    %v8646 = vand.u32 %v3494, 4294901760
    %8647 = vmatpush1.msra.mxu0 %v8646
    %v8648 = vand.u32 %v3507, 4294901760
    %8649 = vmatprep.subr.mxu0 %v8648
    %v8650 = vand.u32 %v3506, 4294901760
    %8651 = vmatpush1.msra.mxu0 %v8650
    %v8652 = vand.u32 %v3519, 4294901760
    %8653 = vmatprep.subr.mxu0 %v8652
    %v8654 = vand.u32 %v3518, 4294901760
    %8655 = vmatpush1.msra.mxu0 %v8654
    %v8656 = vand.u32 %v3531, 4294901760
    %8657 = vmatprep.subr.mxu0 %v8656
    %v8658 = vand.u32 %v3530, 4294901760
    %8659 = vmatpush1.msra.mxu0 %v8658
    %v8660 = vand.u32 %v3543, 4294901760
    %8661 = vmatprep.subr.mxu0 %v8660
    %v8662 = vand.u32 %v3542, 4294901760
    %8663 = vmatpush1.msra.mxu0 %v8662
    %v8664 = vand.u32 %v3555, 4294901760
    %8665 = vmatprep.subr.mxu0 %v8664
    %v8666 = vand.u32 %v3554, 4294901760
    %8667 = vmatpush1.msra.mxu0 %v8666
    %v8668 = vand.u32 %v3567, 4294901760
    %8669 = vmatprep.subr.mxu0 %v8668
    %v8670 = vand.u32 %v3566, 4294901760
    %8671 = vmatpush1.msra.mxu0 %v8670
    %v8672 = vand.u32 %v3579, 4294901760
    %8673 = vmatprep.subr.mxu0 %v8672
    %v8674 = vand.u32 %v3578, 4294901760
    %8675 = vmatpush1.msra.mxu0 %v8674
    %8676 = vmatprep.subr.mxu0 0.0
    %8677 = vmatpush1.msra.mxu0 0.0
    %8678 = vmatprep.subr.mxu0 0.0
    %8679 = vmatpush1.msra.mxu0 0.0
    %8680 = vmatprep.subr.mxu0 0.0
    %8681 = vmatpush1.msra.mxu0 0.0
    %8682 = vmatprep.subr.mxu0 0.0
    %8683 = vmatpush1.msra.mxu0 0.0
    %8684 = vmatprep.subr.mxu0 0.0
    %8685 = vmatpush1.msra.mxu0 0.0
    %8686 = vmatprep.subr.mxu0 0.0
    %8687 = vmatpush1.msra.mxu0 0.0
    %8688 = vmatprep.subr.mxu0 0.0
    %8689 = vmatpush1.msra.mxu0 0.0
    %8690 = vmatprep.subr.mxu0 0.0
    %8691 = vmatpush1.msra.mxu0 0.0
    %8692 = vmatprep.subr.mxu0 0.0
    %8693 = vmatpush1.msra.mxu0 0.0
    %8694 = vmatprep.subr.mxu0 0.0
    %8695 = vmatpush1.msra.mxu0 0.0
    %8696 = vmatprep.subr.mxu0 0.0
    %8697 = vmatpush1.msra.mxu0 0.0
    %8698 = vmatprep.subr.mxu0 0.0
    %8699 = vmatpush1.msra.mxu0 0.0
    %8700 = vmatprep.subr.mxu0 0.0
    %8701 = vmatpush1.msra.mxu0 0.0
    %8702 = vmatprep.subr.mxu0 0.0
    %8703 = vmatpush1.msra.mxu0 0.0
    %8704 = vmatprep.subr.mxu0 0.0
    %8705 = vmatpush1.msra.mxu0 0.0
    %8706 = vmatprep.subr.mxu0 0.0
    %8707 = vmatpush1.msra.mxu0 0.0
    %8708 = vmatprep.mubr.f32.mxu0 0.0
    %v8709 = vand.u32 %v3387, 4294901760
    %8710 = vmatmul.mubr.f32.gmra.mrb[0].mxu0 %v8709
    %v8711 = vpop.f32.mrb[0].mxu0
    %v8712 = vadd.f32 %v8608, %v8711
    %v8713 = vpop.f32.mrb[0].mxu0
    %v8714 = vadd.f32 %v8610, %v8713
    %8715 = vdwg.mxu0
    %v8716 = vmax.f32 %v4437, 0.0
    %v8717 = vmax.f32 %v4439, 0.0
    %v8718 = vmax.f32 %v5292, 0.0
    %v8719 = vmax.f32 %v5294, 0.0
    %v8720 = vmax.f32 %v6147, 0.0
    %v8721 = vmax.f32 %v6149, 0.0
    %v8722 = vmax.f32 %v7002, 0.0
    %v8723 = vmax.f32 %v7004, 0.0
    %v8724 = vmax.f32 %v7857, 0.0
    %v8725 = vmax.f32 %v7859, 0.0
    %v8726 = vmax.f32 %v8712, 0.0
    %v8727 = vmax.f32 %v8714, 0.0
    %8740 = vrot.lane.b32.xlu0 %v8716, 124
    %v8741 = vpop.permute.xlu0 %8740
    %8742 = vrot.lane.b32.xlu0 %v8717, 124
    %v8743 = vpop.permute.xlu0 %8742
    %8744 = vrot.lane.b32.xlu0 %v8718, 124
    %v8745 = vpop.permute.xlu0 %8744
    %8746 = vrot.lane.b32.xlu0 %v8719, 124
    %v8747 = vpop.permute.xlu0 %8746
    %8748 = vrot.lane.b32.xlu0 %v8720, 124
    %v8749 = vpop.permute.xlu0 %8748
    %8750 = vrot.lane.b32.xlu0 %v8721, 124
    %v8751 = vpop.permute.xlu0 %8750
    %8752 = vrot.lane.b32.xlu0 %v8722, 124
    %v8753 = vpop.permute.xlu0 %8752
    %8754 = vrot.lane.b32.xlu0 %v8723, 124
    %v8755 = vpop.permute.xlu0 %8754
    %8756 = vrot.lane.b32.xlu0 %v8724, 124
    %v8757 = vpop.permute.xlu0 %8756
    %8758 = vrot.lane.b32.xlu0 %v8725, 124
    %v8759 = vpop.permute.xlu0 %8758
    %8760 = vrot.lane.b32.xlu0 %v8726, 124
    %v8761 = vpop.permute.xlu0 %8760
    %8762 = vrot.lane.b32.xlu0 %v8727, 124
    %v8763 = vpop.permute.xlu0 %8762
    %v8764 = vsel %vm1338, %v8741, %v8743
    %v8765 = vsel %vm1338, %v8743, %v8745
    %v8766 = vsel %vm1338, %v8745, %v8747
    %v8767 = vsel %vm1338, %v8747, %v8749
    %v8768 = vsel %vm1338, %v8749, %v8751
    %v8769 = vsel %vm1338, %v8751, %v8753
    %v8770 = vsel %vm1338, %v8753, %v8755
    %v8771 = vsel %vm1338, %v8755, %v8757
    %v8772 = vsel %vm1338, %v8757, %v8759
    %v8773 = vsel %vm1338, %v8759, %v8761
    %v8774 = vsel %vm1338, %v8761, %v8763
    %v8787 = vmax.f32 %v8716, %v8764
    %v8788 = vmax.f32 %v8717, %v8765
    %v8789 = vmax.f32 %v8718, %v8766
    %v8790 = vmax.f32 %v8719, %v8767
    %v8791 = vmax.f32 %v8720, %v8768
    %v8792 = vmax.f32 %v8721, %v8769
    %v8793 = vmax.f32 %v8722, %v8770
    %v8794 = vmax.f32 %v8723, %v8771
    %v8795 = vmax.f32 %v8724, %v8772
    %v8796 = vmax.f32 %v8725, %v8773
    %v8797 = vmax.f32 %v8726, %v8774
    %v8798 = vmax.f32 %v8727, %v8763
    %8799 = vrot.lane.b32.xlu0 %v8716, 120
    %v8800 = vpop.permute.xlu0 %8799
    %8801 = vrot.lane.b32.xlu0 %v8717, 120
    %v8802 = vpop.permute.xlu0 %8801
    %8803 = vrot.lane.b32.xlu0 %v8718, 120
    %v8804 = vpop.permute.xlu0 %8803
    %8805 = vrot.lane.b32.xlu0 %v8719, 120
    %v8806 = vpop.permute.xlu0 %8805
    %8807 = vrot.lane.b32.xlu0 %v8720, 120
    %v8808 = vpop.permute.xlu0 %8807
    %8809 = vrot.lane.b32.xlu0 %v8721, 120
    %v8810 = vpop.permute.xlu0 %8809
    %8811 = vrot.lane.b32.xlu0 %v8722, 120
    %v8812 = vpop.permute.xlu0 %8811
    %8813 = vrot.lane.b32.xlu0 %v8723, 120
    %v8814 = vpop.permute.xlu0 %8813
    %8815 = vrot.lane.b32.xlu0 %v8724, 120
    %v8816 = vpop.permute.xlu0 %8815
    %8817 = vrot.lane.b32.xlu0 %v8725, 120
    %v8818 = vpop.permute.xlu0 %8817
    %8819 = vrot.lane.b32.xlu0 %v8726, 120
    %v8820 = vpop.permute.xlu0 %8819
    %8821 = vrot.lane.b32.xlu0 %v8727, 120
    %v8822 = vpop.permute.xlu0 %8821
    %v8823 = vsel %vm1051, %v8800, %v8802
    %v8824 = vsel %vm1051, %v8802, %v8804
    %v8825 = vsel %vm1051, %v8804, %v8806
    %v8826 = vsel %vm1051, %v8806, %v8808
    %v8827 = vsel %vm1051, %v8808, %v8810
    %v8828 = vsel %vm1051, %v8810, %v8812
    %v8829 = vsel %vm1051, %v8812, %v8814
    %v8830 = vsel %vm1051, %v8814, %v8816
    %v8831 = vsel %vm1051, %v8816, %v8818
    %v8832 = vsel %vm1051, %v8818, %v8820
    %v8833 = vsel %vm1051, %v8820, %v8822
    %v8846 = vmax.f32 %v8787, %v8823
    %v8847 = vmax.f32 %v8788, %v8824
    %v8848 = vmax.f32 %v8789, %v8825
    %v8849 = vmax.f32 %v8790, %v8826
    %v8850 = vmax.f32 %v8791, %v8827
    %v8851 = vmax.f32 %v8792, %v8828
    %v8852 = vmax.f32 %v8793, %v8829
    %v8853 = vmax.f32 %v8794, %v8830
    %v8854 = vmax.f32 %v8795, %v8831
    %v8855 = vmax.f32 %v8796, %v8832
    %v8856 = vmax.f32 %v8797, %v8833
    %v8857 = vmax.f32 %v8798, %v8822
    %8858 = vrot.lane.b32.xlu0 %v8716, 116
    %v8859 = vpop.permute.xlu0 %8858
    %8860 = vrot.lane.b32.xlu0 %v8717, 116
    %v8861 = vpop.permute.xlu0 %8860
    %8862 = vrot.lane.b32.xlu0 %v8718, 116
    %v8863 = vpop.permute.xlu0 %8862
    %8864 = vrot.lane.b32.xlu0 %v8719, 116
    %v8865 = vpop.permute.xlu0 %8864
    %8866 = vrot.lane.b32.xlu0 %v8720, 116
    %v8867 = vpop.permute.xlu0 %8866
    %8868 = vrot.lane.b32.xlu0 %v8721, 116
    %v8869 = vpop.permute.xlu0 %8868
    %8870 = vrot.lane.b32.xlu0 %v8722, 116
    %v8871 = vpop.permute.xlu0 %8870
    %8872 = vrot.lane.b32.xlu0 %v8723, 116
    %v8873 = vpop.permute.xlu0 %8872
    %8874 = vrot.lane.b32.xlu0 %v8724, 116
    %v8875 = vpop.permute.xlu0 %8874
    %8876 = vrot.lane.b32.xlu0 %v8725, 116
    %v8877 = vpop.permute.xlu0 %8876
    %8878 = vrot.lane.b32.xlu0 %v8726, 116
    %v8879 = vpop.permute.xlu0 %8878
    %8880 = vrot.lane.b32.xlu0 %v8727, 116
    %v8881 = vpop.permute.xlu0 %8880
    %v8882 = vsel %vm1913, %v8859, %v8861
    %v8883 = vsel %vm1913, %v8861, %v8863
    %v8884 = vsel %vm1913, %v8863, %v8865
    %v8885 = vsel %vm1913, %v8865, %v8867
    %v8886 = vsel %vm1913, %v8867, %v8869
    %v8887 = vsel %vm1913, %v8869, %v8871
    %v8888 = vsel %vm1913, %v8871, %v8873
    %v8889 = vsel %vm1913, %v8873, %v8875
    %v8890 = vsel %vm1913, %v8875, %v8877
    %v8891 = vsel %vm1913, %v8877, %v8879
    %v8892 = vsel %vm1913, %v8879, %v8881
    %v8905 = vmax.f32 %v8846, %v8882
    %v8906 = vmax.f32 %v8847, %v8883
    %v8907 = vmax.f32 %v8848, %v8884
    %v8908 = vmax.f32 %v8849, %v8885
    %v8909 = vmax.f32 %v8850, %v8886
    %v8910 = vmax.f32 %v8851, %v8887
    %v8911 = vmax.f32 %v8852, %v8888
    %v8912 = vmax.f32 %v8853, %v8889
    %v8913 = vmax.f32 %v8854, %v8890
    %v8914 = vmax.f32 %v8855, %v8891
    %v8915 = vmax.f32 %v8856, %v8892
    %v8916 = vmax.f32 %v8857, %v8881
    %v8917 = vld [vmem:[%s7] sm:$0xff]
    %v8918 = vld [vmem:[%s7 + $0x8] sm:$0xff]
    %v8919 = vld [vmem:[%s7 + $0x10] sm:$0xff]
    %v8920 = vld [vmem:[%s7 + $0x18] sm:$0xff]
    %v8921 = vld [vmem:[%s7 + $0x20] sm:$0xff]
    %v8922 = vld [vmem:[%s7 + $0x28] sm:$0xff]
    %v8923 = vld [vmem:[%s7 + $0x30] sm:$0xff]
    %v8924 = vld [vmem:[%s7 + $0x38] sm:$0xff]
    %v8925 = vld [vmem:[%s7 + $0x40] sm:$0xff]
    %v8926 = vld [vmem:[%s7 + $0x48] sm:$0xff]
    %v8927 = vld [vmem:[%s7 + $0x50] sm:$0xff]
    %v8928 = vld [vmem:[%s7 + $0x58] sm:$0xff]
    %v8929 = vld [vmem:[%s7 + $0x60] sm:$0xff]
    %v8930 = vld [vmem:[%s7 + $0x68] sm:$0xff]
    %v8931 = vld [vmem:[%s7 + $0x70] sm:$0xff]
    %v8932 = vld [vmem:[%s7 + $0x78] sm:$0xff]
    %v8933 = vld [vmem:[%s7 + $0x80] sm:$0xff]
    %v8934 = vld [vmem:[%s7 + $0x88] sm:$0xff]
    %v8935 = vld [vmem:[%s7 + $0x90] sm:$0xff]
    %v8936 = vld [vmem:[%s7 + $0x98] sm:$0xff]
    %v8937 = vld [vmem:[%s7 + $0xa0] sm:$0xff]
    %v8938 = vld [vmem:[%s7 + $0xa8] sm:$0xff]
    %v8939 = vld [vmem:[%s7 + $0xb0] sm:$0xff]
    %v8940 = vld [vmem:[%s7 + $0xb8] sm:$0xff]
    %v8941 = vld [vmem:[%s7 + $0xc0] sm:$0xff]
    %v8942 = vld [vmem:[%s7 + $0xc8] sm:$0xff]
    %v8943 = vld [vmem:[%s7 + $0xd0] sm:$0xff]
    %v8944 = vld [vmem:[%s7 + $0xd8] sm:$0xff]
    %v8945 = vld [vmem:[%s7 + $0xe0] sm:$0xff]
    %v8946 = vld [vmem:[%s7 + $0xe8] sm:$0xff]
    %v8947 = vld [vmem:[%s8] sm:$0x1]
    %v8948 = vmul.f32 %v8905, %v8917
    %v8949 = vmul.f32 %v8906, %v8918
    %v8950 = vmul.f32 %v8907, %v8919
    %v8951 = vmul.f32 %v8908, %v8920
    %v8952 = vmul.f32 %v8909, %v8921
    %v8953 = vmul.f32 %v8910, %v8922
    %v8954 = vmul.f32 %v8905, %v8923
    %v8955 = vmul.f32 %v8906, %v8924
    %v8956 = vmul.f32 %v8907, %v8925
    %v8957 = vmul.f32 %v8908, %v8926
    %v8958 = vmul.f32 %v8909, %v8927
    %v8959 = vmul.f32 %v8910, %v8928
    %v8960 = vmul.f32 %v8905, %v8929
    %v8961 = vmul.f32 %v8906, %v8930
    %v8962 = vmul.f32 %v8907, %v8931
    %v8963 = vmul.f32 %v8908, %v8932
    %v8964 = vmul.f32 %v8909, %v8933
    %v8965 = vmul.f32 %v8910, %v8934
    %v8966 = vmul.f32 %v8905, %v8935
    %v8967 = vmul.f32 %v8906, %v8936
    %v8968 = vmul.f32 %v8907, %v8937
    %v8969 = vmul.f32 %v8908, %v8938
    %v8970 = vmul.f32 %v8909, %v8939
    %v8971 = vmul.f32 %v8910, %v8940
    %v8972 = vmul.f32 %v8905, %v8941
    %v8973 = vmul.f32 %v8906, %v8942
    %v8974 = vmul.f32 %v8907, %v8943
    %v8975 = vmul.f32 %v8908, %v8944
    %v8976 = vmul.f32 %v8909, %v8945
    %v8977 = vmul.f32 %v8910, %v8946
    %v8978 = vadd.f32 %v8948, %v8949
    %v8979 = vadd.f32 %v8978, %v8950
    %v8980 = vadd.f32 %v8979, %v8951
    %v8981 = vadd.f32 %v8980, %v8952
    %v8982 = vsel %vm2396, %v8953, 0.0
    %v8983 = vadd.f32 %v8981, %v8982
    %8984 = vadd.xlane.f32.xlu0 %v8983
    %v8985 = vpop.xlane.xlu0 %8984
    %v8986 = vadd.f32 %v8954, %v8955
    %v8987 = vadd.f32 %v8986, %v8956
    %v8988 = vadd.f32 %v8987, %v8957
    %v8989 = vadd.f32 %v8988, %v8958
    %v8990 = vsel %vm2396, %v8959, 0.0
    %v8991 = vadd.f32 %v8989, %v8990
    %8992 = vadd.xlane.f32.xlu0 %v8991
    %v8993 = vpop.xlane.xlu0 %8992
    %v8994 = vadd.f32 %v8960, %v8961
    %v8995 = vadd.f32 %v8994, %v8962
    %v8996 = vadd.f32 %v8995, %v8963
    %v8997 = vadd.f32 %v8996, %v8964
    %v8998 = vsel %vm2396, %v8965, 0.0
    %v8999 = vadd.f32 %v8997, %v8998
    %9000 = vadd.xlane.f32.xlu0 %v8999
    %v9001 = vpop.xlane.xlu0 %9000
    %v9002 = vadd.f32 %v8966, %v8967
    %v9003 = vadd.f32 %v9002, %v8968
    %v9004 = vadd.f32 %v9003, %v8969
    %v9005 = vadd.f32 %v9004, %v8970
    %v9006 = vsel %vm2396, %v8971, 0.0
    %v9007 = vadd.f32 %v9005, %v9006
    %9008 = vadd.xlane.f32.xlu0 %v9007
    %v9009 = vpop.xlane.xlu0 %9008
    %v9010 = vadd.f32 %v8972, %v8973
    %v9011 = vadd.f32 %v9010, %v8974
    %v9012 = vadd.f32 %v9011, %v8975
    %v9013 = vadd.f32 %v9012, %v8976
    %v9014 = vsel %vm2396, %v8977, 0.0
    %v9015 = vadd.f32 %v9013, %v9014
    %9016 = vadd.xlane.f32.xlu0 %v9015
    %v9017 = vpop.xlane.xlu0 %9016
    %v9023 = vlaneseq
    %v9024 = vand.u32 %v9023, 127
    %v9025 = vlaneseq
    %v9026 = vshrl.u32 %v9025, 7
    %v9027 = vsub.s32 %v9024, %v9026
    %v9028 = vrot.slane %v8985, %v9027
    %v9029 = vlaneseq
    %v9030 = vshrl.u32 %v9029, 7
    %v9031 = vsub.s32 %v9024, %v9030
    %v9032 = vrot.slane %v8993, %v9031
    %v9033 = vlaneseq
    %v9034 = vshrl.u32 %v9033, 7
    %v9035 = vsub.s32 %v9024, %v9034
    %v9036 = vrot.slane %v9001, %v9035
    %v9037 = vlaneseq
    %v9038 = vshrl.u32 %v9037, 7
    %v9039 = vsub.s32 %v9024, %v9038
    %v9040 = vrot.slane %v9009, %v9039
    %v9041 = vlaneseq
    %v9042 = vshrl.u32 %v9041, 7
    %v9043 = vsub.s32 %v9024, %v9042
    %v9044 = vrot.slane %v9017, %v9043
    %vm9045 = vcmask 1041409
    %v9046 = vsel %vm9045, %v9032, %v9028
    %vm9047 = vcmask 1042434
    %v9048 = vsel %vm9047, %v9036, %v9046
    %vm9049 = vcmask 1043459
    %v9050 = vsel %vm9049, %v9040, %v9048
    %vm9051 = vcmask 1044484
    %v9052 = vsel %vm9051, %v9044, %v9050
    %vm9054 = vcmask 61440
    %v9055 = vsel %vm9054, %v9052, 0.0
    %9056 = vadd.xlane.f32.xlu0 %v9055
    %v9057 = vpop.xlane.xlu0 %9056
    %9058 = vxpose.xlu0.b32.start [1/16] %v9057, 128
    %9059 = vxpose.xlu0.b32.cont [2/16] 0.0, 128
    %9060 = vxpose.xlu0.b32.cont [3/16] 0.0, 128
    %9061 = vxpose.xlu0.b32.cont [4/16] 0.0, 128
    %9062 = vxpose.xlu0.b32.cont [5/16] 0.0, 128
    %9063 = vxpose.xlu0.b32.cont [6/16] 0.0, 128
    %9064 = vxpose.xlu0.b32.cont [7/16] 0.0, 128
    %9065 = vxpose.xlu0.b32.cont [8/16] 0.0, 128
    %9066 = vxpose.xlu0.b32.cont [9/16] 0.0, 128
    %9067 = vxpose.xlu0.b32.cont [10/16] 0.0, 128
    %9068 = vxpose.xlu0.b32.cont [11/16] 0.0, 128
    %9069 = vxpose.xlu0.b32.cont [12/16] 0.0, 128
    %9070 = vxpose.xlu0.b32.cont [13/16] 0.0, 128
    %9071 = vxpose.xlu0.b32.cont [14/16] 0.0, 128
    %9072 = vxpose.xlu0.b32.cont [15/16] 0.0, 128
    %9073 = vxpose.xlu0.b32.end [16/16] 0.0, 128
    %v9074 = vpop.trf.xlu0
    %v9075 = vpop.trf.xlu0
    %v9076 = vpop.trf.xlu0
    %v9077 = vpop.trf.xlu0
    %v9078 = vpop.trf.xlu0
    %v9079 = vpop.trf.xlu0
    %v9080 = vpop.trf.xlu0
    %v9081 = vpop.trf.xlu0
    %v9082 = vpop.trf.xlu0
    %v9083 = vpop.trf.xlu0
    %v9084 = vpop.trf.xlu0
    %v9085 = vpop.trf.xlu0
    %v9086 = vpop.trf.xlu0
    %v9087 = vpop.trf.xlu0
    %v9088 = vpop.trf.xlu0
    %v9089 = vpop.trf.xlu0
    %v9090 = vadd.f32 %v9074, %v8947
    %vm9091 = vcmask 32768
    %9092 = vst.msk [vmem:[#allocation5] sm:$0x1] %vm9091, %v9090
    %v9093 = vmul.f32 %v8911, %v8917
    %v9094 = vmul.f32 %v8912, %v8918
    %v9095 = vmul.f32 %v8913, %v8919
    %v9096 = vmul.f32 %v8914, %v8920
    %v9097 = vmul.f32 %v8915, %v8921
    %v9098 = vmul.f32 %v8916, %v8922
    %v9099 = vmul.f32 %v8911, %v8923
    %v9100 = vmul.f32 %v8912, %v8924
    %v9101 = vmul.f32 %v8913, %v8925
    %v9102 = vmul.f32 %v8914, %v8926
    %v9103 = vmul.f32 %v8915, %v8927
    %v9104 = vmul.f32 %v8916, %v8928
    %v9105 = vmul.f32 %v8911, %v8929
    %v9106 = vmul.f32 %v8912, %v8930
    %v9107 = vmul.f32 %v8913, %v8931
    %v9108 = vmul.f32 %v8914, %v8932
    %v9109 = vmul.f32 %v8915, %v8933
    %v9110 = vmul.f32 %v8916, %v8934
    %v9111 = vmul.f32 %v8911, %v8935
    %v9112 = vmul.f32 %v8912, %v8936
    %v9113 = vmul.f32 %v8913, %v8937
    %v9114 = vmul.f32 %v8914, %v8938
    %v9115 = vmul.f32 %v8915, %v8939
    %v9116 = vmul.f32 %v8916, %v8940
    %v9117 = vmul.f32 %v8911, %v8941
    %v9118 = vmul.f32 %v8912, %v8942
    %v9119 = vmul.f32 %v8913, %v8943
    %v9120 = vmul.f32 %v8914, %v8944
    %v9121 = vmul.f32 %v8915, %v8945
    %v9122 = vmul.f32 %v8916, %v8946
    %v9123 = vadd.f32 %v9093, %v9094
    %v9124 = vadd.f32 %v9123, %v9095
    %v9125 = vadd.f32 %v9124, %v9096
    %v9126 = vadd.f32 %v9125, %v9097
    %v9127 = vsel %vm2396, %v9098, 0.0
    %v9128 = vadd.f32 %v9126, %v9127
    %9129 = vadd.xlane.f32.xlu0 %v9128
    %v9130 = vpop.xlane.xlu0 %9129
    %v9131 = vadd.f32 %v9099, %v9100
    %v9132 = vadd.f32 %v9131, %v9101
    %v9133 = vadd.f32 %v9132, %v9102
    %v9134 = vadd.f32 %v9133, %v9103
    %v9135 = vsel %vm2396, %v9104, 0.0
    %v9136 = vadd.f32 %v9134, %v9135
    %9137 = vadd.xlane.f32.xlu0 %v9136
    %v9138 = vpop.xlane.xlu0 %9137
    %v9139 = vadd.f32 %v9105, %v9106
    %v9140 = vadd.f32 %v9139, %v9107
    %v9141 = vadd.f32 %v9140, %v9108
    %v9142 = vadd.f32 %v9141, %v9109
    %v9143 = vsel %vm2396, %v9110, 0.0
    %v9144 = vadd.f32 %v9142, %v9143
    %9145 = vadd.xlane.f32.xlu0 %v9144
    %v9146 = vpop.xlane.xlu0 %9145
    %v9147 = vadd.f32 %v9111, %v9112
    %v9148 = vadd.f32 %v9147, %v9113
    %v9149 = vadd.f32 %v9148, %v9114
    %v9150 = vadd.f32 %v9149, %v9115
    %v9151 = vsel %vm2396, %v9116, 0.0
    %v9152 = vadd.f32 %v9150, %v9151
    %9153 = vadd.xlane.f32.xlu0 %v9152
    %v9154 = vpop.xlane.xlu0 %9153
    %v9155 = vadd.f32 %v9117, %v9118
    %v9156 = vadd.f32 %v9155, %v9119
    %v9157 = vadd.f32 %v9156, %v9120
    %v9158 = vadd.f32 %v9157, %v9121
    %v9159 = vsel %vm2396, %v9122, 0.0
    %v9160 = vadd.f32 %v9158, %v9159
    %9161 = vadd.xlane.f32.xlu0 %v9160
    %v9162 = vpop.xlane.xlu0 %9161
    %v9168 = vlaneseq
    %v9169 = vshrl.u32 %v9168, 7
    %v9170 = vsub.s32 %v9024, %v9169
    %v9171 = vrot.slane %v9130, %v9170
    %v9172 = vlaneseq
    %v9173 = vshrl.u32 %v9172, 7
    %v9174 = vsub.s32 %v9024, %v9173
    %v9175 = vrot.slane %v9138, %v9174
    %v9176 = vlaneseq
    %v9177 = vshrl.u32 %v9176, 7
    %v9178 = vsub.s32 %v9024, %v9177
    %v9179 = vrot.slane %v9146, %v9178
    %v9180 = vlaneseq
    %v9181 = vshrl.u32 %v9180, 7
    %v9182 = vsub.s32 %v9024, %v9181
    %v9183 = vrot.slane %v9154, %v9182
    %v9184 = vlaneseq
    %v9185 = vshrl.u32 %v9184, 7
    %v9186 = vsub.s32 %v9024, %v9185
    %v9187 = vrot.slane %v9162, %v9186
    %v9188 = vsel %vm9045, %v9175, %v9171
    %v9189 = vsel %vm9047, %v9179, %v9188
    %v9190 = vsel %vm9049, %v9183, %v9189
    %v9191 = vsel %vm9051, %v9187, %v9190
    %v9193 = vsel %vm9054, %v9191, 0.0
    %9194 = vadd.xlane.f32.xlu0 %v9193
    %v9195 = vpop.xlane.xlu0 %9194
    %9196 = vxpose.xlu0.b32.start [1/16] %v9195, 128
    %9197 = vxpose.xlu0.b32.cont [2/16] 0.0, 128
    %9198 = vxpose.xlu0.b32.cont [3/16] 0.0, 128
    %9199 = vxpose.xlu0.b32.cont [4/16] 0.0, 128
    %9200 = vxpose.xlu0.b32.cont [5/16] 0.0, 128
    %9201 = vxpose.xlu0.b32.cont [6/16] 0.0, 128
    %9202 = vxpose.xlu0.b32.cont [7/16] 0.0, 128
    %9203 = vxpose.xlu0.b32.cont [8/16] 0.0, 128
    %9204 = vxpose.xlu0.b32.cont [9/16] 0.0, 128
    %9205 = vxpose.xlu0.b32.cont [10/16] 0.0, 128
    %9206 = vxpose.xlu0.b32.cont [11/16] 0.0, 128
    %9207 = vxpose.xlu0.b32.cont [12/16] 0.0, 128
    %9208 = vxpose.xlu0.b32.cont [13/16] 0.0, 128
    %9209 = vxpose.xlu0.b32.cont [14/16] 0.0, 128
    %9210 = vxpose.xlu0.b32.cont [15/16] 0.0, 128
    %9211 = vxpose.xlu0.b32.end [16/16] 0.0, 128
    %v9212 = vpop.trf.xlu0
    %v9213 = vpop.trf.xlu0
    %v9214 = vpop.trf.xlu0
    %v9215 = vpop.trf.xlu0
    %v9216 = vpop.trf.xlu0
    %v9217 = vpop.trf.xlu0
    %v9218 = vpop.trf.xlu0
    %v9219 = vpop.trf.xlu0
    %v9220 = vpop.trf.xlu0
    %v9221 = vpop.trf.xlu0
    %v9222 = vpop.trf.xlu0
    %v9223 = vpop.trf.xlu0
    %v9224 = vpop.trf.xlu0
    %v9225 = vpop.trf.xlu0
    %v9226 = vpop.trf.xlu0
    %v9227 = vpop.trf.xlu0
    %v9228 = vadd.f32 %v9212, %v8947
    %9229 = vst.msk [vmem:[#allocation5 + $0x1] sm:$0x1] %vm9091, %v9228
    // Predicated region
    $region38: #{sleep_stager_forward.1} parent=1 // pred_check
      _
    $region39: #{sleep_stager_forward.1} parent=1 // pred_check_branch
      %9231 = sbr.rel (0) target = $region41
    $region40: #{sleep_stager_forward.1} parent=1 // pred_region
      %s9233 = ssub.s32 32, 32
      %9234 = vsyncadd [#allocation6], %s9233
      %s9236 = sshll.u32 [#allocation5], 4
      %s9237 = int_to_ptr.vmem [resolvable:$true] %s9236
      %9239 = dma.vmem_to_hbm [thread:$0]  %s9237, 32, %s9, [#allocation6]
    $region41: #{sleep_stager_forward.1} parent=1 // pred_fallthru
      _
    // Predicated region
    $region42: #{sleep_stager_forward.1} parent=1 // pred_check
      _
    $region43: #{sleep_stager_forward.1} parent=1 // pred_check_branch
      %9241 = sbr.rel (0) target = $region45
    $region44: #{sleep_stager_forward.1} parent=1 // pred_region
      %9242 = dma.done [#allocation6], 32
    $region45: #{sleep_stager_forward.1} parent=1 // pred_fallthru
      _
    %9243 = vsyncpa [#allocation6], 1

</llo_original>
